<compile_context>
chip_gen: v7x
topology: tpu7x:2x2x1
jax: 0.10.0
libtpu: 0.0.40
codegen_flags: <defaults>
</compile_context>

<pallas_src>
import jax
import jax.numpy as jnp
from jax import lax
from jax.experimental import pallas as pl
from jax.experimental.pallas import tpu as pltpu

N, H, W = 2, 16, 16        # batch, spatial
M = N * H * W              # 512 output pixels
C_IN = 1                   # grayscale input
C1 = 32                    # conv1/conv2/conv4 width
C3 = 64                    # conv3 output width
C_OUT = 2                  # conv5 output channels
EPS = 1e-5


def fcn_kernel(xp_ref,
               w1_ref, b1_ref, g1_ref, be1_ref,
               w2_ref, b2_ref, g2_ref, be2_ref,
               w3_ref, b3_ref, g3_ref, be3_ref,
               w4_ref, b4_ref, g4_ref, be4_ref,
               w5_ref, b5_ref,
               o_ref, pad_ref):
    inv_m = 1.0 / float(M)

    def bn_relu_rows(y, g_ref, be_ref):
        """Train-mode BN + ReLU on (M, C); single-pass stats over axis 0."""
        s = jnp.sum(y, axis=0, keepdims=True)
        ss = jnp.sum(y * y, axis=0, keepdims=True)
        mu = s * inv_m
        var = ss * inv_m - mu * mu
        scale = g_ref[...] * lax.rsqrt(var + EPS)
        shift = be_ref[...] - mu * scale
        return jnp.maximum(y * scale + shift, 0.0)

    def bn_relu_cols(y, g_ref, be_ref):
        """Train-mode BN + ReLU on (C, M); single-pass stats over lanes."""
        s = jnp.sum(y, axis=1, keepdims=True)
        ss = jnp.sum(y * y, axis=1, keepdims=True)
        mu = s * inv_m
        var = ss * inv_m - mu * mu
        scale = g_ref[...] * lax.rsqrt(var + EPS)
        shift = be_ref[...] - mu * scale
        return jnp.maximum(y * scale + shift, 0.0)

    def im2col(h_mc):
        """(M, C1) activations -> (M, 9*C1) patch matrix via the padded scratch."""
        pad_ref[:, 1:H + 1, 1:W + 1, :] = h_mc.reshape(N, H, W, C1)
        cols = [pad_ref[:, ky:ky + H, kx:kx + W, :].reshape(M, C1)
                for ky in range(3) for kx in range(3)]
        return jnp.concatenate(cols, axis=-1)

    # Zero only the 1-pixel border of the padded scratch (once); every im2col()
    # call fully overwrites the interior before reading it.
    pad_ref[:, 0:1, :, :] = jnp.zeros((N, 1, W + 2, C1), jnp.float32)
    pad_ref[:, H + 1:H + 2, :, :] = jnp.zeros((N, 1, W + 2, C1), jnp.float32)
    pad_ref[:, :, 0:1, :] = jnp.zeros((N, H + 2, 1, C1), jnp.float32)
    pad_ref[:, :, W + 1:W + 2, :] = jnp.zeros((N, H + 2, 1, C1), jnp.float32)

    # ---- conv1 (3x3, 1->32): wrapper pre-im2col'ed input -> (M, 9) x (9, 32)
    h = jnp.dot(xp_ref[...], w1_ref[...], preferred_element_type=jnp.float32)
    h = bn_relu_rows(h + b1_ref[...], g1_ref, be1_ref)                    # (M, 32)

    # ---- conv2 (3x3, 32->32): single im2col matmul, K = 288
    h = jnp.dot(im2col(h), w2_ref[...], preferred_element_type=jnp.float32)
    h = bn_relu_rows(h + b2_ref[...], g2_ref, be2_ref)                    # (M, 32)

    # ---- conv3 (3x3, 32->64): single im2col matmul, K = 288
    h = jnp.dot(im2col(h), w3_ref[...], preferred_element_type=jnp.float32)
    h = bn_relu_rows(h + b3_ref[...], g3_ref, be3_ref)                    # (M, 64)

    # ---- conv4 (1x1, 64->32) in transposed (C, M) layout; the transpose of h
    # is folded into the contraction (both operands contract their last dim).
    ht = lax.dot_general(w4_ref[...], h, (((1,), (1,)), ((), ())),
                         preferred_element_type=jnp.float32)              # (32, M)
    ht = bn_relu_cols(ht + b4_ref[...], g4_ref, be4_ref)

    # ---- conv5 (1x1, 32->2), no BN / activation; lane-dense (2, M) store.
    o_ref[...] = jnp.dot(w5_ref[...], ht,
                         preferred_element_type=jnp.float32) + b5_ref[...]


def init_params(key):
    """Deterministic init mimicking PyTorch default Conv2d / BatchNorm2d init."""
    ks = jax.random.split(key, 10)

    def uni(k, shape, fan_in):
        bound = 1.0 / jnp.sqrt(float(fan_in))
        return jax.random.uniform(k, shape, jnp.float32, -bound, bound)

    # conv1: 1 -> 32, 3x3.  HWIO (3,3,1,32) -> (9, 32) im2col weight.
    w1 = uni(ks[0], (3, 3, C_IN, C1), 9 * C_IN).reshape(9 * C_IN, C1)
    b1 = uni(ks[1], (1, C1), 9 * C_IN)
    # conv2: 32 -> 32, 3x3.  (288, 32)
    w2 = uni(ks[2], (3, 3, C1, C1), 9 * C1).reshape(9 * C1, C1)
    b2 = uni(ks[3], (1, C1), 9 * C1)
    # conv3: 32 -> 64, 3x3.  (288, 64)
    w3 = uni(ks[4], (3, 3, C1, C3), 9 * C1).reshape(9 * C1, C3)
    b3 = uni(ks[5], (1, C3), 9 * C1)
    # conv4: 64 -> 32, 1x1.  Stored as (Cout, Cin) for the (C, M) layout.
    w4 = uni(ks[6], (C1, C3), C3)
    b4 = uni(ks[7], (C1, 1), C3)
    # conv5: 32 -> 2, 1x1.   Stored as (Cout, Cin).
    w5 = uni(ks[8], (C_OUT, C1), C1)
    b5 = uni(ks[9], (C_OUT, 1), C1)

    def bn_row(c):  # PyTorch default: gamma=1, beta=0
        return jnp.ones((1, c), jnp.float32), jnp.zeros((1, c), jnp.float32)

    def bn_col(c):
        return jnp.ones((c, 1), jnp.float32), jnp.zeros((c, 1), jnp.float32)

    g1, be1 = bn_row(C1)
    g2, be2 = bn_row(C1)
    g3, be3 = bn_row(C3)
    g4, be4 = bn_col(C1)

    return (w1, b1, g1, be1, w2, b2, g2, be2, w3, b3, g3, be3,
            w4, b4, g4, be4, w5, b5)


@jax.jit
def fcn_net1_forward(x_nchw, params):
    # conv1 im2col in the wrapper (layout plumbing only): (N,1,H,W) -> (M, 9).
    x = x_nchw[:, 0, :, :].astype(jnp.float32)
    xpad = jnp.pad(x, ((0, 0), (1, 1), (1, 1)))
    x_patches = jnp.concatenate(
        [xpad[:, ky:ky + H, kx:kx + W].reshape(M, 1)
         for ky in range(3) for kx in range(3)], axis=-1)                 # (M, 9)

    vmem = pl.BlockSpec(memory_space=pltpu.MemorySpace.VMEM)
    n_in = 1 + len(params)

    flops = 2 * M * (9 * C_IN * C1 + 9 * C1 * C1 + 9 * C1 * C3
                     + C3 * C1 + C1 * C_OUT)
    bytes_accessed = 4 * (M * 9 + C_OUT * M
                          + sum(p.size for p in jax.tree_util.tree_leaves(params)))

    out_cm = pl.pallas_call(
        fcn_kernel,
        out_shape=jax.ShapeDtypeStruct((C_OUT, M), jnp.float32),
        in_specs=[vmem] * n_in,
        out_specs=vmem,
        scratch_shapes=[pltpu.VMEM((N, H + 2, W + 2, C1), jnp.float32)],
        compiler_params=pltpu.CompilerParams(vmem_limit_bytes=8 << 20),
        cost_estimate=pl.CostEstimate(flops=flops,
                                      transcendentals=3 * C1 + C3,
                                      bytes_accessed=bytes_accessed),
    )(x_patches, *params)

    # Lane-dense (C_OUT, N*H*W) kernel output -> NCHW like the PyTorch module.
    return jnp.transpose(out_cm.reshape(C_OUT, N, H, W), (1, 0, 2, 3))


if __name__ == "__main__":
    key = jax.random.PRNGKey(0)
    k_x, k_p = jax.random.split(key)
    x = jax.random.normal(k_x, (N, C_IN, H, W), jnp.float32)   # NCHW like PyTorch
    params = init_params(k_p)

    out = fcn_net1_forward(x, params)
    jax.block_until_ready(out)
    assert out.shape == (N, C_OUT, H, W), out.shape
    print("KERNEL_OK")
</pallas_src>

<mosaic_0001>
module attributes {stable_mosaic.version = 11 : i64} {
  func.func @fcn_kernel(%arg0: memref<512x9xf32, #tpu.memory_space<vmem>>, %arg1: memref<9x32xf32, #tpu.memory_space<vmem>>, %arg2: memref<1x32xf32, #tpu.memory_space<vmem>>, %arg3: memref<1x32xf32, #tpu.memory_space<vmem>>, %arg4: memref<1x32xf32, #tpu.memory_space<vmem>>, %arg5: memref<288x32xf32, #tpu.memory_space<vmem>>, %arg6: memref<1x32xf32, #tpu.memory_space<vmem>>, %arg7: memref<1x32xf32, #tpu.memory_space<vmem>>, %arg8: memref<1x32xf32, #tpu.memory_space<vmem>>, %arg9: memref<288x64xf32, #tpu.memory_space<vmem>>, %arg10: memref<1x64xf32, #tpu.memory_space<vmem>>, %arg11: memref<1x64xf32, #tpu.memory_space<vmem>>, %arg12: memref<1x64xf32, #tpu.memory_space<vmem>>, %arg13: memref<32x64xf32, #tpu.memory_space<vmem>>, %arg14: memref<32x1xf32, #tpu.memory_space<vmem>>, %arg15: memref<32x1xf32, #tpu.memory_space<vmem>>, %arg16: memref<32x1xf32, #tpu.memory_space<vmem>>, %arg17: memref<2x32xf32, #tpu.memory_space<vmem>>, %arg18: memref<2x1xf32, #tpu.memory_space<vmem>>, %arg19: memref<2x512xf32, #tpu.memory_space<vmem>>, %arg20: memref<2x18x18x32xf32, #tpu.memory_space<vmem>>) attributes {dimension_semantics = [], scalar_prefetch = 0 : i64, scratch_operands = 1 : i64, tpu.core_type = #tpu.core_type<tc>} {
    %cst = arith.constant 0.000000e+00 : f32
    %0 = vector.broadcast %cst : f32 to vector<2x1x18x32xf32>
    %c0 = arith.constant 0 : index
    %c0_0 = arith.constant 0 : index
    %c0_1 = arith.constant 0 : index
    %c0_2 = arith.constant 0 : index
    %1 = vector.load %arg20[%c0, %c0_0, %c0_1, %c0_2] : memref<2x18x18x32xf32, #tpu.memory_space<vmem>>, vector<2x1x18x32xf32>
    tpu.vector_store %arg20[%c0, %c0_0, %c0_1, %c0_2], %0 {strides = array<i32>} : memref<2x18x18x32xf32, #tpu.memory_space<vmem>>, vector<2x1x18x32xf32>,
    %cst_3 = arith.constant 0.000000e+00 : f32
    %2 = vector.broadcast %cst_3 : f32 to vector<2x1x18x32xf32>
    %c0_4 = arith.constant 0 : index
    %c17 = arith.constant 17 : index
    %c0_5 = arith.constant 0 : index
    %c0_6 = arith.constant 0 : index
    %3 = vector.load %arg20[%c0_4, %c17, %c0_5, %c0_6] : memref<2x18x18x32xf32, #tpu.memory_space<vmem>>, vector<2x1x18x32xf32>
    tpu.vector_store %arg20[%c0_4, %c17, %c0_5, %c0_6], %2 {strides = array<i32>} : memref<2x18x18x32xf32, #tpu.memory_space<vmem>>, vector<2x1x18x32xf32>,
    %cst_7 = arith.constant 0.000000e+00 : f32
    %4 = vector.broadcast %cst_7 : f32 to vector<2x18x1x32xf32>
    %c0_8 = arith.constant 0 : index
    %c0_9 = arith.constant 0 : index
    %c0_10 = arith.constant 0 : index
    %c0_11 = arith.constant 0 : index
    %5 = vector.load %arg20[%c0_8, %c0_9, %c0_10, %c0_11] : memref<2x18x18x32xf32, #tpu.memory_space<vmem>>, vector<2x18x1x32xf32>
    tpu.vector_store %arg20[%c0_8, %c0_9, %c0_10, %c0_11], %4 {strides = array<i32>} : memref<2x18x18x32xf32, #tpu.memory_space<vmem>>, vector<2x18x1x32xf32>,
    %cst_12 = arith.constant 0.000000e+00 : f32
    %6 = vector.broadcast %cst_12 : f32 to vector<2x18x1x32xf32>
    %c0_13 = arith.constant 0 : index
    %c0_14 = arith.constant 0 : index
    %c17_15 = arith.constant 17 : index
    %c0_16 = arith.constant 0 : index
    %7 = vector.load %arg20[%c0_13, %c0_14, %c17_15, %c0_16] : memref<2x18x18x32xf32, #tpu.memory_space<vmem>>, vector<2x18x1x32xf32>
    tpu.vector_store %arg20[%c0_13, %c0_14, %c17_15, %c0_16], %6 {strides = array<i32>} : memref<2x18x18x32xf32, #tpu.memory_space<vmem>>, vector<2x18x1x32xf32>,
    %c0_17 = arith.constant 0 : index
    %c0_18 = arith.constant 0 : index
    %8 = vector.load %arg0[%c0_17, %c0_18] : memref<512x9xf32, #tpu.memory_space<vmem>>, vector<512x9xf32>
    %c0_19 = arith.constant 0 : index
    %c0_20 = arith.constant 0 : index
    %9 = vector.load %arg1[%c0_19, %c0_20] : memref<9x32xf32, #tpu.memory_space<vmem>>, vector<9x32xf32>
    %cst_21 = arith.constant dense<0.000000e+00> : vector<512x32xf32>
    %10 = tpu.matmul %8, %9, %cst_21 {dimension_numbers = #tpu.dot_dimension_numbers<[1], [0], [0], [1], [0, 0, 1, 1], [], []>} : vector<512x9xf32>, vector<9x32xf32>, vector<512x32xf32> -> vector<512x32xf32>
    %c0_22 = arith.constant 0 : index
    %c0_23 = arith.constant 0 : index
    %11 = vector.load %arg2[%c0_22, %c0_23] : memref<1x32xf32, #tpu.memory_space<vmem>>, vector<1x32xf32>
    %12 = vector.broadcast %11 : vector<1x32xf32> to vector<512x32xf32>
    %13 = arith.addf %10, %12 : vector<512x32xf32>
    %cst_24 = arith.constant dense<0.000000e+00> : vector<32xf32>
    %14 = vector.multi_reduction <add>, %13, %cst_24 [0] : vector<512x32xf32> to vector<32xf32>
    %15 = vector.shape_cast %14 : vector<32xf32> to vector<1x32xf32>
    %16 = arith.mulf %13, %13 : vector<512x32xf32>
    %cst_25 = arith.constant dense<0.000000e+00> : vector<32xf32>
    %17 = vector.multi_reduction <add>, %16, %cst_25 [0] : vector<512x32xf32> to vector<32xf32>
    %18 = vector.shape_cast %17 : vector<32xf32> to vector<1x32xf32>
    %cst_26 = arith.constant 0.001953125 : f32
    %19 = vector.broadcast %cst_26 : f32 to vector<1x32xf32>
    %20 = arith.mulf %15, %19 : vector<1x32xf32>
    %cst_27 = arith.constant 0.001953125 : f32
    %21 = vector.broadcast %cst_27 : f32 to vector<1x32xf32>
    %22 = arith.mulf %18, %21 : vector<1x32xf32>
    %23 = arith.mulf %20, %20 : vector<1x32xf32>
    %24 = arith.subf %22, %23 : vector<1x32xf32>
    %c0_28 = arith.constant 0 : index
    %c0_29 = arith.constant 0 : index
    %25 = vector.load %arg3[%c0_28, %c0_29] : memref<1x32xf32, #tpu.memory_space<vmem>>, vector<1x32xf32>
    %cst_30 = arith.constant 9.99999974E-6 : f32
    %26 = vector.broadcast %cst_30 : f32 to vector<1x32xf32>
    %27 = arith.addf %24, %26 : vector<1x32xf32>
    %28 = math.rsqrt %27 : vector<1x32xf32>
    %29 = arith.mulf %25, %28 : vector<1x32xf32>
    %c0_31 = arith.constant 0 : index
    %c0_32 = arith.constant 0 : index
    %30 = vector.load %arg4[%c0_31, %c0_32] : memref<1x32xf32, #tpu.memory_space<vmem>>, vector<1x32xf32>
    %31 = arith.mulf %20, %29 : vector<1x32xf32>
    %32 = arith.subf %30, %31 : vector<1x32xf32>
    %33 = vector.broadcast %29 : vector<1x32xf32> to vector<512x32xf32>
    %34 = arith.mulf %13, %33 : vector<512x32xf32>
    %35 = vector.broadcast %32 : vector<1x32xf32> to vector<512x32xf32>
    %36 = arith.addf %34, %35 : vector<512x32xf32>
    %cst_33 = arith.constant 0.000000e+00 : f32
    %37 = vector.broadcast %cst_33 : f32 to vector<512x32xf32>
    %38 = arith.maximumf %36, %37 : vector<512x32xf32>
    %39 = vector.shape_cast %38 : vector<512x32xf32> to vector<2x16x16x32xf32>
    %c0_34 = arith.constant 0 : index
    %c1 = arith.constant 1 : index
    %c1_35 = arith.constant 1 : index
    %c0_36 = arith.constant 0 : index
    %40 = vector.load %arg20[%c0_34, %c1, %c1_35, %c0_36] : memref<2x18x18x32xf32, #tpu.memory_space<vmem>>, vector<2x16x16x32xf32>
    tpu.vector_store %arg20[%c0_34, %c1, %c1_35, %c0_36], %39 {strides = array<i32>} : memref<2x18x18x32xf32, #tpu.memory_space<vmem>>, vector<2x16x16x32xf32>,
    %c0_37 = arith.constant 0 : index
    %c0_38 = arith.constant 0 : index
    %c0_39 = arith.constant 0 : index
    %c0_40 = arith.constant 0 : index
    %41 = vector.load %arg20[%c0_37, %c0_38, %c0_39, %c0_40] : memref<2x18x18x32xf32, #tpu.memory_space<vmem>>, vector<2x16x16x32xf32>
    %42 = vector.shape_cast %41 : vector<2x16x16x32xf32> to vector<512x32xf32>
    %c0_41 = arith.constant 0 : index
    %c0_42 = arith.constant 0 : index
    %c1_43 = arith.constant 1 : index
    %c0_44 = arith.constant 0 : index
    %43 = vector.load %arg20[%c0_41, %c0_42, %c1_43, %c0_44] : memref<2x18x18x32xf32, #tpu.memory_space<vmem>>, vector<2x16x16x32xf32>
    %44 = vector.shape_cast %43 : vector<2x16x16x32xf32> to vector<512x32xf32>
    %c0_45 = arith.constant 0 : index
    %c0_46 = arith.constant 0 : index
    %c2 = arith.constant 2 : index
    %c0_47 = arith.constant 0 : index
    %45 = vector.load %arg20[%c0_45, %c0_46, %c2, %c0_47] : memref<2x18x18x32xf32, #tpu.memory_space<vmem>>, vector<2x16x16x32xf32>
    %46 = vector.shape_cast %45 : vector<2x16x16x32xf32> to vector<512x32xf32>
    %c0_48 = arith.constant 0 : index
    %c1_49 = arith.constant 1 : index
    %c0_50 = arith.constant 0 : index
    %c0_51 = arith.constant 0 : index
    %47 = vector.load %arg20[%c0_48, %c1_49, %c0_50, %c0_51] : memref<2x18x18x32xf32, #tpu.memory_space<vmem>>, vector<2x16x16x32xf32>
    %48 = vector.shape_cast %47 : vector<2x16x16x32xf32> to vector<512x32xf32>
    %c0_52 = arith.constant 0 : index
    %c1_53 = arith.constant 1 : index
    %c1_54 = arith.constant 1 : index
    %c0_55 = arith.constant 0 : index
    %49 = vector.load %arg20[%c0_52, %c1_53, %c1_54, %c0_55] : memref<2x18x18x32xf32, #tpu.memory_space<vmem>>, vector<2x16x16x32xf32>
    %50 = vector.shape_cast %49 : vector<2x16x16x32xf32> to vector<512x32xf32>
    %c0_56 = arith.constant 0 : index
    %c1_57 = arith.constant 1 : index
    %c2_58 = arith.constant 2 : index
    %c0_59 = arith.constant 0 : index
    %51 = vector.load %arg20[%c0_56, %c1_57, %c2_58, %c0_59] : memref<2x18x18x32xf32, #tpu.memory_space<vmem>>, vector<2x16x16x32xf32>
    %52 = vector.shape_cast %51 : vector<2x16x16x32xf32> to vector<512x32xf32>
    %c0_60 = arith.constant 0 : index
    %c2_61 = arith.constant 2 : index
    %c0_62 = arith.constant 0 : index
    %c0_63 = arith.constant 0 : index
    %53 = vector.load %arg20[%c0_60, %c2_61, %c0_62, %c0_63] : memref<2x18x18x32xf32, #tpu.memory_space<vmem>>, vector<2x16x16x32xf32>
    %54 = vector.shape_cast %53 : vector<2x16x16x32xf32> to vector<512x32xf32>
    %c0_64 = arith.constant 0 : index
    %c2_65 = arith.constant 2 : index
    %c1_66 = arith.constant 1 : index
    %c0_67 = arith.constant 0 : index
    %55 = vector.load %arg20[%c0_64, %c2_65, %c1_66, %c0_67] : memref<2x18x18x32xf32, #tpu.memory_space<vmem>>, vector<2x16x16x32xf32>
    %56 = vector.shape_cast %55 : vector<2x16x16x32xf32> to vector<512x32xf32>
    %c0_68 = arith.constant 0 : index
    %c2_69 = arith.constant 2 : index
    %c2_70 = arith.constant 2 : index
    %c0_71 = arith.constant 0 : index
    %57 = vector.load %arg20[%c0_68, %c2_69, %c2_70, %c0_71] : memref<2x18x18x32xf32, #tpu.memory_space<vmem>>, vector<2x16x16x32xf32>
    %58 = vector.shape_cast %57 : vector<2x16x16x32xf32> to vector<512x32xf32>
    %59 = tpu.concatenate %42, %44, %46, %48, %50, %52, %54, %56, %58 in 1 : vector<512x32xf32>, vector<512x32xf32>, vector<512x32xf32>, vector<512x32xf32>, vector<512x32xf32>, vector<512x32xf32>, vector<512x32xf32>, vector<512x32xf32>, vector<512x32xf32> -> vector<512x288xf32>
    %c0_72 = arith.constant 0 : index
    %c0_73 = arith.constant 0 : index
    %60 = vector.load %arg5[%c0_72, %c0_73] : memref<288x32xf32, #tpu.memory_space<vmem>>, vector<288x32xf32>
    %cst_74 = arith.constant dense<0.000000e+00> : vector<512x32xf32>
    %61 = tpu.matmul %59, %60, %cst_74 {dimension_numbers = #tpu.dot_dimension_numbers<[1], [0], [0], [1], [0, 0, 1, 1], [], []>} : vector<512x288xf32>, vector<288x32xf32>, vector<512x32xf32> -> vector<512x32xf32>
    %c0_75 = arith.constant 0 : index
    %c0_76 = arith.constant 0 : index
    %62 = vector.load %arg6[%c0_75, %c0_76] : memref<1x32xf32, #tpu.memory_space<vmem>>, vector<1x32xf32>
    %63 = vector.broadcast %62 : vector<1x32xf32> to vector<512x32xf32>
    %64 = arith.addf %61, %63 : vector<512x32xf32>
    %cst_77 = arith.constant dense<0.000000e+00> : vector<32xf32>
    %65 = vector.multi_reduction <add>, %64, %cst_77 [0] : vector<512x32xf32> to vector<32xf32>
    %66 = vector.shape_cast %65 : vector<32xf32> to vector<1x32xf32>
    %67 = arith.mulf %64, %64 : vector<512x32xf32>
    %cst_78 = arith.constant dense<0.000000e+00> : vector<32xf32>
    %68 = vector.multi_reduction <add>, %67, %cst_78 [0] : vector<512x32xf32> to vector<32xf32>
    %69 = vector.shape_cast %68 : vector<32xf32> to vector<1x32xf32>
    %cst_79 = arith.constant 0.001953125 : f32
    %70 = vector.broadcast %cst_79 : f32 to vector<1x32xf32>
    %71 = arith.mulf %66, %70 : vector<1x32xf32>
    %cst_80 = arith.constant 0.001953125 : f32
    %72 = vector.broadcast %cst_80 : f32 to vector<1x32xf32>
    %73 = arith.mulf %69, %72 : vector<1x32xf32>
    %74 = arith.mulf %71, %71 : vector<1x32xf32>
    %75 = arith.subf %73, %74 : vector<1x32xf32>
    %c0_81 = arith.constant 0 : index
    %c0_82 = arith.constant 0 : index
    %76 = vector.load %arg7[%c0_81, %c0_82] : memref<1x32xf32, #tpu.memory_space<vmem>>, vector<1x32xf32>
    %cst_83 = arith.constant 9.99999974E-6 : f32
    %77 = vector.broadcast %cst_83 : f32 to vector<1x32xf32>
    %78 = arith.addf %75, %77 : vector<1x32xf32>
    %79 = math.rsqrt %78 : vector<1x32xf32>
    %80 = arith.mulf %76, %79 : vector<1x32xf32>
    %c0_84 = arith.constant 0 : index
    %c0_85 = arith.constant 0 : index
    %81 = vector.load %arg8[%c0_84, %c0_85] : memref<1x32xf32, #tpu.memory_space<vmem>>, vector<1x32xf32>
    %82 = arith.mulf %71, %80 : vector<1x32xf32>
    %83 = arith.subf %81, %82 : vector<1x32xf32>
    %84 = vector.broadcast %80 : vector<1x32xf32> to vector<512x32xf32>
    %85 = arith.mulf %64, %84 : vector<512x32xf32>
    %86 = vector.broadcast %83 : vector<1x32xf32> to vector<512x32xf32>
    %87 = arith.addf %85, %86 : vector<512x32xf32>
    %cst_86 = arith.constant 0.000000e+00 : f32
    %88 = vector.broadcast %cst_86 : f32 to vector<512x32xf32>
    %89 = arith.maximumf %87, %88 : vector<512x32xf32>
    %90 = vector.shape_cast %89 : vector<512x32xf32> to vector<2x16x16x32xf32>
    %c0_87 = arith.constant 0 : index
    %c1_88 = arith.constant 1 : index
    %c1_89 = arith.constant 1 : index
    %c0_90 = arith.constant 0 : index
    %91 = vector.load %arg20[%c0_87, %c1_88, %c1_89, %c0_90] : memref<2x18x18x32xf32, #tpu.memory_space<vmem>>, vector<2x16x16x32xf32>
    tpu.vector_store %arg20[%c0_87, %c1_88, %c1_89, %c0_90], %90 {strides = array<i32>} : memref<2x18x18x32xf32, #tpu.memory_space<vmem>>, vector<2x16x16x32xf32>,
    %c0_91 = arith.constant 0 : index
    %c0_92 = arith.constant 0 : index
    %c0_93 = arith.constant 0 : index
    %c0_94 = arith.constant 0 : index
    %92 = vector.load %arg20[%c0_91, %c0_92, %c0_93, %c0_94] : memref<2x18x18x32xf32, #tpu.memory_space<vmem>>, vector<2x16x16x32xf32>
    %93 = vector.shape_cast %92 : vector<2x16x16x32xf32> to vector<512x32xf32>
    %c0_95 = arith.constant 0 : index
    %c0_96 = arith.constant 0 : index
    %c1_97 = arith.constant 1 : index
    %c0_98 = arith.constant 0 : index
    %94 = vector.load %arg20[%c0_95, %c0_96, %c1_97, %c0_98] : memref<2x18x18x32xf32, #tpu.memory_space<vmem>>, vector<2x16x16x32xf32>
    %95 = vector.shape_cast %94 : vector<2x16x16x32xf32> to vector<512x32xf32>
    %c0_99 = arith.constant 0 : index
    %c0_100 = arith.constant 0 : index
    %c2_101 = arith.constant 2 : index
    %c0_102 = arith.constant 0 : index
    %96 = vector.load %arg20[%c0_99, %c0_100, %c2_101, %c0_102] : memref<2x18x18x32xf32, #tpu.memory_space<vmem>>, vector<2x16x16x32xf32>
    %97 = vector.shape_cast %96 : vector<2x16x16x32xf32> to vector<512x32xf32>
    %c0_103 = arith.constant 0 : index
    %c1_104 = arith.constant 1 : index
    %c0_105 = arith.constant 0 : index
    %c0_106 = arith.constant 0 : index
    %98 = vector.load %arg20[%c0_103, %c1_104, %c0_105, %c0_106] : memref<2x18x18x32xf32, #tpu.memory_space<vmem>>, vector<2x16x16x32xf32>
    %99 = vector.shape_cast %98 : vector<2x16x16x32xf32> to vector<512x32xf32>
    %c0_107 = arith.constant 0 : index
    %c1_108 = arith.constant 1 : index
    %c1_109 = arith.constant 1 : index
    %c0_110 = arith.constant 0 : index
    %100 = vector.load %arg20[%c0_107, %c1_108, %c1_109, %c0_110] : memref<2x18x18x32xf32, #tpu.memory_space<vmem>>, vector<2x16x16x32xf32>
    %101 = vector.shape_cast %100 : vector<2x16x16x32xf32> to vector<512x32xf32>
    %c0_111 = arith.constant 0 : index
    %c1_112 = arith.constant 1 : index
    %c2_113 = arith.constant 2 : index
    %c0_114 = arith.constant 0 : index
    %102 = vector.load %arg20[%c0_111, %c1_112, %c2_113, %c0_114] : memref<2x18x18x32xf32, #tpu.memory_space<vmem>>, vector<2x16x16x32xf32>
    %103 = vector.shape_cast %102 : vector<2x16x16x32xf32> to vector<512x32xf32>
    %c0_115 = arith.constant 0 : index
    %c2_116 = arith.constant 2 : index
    %c0_117 = arith.constant 0 : index
    %c0_118 = arith.constant 0 : index
    %104 = vector.load %arg20[%c0_115, %c2_116, %c0_117, %c0_118] : memref<2x18x18x32xf32, #tpu.memory_space<vmem>>, vector<2x16x16x32xf32>
    %105 = vector.shape_cast %104 : vector<2x16x16x32xf32> to vector<512x32xf32>
    %c0_119 = arith.constant 0 : index
    %c2_120 = arith.constant 2 : index
    %c1_121 = arith.constant 1 : index
    %c0_122 = arith.constant 0 : index
    %106 = vector.load %arg20[%c0_119, %c2_120, %c1_121, %c0_122] : memref<2x18x18x32xf32, #tpu.memory_space<vmem>>, vector<2x16x16x32xf32>
    %107 = vector.shape_cast %106 : vector<2x16x16x32xf32> to vector<512x32xf32>
    %c0_123 = arith.constant 0 : index
    %c2_124 = arith.constant 2 : index
    %c2_125 = arith.constant 2 : index
    %c0_126 = arith.constant 0 : index
    %108 = vector.load %arg20[%c0_123, %c2_124, %c2_125, %c0_126] : memref<2x18x18x32xf32, #tpu.memory_space<vmem>>, vector<2x16x16x32xf32>
    %109 = vector.shape_cast %108 : vector<2x16x16x32xf32> to vector<512x32xf32>
    %110 = tpu.concatenate %93, %95, %97, %99, %101, %103, %105, %107, %109 in 1 : vector<512x32xf32>, vector<512x32xf32>, vector<512x32xf32>, vector<512x32xf32>, vector<512x32xf32>, vector<512x32xf32>, vector<512x32xf32>, vector<512x32xf32>, vector<512x32xf32> -> vector<512x288xf32>
    %c0_127 = arith.constant 0 : index
    %c0_128 = arith.constant 0 : index
    %111 = vector.load %arg9[%c0_127, %c0_128] : memref<288x64xf32, #tpu.memory_space<vmem>>, vector<288x64xf32>
    %cst_129 = arith.constant dense<0.000000e+00> : vector<512x64xf32>
    %112 = tpu.matmul %110, %111, %cst_129 {dimension_numbers = #tpu.dot_dimension_numbers<[1], [0], [0], [1], [0, 0, 1, 1], [], []>} : vector<512x288xf32>, vector<288x64xf32>, vector<512x64xf32> -> vector<512x64xf32>
    %c0_130 = arith.constant 0 : index
    %c0_131 = arith.constant 0 : index
    %113 = vector.load %arg10[%c0_130, %c0_131] : memref<1x64xf32, #tpu.memory_space<vmem>>, vector<1x64xf32>
    %114 = vector.broadcast %113 : vector<1x64xf32> to vector<512x64xf32>
    %115 = arith.addf %112, %114 : vector<512x64xf32>
    %cst_132 = arith.constant dense<0.000000e+00> : vector<64xf32>
    %116 = vector.multi_reduction <add>, %115, %cst_132 [0] : vector<512x64xf32> to vector<64xf32>
    %117 = vector.shape_cast %116 : vector<64xf32> to vector<1x64xf32>
    %118 = arith.mulf %115, %115 : vector<512x64xf32>
    %cst_133 = arith.constant dense<0.000000e+00> : vector<64xf32>
    %119 = vector.multi_reduction <add>, %118, %cst_133 [0] : vector<512x64xf32> to vector<64xf32>
    %120 = vector.shape_cast %119 : vector<64xf32> to vector<1x64xf32>
    %cst_134 = arith.constant 0.001953125 : f32
    %121 = vector.broadcast %cst_134 : f32 to vector<1x64xf32>
    %122 = arith.mulf %117, %121 : vector<1x64xf32>
    %cst_135 = arith.constant 0.001953125 : f32
    %123 = vector.broadcast %cst_135 : f32 to vector<1x64xf32>
    %124 = arith.mulf %120, %123 : vector<1x64xf32>
    %125 = arith.mulf %122, %122 : vector<1x64xf32>
    %126 = arith.subf %124, %125 : vector<1x64xf32>
    %c0_136 = arith.constant 0 : index
    %c0_137 = arith.constant 0 : index
    %127 = vector.load %arg11[%c0_136, %c0_137] : memref<1x64xf32, #tpu.memory_space<vmem>>, vector<1x64xf32>
    %cst_138 = arith.constant 9.99999974E-6 : f32
    %128 = vector.broadcast %cst_138 : f32 to vector<1x64xf32>
    %129 = arith.addf %126, %128 : vector<1x64xf32>
    %130 = math.rsqrt %129 : vector<1x64xf32>
    %131 = arith.mulf %127, %130 : vector<1x64xf32>
    %c0_139 = arith.constant 0 : index
    %c0_140 = arith.constant 0 : index
    %132 = vector.load %arg12[%c0_139, %c0_140] : memref<1x64xf32, #tpu.memory_space<vmem>>, vector<1x64xf32>
    %133 = arith.mulf %122, %131 : vector<1x64xf32>
    %134 = arith.subf %132, %133 : vector<1x64xf32>
    %135 = vector.broadcast %131 : vector<1x64xf32> to vector<512x64xf32>
    %136 = arith.mulf %115, %135 : vector<512x64xf32>
    %137 = vector.broadcast %134 : vector<1x64xf32> to vector<512x64xf32>
    %138 = arith.addf %136, %137 : vector<512x64xf32>
    %cst_141 = arith.constant 0.000000e+00 : f32
    %139 = vector.broadcast %cst_141 : f32 to vector<512x64xf32>
    %140 = arith.maximumf %138, %139 : vector<512x64xf32>
    %c0_142 = arith.constant 0 : index
    %c0_143 = arith.constant 0 : index
    %141 = vector.load %arg13[%c0_142, %c0_143] : memref<32x64xf32, #tpu.memory_space<vmem>>, vector<32x64xf32>
    %cst_144 = arith.constant dense<0.000000e+00> : vector<32x512xf32>
    %142 = tpu.matmul %141, %140, %cst_144 {dimension_numbers = #tpu.dot_dimension_numbers<[1], [1], [0], [0], [0, 0, 1, 0], [], []>} : vector<32x64xf32>, vector<512x64xf32>, vector<32x512xf32> -> vector<32x512xf32>
    %c0_145 = arith.constant 0 : index
    %c0_146 = arith.constant 0 : index
    %143 = vector.load %arg14[%c0_145, %c0_146] : memref<32x1xf32, #tpu.memory_space<vmem>>, vector<32x1xf32>
    %144 = vector.broadcast %143 : vector<32x1xf32> to vector<32x512xf32>
    %145 = arith.addf %142, %144 : vector<32x512xf32>
    %cst_147 = arith.constant dense<0.000000e+00> : vector<32xf32>
    %146 = vector.multi_reduction <add>, %145, %cst_147 [1] : vector<32x512xf32> to vector<32xf32>
    %147 = vector.shape_cast %146 : vector<32xf32> to vector<32x1xf32>
    %148 = arith.mulf %145, %145 : vector<32x512xf32>
    %cst_148 = arith.constant dense<0.000000e+00> : vector<32xf32>
    %149 = vector.multi_reduction <add>, %148, %cst_148 [1] : vector<32x512xf32> to vector<32xf32>
    %150 = vector.shape_cast %149 : vector<32xf32> to vector<32x1xf32>
    %cst_149 = arith.constant 0.001953125 : f32
    %151 = vector.broadcast %cst_149 : f32 to vector<32x1xf32>
    %152 = arith.mulf %147, %151 : vector<32x1xf32>
    %cst_150 = arith.constant 0.001953125 : f32
    %153 = vector.broadcast %cst_150 : f32 to vector<32x1xf32>
    %154 = arith.mulf %150, %153 : vector<32x1xf32>
    %155 = arith.mulf %152, %152 : vector<32x1xf32>
    %156 = arith.subf %154, %155 : vector<32x1xf32>
    %c0_151 = arith.constant 0 : index
    %c0_152 = arith.constant 0 : index
    %157 = vector.load %arg15[%c0_151, %c0_152] : memref<32x1xf32, #tpu.memory_space<vmem>>, vector<32x1xf32>
    %cst_153 = arith.constant 9.99999974E-6 : f32
    %158 = vector.broadcast %cst_153 : f32 to vector<32x1xf32>
    %159 = arith.addf %156, %158 : vector<32x1xf32>
    %160 = math.rsqrt %159 : vector<32x1xf32>
    %161 = arith.mulf %157, %160 : vector<32x1xf32>
    %c0_154 = arith.constant 0 : index
    %c0_155 = arith.constant 0 : index
    %162 = vector.load %arg16[%c0_154, %c0_155] : memref<32x1xf32, #tpu.memory_space<vmem>>, vector<32x1xf32>
    %163 = arith.mulf %152, %161 : vector<32x1xf32>
    %164 = arith.subf %162, %163 : vector<32x1xf32>
    %165 = vector.broadcast %161 : vector<32x1xf32> to vector<32x512xf32>
    %166 = arith.mulf %145, %165 : vector<32x512xf32>
    %167 = vector.broadcast %164 : vector<32x1xf32> to vector<32x512xf32>
    %168 = arith.addf %166, %167 : vector<32x512xf32>
    %cst_156 = arith.constant 0.000000e+00 : f32
    %169 = vector.broadcast %cst_156 : f32 to vector<32x512xf32>
    %170 = arith.maximumf %168, %169 : vector<32x512xf32>
    %c0_157 = arith.constant 0 : index
    %c0_158 = arith.constant 0 : index
    %171 = vector.load %arg17[%c0_157, %c0_158] : memref<2x32xf32, #tpu.memory_space<vmem>>, vector<2x32xf32>
    %cst_159 = arith.constant dense<0.000000e+00> : vector<2x512xf32>
    %172 = tpu.matmul %171, %170, %cst_159 {dimension_numbers = #tpu.dot_dimension_numbers<[1], [0], [0], [1], [0, 0, 1, 1], [], []>} : vector<2x32xf32>, vector<32x512xf32>, vector<2x512xf32> -> vector<2x512xf32>
    %c0_160 = arith.constant 0 : index
    %c0_161 = arith.constant 0 : index
    %173 = vector.load %arg18[%c0_160, %c0_161] : memref<2x1xf32, #tpu.memory_space<vmem>>, vector<2x1xf32>
    %174 = vector.broadcast %173 : vector<2x1xf32> to vector<2x512xf32>
    %175 = arith.addf %172, %174 : vector<2x512xf32>
    %c0_162 = arith.constant 0 : index
    %c0_163 = arith.constant 0 : index
    %176 = vector.load %arg19[%c0_162, %c0_163] : memref<2x512xf32, #tpu.memory_space<vmem>>, vector<2x512xf32>
    tpu.vector_store %arg19[%c0_162, %c0_163], %175 {strides = array<i32>} : memref<2x512xf32, #tpu.memory_space<vmem>>, vector<2x512xf32>,
    return
  }
}

</mosaic_0001>

<llo_original>
// kernel: fcn_net1_forward.1
$region0: #{fcn_net1_forward.1}
  #allocation0 [shape = 'u32[]', space=smem, size = 0x4, offset = 0x4, fixed_abs, tag = 'smem constant byte address 0x4 - core index']
  #allocation1 [shape = 'u32[144,128]{1,0:T(1,128)}', space=vmem, size = 0x12000, scoped, tag = 'internal scratch']
  #allocation2 [shape = 'f32[2,18,18,32]{3,2,1,0:T(8,128)}', space=vmem, size = 0x6c000, scoped, tag = 'scratch operand']
  %s0 = inlined_call_operand.vmem [shape: f32[512,9], index: 0, kind: input, shape index: {}]
  %s1 = inlined_call_operand.vmem [shape: f32[9,32], index: 1, kind: input, shape index: {}]
  %s2 = inlined_call_operand.vmem [shape: f32[1,32], index: 2, kind: input, shape index: {}]
  %s3 = inlined_call_operand.vmem [shape: f32[1,32], index: 3, kind: input, shape index: {}]
  %s4 = inlined_call_operand.vmem [shape: f32[1,32], index: 4, kind: input, shape index: {}]
  %s5 = inlined_call_operand.vmem [shape: f32[288,32], index: 5, kind: input, shape index: {}]
  %s6 = inlined_call_operand.vmem [shape: f32[1,32], index: 6, kind: input, shape index: {}]
  %s7 = inlined_call_operand.vmem [shape: f32[1,32], index: 7, kind: input, shape index: {}]
  %s8 = inlined_call_operand.vmem [shape: f32[1,32], index: 8, kind: input, shape index: {}]
  %s9 = inlined_call_operand.vmem [shape: f32[288,64], index: 9, kind: input, shape index: {}]
  %s10 = inlined_call_operand.vmem [shape: f32[1,64], index: 10, kind: input, shape index: {}]
  %s11 = inlined_call_operand.vmem [shape: f32[1,64], index: 11, kind: input, shape index: {}]
  %s12 = inlined_call_operand.vmem [shape: f32[1,64], index: 12, kind: input, shape index: {}]
  %s13 = inlined_call_operand.vmem [shape: f32[32,64], index: 13, kind: input, shape index: {}]
  %s14 = inlined_call_operand.vmem [shape: f32[32,1], index: 14, kind: input, shape index: {}]
  %s15 = inlined_call_operand.vmem [shape: f32[32,1], index: 15, kind: input, shape index: {}]
  %s16 = inlined_call_operand.vmem [shape: f32[32,1], index: 16, kind: input, shape index: {}]
  %s17 = inlined_call_operand.vmem [shape: f32[2,32], index: 17, kind: input, shape index: {}]
  %s18 = inlined_call_operand.vmem [shape: f32[2,1], index: 18, kind: input, shape index: {}]
  %s19 = inlined_call_operand.vmem [shape: f32[2,512], index: 19, kind: output, shape index: {}]
  %s20 = sld [smem:[#allocation0]]
  $region86: #{fcn_net1_forward.1} parent=0
    _
  %s22 = ssub.s32 1, %s20
  %s23 = scalar_select 0, %s22, %s20
  // Predicated region
  $region2: #{fcn_net1_forward.1} parent=0 // pred_check
    _
  $region3: #{fcn_net1_forward.1} parent=0 // pred_check_branch
    %25 = sbr.rel (0) target = $region5
  $region4: #{fcn_net1_forward.1} parent=0 // pred_region
    _
  $region5: #{fcn_net1_forward.1} parent=0 // pred_fallthru
    _
  // Predicated region
  $region6: #{fcn_net1_forward.1} parent=0 // pred_check
    _
  $region7: #{fcn_net1_forward.1} parent=0 // pred_check_branch
    %27 = sbr.rel (0) target = $region9
  $region8: #{fcn_net1_forward.1} parent=0 // pred_region
    _
  $region9: #{fcn_net1_forward.1} parent=0 // pred_fallthru
    _
  // Predicated region
  $region10: #{fcn_net1_forward.1} parent=0 // pred_check
    _
  $region11: #{fcn_net1_forward.1} parent=0 // pred_check_branch
    %29 = sbr.rel (0) target = $region13
  $region12: #{fcn_net1_forward.1} parent=0 // pred_region
    _
  $region13: #{fcn_net1_forward.1} parent=0 // pred_fallthru
    _
  // Predicated region
  $region14: #{fcn_net1_forward.1} parent=0 // pred_check
    _
  $region15: #{fcn_net1_forward.1} parent=0 // pred_check_branch
    %31 = sbr.rel (0) target = $region17
  $region16: #{fcn_net1_forward.1} parent=0 // pred_region
    _
  $region17: #{fcn_net1_forward.1} parent=0 // pred_fallthru
    _
  // Predicated region
  $region18: #{fcn_net1_forward.1} parent=0 // pred_check
    _
  $region19: #{fcn_net1_forward.1} parent=0 // pred_check_branch
    %33 = sbr.rel (0) target = $region21
  $region20: #{fcn_net1_forward.1} parent=0 // pred_region
    _
  $region21: #{fcn_net1_forward.1} parent=0 // pred_fallthru
    _
  // Predicated region
  $region22: #{fcn_net1_forward.1} parent=0 // pred_check
    _
  $region23: #{fcn_net1_forward.1} parent=0 // pred_check_branch
    %35 = sbr.rel (0) target = $region25
  $region24: #{fcn_net1_forward.1} parent=0 // pred_region
    _
  $region25: #{fcn_net1_forward.1} parent=0 // pred_fallthru
    _
  // Predicated region
  $region26: #{fcn_net1_forward.1} parent=0 // pred_check
    _
  $region27: #{fcn_net1_forward.1} parent=0 // pred_check_branch
    %37 = sbr.rel (0) target = $region29
  $region28: #{fcn_net1_forward.1} parent=0 // pred_region
    _
  $region29: #{fcn_net1_forward.1} parent=0 // pred_fallthru
    _
  // Predicated region
  $region30: #{fcn_net1_forward.1} parent=0 // pred_check
    _
  $region31: #{fcn_net1_forward.1} parent=0 // pred_check_branch
    %39 = sbr.rel (0) target = $region33
  $region32: #{fcn_net1_forward.1} parent=0 // pred_region
    _
  $region33: #{fcn_net1_forward.1} parent=0 // pred_fallthru
    _
  // Predicated region
  $region34: #{fcn_net1_forward.1} parent=0 // pred_check
    _
  $region35: #{fcn_net1_forward.1} parent=0 // pred_check_branch
    %41 = sbr.rel (0) target = $region37
  $region36: #{fcn_net1_forward.1} parent=0 // pred_region
    _
  $region37: #{fcn_net1_forward.1} parent=0 // pred_fallthru
    _
  // Predicated region
  $region38: #{fcn_net1_forward.1} parent=0 // pred_check
    _
  $region39: #{fcn_net1_forward.1} parent=0 // pred_check_branch
    %43 = sbr.rel (0) target = $region41
  $region40: #{fcn_net1_forward.1} parent=0 // pred_region
    _
  $region41: #{fcn_net1_forward.1} parent=0 // pred_fallthru
    _
  // Predicated region
  $region42: #{fcn_net1_forward.1} parent=0 // pred_check
    _
  $region43: #{fcn_net1_forward.1} parent=0 // pred_check_branch
    %45 = sbr.rel (0) target = $region45
  $region44: #{fcn_net1_forward.1} parent=0 // pred_region
    _
  $region45: #{fcn_net1_forward.1} parent=0 // pred_fallthru
    _
  // Predicated region
  $region46: #{fcn_net1_forward.1} parent=0 // pred_check
    _
  $region47: #{fcn_net1_forward.1} parent=0 // pred_check_branch
    %47 = sbr.rel (0) target = $region49
  $region48: #{fcn_net1_forward.1} parent=0 // pred_region
    _
  $region49: #{fcn_net1_forward.1} parent=0 // pred_fallthru
    _
  // Predicated region
  $region50: #{fcn_net1_forward.1} parent=0 // pred_check
    _
  $region51: #{fcn_net1_forward.1} parent=0 // pred_check_branch
    %49 = sbr.rel (0) target = $region53
  $region52: #{fcn_net1_forward.1} parent=0 // pred_region
    _
  $region53: #{fcn_net1_forward.1} parent=0 // pred_fallthru
    _
  // Predicated region
  $region54: #{fcn_net1_forward.1} parent=0 // pred_check
    _
  $region55: #{fcn_net1_forward.1} parent=0 // pred_check_branch
    %51 = sbr.rel (0) target = $region57
  $region56: #{fcn_net1_forward.1} parent=0 // pred_region
    _
  $region57: #{fcn_net1_forward.1} parent=0 // pred_fallthru
    _
  // Predicated region
  $region58: #{fcn_net1_forward.1} parent=0 // pred_check
    _
  $region59: #{fcn_net1_forward.1} parent=0 // pred_check_branch
    %53 = sbr.rel (0) target = $region61
  $region60: #{fcn_net1_forward.1} parent=0 // pred_region
    _
  $region61: #{fcn_net1_forward.1} parent=0 // pred_fallthru
    _
  // Predicated region
  $region62: #{fcn_net1_forward.1} parent=0 // pred_check
    _
  $region63: #{fcn_net1_forward.1} parent=0 // pred_check_branch
    %55 = sbr.rel (0) target = $region65
  $region64: #{fcn_net1_forward.1} parent=0 // pred_region
    _
  $region65: #{fcn_net1_forward.1} parent=0 // pred_fallthru
    _
  // Predicated region
  $region66: #{fcn_net1_forward.1} parent=0 // pred_check
    _
  $region67: #{fcn_net1_forward.1} parent=0 // pred_check_branch
    %57 = sbr.rel (0) target = $region69
  $region68: #{fcn_net1_forward.1} parent=0 // pred_region
    _
  $region69: #{fcn_net1_forward.1} parent=0 // pred_fallthru
    _
  // Predicated region
  $region70: #{fcn_net1_forward.1} parent=0 // pred_check
    _
  $region71: #{fcn_net1_forward.1} parent=0 // pred_check_branch
    %59 = sbr.rel (0) target = $region73
  $region72: #{fcn_net1_forward.1} parent=0 // pred_region
    _
  $region73: #{fcn_net1_forward.1} parent=0 // pred_fallthru
    _
  // Predicated region
  $region74: #{fcn_net1_forward.1} parent=0 // pred_check
    _
  $region75: #{fcn_net1_forward.1} parent=0 // pred_check_branch
    %61 = sbr.rel (0) target = $region77
  $region76: #{fcn_net1_forward.1} parent=0 // pred_region
    _
  $region77: #{fcn_net1_forward.1} parent=0 // pred_fallthru
    _
  %vm62 = vcmask 261120
  %63 = vst.msk [vmem:[#allocation2] sm:$0xff] %vm62, 0.0
  %64 = vst.msk [vmem:[#allocation2 + $0x8] sm:$0xff] %vm62, 0.0
  %vm65 = vcmask 254976
  %66 = vst.msk [vmem:[#allocation2 + $0x10] sm:$0x3] %vm65, 0.0
  %67 = vst.msk [vmem:[#allocation2 + $0x1b0] sm:$0xff] %vm62, 0.0
  %68 = vst.msk [vmem:[#allocation2 + $0x1b8] sm:$0xff] %vm62, 0.0
  %69 = vst.msk [vmem:[#allocation2 + $0x1c0] sm:$0x3] %vm65, 0.0
  %s70 = scalar_lea.vmem [#allocation2], 408
  %71 = vst.msk [vmem:[%s70] sm:$0xff] %vm62, 0.0
  %72 = vst.msk [vmem:[%s70 + $0x8] sm:$0xff] %vm62, 0.0
  %73 = vst.msk [vmem:[%s70 + $0x10] sm:$0x3] %vm65, 0.0
  %74 = vst.msk [vmem:[%s70 + $0x1b0] sm:$0xff] %vm62, 0.0
  %75 = vst.msk [vmem:[%s70 + $0x1b8] sm:$0xff] %vm62, 0.0
  %76 = vst.msk [vmem:[%s70 + $0x1c0] sm:$0x3] %vm65, 0.0
  %vm77 = vcmask 253952
  %78 = vst.msk [vmem:[#allocation2] sm:$0x1] %vm77, 0.0
  %79 = vst.msk [vmem:[#allocation2 + $0x18] sm:$0x1] %vm77, 0.0
  %80 = vst.msk [vmem:[#allocation2 + $0x30] sm:$0x1] %vm77, 0.0
  %81 = vst.msk [vmem:[#allocation2 + $0x48] sm:$0x1] %vm77, 0.0
  %82 = vst.msk [vmem:[#allocation2 + $0x60] sm:$0x1] %vm77, 0.0
  %83 = vst.msk [vmem:[#allocation2 + $0x78] sm:$0x1] %vm77, 0.0
  %84 = vst.msk [vmem:[#allocation2 + $0x90] sm:$0x1] %vm77, 0.0
  %85 = vst.msk [vmem:[#allocation2 + $0xa8] sm:$0x1] %vm77, 0.0
  %86 = vst.msk [vmem:[#allocation2 + $0xc0] sm:$0x1] %vm77, 0.0
  %87 = vst.msk [vmem:[#allocation2 + $0xd8] sm:$0x1] %vm77, 0.0
  %88 = vst.msk [vmem:[#allocation2 + $0xf0] sm:$0x1] %vm77, 0.0
  %89 = vst.msk [vmem:[#allocation2 + $0x108] sm:$0x1] %vm77, 0.0
  %90 = vst.msk [vmem:[#allocation2 + $0x120] sm:$0x1] %vm77, 0.0
  %91 = vst.msk [vmem:[#allocation2 + $0x138] sm:$0x1] %vm77, 0.0
  %92 = vst.msk [vmem:[#allocation2 + $0x150] sm:$0x1] %vm77, 0.0
  %93 = vst.msk [vmem:[#allocation2 + $0x168] sm:$0x1] %vm77, 0.0
  %94 = vst.msk [vmem:[#allocation2 + $0x180] sm:$0x1] %vm77, 0.0
  %95 = vst.msk [vmem:[#allocation2 + $0x198] sm:$0x1] %vm77, 0.0
  %96 = vst.msk [vmem:[#allocation2 + $0x1b0] sm:$0x1] %vm77, 0.0
  %97 = vst.msk [vmem:[#allocation2 + $0x1c8] sm:$0x1] %vm77, 0.0
  %98 = vst.msk [vmem:[#allocation2 + $0x1e0] sm:$0x1] %vm77, 0.0
  %99 = vst.msk [vmem:[#allocation2 + $0x1f8] sm:$0x1] %vm77, 0.0
  %100 = vst.msk [vmem:[#allocation2 + $0x210] sm:$0x1] %vm77, 0.0
  %101 = vst.msk [vmem:[#allocation2 + $0x228] sm:$0x1] %vm77, 0.0
  %102 = vst.msk [vmem:[#allocation2 + $0x240] sm:$0x1] %vm77, 0.0
  %103 = vst.msk [vmem:[#allocation2 + $0x258] sm:$0x1] %vm77, 0.0
  %104 = vst.msk [vmem:[#allocation2 + $0x270] sm:$0x1] %vm77, 0.0
  %105 = vst.msk [vmem:[#allocation2 + $0x288] sm:$0x1] %vm77, 0.0
  %106 = vst.msk [vmem:[#allocation2 + $0x2a0] sm:$0x1] %vm77, 0.0
  %107 = vst.msk [vmem:[#allocation2 + $0x2b8] sm:$0x1] %vm77, 0.0
  %108 = vst.msk [vmem:[#allocation2 + $0x2d0] sm:$0x1] %vm77, 0.0
  %109 = vst.msk [vmem:[#allocation2 + $0x2e8] sm:$0x1] %vm77, 0.0
  %110 = vst.msk [vmem:[#allocation2 + $0x300] sm:$0x1] %vm77, 0.0
  %111 = vst.msk [vmem:[#allocation2 + $0x318] sm:$0x1] %vm77, 0.0
  %112 = vst.msk [vmem:[#allocation2 + $0x330] sm:$0x1] %vm77, 0.0
  %113 = vst.msk [vmem:[#allocation2 + $0x348] sm:$0x1] %vm77, 0.0
  %114 = vst.msk [vmem:[#allocation2 + $0x11] sm:$0x1] %vm77, 0.0
  %115 = vst.msk [vmem:[#allocation2 + $0x29] sm:$0x1] %vm77, 0.0
  %116 = vst.msk [vmem:[#allocation2 + $0x41] sm:$0x1] %vm77, 0.0
  %117 = vst.msk [vmem:[#allocation2 + $0x59] sm:$0x1] %vm77, 0.0
  %118 = vst.msk [vmem:[#allocation2 + $0x71] sm:$0x1] %vm77, 0.0
  %119 = vst.msk [vmem:[#allocation2 + $0x89] sm:$0x1] %vm77, 0.0
  %120 = vst.msk [vmem:[#allocation2 + $0xa1] sm:$0x1] %vm77, 0.0
  %121 = vst.msk [vmem:[#allocation2 + $0xb9] sm:$0x1] %vm77, 0.0
  %122 = vst.msk [vmem:[#allocation2 + $0xd1] sm:$0x1] %vm77, 0.0
  %123 = vst.msk [vmem:[#allocation2 + $0xe9] sm:$0x1] %vm77, 0.0
  %124 = vst.msk [vmem:[#allocation2 + $0x101] sm:$0x1] %vm77, 0.0
  %125 = vst.msk [vmem:[#allocation2 + $0x119] sm:$0x1] %vm77, 0.0
  %126 = vst.msk [vmem:[#allocation2 + $0x131] sm:$0x1] %vm77, 0.0
  %127 = vst.msk [vmem:[#allocation2 + $0x149] sm:$0x1] %vm77, 0.0
  %128 = vst.msk [vmem:[#allocation2 + $0x161] sm:$0x1] %vm77, 0.0
  %129 = vst.msk [vmem:[#allocation2 + $0x179] sm:$0x1] %vm77, 0.0
  %130 = vst.msk [vmem:[#allocation2 + $0x191] sm:$0x1] %vm77, 0.0
  %131 = vst.msk [vmem:[#allocation2 + $0x1a9] sm:$0x1] %vm77, 0.0
  %132 = vst.msk [vmem:[#allocation2 + $0x1c1] sm:$0x1] %vm77, 0.0
  %133 = vst.msk [vmem:[#allocation2 + $0x1d9] sm:$0x1] %vm77, 0.0
  %134 = vst.msk [vmem:[#allocation2 + $0x1f1] sm:$0x1] %vm77, 0.0
  %135 = vst.msk [vmem:[#allocation2 + $0x209] sm:$0x1] %vm77, 0.0
  %136 = vst.msk [vmem:[#allocation2 + $0x221] sm:$0x1] %vm77, 0.0
  %137 = vst.msk [vmem:[#allocation2 + $0x239] sm:$0x1] %vm77, 0.0
  %138 = vst.msk [vmem:[#allocation2 + $0x251] sm:$0x1] %vm77, 0.0
  %139 = vst.msk [vmem:[#allocation2 + $0x269] sm:$0x1] %vm77, 0.0
  %140 = vst.msk [vmem:[#allocation2 + $0x281] sm:$0x1] %vm77, 0.0
  %141 = vst.msk [vmem:[#allocation2 + $0x299] sm:$0x1] %vm77, 0.0
  %142 = vst.msk [vmem:[#allocation2 + $0x2b1] sm:$0x1] %vm77, 0.0
  %143 = vst.msk [vmem:[#allocation2 + $0x2c9] sm:$0x1] %vm77, 0.0
  %144 = vst.msk [vmem:[#allocation2 + $0x2e1] sm:$0x1] %vm77, 0.0
  %145 = vst.msk [vmem:[#allocation2 + $0x2f9] sm:$0x1] %vm77, 0.0
  %146 = vst.msk [vmem:[#allocation2 + $0x311] sm:$0x1] %vm77, 0.0
  %147 = vst.msk [vmem:[#allocation2 + $0x329] sm:$0x1] %vm77, 0.0
  %148 = vst.msk [vmem:[#allocation2 + $0x341] sm:$0x1] %vm77, 0.0
  %149 = vst.msk [vmem:[#allocation2 + $0x359] sm:$0x1] %vm77, 0.0
  %v150 = vld [vmem:[%s0] sm:$0xff]
  %v151 = vld [vmem:[%s0 + $0x8] sm:$0xff]
  %v152 = vld [vmem:[%s0 + $0x10] sm:$0xff]
  %v153 = vld [vmem:[%s0 + $0x18] sm:$0xff]
  %v154 = vld [vmem:[%s0 + $0x20] sm:$0xff]
  %v155 = vld [vmem:[%s0 + $0x28] sm:$0xff]
  %v156 = vld [vmem:[%s0 + $0x30] sm:$0xff]
  %v157 = vld [vmem:[%s0 + $0x38] sm:$0xff]
  %v158 = vld [vmem:[%s0 + $0x40] sm:$0xff]
  %v159 = vld [vmem:[%s0 + $0x48] sm:$0xff]
  %v160 = vld [vmem:[%s0 + $0x50] sm:$0xff]
  %v161 = vld [vmem:[%s0 + $0x58] sm:$0xff]
  %v162 = vld [vmem:[%s0 + $0x60] sm:$0xff]
  %v163 = vld [vmem:[%s0 + $0x68] sm:$0xff]
  %v164 = vld [vmem:[%s0 + $0x70] sm:$0xff]
  %v165 = vld [vmem:[%s0 + $0x78] sm:$0xff]
  %v166 = vld [vmem:[%s0 + $0x80] sm:$0xff]
  %v167 = vld [vmem:[%s0 + $0x88] sm:$0xff]
  %v168 = vld [vmem:[%s0 + $0x90] sm:$0xff]
  %v169 = vld [vmem:[%s0 + $0x98] sm:$0xff]
  %v170 = vld [vmem:[%s0 + $0xa0] sm:$0xff]
  %v171 = vld [vmem:[%s0 + $0xa8] sm:$0xff]
  %v172 = vld [vmem:[%s0 + $0xb0] sm:$0xff]
  %v173 = vld [vmem:[%s0 + $0xb8] sm:$0xff]
  %v174 = vld [vmem:[%s0 + $0xc0] sm:$0xff]
  %v175 = vld [vmem:[%s0 + $0xc8] sm:$0xff]
  %v176 = vld [vmem:[%s0 + $0xd0] sm:$0xff]
  %v177 = vld [vmem:[%s0 + $0xd8] sm:$0xff]
  %v178 = vld [vmem:[%s0 + $0xe0] sm:$0xff]
  %v179 = vld [vmem:[%s0 + $0xe8] sm:$0xff]
  %v180 = vld [vmem:[%s0 + $0xf0] sm:$0xff]
  %v181 = vld [vmem:[%s0 + $0xf8] sm:$0xff]
  %v182 = vld [vmem:[%s0 + $0x100] sm:$0xff]
  %v183 = vld [vmem:[%s0 + $0x108] sm:$0xff]
  %v184 = vld [vmem:[%s0 + $0x110] sm:$0xff]
  %v185 = vld [vmem:[%s0 + $0x118] sm:$0xff]
  %v186 = vld [vmem:[%s0 + $0x120] sm:$0xff]
  %v187 = vld [vmem:[%s0 + $0x128] sm:$0xff]
  %v188 = vld [vmem:[%s0 + $0x130] sm:$0xff]
  %v189 = vld [vmem:[%s0 + $0x138] sm:$0xff]
  %v190 = vld [vmem:[%s0 + $0x140] sm:$0xff]
  %v191 = vld [vmem:[%s0 + $0x148] sm:$0xff]
  %v192 = vld [vmem:[%s0 + $0x150] sm:$0xff]
  %v193 = vld [vmem:[%s0 + $0x158] sm:$0xff]
  %v194 = vld [vmem:[%s0 + $0x160] sm:$0xff]
  %v195 = vld [vmem:[%s0 + $0x168] sm:$0xff]
  %v196 = vld [vmem:[%s0 + $0x170] sm:$0xff]
  %v197 = vld [vmem:[%s0 + $0x178] sm:$0xff]
  %v198 = vld [vmem:[%s0 + $0x180] sm:$0xff]
  %v199 = vld [vmem:[%s0 + $0x188] sm:$0xff]
  %v200 = vld [vmem:[%s0 + $0x190] sm:$0xff]
  %v201 = vld [vmem:[%s0 + $0x198] sm:$0xff]
  %v202 = vld [vmem:[%s0 + $0x1a0] sm:$0xff]
  %v203 = vld [vmem:[%s0 + $0x1a8] sm:$0xff]
  %v204 = vld [vmem:[%s0 + $0x1b0] sm:$0xff]
  %v205 = vld [vmem:[%s0 + $0x1b8] sm:$0xff]
  %v206 = vld [vmem:[%s0 + $0x1c0] sm:$0xff]
  %v207 = vld [vmem:[%s0 + $0x1c8] sm:$0xff]
  %v208 = vld [vmem:[%s0 + $0x1d0] sm:$0xff]
  %v209 = vld [vmem:[%s0 + $0x1d8] sm:$0xff]
  %v210 = vld [vmem:[%s0 + $0x1e0] sm:$0xff]
  %v211 = vld [vmem:[%s0 + $0x1e8] sm:$0xff]
  %v212 = vld [vmem:[%s0 + $0x1f0] sm:$0xff]
  %v213 = vld [vmem:[%s0 + $0x1f8] sm:$0xff]
  %v214 = vld [vmem:[%s1] sm:$0xff]
  %v215 = vld [vmem:[%s1 + $0x8] sm:$0x1]
  %v216 = vld [vmem:[%s2] sm:$0x1]
  %v218 = vlaneseq
  %v219 = vshrl.u32 %v218, 7
  %v220 = vsub.s32 0, %v219
  %v221 = vrot.slane %v216, %v220
  %vm223 = vcmask 72704
  %v225 = vsel %vm223, %v150, 0
  %v228 = vsel %vm223, %v151, 0
  %v231 = vsel %vm223, %v152, 0
  %v234 = vsel %vm223, %v153, 0
  %v237 = vsel %vm223, %v154, 0
  %v240 = vsel %vm223, %v155, 0
  %v243 = vsel %vm223, %v156, 0
  %v246 = vsel %vm223, %v157, 0
  %v249 = vsel %vm223, %v158, 0
  %v252 = vsel %vm223, %v159, 0
  %v255 = vsel %vm223, %v160, 0
  %v258 = vsel %vm223, %v161, 0
  %v261 = vsel %vm223, %v162, 0
  %v264 = vsel %vm223, %v163, 0
  %v267 = vsel %vm223, %v164, 0
  %v270 = vsel %vm223, %v165, 0
  %v273 = vsel %vm223, %v166, 0
  %v276 = vsel %vm223, %v167, 0
  %v279 = vsel %vm223, %v168, 0
  %v282 = vsel %vm223, %v169, 0
  %v285 = vsel %vm223, %v170, 0
  %v288 = vsel %vm223, %v171, 0
  %v291 = vsel %vm223, %v172, 0
  %v294 = vsel %vm223, %v173, 0
  %v297 = vsel %vm223, %v174, 0
  %v300 = vsel %vm223, %v175, 0
  %v303 = vsel %vm223, %v176, 0
  %v306 = vsel %vm223, %v177, 0
  %v309 = vsel %vm223, %v178, 0
  %v312 = vsel %vm223, %v179, 0
  %v315 = vsel %vm223, %v180, 0
  %v318 = vsel %vm223, %v181, 0
  %v321 = vsel %vm223, %v182, 0
  %v324 = vsel %vm223, %v183, 0
  %v327 = vsel %vm223, %v184, 0
  %v330 = vsel %vm223, %v185, 0
  %v333 = vsel %vm223, %v186, 0
  %v336 = vsel %vm223, %v187, 0
  %v339 = vsel %vm223, %v188, 0
  %v342 = vsel %vm223, %v189, 0
  %v345 = vsel %vm223, %v190, 0
  %v348 = vsel %vm223, %v191, 0
  %v351 = vsel %vm223, %v192, 0
  %v354 = vsel %vm223, %v193, 0
  %v357 = vsel %vm223, %v194, 0
  %v360 = vsel %vm223, %v195, 0
  %v363 = vsel %vm223, %v196, 0
  %v366 = vsel %vm223, %v197, 0
  %v369 = vsel %vm223, %v198, 0
  %v372 = vsel %vm223, %v199, 0
  %v375 = vsel %vm223, %v200, 0
  %v378 = vsel %vm223, %v201, 0
  %v381 = vsel %vm223, %v202, 0
  %v384 = vsel %vm223, %v203, 0
  %v387 = vsel %vm223, %v204, 0
  %v390 = vsel %vm223, %v205, 0
  %v393 = vsel %vm223, %v206, 0
  %v396 = vsel %vm223, %v207, 0
  %v399 = vsel %vm223, %v208, 0
  %v402 = vsel %vm223, %v209, 0
  %v405 = vsel %vm223, %v210, 0
  %v408 = vsel %vm223, %v211, 0
  %v411 = vsel %vm223, %v212, 0
  %v414 = vsel %vm223, %v213, 0
  %vm416 = vcmask 1040384
  %v418 = vsel %vm416, %v215, 0
  %420 = vmatprep.subr.mxu0 0.0
  %421 = vmatpush1.msra.mxu0 %v214
  %422 = vmatprep.subr.mxu0 0.0
  %423 = vmatpush1.msra.mxu0 %v418
  %424 = vmatprep.subr.mxu0 0.0
  %425 = vmatpush1.msra.mxu0 0.0
  %426 = vmatprep.subr.mxu0 0.0
  %427 = vmatpush1.msra.mxu0 0.0
  %428 = vmatprep.subr.mxu0 0.0
  %429 = vmatpush1.msra.mxu0 0.0
  %430 = vmatprep.subr.mxu0 0.0
  %431 = vmatpush1.msra.mxu0 0.0
  %432 = vmatprep.subr.mxu0 0.0
  %433 = vmatpush1.msra.mxu0 0.0
  %434 = vmatprep.subr.mxu0 0.0
  %435 = vmatpush1.msra.mxu0 0.0
  %436 = vmatprep.subr.mxu0 0.0
  %437 = vmatpush1.msra.mxu0 0.0
  %438 = vmatprep.subr.mxu0 0.0
  %439 = vmatpush1.msra.mxu0 0.0
  %440 = vmatprep.subr.mxu0 0.0
  %441 = vmatpush1.msra.mxu0 0.0
  %442 = vmatprep.subr.mxu0 0.0
  %443 = vmatpush1.msra.mxu0 0.0
  %444 = vmatprep.subr.mxu0 0.0
  %445 = vmatpush1.msra.mxu0 0.0
  %446 = vmatprep.subr.mxu0 0.0
  %447 = vmatpush1.msra.mxu0 0.0
  %448 = vmatprep.subr.mxu0 0.0
  %449 = vmatpush1.msra.mxu0 0.0
  %450 = vmatprep.subr.mxu0 0.0
  %451 = vmatpush1.msra.mxu0 0.0
  %452 = vmatprep.subr.mxu0 0.0
  %453 = vmatpush1.msra.mxu0 0.0
  %454 = vmatprep.subr.mxu0 0.0
  %455 = vmatpush1.msra.mxu0 0.0
  %456 = vmatprep.subr.mxu0 0.0
  %457 = vmatpush1.msra.mxu0 0.0
  %458 = vmatprep.subr.mxu0 0.0
  %459 = vmatpush1.msra.mxu0 0.0
  %460 = vmatprep.subr.mxu0 0.0
  %461 = vmatpush1.msra.mxu0 0.0
  %462 = vmatprep.subr.mxu0 0.0
  %463 = vmatpush1.msra.mxu0 0.0
  %464 = vmatprep.subr.mxu0 0.0
  %465 = vmatpush1.msra.mxu0 0.0
  %466 = vmatprep.subr.mxu0 0.0
  %467 = vmatpush1.msra.mxu0 0.0
  %468 = vmatprep.subr.mxu0 0.0
  %469 = vmatpush1.msra.mxu0 0.0
  %470 = vmatprep.subr.mxu0 0.0
  %471 = vmatpush1.msra.mxu0 0.0
  %472 = vmatprep.subr.mxu0 0.0
  %473 = vmatpush1.msra.mxu0 0.0
  %474 = vmatprep.subr.mxu0 0.0
  %475 = vmatpush1.msra.mxu0 0.0
  %476 = vmatprep.subr.mxu0 0.0
  %477 = vmatpush1.msra.mxu0 0.0
  %478 = vmatprep.subr.mxu0 0.0
  %479 = vmatpush1.msra.mxu0 0.0
  %480 = vmatprep.subr.mxu0 0.0
  %481 = vmatpush1.msra.mxu0 0.0
  %482 = vmatprep.subr.mxu0 0.0
  %483 = vmatpush1.msra.mxu0 0.0
  %484 = vmatprep.mubr.f32.mxu0 0.0
  %485 = vmatmul.mubr.f32.gmra.mrb[0].mxu0 %v225
  %v486 = vpop.f32.mrb[0].mxu0
  %v487 = vadd.f32 %v221, %v486
  %v488 = vpop.f32.mrb[0].mxu0
  %489 = vmatprep.mubr.f32.mxu0 0.0
  %490 = vmatmul.mubr.f32.gmra.mrb[0].mxu0 %v228
  %v491 = vpop.f32.mrb[0].mxu0
  %v492 = vadd.f32 %v221, %v491
  %v493 = vpop.f32.mrb[0].mxu0
  %494 = vmatprep.mubr.f32.mxu0 0.0
  %495 = vmatmul.mubr.f32.gmra.mrb[0].mxu0 %v231
  %v496 = vpop.f32.mrb[0].mxu0
  %v497 = vadd.f32 %v221, %v496
  %v498 = vpop.f32.mrb[0].mxu0
  %499 = vmatprep.mubr.f32.mxu0 0.0
  %500 = vmatmul.mubr.f32.gmra.mrb[0].mxu0 %v234
  %v501 = vpop.f32.mrb[0].mxu0
  %v502 = vadd.f32 %v221, %v501
  %v503 = vpop.f32.mrb[0].mxu0
  %504 = vmatprep.mubr.f32.mxu0 0.0
  %505 = vmatmul.mubr.f32.gmra.mrb[0].mxu0 %v237
  %v506 = vpop.f32.mrb[0].mxu0
  %v507 = vadd.f32 %v221, %v506
  %v508 = vpop.f32.mrb[0].mxu0
  %509 = vmatprep.mubr.f32.mxu0 0.0
  %510 = vmatmul.mubr.f32.gmra.mrb[0].mxu0 %v240
  %v511 = vpop.f32.mrb[0].mxu0
  %v512 = vadd.f32 %v221, %v511
  %v513 = vpop.f32.mrb[0].mxu0
  %514 = vmatprep.mubr.f32.mxu0 0.0
  %515 = vmatmul.mubr.f32.gmra.mrb[0].mxu0 %v243
  %v516 = vpop.f32.mrb[0].mxu0
  %v517 = vadd.f32 %v221, %v516
  %v518 = vpop.f32.mrb[0].mxu0
  %519 = vmatprep.mubr.f32.mxu0 0.0
  %520 = vmatmul.mubr.f32.gmra.mrb[0].mxu0 %v246
  %v521 = vpop.f32.mrb[0].mxu0
  %v522 = vadd.f32 %v221, %v521
  %v523 = vpop.f32.mrb[0].mxu0
  %524 = vmatprep.mubr.f32.mxu0 0.0
  %525 = vmatmul.mubr.f32.gmra.mrb[0].mxu0 %v249
  %v526 = vpop.f32.mrb[0].mxu0
  %v527 = vadd.f32 %v221, %v526
  %v528 = vpop.f32.mrb[0].mxu0
  %529 = vmatprep.mubr.f32.mxu0 0.0
  %530 = vmatmul.mubr.f32.gmra.mrb[0].mxu0 %v252
  %v531 = vpop.f32.mrb[0].mxu0
  %v532 = vadd.f32 %v221, %v531
  %v533 = vpop.f32.mrb[0].mxu0
  %534 = vmatprep.mubr.f32.mxu0 0.0
  %535 = vmatmul.mubr.f32.gmra.mrb[0].mxu0 %v255
  %v536 = vpop.f32.mrb[0].mxu0
  %v537 = vadd.f32 %v221, %v536
  %v538 = vpop.f32.mrb[0].mxu0
  %539 = vmatprep.mubr.f32.mxu0 0.0
  %540 = vmatmul.mubr.f32.gmra.mrb[0].mxu0 %v258
  %v541 = vpop.f32.mrb[0].mxu0
  %v542 = vadd.f32 %v221, %v541
  %v543 = vpop.f32.mrb[0].mxu0
  %544 = vmatprep.mubr.f32.mxu0 0.0
  %545 = vmatmul.mubr.f32.gmra.mrb[0].mxu0 %v261
  %v546 = vpop.f32.mrb[0].mxu0
  %v547 = vadd.f32 %v221, %v546
  %v548 = vpop.f32.mrb[0].mxu0
  %549 = vmatprep.mubr.f32.mxu0 0.0
  %550 = vmatmul.mubr.f32.gmra.mrb[0].mxu0 %v264
  %v551 = vpop.f32.mrb[0].mxu0
  %v552 = vadd.f32 %v221, %v551
  %v553 = vpop.f32.mrb[0].mxu0
  %554 = vmatprep.mubr.f32.mxu0 0.0
  %555 = vmatmul.mubr.f32.gmra.mrb[0].mxu0 %v267
  %v556 = vpop.f32.mrb[0].mxu0
  %v557 = vadd.f32 %v221, %v556
  %v558 = vpop.f32.mrb[0].mxu0
  %559 = vmatprep.mubr.f32.mxu0 0.0
  %560 = vmatmul.mubr.f32.gmra.mrb[0].mxu0 %v270
  %v561 = vpop.f32.mrb[0].mxu0
  %v562 = vadd.f32 %v221, %v561
  %v563 = vpop.f32.mrb[0].mxu0
  %564 = vmatprep.mubr.f32.mxu0 0.0
  %565 = vmatmul.mubr.f32.gmra.mrb[0].mxu0 %v273
  %v566 = vpop.f32.mrb[0].mxu0
  %v567 = vadd.f32 %v221, %v566
  %v568 = vpop.f32.mrb[0].mxu0
  %569 = vmatprep.mubr.f32.mxu0 0.0
  %570 = vmatmul.mubr.f32.gmra.mrb[0].mxu0 %v276
  %v571 = vpop.f32.mrb[0].mxu0
  %v572 = vadd.f32 %v221, %v571
  %v573 = vpop.f32.mrb[0].mxu0
  %574 = vmatprep.mubr.f32.mxu0 0.0
  %575 = vmatmul.mubr.f32.gmra.mrb[0].mxu0 %v279
  %v576 = vpop.f32.mrb[0].mxu0
  %v577 = vadd.f32 %v221, %v576
  %v578 = vpop.f32.mrb[0].mxu0
  %579 = vmatprep.mubr.f32.mxu0 0.0
  %580 = vmatmul.mubr.f32.gmra.mrb[0].mxu0 %v282
  %v581 = vpop.f32.mrb[0].mxu0
  %v582 = vadd.f32 %v221, %v581
  %v583 = vpop.f32.mrb[0].mxu0
  %584 = vmatprep.mubr.f32.mxu0 0.0
  %585 = vmatmul.mubr.f32.gmra.mrb[0].mxu0 %v285
  %v586 = vpop.f32.mrb[0].mxu0
  %v587 = vadd.f32 %v221, %v586
  %v588 = vpop.f32.mrb[0].mxu0
  %589 = vmatprep.mubr.f32.mxu0 0.0
  %590 = vmatmul.mubr.f32.gmra.mrb[0].mxu0 %v288
  %v591 = vpop.f32.mrb[0].mxu0
  %v592 = vadd.f32 %v221, %v591
  %v593 = vpop.f32.mrb[0].mxu0
  %594 = vmatprep.mubr.f32.mxu0 0.0
  %595 = vmatmul.mubr.f32.gmra.mrb[0].mxu0 %v291
  %v596 = vpop.f32.mrb[0].mxu0
  %v597 = vadd.f32 %v221, %v596
  %v598 = vpop.f32.mrb[0].mxu0
  %599 = vmatprep.mubr.f32.mxu0 0.0
  %600 = vmatmul.mubr.f32.gmra.mrb[0].mxu0 %v294
  %v601 = vpop.f32.mrb[0].mxu0
  %v602 = vadd.f32 %v221, %v601
  %v603 = vpop.f32.mrb[0].mxu0
  %604 = vmatprep.mubr.f32.mxu0 0.0
  %605 = vmatmul.mubr.f32.gmra.mrb[0].mxu0 %v297
  %v606 = vpop.f32.mrb[0].mxu0
  %v607 = vadd.f32 %v221, %v606
  %v608 = vpop.f32.mrb[0].mxu0
  %609 = vmatprep.mubr.f32.mxu0 0.0
  %610 = vmatmul.mubr.f32.gmra.mrb[0].mxu0 %v300
  %v611 = vpop.f32.mrb[0].mxu0
  %v612 = vadd.f32 %v221, %v611
  %v613 = vpop.f32.mrb[0].mxu0
  %614 = vmatprep.mubr.f32.mxu0 0.0
  %615 = vmatmul.mubr.f32.gmra.mrb[0].mxu0 %v303
  %v616 = vpop.f32.mrb[0].mxu0
  %v617 = vadd.f32 %v221, %v616
  %v618 = vpop.f32.mrb[0].mxu0
  %619 = vmatprep.mubr.f32.mxu0 0.0
  %620 = vmatmul.mubr.f32.gmra.mrb[0].mxu0 %v306
  %v621 = vpop.f32.mrb[0].mxu0
  %v622 = vadd.f32 %v221, %v621
  %v623 = vpop.f32.mrb[0].mxu0
  %624 = vmatprep.mubr.f32.mxu0 0.0
  %625 = vmatmul.mubr.f32.gmra.mrb[0].mxu0 %v309
  %v626 = vpop.f32.mrb[0].mxu0
  %v627 = vadd.f32 %v221, %v626
  %v628 = vpop.f32.mrb[0].mxu0
  %629 = vmatprep.mubr.f32.mxu0 0.0
  %630 = vmatmul.mubr.f32.gmra.mrb[0].mxu0 %v312
  %v631 = vpop.f32.mrb[0].mxu0
  %v632 = vadd.f32 %v221, %v631
  %v633 = vpop.f32.mrb[0].mxu0
  %634 = vmatprep.mubr.f32.mxu0 0.0
  %635 = vmatmul.mubr.f32.gmra.mrb[0].mxu0 %v315
  %v636 = vpop.f32.mrb[0].mxu0
  %v637 = vadd.f32 %v221, %v636
  %v638 = vpop.f32.mrb[0].mxu0
  %639 = vmatprep.mubr.f32.mxu0 0.0
  %640 = vmatmul.mubr.f32.gmra.mrb[0].mxu0 %v318
  %v641 = vpop.f32.mrb[0].mxu0
  %v642 = vadd.f32 %v221, %v641
  %v643 = vpop.f32.mrb[0].mxu0
  %644 = vmatprep.mubr.f32.mxu0 0.0
  %645 = vmatmul.mubr.f32.gmra.mrb[0].mxu0 %v321
  %v646 = vpop.f32.mrb[0].mxu0
  %v647 = vadd.f32 %v221, %v646
  %v648 = vpop.f32.mrb[0].mxu0
  %649 = vmatprep.mubr.f32.mxu0 0.0
  %650 = vmatmul.mubr.f32.gmra.mrb[0].mxu0 %v324
  %v651 = vpop.f32.mrb[0].mxu0
  %v652 = vadd.f32 %v221, %v651
  %v653 = vpop.f32.mrb[0].mxu0
  %654 = vmatprep.mubr.f32.mxu0 0.0
  %655 = vmatmul.mubr.f32.gmra.mrb[0].mxu0 %v327
  %v656 = vpop.f32.mrb[0].mxu0
  %v657 = vadd.f32 %v221, %v656
  %v658 = vpop.f32.mrb[0].mxu0
  %659 = vmatprep.mubr.f32.mxu0 0.0
  %660 = vmatmul.mubr.f32.gmra.mrb[0].mxu0 %v330
  %v661 = vpop.f32.mrb[0].mxu0
  %v662 = vadd.f32 %v221, %v661
  %v663 = vpop.f32.mrb[0].mxu0
  %664 = vmatprep.mubr.f32.mxu0 0.0
  %665 = vmatmul.mubr.f32.gmra.mrb[0].mxu0 %v333
  %v666 = vpop.f32.mrb[0].mxu0
  %v667 = vadd.f32 %v221, %v666
  %v668 = vpop.f32.mrb[0].mxu0
  %669 = vmatprep.mubr.f32.mxu0 0.0
  %670 = vmatmul.mubr.f32.gmra.mrb[0].mxu0 %v336
  %v671 = vpop.f32.mrb[0].mxu0
  %v672 = vadd.f32 %v221, %v671
  %v673 = vpop.f32.mrb[0].mxu0
  %674 = vmatprep.mubr.f32.mxu0 0.0
  %675 = vmatmul.mubr.f32.gmra.mrb[0].mxu0 %v339
  %v676 = vpop.f32.mrb[0].mxu0
  %v677 = vadd.f32 %v221, %v676
  %v678 = vpop.f32.mrb[0].mxu0
  %679 = vmatprep.mubr.f32.mxu0 0.0
  %680 = vmatmul.mubr.f32.gmra.mrb[0].mxu0 %v342
  %v681 = vpop.f32.mrb[0].mxu0
  %v682 = vadd.f32 %v221, %v681
  %v683 = vpop.f32.mrb[0].mxu0
  %684 = vmatprep.mubr.f32.mxu0 0.0
  %685 = vmatmul.mubr.f32.gmra.mrb[0].mxu0 %v345
  %v686 = vpop.f32.mrb[0].mxu0
  %v687 = vadd.f32 %v221, %v686
  %v688 = vpop.f32.mrb[0].mxu0
  %689 = vmatprep.mubr.f32.mxu0 0.0
  %690 = vmatmul.mubr.f32.gmra.mrb[0].mxu0 %v348
  %v691 = vpop.f32.mrb[0].mxu0
  %v692 = vadd.f32 %v221, %v691
  %v693 = vpop.f32.mrb[0].mxu0
  %694 = vmatprep.mubr.f32.mxu0 0.0
  %695 = vmatmul.mubr.f32.gmra.mrb[0].mxu0 %v351
  %v696 = vpop.f32.mrb[0].mxu0
  %v697 = vadd.f32 %v221, %v696
  %v698 = vpop.f32.mrb[0].mxu0
  %699 = vmatprep.mubr.f32.mxu0 0.0
  %700 = vmatmul.mubr.f32.gmra.mrb[0].mxu0 %v354
  %v701 = vpop.f32.mrb[0].mxu0
  %v702 = vadd.f32 %v221, %v701
  %v703 = vpop.f32.mrb[0].mxu0
  %704 = vmatprep.mubr.f32.mxu0 0.0
  %705 = vmatmul.mubr.f32.gmra.mrb[0].mxu0 %v357
  %v706 = vpop.f32.mrb[0].mxu0
  %v707 = vadd.f32 %v221, %v706
  %v708 = vpop.f32.mrb[0].mxu0
  %709 = vmatprep.mubr.f32.mxu0 0.0
  %710 = vmatmul.mubr.f32.gmra.mrb[0].mxu0 %v360
  %v711 = vpop.f32.mrb[0].mxu0
  %v712 = vadd.f32 %v221, %v711
  %v713 = vpop.f32.mrb[0].mxu0
  %714 = vmatprep.mubr.f32.mxu0 0.0
  %715 = vmatmul.mubr.f32.gmra.mrb[0].mxu0 %v363
  %v716 = vpop.f32.mrb[0].mxu0
  %v717 = vadd.f32 %v221, %v716
  %v718 = vpop.f32.mrb[0].mxu0
  %719 = vmatprep.mubr.f32.mxu0 0.0
  %720 = vmatmul.mubr.f32.gmra.mrb[0].mxu0 %v366
  %v721 = vpop.f32.mrb[0].mxu0
  %v722 = vadd.f32 %v221, %v721
  %v723 = vpop.f32.mrb[0].mxu0
  %724 = vmatprep.mubr.f32.mxu0 0.0
  %725 = vmatmul.mubr.f32.gmra.mrb[0].mxu0 %v369
  %v726 = vpop.f32.mrb[0].mxu0
  %v727 = vadd.f32 %v221, %v726
  %v728 = vpop.f32.mrb[0].mxu0
  %729 = vmatprep.mubr.f32.mxu0 0.0
  %730 = vmatmul.mubr.f32.gmra.mrb[0].mxu0 %v372
  %v731 = vpop.f32.mrb[0].mxu0
  %v732 = vadd.f32 %v221, %v731
  %v733 = vpop.f32.mrb[0].mxu0
  %734 = vmatprep.mubr.f32.mxu0 0.0
  %735 = vmatmul.mubr.f32.gmra.mrb[0].mxu0 %v375
  %v736 = vpop.f32.mrb[0].mxu0
  %v737 = vadd.f32 %v221, %v736
  %v738 = vpop.f32.mrb[0].mxu0
  %739 = vmatprep.mubr.f32.mxu0 0.0
  %740 = vmatmul.mubr.f32.gmra.mrb[0].mxu0 %v378
  %v741 = vpop.f32.mrb[0].mxu0
  %v742 = vadd.f32 %v221, %v741
  %v743 = vpop.f32.mrb[0].mxu0
  %744 = vmatprep.mubr.f32.mxu0 0.0
  %745 = vmatmul.mubr.f32.gmra.mrb[0].mxu0 %v381
  %v746 = vpop.f32.mrb[0].mxu0
  %v747 = vadd.f32 %v221, %v746
  %v748 = vpop.f32.mrb[0].mxu0
  %749 = vmatprep.mubr.f32.mxu0 0.0
  %750 = vmatmul.mubr.f32.gmra.mrb[0].mxu0 %v384
  %v751 = vpop.f32.mrb[0].mxu0
  %v752 = vadd.f32 %v221, %v751
  %v753 = vpop.f32.mrb[0].mxu0
  %754 = vmatprep.mubr.f32.mxu0 0.0
  %755 = vmatmul.mubr.f32.gmra.mrb[0].mxu0 %v387
  %v756 = vpop.f32.mrb[0].mxu0
  %v757 = vadd.f32 %v221, %v756
  %v758 = vpop.f32.mrb[0].mxu0
  %759 = vmatprep.mubr.f32.mxu0 0.0
  %760 = vmatmul.mubr.f32.gmra.mrb[0].mxu0 %v390
  %v761 = vpop.f32.mrb[0].mxu0
  %v762 = vadd.f32 %v221, %v761
  %v763 = vpop.f32.mrb[0].mxu0
  %764 = vmatprep.mubr.f32.mxu0 0.0
  %765 = vmatmul.mubr.f32.gmra.mrb[0].mxu0 %v393
  %v766 = vpop.f32.mrb[0].mxu0
  %v767 = vadd.f32 %v221, %v766
  %v768 = vpop.f32.mrb[0].mxu0
  %769 = vmatprep.mubr.f32.mxu0 0.0
  %770 = vmatmul.mubr.f32.gmra.mrb[0].mxu0 %v396
  %v771 = vpop.f32.mrb[0].mxu0
  %v772 = vadd.f32 %v221, %v771
  %v773 = vpop.f32.mrb[0].mxu0
  %774 = vmatprep.mubr.f32.mxu0 0.0
  %775 = vmatmul.mubr.f32.gmra.mrb[0].mxu0 %v399
  %v776 = vpop.f32.mrb[0].mxu0
  %v777 = vadd.f32 %v221, %v776
  %v778 = vpop.f32.mrb[0].mxu0
  %779 = vmatprep.mubr.f32.mxu0 0.0
  %780 = vmatmul.mubr.f32.gmra.mrb[0].mxu0 %v402
  %v781 = vpop.f32.mrb[0].mxu0
  %v782 = vadd.f32 %v221, %v781
  %v783 = vpop.f32.mrb[0].mxu0
  %784 = vmatprep.mubr.f32.mxu0 0.0
  %785 = vmatmul.mubr.f32.gmra.mrb[0].mxu0 %v405
  %v786 = vpop.f32.mrb[0].mxu0
  %v787 = vadd.f32 %v221, %v786
  %v788 = vpop.f32.mrb[0].mxu0
  %789 = vmatprep.mubr.f32.mxu0 0.0
  %790 = vmatmul.mubr.f32.gmra.mrb[0].mxu0 %v408
  %v791 = vpop.f32.mrb[0].mxu0
  %v792 = vadd.f32 %v221, %v791
  %v793 = vpop.f32.mrb[0].mxu0
  %794 = vmatprep.mubr.f32.mxu0 0.0
  %795 = vmatmul.mubr.f32.gmra.mrb[0].mxu0 %v411
  %v796 = vpop.f32.mrb[0].mxu0
  %v797 = vadd.f32 %v221, %v796
  %v798 = vpop.f32.mrb[0].mxu0
  %799 = vmatprep.mubr.f32.mxu0 0.0
  %800 = vmatmul.mubr.f32.gmra.mrb[0].mxu0 %v414
  %v801 = vpop.f32.mrb[0].mxu0
  %v802 = vadd.f32 %v221, %v801
  %v803 = vpop.f32.mrb[0].mxu0
  %804 = vdwg.mxu0
  %v805 = vsel %vm62, %v487, 0.0
  %v806 = vsel %vm62, %v492, 0.0
  %v807 = vadd.f32 %v805, %v806
  %v808 = vsel %vm62, %v497, 0.0
  %v809 = vadd.f32 %v807, %v808
  %v810 = vsel %vm62, %v502, 0.0
  %v811 = vadd.f32 %v809, %v810
  %v812 = vsel %vm62, %v507, 0.0
  %v813 = vadd.f32 %v811, %v812
  %v814 = vsel %vm62, %v512, 0.0
  %v815 = vadd.f32 %v813, %v814
  %v816 = vsel %vm62, %v517, 0.0
  %v817 = vadd.f32 %v815, %v816
  %v818 = vsel %vm62, %v522, 0.0
  %v819 = vadd.f32 %v817, %v818
  %v820 = vsel %vm62, %v527, 0.0
  %v821 = vadd.f32 %v819, %v820
  %v822 = vsel %vm62, %v532, 0.0
  %v823 = vadd.f32 %v821, %v822
  %v824 = vsel %vm62, %v537, 0.0
  %v825 = vadd.f32 %v823, %v824
  %v826 = vsel %vm62, %v542, 0.0
  %v827 = vadd.f32 %v825, %v826
  %v828 = vsel %vm62, %v547, 0.0
  %v829 = vadd.f32 %v827, %v828
  %v830 = vsel %vm62, %v552, 0.0
  %v831 = vadd.f32 %v829, %v830
  %v832 = vsel %vm62, %v557, 0.0
  %v833 = vadd.f32 %v831, %v832
  %v834 = vsel %vm62, %v562, 0.0
  %v835 = vadd.f32 %v833, %v834
  %v836 = vsel %vm62, %v567, 0.0
  %v837 = vadd.f32 %v835, %v836
  %v838 = vsel %vm62, %v572, 0.0
  %v839 = vadd.f32 %v837, %v838
  %v840 = vsel %vm62, %v577, 0.0
  %v841 = vadd.f32 %v839, %v840
  %v842 = vsel %vm62, %v582, 0.0
  %v843 = vadd.f32 %v841, %v842
  %v844 = vsel %vm62, %v587, 0.0
  %v845 = vadd.f32 %v843, %v844
  %v846 = vsel %vm62, %v592, 0.0
  %v847 = vadd.f32 %v845, %v846
  %v848 = vsel %vm62, %v597, 0.0
  %v849 = vadd.f32 %v847, %v848
  %v850 = vsel %vm62, %v602, 0.0
  %v851 = vadd.f32 %v849, %v850
  %v852 = vsel %vm62, %v607, 0.0
  %v853 = vadd.f32 %v851, %v852
  %v854 = vsel %vm62, %v612, 0.0
  %v855 = vadd.f32 %v853, %v854
  %v856 = vsel %vm62, %v617, 0.0
  %v857 = vadd.f32 %v855, %v856
  %v858 = vsel %vm62, %v622, 0.0
  %v859 = vadd.f32 %v857, %v858
  %v860 = vsel %vm62, %v627, 0.0
  %v861 = vadd.f32 %v859, %v860
  %v862 = vsel %vm62, %v632, 0.0
  %v863 = vadd.f32 %v861, %v862
  %v864 = vsel %vm62, %v637, 0.0
  %v865 = vadd.f32 %v863, %v864
  %v866 = vsel %vm62, %v642, 0.0
  %v867 = vadd.f32 %v865, %v866
  %v868 = vsel %vm62, %v647, 0.0
  %v869 = vadd.f32 %v867, %v868
  %v870 = vsel %vm62, %v652, 0.0
  %v871 = vadd.f32 %v869, %v870
  %v872 = vsel %vm62, %v657, 0.0
  %v873 = vadd.f32 %v871, %v872
  %v874 = vsel %vm62, %v662, 0.0
  %v875 = vadd.f32 %v873, %v874
  %v876 = vsel %vm62, %v667, 0.0
  %v877 = vadd.f32 %v875, %v876
  %v878 = vsel %vm62, %v672, 0.0
  %v879 = vadd.f32 %v877, %v878
  %v880 = vsel %vm62, %v677, 0.0
  %v881 = vadd.f32 %v879, %v880
  %v882 = vsel %vm62, %v682, 0.0
  %v883 = vadd.f32 %v881, %v882
  %v884 = vsel %vm62, %v687, 0.0
  %v885 = vadd.f32 %v883, %v884
  %v886 = vsel %vm62, %v692, 0.0
  %v887 = vadd.f32 %v885, %v886
  %v888 = vsel %vm62, %v697, 0.0
  %v889 = vadd.f32 %v887, %v888
  %v890 = vsel %vm62, %v702, 0.0
  %v891 = vadd.f32 %v889, %v890
  %v892 = vsel %vm62, %v707, 0.0
  %v893 = vadd.f32 %v891, %v892
  %v894 = vsel %vm62, %v712, 0.0
  %v895 = vadd.f32 %v893, %v894
  %v896 = vsel %vm62, %v717, 0.0
  %v897 = vadd.f32 %v895, %v896
  %v898 = vsel %vm62, %v722, 0.0
  %v899 = vadd.f32 %v897, %v898
  %v900 = vsel %vm62, %v727, 0.0
  %v901 = vadd.f32 %v899, %v900
  %v902 = vsel %vm62, %v732, 0.0
  %v903 = vadd.f32 %v901, %v902
  %v904 = vsel %vm62, %v737, 0.0
  %v905 = vadd.f32 %v903, %v904
  %v906 = vsel %vm62, %v742, 0.0
  %v907 = vadd.f32 %v905, %v906
  %v908 = vsel %vm62, %v747, 0.0
  %v909 = vadd.f32 %v907, %v908
  %v910 = vsel %vm62, %v752, 0.0
  %v911 = vadd.f32 %v909, %v910
  %v912 = vsel %vm62, %v757, 0.0
  %v913 = vadd.f32 %v911, %v912
  %v914 = vsel %vm62, %v762, 0.0
  %v915 = vadd.f32 %v913, %v914
  %v916 = vsel %vm62, %v767, 0.0
  %v917 = vadd.f32 %v915, %v916
  %v918 = vsel %vm62, %v772, 0.0
  %v919 = vadd.f32 %v917, %v918
  %v920 = vsel %vm62, %v777, 0.0
  %v921 = vadd.f32 %v919, %v920
  %v922 = vsel %vm62, %v782, 0.0
  %v923 = vadd.f32 %v921, %v922
  %v924 = vsel %vm62, %v787, 0.0
  %v925 = vadd.f32 %v923, %v924
  %v926 = vsel %vm62, %v792, 0.0
  %v927 = vadd.f32 %v925, %v926
  %v928 = vsel %vm62, %v797, 0.0
  %v929 = vadd.f32 %v927, %v928
  %v930 = vsel %vm62, %v802, 0.0
  %v931 = vadd.f32 %v929, %v930
  %v932 = vrot.slane %v931, 4
  %v933 = vadd.f32 %v931, %v932
  %v934 = vrot.slane %v933, 2
  %v935 = vadd.f32 %v933, %v934
  %v936 = vrot.slane %v935, 1
  %v937 = vadd.f32 %v935, %v936
  %v938 = vmul.f32 %v487, %v487
  %v939 = vmul.f32 %v492, %v492
  %v940 = vmul.f32 %v497, %v497
  %v941 = vmul.f32 %v502, %v502
  %v942 = vmul.f32 %v507, %v507
  %v943 = vmul.f32 %v512, %v512
  %v944 = vmul.f32 %v517, %v517
  %v945 = vmul.f32 %v522, %v522
  %v946 = vmul.f32 %v527, %v527
  %v947 = vmul.f32 %v532, %v532
  %v948 = vmul.f32 %v537, %v537
  %v949 = vmul.f32 %v542, %v542
  %v950 = vmul.f32 %v547, %v547
  %v951 = vmul.f32 %v552, %v552
  %v952 = vmul.f32 %v557, %v557
  %v953 = vmul.f32 %v562, %v562
  %v954 = vmul.f32 %v567, %v567
  %v955 = vmul.f32 %v572, %v572
  %v956 = vmul.f32 %v577, %v577
  %v957 = vmul.f32 %v582, %v582
  %v958 = vmul.f32 %v587, %v587
  %v959 = vmul.f32 %v592, %v592
  %v960 = vmul.f32 %v597, %v597
  %v961 = vmul.f32 %v602, %v602
  %v962 = vmul.f32 %v607, %v607
  %v963 = vmul.f32 %v612, %v612
  %v964 = vmul.f32 %v617, %v617
  %v965 = vmul.f32 %v622, %v622
  %v966 = vmul.f32 %v627, %v627
  %v967 = vmul.f32 %v632, %v632
  %v968 = vmul.f32 %v637, %v637
  %v969 = vmul.f32 %v642, %v642
  %v970 = vmul.f32 %v647, %v647
  %v971 = vmul.f32 %v652, %v652
  %v972 = vmul.f32 %v657, %v657
  %v973 = vmul.f32 %v662, %v662
  %v974 = vmul.f32 %v667, %v667
  %v975 = vmul.f32 %v672, %v672
  %v976 = vmul.f32 %v677, %v677
  %v977 = vmul.f32 %v682, %v682
  %v978 = vmul.f32 %v687, %v687
  %v979 = vmul.f32 %v692, %v692
  %v980 = vmul.f32 %v697, %v697
  %v981 = vmul.f32 %v702, %v702
  %v982 = vmul.f32 %v707, %v707
  %v983 = vmul.f32 %v712, %v712
  %v984 = vmul.f32 %v717, %v717
  %v985 = vmul.f32 %v722, %v722
  %v986 = vmul.f32 %v727, %v727
  %v987 = vmul.f32 %v732, %v732
  %v988 = vmul.f32 %v737, %v737
  %v989 = vmul.f32 %v742, %v742
  %v990 = vmul.f32 %v747, %v747
  %v991 = vmul.f32 %v752, %v752
  %v992 = vmul.f32 %v757, %v757
  %v993 = vmul.f32 %v762, %v762
  %v994 = vmul.f32 %v767, %v767
  %v995 = vmul.f32 %v772, %v772
  %v996 = vmul.f32 %v777, %v777
  %v997 = vmul.f32 %v782, %v782
  %v998 = vmul.f32 %v787, %v787
  %v999 = vmul.f32 %v792, %v792
  %v1000 = vmul.f32 %v797, %v797
  %v1001 = vmul.f32 %v802, %v802
  %v1002 = vsel %vm62, %v938, 0.0
  %v1003 = vsel %vm62, %v939, 0.0
  %v1004 = vadd.f32 %v1002, %v1003
  %v1005 = vsel %vm62, %v940, 0.0
  %v1006 = vadd.f32 %v1004, %v1005
  %v1007 = vsel %vm62, %v941, 0.0
  %v1008 = vadd.f32 %v1006, %v1007
  %v1009 = vsel %vm62, %v942, 0.0
  %v1010 = vadd.f32 %v1008, %v1009
  %v1011 = vsel %vm62, %v943, 0.0
  %v1012 = vadd.f32 %v1010, %v1011
  %v1013 = vsel %vm62, %v944, 0.0
  %v1014 = vadd.f32 %v1012, %v1013
  %v1015 = vsel %vm62, %v945, 0.0
  %v1016 = vadd.f32 %v1014, %v1015
  %v1017 = vsel %vm62, %v946, 0.0
  %v1018 = vadd.f32 %v1016, %v1017
  %v1019 = vsel %vm62, %v947, 0.0
  %v1020 = vadd.f32 %v1018, %v1019
  %v1021 = vsel %vm62, %v948, 0.0
  %v1022 = vadd.f32 %v1020, %v1021
  %v1023 = vsel %vm62, %v949, 0.0
  %v1024 = vadd.f32 %v1022, %v1023
  %v1025 = vsel %vm62, %v950, 0.0
  %v1026 = vadd.f32 %v1024, %v1025
  %v1027 = vsel %vm62, %v951, 0.0
  %v1028 = vadd.f32 %v1026, %v1027
  %v1029 = vsel %vm62, %v952, 0.0
  %v1030 = vadd.f32 %v1028, %v1029
  %v1031 = vsel %vm62, %v953, 0.0
  %v1032 = vadd.f32 %v1030, %v1031
  %v1033 = vsel %vm62, %v954, 0.0
  %v1034 = vadd.f32 %v1032, %v1033
  %v1035 = vsel %vm62, %v955, 0.0
  %v1036 = vadd.f32 %v1034, %v1035
  %v1037 = vsel %vm62, %v956, 0.0
  %v1038 = vadd.f32 %v1036, %v1037
  %v1039 = vsel %vm62, %v957, 0.0
  %v1040 = vadd.f32 %v1038, %v1039
  %v1041 = vsel %vm62, %v958, 0.0
  %v1042 = vadd.f32 %v1040, %v1041
  %v1043 = vsel %vm62, %v959, 0.0
  %v1044 = vadd.f32 %v1042, %v1043
  %v1045 = vsel %vm62, %v960, 0.0
  %v1046 = vadd.f32 %v1044, %v1045
  %v1047 = vsel %vm62, %v961, 0.0
  %v1048 = vadd.f32 %v1046, %v1047
  %v1049 = vsel %vm62, %v962, 0.0
  %v1050 = vadd.f32 %v1048, %v1049
  %v1051 = vsel %vm62, %v963, 0.0
  %v1052 = vadd.f32 %v1050, %v1051
  %v1053 = vsel %vm62, %v964, 0.0
  %v1054 = vadd.f32 %v1052, %v1053
  %v1055 = vsel %vm62, %v965, 0.0
  %v1056 = vadd.f32 %v1054, %v1055
  %v1057 = vsel %vm62, %v966, 0.0
  %v1058 = vadd.f32 %v1056, %v1057
  %v1059 = vsel %vm62, %v967, 0.0
  %v1060 = vadd.f32 %v1058, %v1059
  %v1061 = vsel %vm62, %v968, 0.0
  %v1062 = vadd.f32 %v1060, %v1061
  %v1063 = vsel %vm62, %v969, 0.0
  %v1064 = vadd.f32 %v1062, %v1063
  %v1065 = vsel %vm62, %v970, 0.0
  %v1066 = vadd.f32 %v1064, %v1065
  %v1067 = vsel %vm62, %v971, 0.0
  %v1068 = vadd.f32 %v1066, %v1067
  %v1069 = vsel %vm62, %v972, 0.0
  %v1070 = vadd.f32 %v1068, %v1069
  %v1071 = vsel %vm62, %v973, 0.0
  %v1072 = vadd.f32 %v1070, %v1071
  %v1073 = vsel %vm62, %v974, 0.0
  %v1074 = vadd.f32 %v1072, %v1073
  %v1075 = vsel %vm62, %v975, 0.0
  %v1076 = vadd.f32 %v1074, %v1075
  %v1077 = vsel %vm62, %v976, 0.0
  %v1078 = vadd.f32 %v1076, %v1077
  %v1079 = vsel %vm62, %v977, 0.0
  %v1080 = vadd.f32 %v1078, %v1079
  %v1081 = vsel %vm62, %v978, 0.0
  %v1082 = vadd.f32 %v1080, %v1081
  %v1083 = vsel %vm62, %v979, 0.0
  %v1084 = vadd.f32 %v1082, %v1083
  %v1085 = vsel %vm62, %v980, 0.0
  %v1086 = vadd.f32 %v1084, %v1085
  %v1087 = vsel %vm62, %v981, 0.0
  %v1088 = vadd.f32 %v1086, %v1087
  %v1089 = vsel %vm62, %v982, 0.0
  %v1090 = vadd.f32 %v1088, %v1089
  %v1091 = vsel %vm62, %v983, 0.0
  %v1092 = vadd.f32 %v1090, %v1091
  %v1093 = vsel %vm62, %v984, 0.0
  %v1094 = vadd.f32 %v1092, %v1093
  %v1095 = vsel %vm62, %v985, 0.0
  %v1096 = vadd.f32 %v1094, %v1095
  %v1097 = vsel %vm62, %v986, 0.0
  %v1098 = vadd.f32 %v1096, %v1097
  %v1099 = vsel %vm62, %v987, 0.0
  %v1100 = vadd.f32 %v1098, %v1099
  %v1101 = vsel %vm62, %v988, 0.0
  %v1102 = vadd.f32 %v1100, %v1101
  %v1103 = vsel %vm62, %v989, 0.0
  %v1104 = vadd.f32 %v1102, %v1103
  %v1105 = vsel %vm62, %v990, 0.0
  %v1106 = vadd.f32 %v1104, %v1105
  %v1107 = vsel %vm62, %v991, 0.0
  %v1108 = vadd.f32 %v1106, %v1107
  %v1109 = vsel %vm62, %v992, 0.0
  %v1110 = vadd.f32 %v1108, %v1109
  %v1111 = vsel %vm62, %v993, 0.0
  %v1112 = vadd.f32 %v1110, %v1111
  %v1113 = vsel %vm62, %v994, 0.0
  %v1114 = vadd.f32 %v1112, %v1113
  %v1115 = vsel %vm62, %v995, 0.0
  %v1116 = vadd.f32 %v1114, %v1115
  %v1117 = vsel %vm62, %v996, 0.0
  %v1118 = vadd.f32 %v1116, %v1117
  %v1119 = vsel %vm62, %v997, 0.0
  %v1120 = vadd.f32 %v1118, %v1119
  %v1121 = vsel %vm62, %v998, 0.0
  %v1122 = vadd.f32 %v1120, %v1121
  %v1123 = vsel %vm62, %v999, 0.0
  %v1124 = vadd.f32 %v1122, %v1123
  %v1125 = vsel %vm62, %v1000, 0.0
  %v1126 = vadd.f32 %v1124, %v1125
  %v1127 = vsel %vm62, %v1001, 0.0
  %v1128 = vadd.f32 %v1126, %v1127
  %v1129 = vrot.slane %v1128, 4
  %v1130 = vadd.f32 %v1128, %v1129
  %v1131 = vrot.slane %v1130, 2
  %v1132 = vadd.f32 %v1130, %v1131
  %v1133 = vrot.slane %v1132, 1
  %v1134 = vadd.f32 %v1132, %v1133
  %v1135 = vmul.f32 %v937, 0.001953125
  %v1136 = vmul.f32 %v1134, 0.001953125
  %v1137 = vmul.f32 %v1135, %v1135
  %v1138 = vsub.f32 %v1136, %v1137
  %v1139 = vld [vmem:[%s3] sm:$0x1]
  %v1140 = vadd.f32 %v1138, 1e-05
  %v1141 = vrsqrt.pop %v1140
  %v1142 = vmul.f32 %v1139, %v1141
  %v1143 = vld [vmem:[%s4] sm:$0x1]
  %v1144 = vmul.f32 %v1135, %v1142
  %v1145 = vsub.f32 %v1143, %v1144
  %v1147 = vlaneseq
  %v1148 = vshrl.u32 %v1147, 7
  %v1149 = vsub.s32 0, %v1148
  %v1150 = vrot.slane %v1142, %v1149
  %v1152 = vmul.f32 %v487, %v1150
  %v1153 = vmul.f32 %v492, %v1150
  %v1154 = vmul.f32 %v497, %v1150
  %v1155 = vmul.f32 %v502, %v1150
  %v1156 = vmul.f32 %v507, %v1150
  %v1157 = vmul.f32 %v512, %v1150
  %v1158 = vmul.f32 %v517, %v1150
  %v1159 = vmul.f32 %v522, %v1150
  %v1160 = vmul.f32 %v527, %v1150
  %v1161 = vmul.f32 %v532, %v1150
  %v1162 = vmul.f32 %v537, %v1150
  %v1163 = vmul.f32 %v542, %v1150
  %v1164 = vmul.f32 %v547, %v1150
  %v1165 = vmul.f32 %v552, %v1150
  %v1166 = vmul.f32 %v557, %v1150
  %v1167 = vmul.f32 %v562, %v1150
  %v1168 = vmul.f32 %v567, %v1150
  %v1169 = vmul.f32 %v572, %v1150
  %v1170 = vmul.f32 %v577, %v1150
  %v1171 = vmul.f32 %v582, %v1150
  %v1172 = vmul.f32 %v587, %v1150
  %v1173 = vmul.f32 %v592, %v1150
  %v1174 = vmul.f32 %v597, %v1150
  %v1175 = vmul.f32 %v602, %v1150
  %v1176 = vmul.f32 %v607, %v1150
  %v1177 = vmul.f32 %v612, %v1150
  %v1178 = vmul.f32 %v617, %v1150
  %v1179 = vmul.f32 %v622, %v1150
  %v1180 = vmul.f32 %v627, %v1150
  %v1181 = vmul.f32 %v632, %v1150
  %v1182 = vmul.f32 %v637, %v1150
  %v1183 = vmul.f32 %v642, %v1150
  %v1184 = vmul.f32 %v647, %v1150
  %v1185 = vmul.f32 %v652, %v1150
  %v1186 = vmul.f32 %v657, %v1150
  %v1187 = vmul.f32 %v662, %v1150
  %v1188 = vmul.f32 %v667, %v1150
  %v1189 = vmul.f32 %v672, %v1150
  %v1190 = vmul.f32 %v677, %v1150
  %v1191 = vmul.f32 %v682, %v1150
  %v1192 = vmul.f32 %v687, %v1150
  %v1193 = vmul.f32 %v692, %v1150
  %v1194 = vmul.f32 %v697, %v1150
  %v1195 = vmul.f32 %v702, %v1150
  %v1196 = vmul.f32 %v707, %v1150
  %v1197 = vmul.f32 %v712, %v1150
  %v1198 = vmul.f32 %v717, %v1150
  %v1199 = vmul.f32 %v722, %v1150
  %v1200 = vmul.f32 %v727, %v1150
  %v1201 = vmul.f32 %v732, %v1150
  %v1202 = vmul.f32 %v737, %v1150
  %v1203 = vmul.f32 %v742, %v1150
  %v1204 = vmul.f32 %v747, %v1150
  %v1205 = vmul.f32 %v752, %v1150
  %v1206 = vmul.f32 %v757, %v1150
  %v1207 = vmul.f32 %v762, %v1150
  %v1208 = vmul.f32 %v767, %v1150
  %v1209 = vmul.f32 %v772, %v1150
  %v1210 = vmul.f32 %v777, %v1150
  %v1211 = vmul.f32 %v782, %v1150
  %v1212 = vmul.f32 %v787, %v1150
  %v1213 = vmul.f32 %v792, %v1150
  %v1214 = vmul.f32 %v797, %v1150
  %v1215 = vmul.f32 %v802, %v1150
  %v1217 = vlaneseq
  %v1218 = vshrl.u32 %v1217, 7
  %v1219 = vsub.s32 0, %v1218
  %v1220 = vrot.slane %v1145, %v1219
  %v1222 = vadd.f32 %v1152, %v1220
  %v1223 = vadd.f32 %v1153, %v1220
  %v1224 = vadd.f32 %v1154, %v1220
  %v1225 = vadd.f32 %v1155, %v1220
  %v1226 = vadd.f32 %v1156, %v1220
  %v1227 = vadd.f32 %v1157, %v1220
  %v1228 = vadd.f32 %v1158, %v1220
  %v1229 = vadd.f32 %v1159, %v1220
  %v1230 = vadd.f32 %v1160, %v1220
  %v1231 = vadd.f32 %v1161, %v1220
  %v1232 = vadd.f32 %v1162, %v1220
  %v1233 = vadd.f32 %v1163, %v1220
  %v1234 = vadd.f32 %v1164, %v1220
  %v1235 = vadd.f32 %v1165, %v1220
  %v1236 = vadd.f32 %v1166, %v1220
  %v1237 = vadd.f32 %v1167, %v1220
  %v1238 = vadd.f32 %v1168, %v1220
  %v1239 = vadd.f32 %v1169, %v1220
  %v1240 = vadd.f32 %v1170, %v1220
  %v1241 = vadd.f32 %v1171, %v1220
  %v1242 = vadd.f32 %v1172, %v1220
  %v1243 = vadd.f32 %v1173, %v1220
  %v1244 = vadd.f32 %v1174, %v1220
  %v1245 = vadd.f32 %v1175, %v1220
  %v1246 = vadd.f32 %v1176, %v1220
  %v1247 = vadd.f32 %v1177, %v1220
  %v1248 = vadd.f32 %v1178, %v1220
  %v1249 = vadd.f32 %v1179, %v1220
  %v1250 = vadd.f32 %v1180, %v1220
  %v1251 = vadd.f32 %v1181, %v1220
  %v1252 = vadd.f32 %v1182, %v1220
  %v1253 = vadd.f32 %v1183, %v1220
  %v1254 = vadd.f32 %v1184, %v1220
  %v1255 = vadd.f32 %v1185, %v1220
  %v1256 = vadd.f32 %v1186, %v1220
  %v1257 = vadd.f32 %v1187, %v1220
  %v1258 = vadd.f32 %v1188, %v1220
  %v1259 = vadd.f32 %v1189, %v1220
  %v1260 = vadd.f32 %v1190, %v1220
  %v1261 = vadd.f32 %v1191, %v1220
  %v1262 = vadd.f32 %v1192, %v1220
  %v1263 = vadd.f32 %v1193, %v1220
  %v1264 = vadd.f32 %v1194, %v1220
  %v1265 = vadd.f32 %v1195, %v1220
  %v1266 = vadd.f32 %v1196, %v1220
  %v1267 = vadd.f32 %v1197, %v1220
  %v1268 = vadd.f32 %v1198, %v1220
  %v1269 = vadd.f32 %v1199, %v1220
  %v1270 = vadd.f32 %v1200, %v1220
  %v1271 = vadd.f32 %v1201, %v1220
  %v1272 = vadd.f32 %v1202, %v1220
  %v1273 = vadd.f32 %v1203, %v1220
  %v1274 = vadd.f32 %v1204, %v1220
  %v1275 = vadd.f32 %v1205, %v1220
  %v1276 = vadd.f32 %v1206, %v1220
  %v1277 = vadd.f32 %v1207, %v1220
  %v1278 = vadd.f32 %v1208, %v1220
  %v1279 = vadd.f32 %v1209, %v1220
  %v1280 = vadd.f32 %v1210, %v1220
  %v1281 = vadd.f32 %v1211, %v1220
  %v1282 = vadd.f32 %v1212, %v1220
  %v1283 = vadd.f32 %v1213, %v1220
  %v1284 = vadd.f32 %v1214, %v1220
  %v1285 = vadd.f32 %v1215, %v1220
  %v1286 = vmax.f32 %v1222, 0.0
  %v1287 = vmax.f32 %v1223, 0.0
  %v1288 = vmax.f32 %v1224, 0.0
  %v1289 = vmax.f32 %v1225, 0.0
  %v1290 = vmax.f32 %v1226, 0.0
  %v1291 = vmax.f32 %v1227, 0.0
  %v1292 = vmax.f32 %v1228, 0.0
  %v1293 = vmax.f32 %v1229, 0.0
  %v1294 = vmax.f32 %v1230, 0.0
  %v1295 = vmax.f32 %v1231, 0.0
  %v1296 = vmax.f32 %v1232, 0.0
  %v1297 = vmax.f32 %v1233, 0.0
  %v1298 = vmax.f32 %v1234, 0.0
  %v1299 = vmax.f32 %v1235, 0.0
  %v1300 = vmax.f32 %v1236, 0.0
  %v1301 = vmax.f32 %v1237, 0.0
  %v1302 = vmax.f32 %v1238, 0.0
  %v1303 = vmax.f32 %v1239, 0.0
  %v1304 = vmax.f32 %v1240, 0.0
  %v1305 = vmax.f32 %v1241, 0.0
  %v1306 = vmax.f32 %v1242, 0.0
  %v1307 = vmax.f32 %v1243, 0.0
  %v1308 = vmax.f32 %v1244, 0.0
  %v1309 = vmax.f32 %v1245, 0.0
  %v1310 = vmax.f32 %v1246, 0.0
  %v1311 = vmax.f32 %v1247, 0.0
  %v1312 = vmax.f32 %v1248, 0.0
  %v1313 = vmax.f32 %v1249, 0.0
  %v1314 = vmax.f32 %v1250, 0.0
  %v1315 = vmax.f32 %v1251, 0.0
  %v1316 = vmax.f32 %v1252, 0.0
  %v1317 = vmax.f32 %v1253, 0.0
  %v1318 = vmax.f32 %v1254, 0.0
  %v1319 = vmax.f32 %v1255, 0.0
  %v1320 = vmax.f32 %v1256, 0.0
  %v1321 = vmax.f32 %v1257, 0.0
  %v1322 = vmax.f32 %v1258, 0.0
  %v1323 = vmax.f32 %v1259, 0.0
  %v1324 = vmax.f32 %v1260, 0.0
  %v1325 = vmax.f32 %v1261, 0.0
  %v1326 = vmax.f32 %v1262, 0.0
  %v1327 = vmax.f32 %v1263, 0.0
  %v1328 = vmax.f32 %v1264, 0.0
  %v1329 = vmax.f32 %v1265, 0.0
  %v1330 = vmax.f32 %v1266, 0.0
  %v1331 = vmax.f32 %v1267, 0.0
  %v1332 = vmax.f32 %v1268, 0.0
  %v1333 = vmax.f32 %v1269, 0.0
  %v1334 = vmax.f32 %v1270, 0.0
  %v1335 = vmax.f32 %v1271, 0.0
  %v1336 = vmax.f32 %v1272, 0.0
  %v1337 = vmax.f32 %v1273, 0.0
  %v1338 = vmax.f32 %v1274, 0.0
  %v1339 = vmax.f32 %v1275, 0.0
  %v1340 = vmax.f32 %v1276, 0.0
  %v1341 = vmax.f32 %v1277, 0.0
  %v1342 = vmax.f32 %v1278, 0.0
  %v1343 = vmax.f32 %v1279, 0.0
  %v1344 = vmax.f32 %v1280, 0.0
  %v1345 = vmax.f32 %v1281, 0.0
  %v1346 = vmax.f32 %v1282, 0.0
  %v1347 = vmax.f32 %v1283, 0.0
  %v1348 = vmax.f32 %v1284, 0.0
  %v1349 = vmax.f32 %v1285, 0.0
  %s1350 = scalar_lea.vmem [#allocation2], 24
  %1351 = vst.msk [vmem:[%s1350 + $0x1] sm:$0xff] %vm62, %v1286
  %1352 = vst.msk [vmem:[%s1350 + $0x9] sm:$0xff] %vm62, %v1287
  %1353 = vst.msk [vmem:[%s1350 + $0x19] sm:$0xff] %vm62, %v1288
  %1354 = vst.msk [vmem:[%s1350 + $0x21] sm:$0xff] %vm62, %v1289
  %1355 = vst.msk [vmem:[%s1350 + $0x31] sm:$0xff] %vm62, %v1290
  %1356 = vst.msk [vmem:[%s1350 + $0x39] sm:$0xff] %vm62, %v1291
  %1357 = vst.msk [vmem:[%s1350 + $0x49] sm:$0xff] %vm62, %v1292
  %1358 = vst.msk [vmem:[%s1350 + $0x51] sm:$0xff] %vm62, %v1293
  %1359 = vst.msk [vmem:[%s1350 + $0x61] sm:$0xff] %vm62, %v1294
  %1360 = vst.msk [vmem:[%s1350 + $0x69] sm:$0xff] %vm62, %v1295
  %1361 = vst.msk [vmem:[%s1350 + $0x79] sm:$0xff] %vm62, %v1296
  %1362 = vst.msk [vmem:[%s1350 + $0x81] sm:$0xff] %vm62, %v1297
  %1363 = vst.msk [vmem:[%s1350 + $0x91] sm:$0xff] %vm62, %v1298
  %1364 = vst.msk [vmem:[%s1350 + $0x99] sm:$0xff] %vm62, %v1299
  %1365 = vst.msk [vmem:[%s1350 + $0xa9] sm:$0xff] %vm62, %v1300
  %1366 = vst.msk [vmem:[%s1350 + $0xb1] sm:$0xff] %vm62, %v1301
  %1367 = vst.msk [vmem:[%s1350 + $0xc1] sm:$0xff] %vm62, %v1302
  %1368 = vst.msk [vmem:[%s1350 + $0xc9] sm:$0xff] %vm62, %v1303
  %1369 = vst.msk [vmem:[%s1350 + $0xd9] sm:$0xff] %vm62, %v1304
  %1370 = vst.msk [vmem:[%s1350 + $0xe1] sm:$0xff] %vm62, %v1305
  %1371 = vst.msk [vmem:[%s1350 + $0xf1] sm:$0xff] %vm62, %v1306
  %1372 = vst.msk [vmem:[%s1350 + $0xf9] sm:$0xff] %vm62, %v1307
  %1373 = vst.msk [vmem:[%s1350 + $0x109] sm:$0xff] %vm62, %v1308
  %1374 = vst.msk [vmem:[%s1350 + $0x111] sm:$0xff] %vm62, %v1309
  %1375 = vst.msk [vmem:[%s1350 + $0x121] sm:$0xff] %vm62, %v1310
  %1376 = vst.msk [vmem:[%s1350 + $0x129] sm:$0xff] %vm62, %v1311
  %1377 = vst.msk [vmem:[%s1350 + $0x139] sm:$0xff] %vm62, %v1312
  %1378 = vst.msk [vmem:[%s1350 + $0x141] sm:$0xff] %vm62, %v1313
  %1379 = vst.msk [vmem:[%s1350 + $0x151] sm:$0xff] %vm62, %v1314
  %1380 = vst.msk [vmem:[%s1350 + $0x159] sm:$0xff] %vm62, %v1315
  %1381 = vst.msk [vmem:[%s1350 + $0x169] sm:$0xff] %vm62, %v1316
  %1382 = vst.msk [vmem:[%s1350 + $0x171] sm:$0xff] %vm62, %v1317
  %1383 = vst.msk [vmem:[%s1350 + $0x1b1] sm:$0xff] %vm62, %v1318
  %1384 = vst.msk [vmem:[%s1350 + $0x1b9] sm:$0xff] %vm62, %v1319
  %1385 = vst.msk [vmem:[%s1350 + $0x1c9] sm:$0xff] %vm62, %v1320
  %1386 = vst.msk [vmem:[%s1350 + $0x1d1] sm:$0xff] %vm62, %v1321
  %1387 = vst.msk [vmem:[%s1350 + $0x1e1] sm:$0xff] %vm62, %v1322
  %1388 = vst.msk [vmem:[%s1350 + $0x1e9] sm:$0xff] %vm62, %v1323
  %1389 = vst.msk [vmem:[%s1350 + $0x1f9] sm:$0xff] %vm62, %v1324
  %1390 = vst.msk [vmem:[%s1350 + $0x201] sm:$0xff] %vm62, %v1325
  %1391 = vst.msk [vmem:[%s1350 + $0x211] sm:$0xff] %vm62, %v1326
  %1392 = vst.msk [vmem:[%s1350 + $0x219] sm:$0xff] %vm62, %v1327
  %1393 = vst.msk [vmem:[%s1350 + $0x229] sm:$0xff] %vm62, %v1328
  %1394 = vst.msk [vmem:[%s1350 + $0x231] sm:$0xff] %vm62, %v1329
  %1395 = vst.msk [vmem:[%s1350 + $0x241] sm:$0xff] %vm62, %v1330
  %1396 = vst.msk [vmem:[%s1350 + $0x249] sm:$0xff] %vm62, %v1331
  %1397 = vst.msk [vmem:[%s1350 + $0x259] sm:$0xff] %vm62, %v1332
  %1398 = vst.msk [vmem:[%s1350 + $0x261] sm:$0xff] %vm62, %v1333
  %1399 = vst.msk [vmem:[%s1350 + $0x271] sm:$0xff] %vm62, %v1334
  %1400 = vst.msk [vmem:[%s1350 + $0x279] sm:$0xff] %vm62, %v1335
  %1401 = vst.msk [vmem:[%s1350 + $0x289] sm:$0xff] %vm62, %v1336
  %1402 = vst.msk [vmem:[%s1350 + $0x291] sm:$0xff] %vm62, %v1337
  %1403 = vst.msk [vmem:[%s1350 + $0x2a1] sm:$0xff] %vm62, %v1338
  %1404 = vst.msk [vmem:[%s1350 + $0x2a9] sm:$0xff] %vm62, %v1339
  %1405 = vst.msk [vmem:[%s1350 + $0x2b9] sm:$0xff] %vm62, %v1340
  %1406 = vst.msk [vmem:[%s1350 + $0x2c1] sm:$0xff] %vm62, %v1341
  %1407 = vst.msk [vmem:[%s1350 + $0x2d1] sm:$0xff] %vm62, %v1342
  %1408 = vst.msk [vmem:[%s1350 + $0x2d9] sm:$0xff] %vm62, %v1343
  %1409 = vst.msk [vmem:[%s1350 + $0x2e9] sm:$0xff] %vm62, %v1344
  %1410 = vst.msk [vmem:[%s1350 + $0x2f1] sm:$0xff] %vm62, %v1345
  %1411 = vst.msk [vmem:[%s1350 + $0x301] sm:$0xff] %vm62, %v1346
  %1412 = vst.msk [vmem:[%s1350 + $0x309] sm:$0xff] %vm62, %v1347
  %1413 = vst.msk [vmem:[%s1350 + $0x319] sm:$0xff] %vm62, %v1348
  %1414 = vst.msk [vmem:[%s1350 + $0x321] sm:$0xff] %vm62, %v1349
  %v1415 = vld [vmem:[#allocation2] sm:$0xff]
  %v1416 = vld [vmem:[#allocation2 + $0x8] sm:$0xff]
  %v1417 = vld [vmem:[#allocation2 + $0x18] sm:$0xff]
  %v1418 = vld [vmem:[#allocation2 + $0x20] sm:$0xff]
  %v1419 = vld [vmem:[#allocation2 + $0x30] sm:$0xff]
  %v1420 = vld [vmem:[#allocation2 + $0x38] sm:$0xff]
  %v1421 = vld [vmem:[#allocation2 + $0x48] sm:$0xff]
  %v1422 = vld [vmem:[#allocation2 + $0x50] sm:$0xff]
  %v1423 = vld [vmem:[#allocation2 + $0x60] sm:$0xff]
  %v1424 = vld [vmem:[#allocation2 + $0x68] sm:$0xff]
  %v1425 = vld [vmem:[#allocation2 + $0x78] sm:$0xff]
  %v1426 = vld [vmem:[#allocation2 + $0x80] sm:$0xff]
  %v1427 = vld [vmem:[#allocation2 + $0x90] sm:$0xff]
  %v1428 = vld [vmem:[#allocation2 + $0x98] sm:$0xff]
  %v1429 = vld [vmem:[#allocation2 + $0xa8] sm:$0xff]
  %v1430 = vld [vmem:[#allocation2 + $0xb0] sm:$0xff]
  %v1431 = vld [vmem:[#allocation2 + $0xc0] sm:$0xff]
  %v1432 = vld [vmem:[#allocation2 + $0xc8] sm:$0xff]
  %v1433 = vld [vmem:[#allocation2 + $0xd8] sm:$0xff]
  %v1434 = vld [vmem:[#allocation2 + $0xe0] sm:$0xff]
  %v1435 = vld [vmem:[#allocation2 + $0xf0] sm:$0xff]
  %v1436 = vld [vmem:[#allocation2 + $0xf8] sm:$0xff]
  %v1437 = vld [vmem:[#allocation2 + $0x108] sm:$0xff]
  %v1438 = vld [vmem:[#allocation2 + $0x110] sm:$0xff]
  %v1439 = vld [vmem:[#allocation2 + $0x120] sm:$0xff]
  %v1440 = vld [vmem:[#allocation2 + $0x128] sm:$0xff]
  %v1441 = vld [vmem:[#allocation2 + $0x138] sm:$0xff]
  %v1442 = vld [vmem:[#allocation2 + $0x140] sm:$0xff]
  %v1443 = vld [vmem:[#allocation2 + $0x150] sm:$0xff]
  %v1444 = vld [vmem:[#allocation2 + $0x158] sm:$0xff]
  %v1445 = vld [vmem:[#allocation2 + $0x168] sm:$0xff]
  %v1446 = vld [vmem:[#allocation2 + $0x170] sm:$0xff]
  %v1447 = vld [vmem:[#allocation2 + $0x1b0] sm:$0xff]
  %v1448 = vld [vmem:[#allocation2 + $0x1b8] sm:$0xff]
  %v1449 = vld [vmem:[#allocation2 + $0x1c8] sm:$0xff]
  %v1450 = vld [vmem:[#allocation2 + $0x1d0] sm:$0xff]
  %v1451 = vld [vmem:[#allocation2 + $0x1e0] sm:$0xff]
  %v1452 = vld [vmem:[#allocation2 + $0x1e8] sm:$0xff]
  %v1453 = vld [vmem:[#allocation2 + $0x1f8] sm:$0xff]
  %v1454 = vld [vmem:[#allocation2 + $0x200] sm:$0xff]
  %v1455 = vld [vmem:[#allocation2 + $0x210] sm:$0xff]
  %v1456 = vld [vmem:[#allocation2 + $0x218] sm:$0xff]
  %v1457 = vld [vmem:[#allocation2 + $0x228] sm:$0xff]
  %v1458 = vld [vmem:[#allocation2 + $0x230] sm:$0xff]
  %v1459 = vld [vmem:[#allocation2 + $0x240] sm:$0xff]
  %v1460 = vld [vmem:[#allocation2 + $0x248] sm:$0xff]
  %v1461 = vld [vmem:[#allocation2 + $0x258] sm:$0xff]
  %v1462 = vld [vmem:[#allocation2 + $0x260] sm:$0xff]
  %v1463 = vld [vmem:[#allocation2 + $0x270] sm:$0xff]
  %v1464 = vld [vmem:[#allocation2 + $0x278] sm:$0xff]
  %v1465 = vld [vmem:[#allocation2 + $0x288] sm:$0xff]
  %v1466 = vld [vmem:[#allocation2 + $0x290] sm:$0xff]
  %v1467 = vld [vmem:[#allocation2 + $0x2a0] sm:$0xff]
  %v1468 = vld [vmem:[#allocation2 + $0x2a8] sm:$0xff]
  %v1469 = vld [vmem:[#allocation2 + $0x2b8] sm:$0xff]
  %v1470 = vld [vmem:[#allocation2 + $0x2c0] sm:$0xff]
  %v1471 = vld [vmem:[#allocation2 + $0x2d0] sm:$0xff]
  %v1472 = vld [vmem:[#allocation2 + $0x2d8] sm:$0xff]
  %v1473 = vld [vmem:[#allocation2 + $0x2e8] sm:$0xff]
  %v1474 = vld [vmem:[#allocation2 + $0x2f0] sm:$0xff]
  %v1475 = vld [vmem:[#allocation2 + $0x300] sm:$0xff]
  %v1476 = vld [vmem:[#allocation2 + $0x308] sm:$0xff]
  %v1477 = vld [vmem:[#allocation2 + $0x318] sm:$0xff]
  %v1478 = vld [vmem:[#allocation2 + $0x320] sm:$0xff]
  %v1479 = vld [vmem:[#allocation2 + $0x1] sm:$0xff]
  %v1480 = vld [vmem:[#allocation2 + $0x9] sm:$0xff]
  %v1481 = vld [vmem:[#allocation2 + $0x19] sm:$0xff]
  %v1482 = vld [vmem:[#allocation2 + $0x21] sm:$0xff]
  %v1483 = vld [vmem:[#allocation2 + $0x31] sm:$0xff]
  %v1484 = vld [vmem:[#allocation2 + $0x39] sm:$0xff]
  %v1485 = vld [vmem:[#allocation2 + $0x49] sm:$0xff]
  %v1486 = vld [vmem:[#allocation2 + $0x51] sm:$0xff]
  %v1487 = vld [vmem:[#allocation2 + $0x61] sm:$0xff]
  %v1488 = vld [vmem:[#allocation2 + $0x69] sm:$0xff]
  %v1489 = vld [vmem:[#allocation2 + $0x79] sm:$0xff]
  %v1490 = vld [vmem:[#allocation2 + $0x81] sm:$0xff]
  %v1491 = vld [vmem:[#allocation2 + $0x91] sm:$0xff]
  %v1492 = vld [vmem:[#allocation2 + $0x99] sm:$0xff]
  %v1493 = vld [vmem:[#allocation2 + $0xa9] sm:$0xff]
  %v1494 = vld [vmem:[#allocation2 + $0xb1] sm:$0xff]
  %v1495 = vld [vmem:[#allocation2 + $0xc1] sm:$0xff]
  %v1496 = vld [vmem:[#allocation2 + $0xc9] sm:$0xff]
  %v1497 = vld [vmem:[#allocation2 + $0xd9] sm:$0xff]
  %v1498 = vld [vmem:[#allocation2 + $0xe1] sm:$0xff]
  %v1499 = vld [vmem:[#allocation2 + $0xf1] sm:$0xff]
  %v1500 = vld [vmem:[#allocation2 + $0xf9] sm:$0xff]
  %v1501 = vld [vmem:[#allocation2 + $0x109] sm:$0xff]
  %v1502 = vld [vmem:[#allocation2 + $0x111] sm:$0xff]
  %v1503 = vld [vmem:[#allocation2 + $0x121] sm:$0xff]
  %v1504 = vld [vmem:[#allocation2 + $0x129] sm:$0xff]
  %v1505 = vld [vmem:[#allocation2 + $0x139] sm:$0xff]
  %v1506 = vld [vmem:[#allocation2 + $0x141] sm:$0xff]
  %v1507 = vld [vmem:[#allocation2 + $0x151] sm:$0xff]
  %v1508 = vld [vmem:[#allocation2 + $0x159] sm:$0xff]
  %v1509 = vld [vmem:[#allocation2 + $0x169] sm:$0xff]
  %v1510 = vld [vmem:[#allocation2 + $0x171] sm:$0xff]
  %v1511 = vld [vmem:[#allocation2 + $0x1b1] sm:$0xff]
  %v1512 = vld [vmem:[#allocation2 + $0x1b9] sm:$0xff]
  %v1513 = vld [vmem:[#allocation2 + $0x1c9] sm:$0xff]
  %v1514 = vld [vmem:[#allocation2 + $0x1d1] sm:$0xff]
  %v1515 = vld [vmem:[#allocation2 + $0x1e1] sm:$0xff]
  %v1516 = vld [vmem:[#allocation2 + $0x1e9] sm:$0xff]
  %v1517 = vld [vmem:[#allocation2 + $0x1f9] sm:$0xff]
  %v1518 = vld [vmem:[#allocation2 + $0x201] sm:$0xff]
  %v1519 = vld [vmem:[#allocation2 + $0x211] sm:$0xff]
  %v1520 = vld [vmem:[#allocation2 + $0x219] sm:$0xff]
  %v1521 = vld [vmem:[#allocation2 + $0x229] sm:$0xff]
  %v1522 = vld [vmem:[#allocation2 + $0x231] sm:$0xff]
  %v1523 = vld [vmem:[#allocation2 + $0x241] sm:$0xff]
  %v1524 = vld [vmem:[#allocation2 + $0x249] sm:$0xff]
  %v1525 = vld [vmem:[#allocation2 + $0x259] sm:$0xff]
  %v1526 = vld [vmem:[#allocation2 + $0x261] sm:$0xff]
  %v1527 = vld [vmem:[#allocation2 + $0x271] sm:$0xff]
  %v1528 = vld [vmem:[#allocation2 + $0x279] sm:$0xff]
  %v1529 = vld [vmem:[#allocation2 + $0x289] sm:$0xff]
  %v1530 = vld [vmem:[#allocation2 + $0x291] sm:$0xff]
  %v1531 = vld [vmem:[#allocation2 + $0x2a1] sm:$0xff]
  %v1532 = vld [vmem:[#allocation2 + $0x2a9] sm:$0xff]
  %v1533 = vld [vmem:[#allocation2 + $0x2b9] sm:$0xff]
  %v1534 = vld [vmem:[#allocation2 + $0x2c1] sm:$0xff]
  %v1535 = vld [vmem:[#allocation2 + $0x2d1] sm:$0xff]
  %v1536 = vld [vmem:[#allocation2 + $0x2d9] sm:$0xff]
  %v1537 = vld [vmem:[#allocation2 + $0x2e9] sm:$0xff]
  %v1538 = vld [vmem:[#allocation2 + $0x2f1] sm:$0xff]
  %v1539 = vld [vmem:[#allocation2 + $0x301] sm:$0xff]
  %v1540 = vld [vmem:[#allocation2 + $0x309] sm:$0xff]
  %v1541 = vld [vmem:[#allocation2 + $0x319] sm:$0xff]
  %v1542 = vld [vmem:[#allocation2 + $0x321] sm:$0xff]
  %v1543 = vld [vmem:[#allocation2 + $0x2] sm:$0xff]
  %v1544 = vld [vmem:[#allocation2 + $0xa] sm:$0xff]
  %v1545 = vld [vmem:[#allocation2 + $0x1a] sm:$0xff]
  %v1546 = vld [vmem:[#allocation2 + $0x22] sm:$0xff]
  %v1547 = vld [vmem:[#allocation2 + $0x32] sm:$0xff]
  %v1548 = vld [vmem:[#allocation2 + $0x3a] sm:$0xff]
  %v1549 = vld [vmem:[#allocation2 + $0x4a] sm:$0xff]
  %v1550 = vld [vmem:[#allocation2 + $0x52] sm:$0xff]
  %v1551 = vld [vmem:[#allocation2 + $0x62] sm:$0xff]
  %v1552 = vld [vmem:[#allocation2 + $0x6a] sm:$0xff]
  %v1553 = vld [vmem:[#allocation2 + $0x7a] sm:$0xff]
  %v1554 = vld [vmem:[#allocation2 + $0x82] sm:$0xff]
  %v1555 = vld [vmem:[#allocation2 + $0x92] sm:$0xff]
  %v1556 = vld [vmem:[#allocation2 + $0x9a] sm:$0xff]
  %v1557 = vld [vmem:[#allocation2 + $0xaa] sm:$0xff]
  %v1558 = vld [vmem:[#allocation2 + $0xb2] sm:$0xff]
  %v1559 = vld [vmem:[#allocation2 + $0xc2] sm:$0xff]
  %v1560 = vld [vmem:[#allocation2 + $0xca] sm:$0xff]
  %v1561 = vld [vmem:[#allocation2 + $0xda] sm:$0xff]
  %v1562 = vld [vmem:[#allocation2 + $0xe2] sm:$0xff]
  %v1563 = vld [vmem:[#allocation2 + $0xf2] sm:$0xff]
  %v1564 = vld [vmem:[#allocation2 + $0xfa] sm:$0xff]
  %v1565 = vld [vmem:[#allocation2 + $0x10a] sm:$0xff]
  %v1566 = vld [vmem:[#allocation2 + $0x112] sm:$0xff]
  %v1567 = vld [vmem:[#allocation2 + $0x122] sm:$0xff]
  %v1568 = vld [vmem:[#allocation2 + $0x12a] sm:$0xff]
  %v1569 = vld [vmem:[#allocation2 + $0x13a] sm:$0xff]
  %v1570 = vld [vmem:[#allocation2 + $0x142] sm:$0xff]
  %v1571 = vld [vmem:[#allocation2 + $0x152] sm:$0xff]
  %v1572 = vld [vmem:[#allocation2 + $0x15a] sm:$0xff]
  %v1573 = vld [vmem:[#allocation2 + $0x16a] sm:$0xff]
  %v1574 = vld [vmem:[#allocation2 + $0x172] sm:$0xff]
  %v1575 = vld [vmem:[#allocation2 + $0x1b2] sm:$0xff]
  %v1576 = vld [vmem:[#allocation2 + $0x1ba] sm:$0xff]
  %v1577 = vld [vmem:[#allocation2 + $0x1ca] sm:$0xff]
  %v1578 = vld [vmem:[#allocation2 + $0x1d2] sm:$0xff]
  %v1579 = vld [vmem:[#allocation2 + $0x1e2] sm:$0xff]
  %v1580 = vld [vmem:[#allocation2 + $0x1ea] sm:$0xff]
  %v1581 = vld [vmem:[#allocation2 + $0x1fa] sm:$0xff]
  %v1582 = vld [vmem:[#allocation2 + $0x202] sm:$0xff]
  %v1583 = vld [vmem:[#allocation2 + $0x212] sm:$0xff]
  %v1584 = vld [vmem:[#allocation2 + $0x21a] sm:$0xff]
  %v1585 = vld [vmem:[#allocation2 + $0x22a] sm:$0xff]
  %v1586 = vld [vmem:[#allocation2 + $0x232] sm:$0xff]
  %v1587 = vld [vmem:[#allocation2 + $0x242] sm:$0xff]
  %v1588 = vld [vmem:[#allocation2 + $0x24a] sm:$0xff]
  %v1589 = vld [vmem:[#allocation2 + $0x25a] sm:$0xff]
  %v1590 = vld [vmem:[#allocation2 + $0x262] sm:$0xff]
  %v1591 = vld [vmem:[#allocation2 + $0x272] sm:$0xff]
  %v1592 = vld [vmem:[#allocation2 + $0x27a] sm:$0xff]
  %v1593 = vld [vmem:[#allocation2 + $0x28a] sm:$0xff]
  %v1594 = vld [vmem:[#allocation2 + $0x292] sm:$0xff]
  %v1595 = vld [vmem:[#allocation2 + $0x2a2] sm:$0xff]
  %v1596 = vld [vmem:[#allocation2 + $0x2aa] sm:$0xff]
  %v1597 = vld [vmem:[#allocation2 + $0x2ba] sm:$0xff]
  %v1598 = vld [vmem:[#allocation2 + $0x2c2] sm:$0xff]
  %v1599 = vld [vmem:[#allocation2 + $0x2d2] sm:$0xff]
  %v1600 = vld [vmem:[#allocation2 + $0x2da] sm:$0xff]
  %v1601 = vld [vmem:[#allocation2 + $0x2ea] sm:$0xff]
  %v1602 = vld [vmem:[#allocation2 + $0x2f2] sm:$0xff]
  %v1603 = vld [vmem:[#allocation2 + $0x302] sm:$0xff]
  %v1604 = vld [vmem:[#allocation2 + $0x30a] sm:$0xff]
  %v1605 = vld [vmem:[#allocation2 + $0x31a] sm:$0xff]
  %v1606 = vld [vmem:[#allocation2 + $0x322] sm:$0xff]
  %v1607 = vld [vmem:[%s1350] sm:$0xff]
  %v1608 = vld [vmem:[%s1350 + $0x8] sm:$0xff]
  %v1609 = vld [vmem:[%s1350 + $0x18] sm:$0xff]
  %v1610 = vld [vmem:[%s1350 + $0x20] sm:$0xff]
  %v1611 = vld [vmem:[%s1350 + $0x30] sm:$0xff]
  %v1612 = vld [vmem:[%s1350 + $0x38] sm:$0xff]
  %v1613 = vld [vmem:[%s1350 + $0x48] sm:$0xff]
  %v1614 = vld [vmem:[%s1350 + $0x50] sm:$0xff]
  %v1615 = vld [vmem:[%s1350 + $0x60] sm:$0xff]
  %v1616 = vld [vmem:[%s1350 + $0x68] sm:$0xff]
  %v1617 = vld [vmem:[%s1350 + $0x78] sm:$0xff]
  %v1618 = vld [vmem:[%s1350 + $0x80] sm:$0xff]
  %v1619 = vld [vmem:[%s1350 + $0x90] sm:$0xff]
  %v1620 = vld [vmem:[%s1350 + $0x98] sm:$0xff]
  %v1621 = vld [vmem:[%s1350 + $0xa8] sm:$0xff]
  %v1622 = vld [vmem:[%s1350 + $0xb0] sm:$0xff]
  %v1623 = vld [vmem:[%s1350 + $0xc0] sm:$0xff]
  %v1624 = vld [vmem:[%s1350 + $0xc8] sm:$0xff]
  %v1625 = vld [vmem:[%s1350 + $0xd8] sm:$0xff]
  %v1626 = vld [vmem:[%s1350 + $0xe0] sm:$0xff]
  %v1627 = vld [vmem:[%s1350 + $0xf0] sm:$0xff]
  %v1628 = vld [vmem:[%s1350 + $0xf8] sm:$0xff]
  %v1629 = vld [vmem:[%s1350 + $0x108] sm:$0xff]
  %v1630 = vld [vmem:[%s1350 + $0x110] sm:$0xff]
  %v1631 = vld [vmem:[%s1350 + $0x120] sm:$0xff]
  %v1632 = vld [vmem:[%s1350 + $0x128] sm:$0xff]
  %v1633 = vld [vmem:[%s1350 + $0x138] sm:$0xff]
  %v1634 = vld [vmem:[%s1350 + $0x140] sm:$0xff]
  %v1635 = vld [vmem:[%s1350 + $0x150] sm:$0xff]
  %v1636 = vld [vmem:[%s1350 + $0x158] sm:$0xff]
  %v1637 = vld [vmem:[%s1350 + $0x168] sm:$0xff]
  %v1638 = vld [vmem:[%s1350 + $0x170] sm:$0xff]
  %v1639 = vld [vmem:[%s1350 + $0x1b0] sm:$0xff]
  %v1640 = vld [vmem:[%s1350 + $0x1b8] sm:$0xff]
  %v1641 = vld [vmem:[%s1350 + $0x1c8] sm:$0xff]
  %v1642 = vld [vmem:[%s1350 + $0x1d0] sm:$0xff]
  %v1643 = vld [vmem:[%s1350 + $0x1e0] sm:$0xff]
  %v1644 = vld [vmem:[%s1350 + $0x1e8] sm:$0xff]
  %v1645 = vld [vmem:[%s1350 + $0x1f8] sm:$0xff]
  %v1646 = vld [vmem:[%s1350 + $0x200] sm:$0xff]
  %v1647 = vld [vmem:[%s1350 + $0x210] sm:$0xff]
  %v1648 = vld [vmem:[%s1350 + $0x218] sm:$0xff]
  %v1649 = vld [vmem:[%s1350 + $0x228] sm:$0xff]
  %v1650 = vld [vmem:[%s1350 + $0x230] sm:$0xff]
  %v1651 = vld [vmem:[%s1350 + $0x240] sm:$0xff]
  %v1652 = vld [vmem:[%s1350 + $0x248] sm:$0xff]
  %v1653 = vld [vmem:[%s1350 + $0x258] sm:$0xff]
  %v1654 = vld [vmem:[%s1350 + $0x260] sm:$0xff]
  %v1655 = vld [vmem:[%s1350 + $0x270] sm:$0xff]
  %v1656 = vld [vmem:[%s1350 + $0x278] sm:$0xff]
  %v1657 = vld [vmem:[%s1350 + $0x288] sm:$0xff]
  %v1658 = vld [vmem:[%s1350 + $0x290] sm:$0xff]
  %v1659 = vld [vmem:[%s1350 + $0x2a0] sm:$0xff]
  %v1660 = vld [vmem:[%s1350 + $0x2a8] sm:$0xff]
  %v1661 = vld [vmem:[%s1350 + $0x2b8] sm:$0xff]
  %v1662 = vld [vmem:[%s1350 + $0x2c0] sm:$0xff]
  %v1663 = vld [vmem:[%s1350 + $0x2d0] sm:$0xff]
  %v1664 = vld [vmem:[%s1350 + $0x2d8] sm:$0xff]
  %v1665 = vld [vmem:[%s1350 + $0x2e8] sm:$0xff]
  %v1666 = vld [vmem:[%s1350 + $0x2f0] sm:$0xff]
  %v1667 = vld [vmem:[%s1350 + $0x300] sm:$0xff]
  %v1668 = vld [vmem:[%s1350 + $0x308] sm:$0xff]
  %v1669 = vld [vmem:[%s1350 + $0x318] sm:$0xff]
  %v1670 = vld [vmem:[%s1350 + $0x320] sm:$0xff]
  %v1671 = vld [vmem:[%s1350 + $0x1] sm:$0xff]
  %v1672 = vld [vmem:[%s1350 + $0x9] sm:$0xff]
  %v1673 = vld [vmem:[%s1350 + $0x19] sm:$0xff]
  %v1674 = vld [vmem:[%s1350 + $0x21] sm:$0xff]
  %v1675 = vld [vmem:[%s1350 + $0x31] sm:$0xff]
  %v1676 = vld [vmem:[%s1350 + $0x39] sm:$0xff]
  %v1677 = vld [vmem:[%s1350 + $0x49] sm:$0xff]
  %v1678 = vld [vmem:[%s1350 + $0x51] sm:$0xff]
  %v1679 = vld [vmem:[%s1350 + $0x61] sm:$0xff]
  %v1680 = vld [vmem:[%s1350 + $0x69] sm:$0xff]
  %v1681 = vld [vmem:[%s1350 + $0x79] sm:$0xff]
  %v1682 = vld [vmem:[%s1350 + $0x81] sm:$0xff]
  %v1683 = vld [vmem:[%s1350 + $0x91] sm:$0xff]
  %v1684 = vld [vmem:[%s1350 + $0x99] sm:$0xff]
  %v1685 = vld [vmem:[%s1350 + $0xa9] sm:$0xff]
  %v1686 = vld [vmem:[%s1350 + $0xb1] sm:$0xff]
  %v1687 = vld [vmem:[%s1350 + $0xc1] sm:$0xff]
  %v1688 = vld [vmem:[%s1350 + $0xc9] sm:$0xff]
  %v1689 = vld [vmem:[%s1350 + $0xd9] sm:$0xff]
  %v1690 = vld [vmem:[%s1350 + $0xe1] sm:$0xff]
  %v1691 = vld [vmem:[%s1350 + $0xf1] sm:$0xff]
  %v1692 = vld [vmem:[%s1350 + $0xf9] sm:$0xff]
  %v1693 = vld [vmem:[%s1350 + $0x109] sm:$0xff]
  %v1694 = vld [vmem:[%s1350 + $0x111] sm:$0xff]
  %v1695 = vld [vmem:[%s1350 + $0x121] sm:$0xff]
  %v1696 = vld [vmem:[%s1350 + $0x129] sm:$0xff]
  %v1697 = vld [vmem:[%s1350 + $0x139] sm:$0xff]
  %v1698 = vld [vmem:[%s1350 + $0x141] sm:$0xff]
  %v1699 = vld [vmem:[%s1350 + $0x151] sm:$0xff]
  %v1700 = vld [vmem:[%s1350 + $0x159] sm:$0xff]
  %v1701 = vld [vmem:[%s1350 + $0x169] sm:$0xff]
  %v1702 = vld [vmem:[%s1350 + $0x171] sm:$0xff]
  %v1703 = vld [vmem:[%s1350 + $0x1b1] sm:$0xff]
  %v1704 = vld [vmem:[%s1350 + $0x1b9] sm:$0xff]
  %v1705 = vld [vmem:[%s1350 + $0x1c9] sm:$0xff]
  %v1706 = vld [vmem:[%s1350 + $0x1d1] sm:$0xff]
  %v1707 = vld [vmem:[%s1350 + $0x1e1] sm:$0xff]
  %v1708 = vld [vmem:[%s1350 + $0x1e9] sm:$0xff]
  %v1709 = vld [vmem:[%s1350 + $0x1f9] sm:$0xff]
  %v1710 = vld [vmem:[%s1350 + $0x201] sm:$0xff]
  %v1711 = vld [vmem:[%s1350 + $0x211] sm:$0xff]
  %v1712 = vld [vmem:[%s1350 + $0x219] sm:$0xff]
  %v1713 = vld [vmem:[%s1350 + $0x229] sm:$0xff]
  %v1714 = vld [vmem:[%s1350 + $0x231] sm:$0xff]
  %v1715 = vld [vmem:[%s1350 + $0x241] sm:$0xff]
  %v1716 = vld [vmem:[%s1350 + $0x249] sm:$0xff]
  %v1717 = vld [vmem:[%s1350 + $0x259] sm:$0xff]
  %v1718 = vld [vmem:[%s1350 + $0x261] sm:$0xff]
  %v1719 = vld [vmem:[%s1350 + $0x271] sm:$0xff]
  %v1720 = vld [vmem:[%s1350 + $0x279] sm:$0xff]
  %v1721 = vld [vmem:[%s1350 + $0x289] sm:$0xff]
  %v1722 = vld [vmem:[%s1350 + $0x291] sm:$0xff]
  %v1723 = vld [vmem:[%s1350 + $0x2a1] sm:$0xff]
  %v1724 = vld [vmem:[%s1350 + $0x2a9] sm:$0xff]
  %v1725 = vld [vmem:[%s1350 + $0x2b9] sm:$0xff]
  %v1726 = vld [vmem:[%s1350 + $0x2c1] sm:$0xff]
  %v1727 = vld [vmem:[%s1350 + $0x2d1] sm:$0xff]
  %v1728 = vld [vmem:[%s1350 + $0x2d9] sm:$0xff]
  %v1729 = vld [vmem:[%s1350 + $0x2e9] sm:$0xff]
  %v1730 = vld [vmem:[%s1350 + $0x2f1] sm:$0xff]
  %v1731 = vld [vmem:[%s1350 + $0x301] sm:$0xff]
  %v1732 = vld [vmem:[%s1350 + $0x309] sm:$0xff]
  %v1733 = vld [vmem:[%s1350 + $0x319] sm:$0xff]
  %v1734 = vld [vmem:[%s1350 + $0x321] sm:$0xff]
  %v1735 = vld [vmem:[%s1350 + $0x2] sm:$0xff]
  %v1736 = vld [vmem:[%s1350 + $0xa] sm:$0xff]
  %v1737 = vld [vmem:[%s1350 + $0x1a] sm:$0xff]
  %v1738 = vld [vmem:[%s1350 + $0x22] sm:$0xff]
  %v1739 = vld [vmem:[%s1350 + $0x32] sm:$0xff]
  %v1740 = vld [vmem:[%s1350 + $0x3a] sm:$0xff]
  %v1741 = vld [vmem:[%s1350 + $0x4a] sm:$0xff]
  %v1742 = vld [vmem:[%s1350 + $0x52] sm:$0xff]
  %v1743 = vld [vmem:[%s1350 + $0x62] sm:$0xff]
  %v1744 = vld [vmem:[%s1350 + $0x6a] sm:$0xff]
  %v1745 = vld [vmem:[%s1350 + $0x7a] sm:$0xff]
  %v1746 = vld [vmem:[%s1350 + $0x82] sm:$0xff]
  %v1747 = vld [vmem:[%s1350 + $0x92] sm:$0xff]
  %v1748 = vld [vmem:[%s1350 + $0x9a] sm:$0xff]
  %v1749 = vld [vmem:[%s1350 + $0xaa] sm:$0xff]
  %v1750 = vld [vmem:[%s1350 + $0xb2] sm:$0xff]
  %v1751 = vld [vmem:[%s1350 + $0xc2] sm:$0xff]
  %v1752 = vld [vmem:[%s1350 + $0xca] sm:$0xff]
  %v1753 = vld [vmem:[%s1350 + $0xda] sm:$0xff]
  %v1754 = vld [vmem:[%s1350 + $0xe2] sm:$0xff]
  %v1755 = vld [vmem:[%s1350 + $0xf2] sm:$0xff]
  %v1756 = vld [vmem:[%s1350 + $0xfa] sm:$0xff]
  %v1757 = vld [vmem:[%s1350 + $0x10a] sm:$0xff]
  %v1758 = vld [vmem:[%s1350 + $0x112] sm:$0xff]
  %v1759 = vld [vmem:[%s1350 + $0x122] sm:$0xff]
  %v1760 = vld [vmem:[%s1350 + $0x12a] sm:$0xff]
  %v1761 = vld [vmem:[%s1350 + $0x13a] sm:$0xff]
  %v1762 = vld [vmem:[%s1350 + $0x142] sm:$0xff]
  %v1763 = vld [vmem:[%s1350 + $0x152] sm:$0xff]
  %v1764 = vld [vmem:[%s1350 + $0x15a] sm:$0xff]
  %v1765 = vld [vmem:[%s1350 + $0x16a] sm:$0xff]
  %v1766 = vld [vmem:[%s1350 + $0x172] sm:$0xff]
  %v1767 = vld [vmem:[%s1350 + $0x1b2] sm:$0xff]
  %v1768 = vld [vmem:[%s1350 + $0x1ba] sm:$0xff]
  %v1769 = vld [vmem:[%s1350 + $0x1ca] sm:$0xff]
  %v1770 = vld [vmem:[%s1350 + $0x1d2] sm:$0xff]
  %v1771 = vld [vmem:[%s1350 + $0x1e2] sm:$0xff]
  %v1772 = vld [vmem:[%s1350 + $0x1ea] sm:$0xff]
  %v1773 = vld [vmem:[%s1350 + $0x1fa] sm:$0xff]
  %v1774 = vld [vmem:[%s1350 + $0x202] sm:$0xff]
  %v1775 = vld [vmem:[%s1350 + $0x212] sm:$0xff]
  %v1776 = vld [vmem:[%s1350 + $0x21a] sm:$0xff]
  %v1777 = vld [vmem:[%s1350 + $0x22a] sm:$0xff]
  %v1778 = vld [vmem:[%s1350 + $0x232] sm:$0xff]
  %v1779 = vld [vmem:[%s1350 + $0x242] sm:$0xff]
  %v1780 = vld [vmem:[%s1350 + $0x24a] sm:$0xff]
  %v1781 = vld [vmem:[%s1350 + $0x25a] sm:$0xff]
  %v1782 = vld [vmem:[%s1350 + $0x262] sm:$0xff]
  %v1783 = vld [vmem:[%s1350 + $0x272] sm:$0xff]
  %v1784 = vld [vmem:[%s1350 + $0x27a] sm:$0xff]
  %v1785 = vld [vmem:[%s1350 + $0x28a] sm:$0xff]
  %v1786 = vld [vmem:[%s1350 + $0x292] sm:$0xff]
  %v1787 = vld [vmem:[%s1350 + $0x2a2] sm:$0xff]
  %v1788 = vld [vmem:[%s1350 + $0x2aa] sm:$0xff]
  %v1789 = vld [vmem:[%s1350 + $0x2ba] sm:$0xff]
  %v1790 = vld [vmem:[%s1350 + $0x2c2] sm:$0xff]
  %v1791 = vld [vmem:[%s1350 + $0x2d2] sm:$0xff]
  %v1792 = vld [vmem:[%s1350 + $0x2da] sm:$0xff]
  %v1793 = vld [vmem:[%s1350 + $0x2ea] sm:$0xff]
  %v1794 = vld [vmem:[%s1350 + $0x2f2] sm:$0xff]
  %v1795 = vld [vmem:[%s1350 + $0x302] sm:$0xff]
  %v1796 = vld [vmem:[%s1350 + $0x30a] sm:$0xff]
  %v1797 = vld [vmem:[%s1350 + $0x31a] sm:$0xff]
  %v1798 = vld [vmem:[%s1350 + $0x322] sm:$0xff]
  %s1799 = scalar_lea.vmem [#allocation2], 48
  %v1800 = vld [vmem:[%s1799] sm:$0xff]
  %v1801 = vld [vmem:[%s1799 + $0x8] sm:$0xff]
  %v1802 = vld [vmem:[%s1799 + $0x18] sm:$0xff]
  %v1803 = vld [vmem:[%s1799 + $0x20] sm:$0xff]
  %v1804 = vld [vmem:[%s1799 + $0x30] sm:$0xff]
  %v1805 = vld [vmem:[%s1799 + $0x38] sm:$0xff]
  %v1806 = vld [vmem:[%s1799 + $0x48] sm:$0xff]
  %v1807 = vld [vmem:[%s1799 + $0x50] sm:$0xff]
  %v1808 = vld [vmem:[%s1799 + $0x60] sm:$0xff]
  %v1809 = vld [vmem:[%s1799 + $0x68] sm:$0xff]
  %v1810 = vld [vmem:[%s1799 + $0x78] sm:$0xff]
  %v1811 = vld [vmem:[%s1799 + $0x80] sm:$0xff]
  %v1812 = vld [vmem:[%s1799 + $0x90] sm:$0xff]
  %v1813 = vld [vmem:[%s1799 + $0x98] sm:$0xff]
  %v1814 = vld [vmem:[%s1799 + $0xa8] sm:$0xff]
  %v1815 = vld [vmem:[%s1799 + $0xb0] sm:$0xff]
  %v1816 = vld [vmem:[%s1799 + $0xc0] sm:$0xff]
  %v1817 = vld [vmem:[%s1799 + $0xc8] sm:$0xff]
  %v1818 = vld [vmem:[%s1799 + $0xd8] sm:$0xff]
  %v1819 = vld [vmem:[%s1799 + $0xe0] sm:$0xff]
  %v1820 = vld [vmem:[%s1799 + $0xf0] sm:$0xff]
  %v1821 = vld [vmem:[%s1799 + $0xf8] sm:$0xff]
  %v1822 = vld [vmem:[%s1799 + $0x108] sm:$0xff]
  %v1823 = vld [vmem:[%s1799 + $0x110] sm:$0xff]
  %v1824 = vld [vmem:[%s1799 + $0x120] sm:$0xff]
  %v1825 = vld [vmem:[%s1799 + $0x128] sm:$0xff]
  %v1826 = vld [vmem:[%s1799 + $0x138] sm:$0xff]
  %v1827 = vld [vmem:[%s1799 + $0x140] sm:$0xff]
  %v1828 = vld [vmem:[%s1799 + $0x150] sm:$0xff]
  %v1829 = vld [vmem:[%s1799 + $0x158] sm:$0xff]
  %v1830 = vld [vmem:[%s1799 + $0x168] sm:$0xff]
  %v1831 = vld [vmem:[%s1799 + $0x170] sm:$0xff]
  %v1832 = vld [vmem:[%s1799 + $0x1b0] sm:$0xff]
  %v1833 = vld [vmem:[%s1799 + $0x1b8] sm:$0xff]
  %v1834 = vld [vmem:[%s1799 + $0x1c8] sm:$0xff]
  %v1835 = vld [vmem:[%s1799 + $0x1d0] sm:$0xff]
  %v1836 = vld [vmem:[%s1799 + $0x1e0] sm:$0xff]
  %v1837 = vld [vmem:[%s1799 + $0x1e8] sm:$0xff]
  %v1838 = vld [vmem:[%s1799 + $0x1f8] sm:$0xff]
  %v1839 = vld [vmem:[%s1799 + $0x200] sm:$0xff]
  %v1840 = vld [vmem:[%s1799 + $0x210] sm:$0xff]
  %v1841 = vld [vmem:[%s1799 + $0x218] sm:$0xff]
  %v1842 = vld [vmem:[%s1799 + $0x228] sm:$0xff]
  %v1843 = vld [vmem:[%s1799 + $0x230] sm:$0xff]
  %v1844 = vld [vmem:[%s1799 + $0x240] sm:$0xff]
  %v1845 = vld [vmem:[%s1799 + $0x248] sm:$0xff]
  %v1846 = vld [vmem:[%s1799 + $0x258] sm:$0xff]
  %v1847 = vld [vmem:[%s1799 + $0x260] sm:$0xff]
  %v1848 = vld [vmem:[%s1799 + $0x270] sm:$0xff]
  %v1849 = vld [vmem:[%s1799 + $0x278] sm:$0xff]
  %v1850 = vld [vmem:[%s1799 + $0x288] sm:$0xff]
  %v1851 = vld [vmem:[%s1799 + $0x290] sm:$0xff]
  %v1852 = vld [vmem:[%s1799 + $0x2a0] sm:$0xff]
  %v1853 = vld [vmem:[%s1799 + $0x2a8] sm:$0xff]
  %v1854 = vld [vmem:[%s1799 + $0x2b8] sm:$0xff]
  %v1855 = vld [vmem:[%s1799 + $0x2c0] sm:$0xff]
  %v1856 = vld [vmem:[%s1799 + $0x2d0] sm:$0xff]
  %v1857 = vld [vmem:[%s1799 + $0x2d8] sm:$0xff]
  %v1858 = vld [vmem:[%s1799 + $0x2e8] sm:$0xff]
  %v1859 = vld [vmem:[%s1799 + $0x2f0] sm:$0xff]
  %v1860 = vld [vmem:[%s1799 + $0x300] sm:$0xff]
  %v1861 = vld [vmem:[%s1799 + $0x308] sm:$0xff]
  %v1862 = vld [vmem:[%s1799 + $0x318] sm:$0xff]
  %v1863 = vld [vmem:[%s1799 + $0x320] sm:$0xff]
  %v1864 = vld [vmem:[%s1799 + $0x1] sm:$0xff]
  %v1865 = vld [vmem:[%s1799 + $0x9] sm:$0xff]
  %v1866 = vld [vmem:[%s1799 + $0x19] sm:$0xff]
  %v1867 = vld [vmem:[%s1799 + $0x21] sm:$0xff]
  %v1868 = vld [vmem:[%s1799 + $0x31] sm:$0xff]
  %v1869 = vld [vmem:[%s1799 + $0x39] sm:$0xff]
  %v1870 = vld [vmem:[%s1799 + $0x49] sm:$0xff]
  %v1871 = vld [vmem:[%s1799 + $0x51] sm:$0xff]
  %v1872 = vld [vmem:[%s1799 + $0x61] sm:$0xff]
  %v1873 = vld [vmem:[%s1799 + $0x69] sm:$0xff]
  %v1874 = vld [vmem:[%s1799 + $0x79] sm:$0xff]
  %v1875 = vld [vmem:[%s1799 + $0x81] sm:$0xff]
  %v1876 = vld [vmem:[%s1799 + $0x91] sm:$0xff]
  %v1877 = vld [vmem:[%s1799 + $0x99] sm:$0xff]
  %v1878 = vld [vmem:[%s1799 + $0xa9] sm:$0xff]
  %v1879 = vld [vmem:[%s1799 + $0xb1] sm:$0xff]
  %v1880 = vld [vmem:[%s1799 + $0xc1] sm:$0xff]
  %v1881 = vld [vmem:[%s1799 + $0xc9] sm:$0xff]
  %v1882 = vld [vmem:[%s1799 + $0xd9] sm:$0xff]
  %v1883 = vld [vmem:[%s1799 + $0xe1] sm:$0xff]
  %v1884 = vld [vmem:[%s1799 + $0xf1] sm:$0xff]
  %v1885 = vld [vmem:[%s1799 + $0xf9] sm:$0xff]
  %v1886 = vld [vmem:[%s1799 + $0x109] sm:$0xff]
  %v1887 = vld [vmem:[%s1799 + $0x111] sm:$0xff]
  %v1888 = vld [vmem:[%s1799 + $0x121] sm:$0xff]
  %v1889 = vld [vmem:[%s1799 + $0x129] sm:$0xff]
  %v1890 = vld [vmem:[%s1799 + $0x139] sm:$0xff]
  %v1891 = vld [vmem:[%s1799 + $0x141] sm:$0xff]
  %v1892 = vld [vmem:[%s1799 + $0x151] sm:$0xff]
  %v1893 = vld [vmem:[%s1799 + $0x159] sm:$0xff]
  %v1894 = vld [vmem:[%s1799 + $0x169] sm:$0xff]
  %v1895 = vld [vmem:[%s1799 + $0x171] sm:$0xff]
  %v1896 = vld [vmem:[%s1799 + $0x1b1] sm:$0xff]
  %v1897 = vld [vmem:[%s1799 + $0x1b9] sm:$0xff]
  %v1898 = vld [vmem:[%s1799 + $0x1c9] sm:$0xff]
  %v1899 = vld [vmem:[%s1799 + $0x1d1] sm:$0xff]
  %v1900 = vld [vmem:[%s1799 + $0x1e1] sm:$0xff]
  %v1901 = vld [vmem:[%s1799 + $0x1e9] sm:$0xff]
  %v1902 = vld [vmem:[%s1799 + $0x1f9] sm:$0xff]
  %v1903 = vld [vmem:[%s1799 + $0x201] sm:$0xff]
  %v1904 = vld [vmem:[%s1799 + $0x211] sm:$0xff]
  %v1905 = vld [vmem:[%s1799 + $0x219] sm:$0xff]
  %v1906 = vld [vmem:[%s1799 + $0x229] sm:$0xff]
  %v1907 = vld [vmem:[%s1799 + $0x231] sm:$0xff]
  %v1908 = vld [vmem:[%s1799 + $0x241] sm:$0xff]
  %v1909 = vld [vmem:[%s1799 + $0x249] sm:$0xff]
  %v1910 = vld [vmem:[%s1799 + $0x259] sm:$0xff]
  %v1911 = vld [vmem:[%s1799 + $0x261] sm:$0xff]
  %v1912 = vld [vmem:[%s1799 + $0x271] sm:$0xff]
  %v1913 = vld [vmem:[%s1799 + $0x279] sm:$0xff]
  %v1914 = vld [vmem:[%s1799 + $0x289] sm:$0xff]
  %v1915 = vld [vmem:[%s1799 + $0x291] sm:$0xff]
  %v1916 = vld [vmem:[%s1799 + $0x2a1] sm:$0xff]
  %v1917 = vld [vmem:[%s1799 + $0x2a9] sm:$0xff]
  %v1918 = vld [vmem:[%s1799 + $0x2b9] sm:$0xff]
  %v1919 = vld [vmem:[%s1799 + $0x2c1] sm:$0xff]
  %v1920 = vld [vmem:[%s1799 + $0x2d1] sm:$0xff]
  %v1921 = vld [vmem:[%s1799 + $0x2d9] sm:$0xff]
  %v1922 = vld [vmem:[%s1799 + $0x2e9] sm:$0xff]
  %v1923 = vld [vmem:[%s1799 + $0x2f1] sm:$0xff]
  %v1924 = vld [vmem:[%s1799 + $0x301] sm:$0xff]
  %v1925 = vld [vmem:[%s1799 + $0x309] sm:$0xff]
  %v1926 = vld [vmem:[%s1799 + $0x319] sm:$0xff]
  %v1927 = vld [vmem:[%s1799 + $0x321] sm:$0xff]
  %v1928 = vld [vmem:[%s1799 + $0x2] sm:$0xff]
  %v1929 = vld [vmem:[%s1799 + $0xa] sm:$0xff]
  %v1930 = vld [vmem:[%s1799 + $0x1a] sm:$0xff]
  %v1931 = vld [vmem:[%s1799 + $0x22] sm:$0xff]
  %v1932 = vld [vmem:[%s1799 + $0x32] sm:$0xff]
  %v1933 = vld [vmem:[%s1799 + $0x3a] sm:$0xff]
  %v1934 = vld [vmem:[%s1799 + $0x4a] sm:$0xff]
  %v1935 = vld [vmem:[%s1799 + $0x52] sm:$0xff]
  %v1936 = vld [vmem:[%s1799 + $0x62] sm:$0xff]
  %v1937 = vld [vmem:[%s1799 + $0x6a] sm:$0xff]
  %v1938 = vld [vmem:[%s1799 + $0x7a] sm:$0xff]
  %v1939 = vld [vmem:[%s1799 + $0x82] sm:$0xff]
  %v1940 = vld [vmem:[%s1799 + $0x92] sm:$0xff]
  %v1941 = vld [vmem:[%s1799 + $0x9a] sm:$0xff]
  %v1942 = vld [vmem:[%s1799 + $0xaa] sm:$0xff]
  %v1943 = vld [vmem:[%s1799 + $0xb2] sm:$0xff]
  %v1944 = vld [vmem:[%s1799 + $0xc2] sm:$0xff]
  %v1945 = vld [vmem:[%s1799 + $0xca] sm:$0xff]
  %v1946 = vld [vmem:[%s1799 + $0xda] sm:$0xff]
  %v1947 = vld [vmem:[%s1799 + $0xe2] sm:$0xff]
  %v1948 = vld [vmem:[%s1799 + $0xf2] sm:$0xff]
  %v1949 = vld [vmem:[%s1799 + $0xfa] sm:$0xff]
  %v1950 = vld [vmem:[%s1799 + $0x10a] sm:$0xff]
  %v1951 = vld [vmem:[%s1799 + $0x112] sm:$0xff]
  %v1952 = vld [vmem:[%s1799 + $0x122] sm:$0xff]
  %v1953 = vld [vmem:[%s1799 + $0x12a] sm:$0xff]
  %v1954 = vld [vmem:[%s1799 + $0x13a] sm:$0xff]
  %v1955 = vld [vmem:[%s1799 + $0x142] sm:$0xff]
  %v1956 = vld [vmem:[%s1799 + $0x152] sm:$0xff]
  %v1957 = vld [vmem:[%s1799 + $0x15a] sm:$0xff]
  %v1958 = vld [vmem:[%s1799 + $0x16a] sm:$0xff]
  %v1959 = vld [vmem:[%s1799 + $0x172] sm:$0xff]
  %v1960 = vld [vmem:[%s1799 + $0x1b2] sm:$0xff]
  %v1961 = vld [vmem:[%s1799 + $0x1ba] sm:$0xff]
  %v1962 = vld [vmem:[%s1799 + $0x1ca] sm:$0xff]
  %v1963 = vld [vmem:[%s1799 + $0x1d2] sm:$0xff]
  %v1964 = vld [vmem:[%s1799 + $0x1e2] sm:$0xff]
  %v1965 = vld [vmem:[%s1799 + $0x1ea] sm:$0xff]
  %v1966 = vld [vmem:[%s1799 + $0x1fa] sm:$0xff]
  %v1967 = vld [vmem:[%s1799 + $0x202] sm:$0xff]
  %v1968 = vld [vmem:[%s1799 + $0x212] sm:$0xff]
  %v1969 = vld [vmem:[%s1799 + $0x21a] sm:$0xff]
  %v1970 = vld [vmem:[%s1799 + $0x22a] sm:$0xff]
  %v1971 = vld [vmem:[%s1799 + $0x232] sm:$0xff]
  %v1972 = vld [vmem:[%s1799 + $0x242] sm:$0xff]
  %v1973 = vld [vmem:[%s1799 + $0x24a] sm:$0xff]
  %v1974 = vld [vmem:[%s1799 + $0x25a] sm:$0xff]
  %v1975 = vld [vmem:[%s1799 + $0x262] sm:$0xff]
  %v1976 = vld [vmem:[%s1799 + $0x272] sm:$0xff]
  %v1977 = vld [vmem:[%s1799 + $0x27a] sm:$0xff]
  %v1978 = vld [vmem:[%s1799 + $0x28a] sm:$0xff]
  %v1979 = vld [vmem:[%s1799 + $0x292] sm:$0xff]
  %v1980 = vld [vmem:[%s1799 + $0x2a2] sm:$0xff]
  %v1981 = vld [vmem:[%s1799 + $0x2aa] sm:$0xff]
  %v1982 = vld [vmem:[%s1799 + $0x2ba] sm:$0xff]
  %v1983 = vld [vmem:[%s1799 + $0x2c2] sm:$0xff]
  %v1984 = vld [vmem:[%s1799 + $0x2d2] sm:$0xff]
  %v1985 = vld [vmem:[%s1799 + $0x2da] sm:$0xff]
  %v1986 = vld [vmem:[%s1799 + $0x2ea] sm:$0xff]
  %v1987 = vld [vmem:[%s1799 + $0x2f2] sm:$0xff]
  %v1988 = vld [vmem:[%s1799 + $0x302] sm:$0xff]
  %v1989 = vld [vmem:[%s1799 + $0x30a] sm:$0xff]
  %v1990 = vld [vmem:[%s1799 + $0x31a] sm:$0xff]
  %v1991 = vld [vmem:[%s1799 + $0x322] sm:$0xff]
  %2056 = vrot.lane.b32.xlu0 %v1479, 32
  %v2057 = vpop.permute.xlu0 %2056
  %2058 = vrot.lane.b32.xlu0 %v1480, 32
  %v2059 = vpop.permute.xlu0 %2058
  %2060 = vrot.lane.b32.xlu0 %v1481, 32
  %v2061 = vpop.permute.xlu0 %2060
  %2062 = vrot.lane.b32.xlu0 %v1482, 32
  %v2063 = vpop.permute.xlu0 %2062
  %2064 = vrot.lane.b32.xlu0 %v1483, 32
  %v2065 = vpop.permute.xlu0 %2064
  %2066 = vrot.lane.b32.xlu0 %v1484, 32
  %v2067 = vpop.permute.xlu0 %2066
  %2068 = vrot.lane.b32.xlu0 %v1485, 32
  %v2069 = vpop.permute.xlu0 %2068
  %2070 = vrot.lane.b32.xlu0 %v1486, 32
  %v2071 = vpop.permute.xlu0 %2070
  %2072 = vrot.lane.b32.xlu0 %v1487, 32
  %v2073 = vpop.permute.xlu0 %2072
  %2074 = vrot.lane.b32.xlu0 %v1488, 32
  %v2075 = vpop.permute.xlu0 %2074
  %2076 = vrot.lane.b32.xlu0 %v1489, 32
  %v2077 = vpop.permute.xlu0 %2076
  %2078 = vrot.lane.b32.xlu0 %v1490, 32
  %v2079 = vpop.permute.xlu0 %2078
  %2080 = vrot.lane.b32.xlu0 %v1491, 32
  %v2081 = vpop.permute.xlu0 %2080
  %2082 = vrot.lane.b32.xlu0 %v1492, 32
  %v2083 = vpop.permute.xlu0 %2082
  %2084 = vrot.lane.b32.xlu0 %v1493, 32
  %v2085 = vpop.permute.xlu0 %2084
  %2086 = vrot.lane.b32.xlu0 %v1494, 32
  %v2087 = vpop.permute.xlu0 %2086
  %2088 = vrot.lane.b32.xlu0 %v1495, 32
  %v2089 = vpop.permute.xlu0 %2088
  %2090 = vrot.lane.b32.xlu0 %v1496, 32
  %v2091 = vpop.permute.xlu0 %2090
  %2092 = vrot.lane.b32.xlu0 %v1497, 32
  %v2093 = vpop.permute.xlu0 %2092
  %2094 = vrot.lane.b32.xlu0 %v1498, 32
  %v2095 = vpop.permute.xlu0 %2094
  %2096 = vrot.lane.b32.xlu0 %v1499, 32
  %v2097 = vpop.permute.xlu0 %2096
  %2098 = vrot.lane.b32.xlu0 %v1500, 32
  %v2099 = vpop.permute.xlu0 %2098
  %2100 = vrot.lane.b32.xlu0 %v1501, 32
  %v2101 = vpop.permute.xlu0 %2100
  %2102 = vrot.lane.b32.xlu0 %v1502, 32
  %v2103 = vpop.permute.xlu0 %2102
  %2104 = vrot.lane.b32.xlu0 %v1503, 32
  %v2105 = vpop.permute.xlu0 %2104
  %2106 = vrot.lane.b32.xlu0 %v1504, 32
  %v2107 = vpop.permute.xlu0 %2106
  %2108 = vrot.lane.b32.xlu0 %v1505, 32
  %v2109 = vpop.permute.xlu0 %2108
  %2110 = vrot.lane.b32.xlu0 %v1506, 32
  %v2111 = vpop.permute.xlu0 %2110
  %2112 = vrot.lane.b32.xlu0 %v1507, 32
  %v2113 = vpop.permute.xlu0 %2112
  %2114 = vrot.lane.b32.xlu0 %v1508, 32
  %v2115 = vpop.permute.xlu0 %2114
  %2116 = vrot.lane.b32.xlu0 %v1509, 32
  %v2117 = vpop.permute.xlu0 %2116
  %2118 = vrot.lane.b32.xlu0 %v1510, 32
  %v2119 = vpop.permute.xlu0 %2118
  %2120 = vrot.lane.b32.xlu0 %v1511, 32
  %v2121 = vpop.permute.xlu0 %2120
  %2122 = vrot.lane.b32.xlu0 %v1512, 32
  %v2123 = vpop.permute.xlu0 %2122
  %2124 = vrot.lane.b32.xlu0 %v1513, 32
  %v2125 = vpop.permute.xlu0 %2124
  %2126 = vrot.lane.b32.xlu0 %v1514, 32
  %v2127 = vpop.permute.xlu0 %2126
  %2128 = vrot.lane.b32.xlu0 %v1515, 32
  %v2129 = vpop.permute.xlu0 %2128
  %2130 = vrot.lane.b32.xlu0 %v1516, 32
  %v2131 = vpop.permute.xlu0 %2130
  %2132 = vrot.lane.b32.xlu0 %v1517, 32
  %v2133 = vpop.permute.xlu0 %2132
  %2134 = vrot.lane.b32.xlu0 %v1518, 32
  %v2135 = vpop.permute.xlu0 %2134
  %2136 = vrot.lane.b32.xlu0 %v1519, 32
  %v2137 = vpop.permute.xlu0 %2136
  %2138 = vrot.lane.b32.xlu0 %v1520, 32
  %v2139 = vpop.permute.xlu0 %2138
  %2140 = vrot.lane.b32.xlu0 %v1521, 32
  %v2141 = vpop.permute.xlu0 %2140
  %2142 = vrot.lane.b32.xlu0 %v1522, 32
  %v2143 = vpop.permute.xlu0 %2142
  %2144 = vrot.lane.b32.xlu0 %v1523, 32
  %v2145 = vpop.permute.xlu0 %2144
  %2146 = vrot.lane.b32.xlu0 %v1524, 32
  %v2147 = vpop.permute.xlu0 %2146
  %2148 = vrot.lane.b32.xlu0 %v1525, 32
  %v2149 = vpop.permute.xlu0 %2148
  %2150 = vrot.lane.b32.xlu0 %v1526, 32
  %v2151 = vpop.permute.xlu0 %2150
  %2152 = vrot.lane.b32.xlu0 %v1527, 32
  %v2153 = vpop.permute.xlu0 %2152
  %2154 = vrot.lane.b32.xlu0 %v1528, 32
  %v2155 = vpop.permute.xlu0 %2154
  %2156 = vrot.lane.b32.xlu0 %v1529, 32
  %v2157 = vpop.permute.xlu0 %2156
  %2158 = vrot.lane.b32.xlu0 %v1530, 32
  %v2159 = vpop.permute.xlu0 %2158
  %2160 = vrot.lane.b32.xlu0 %v1531, 32
  %v2161 = vpop.permute.xlu0 %2160
  %2162 = vrot.lane.b32.xlu0 %v1532, 32
  %v2163 = vpop.permute.xlu0 %2162
  %2164 = vrot.lane.b32.xlu0 %v1533, 32
  %v2165 = vpop.permute.xlu0 %2164
  %2166 = vrot.lane.b32.xlu0 %v1534, 32
  %v2167 = vpop.permute.xlu0 %2166
  %2168 = vrot.lane.b32.xlu0 %v1535, 32
  %v2169 = vpop.permute.xlu0 %2168
  %2170 = vrot.lane.b32.xlu0 %v1536, 32
  %v2171 = vpop.permute.xlu0 %2170
  %2172 = vrot.lane.b32.xlu0 %v1537, 32
  %v2173 = vpop.permute.xlu0 %2172
  %2174 = vrot.lane.b32.xlu0 %v1538, 32
  %v2175 = vpop.permute.xlu0 %2174
  %2176 = vrot.lane.b32.xlu0 %v1539, 32
  %v2177 = vpop.permute.xlu0 %2176
  %2178 = vrot.lane.b32.xlu0 %v1540, 32
  %v2179 = vpop.permute.xlu0 %2178
  %2180 = vrot.lane.b32.xlu0 %v1541, 32
  %v2181 = vpop.permute.xlu0 %2180
  %2182 = vrot.lane.b32.xlu0 %v1542, 32
  %v2183 = vpop.permute.xlu0 %2182
  %2312 = vrot.lane.b32.xlu0 %v1543, 64
  %v2313 = vpop.permute.xlu0 %2312
  %2314 = vrot.lane.b32.xlu0 %v1544, 64
  %v2315 = vpop.permute.xlu0 %2314
  %2316 = vrot.lane.b32.xlu0 %v1545, 64
  %v2317 = vpop.permute.xlu0 %2316
  %2318 = vrot.lane.b32.xlu0 %v1546, 64
  %v2319 = vpop.permute.xlu0 %2318
  %2320 = vrot.lane.b32.xlu0 %v1547, 64
  %v2321 = vpop.permute.xlu0 %2320
  %2322 = vrot.lane.b32.xlu0 %v1548, 64
  %v2323 = vpop.permute.xlu0 %2322
  %2324 = vrot.lane.b32.xlu0 %v1549, 64
  %v2325 = vpop.permute.xlu0 %2324
  %2326 = vrot.lane.b32.xlu0 %v1550, 64
  %v2327 = vpop.permute.xlu0 %2326
  %2328 = vrot.lane.b32.xlu0 %v1551, 64
  %v2329 = vpop.permute.xlu0 %2328
  %2330 = vrot.lane.b32.xlu0 %v1552, 64
  %v2331 = vpop.permute.xlu0 %2330
  %2332 = vrot.lane.b32.xlu0 %v1553, 64
  %v2333 = vpop.permute.xlu0 %2332
  %2334 = vrot.lane.b32.xlu0 %v1554, 64
  %v2335 = vpop.permute.xlu0 %2334
  %2336 = vrot.lane.b32.xlu0 %v1555, 64
  %v2337 = vpop.permute.xlu0 %2336
  %2338 = vrot.lane.b32.xlu0 %v1556, 64
  %v2339 = vpop.permute.xlu0 %2338
  %2340 = vrot.lane.b32.xlu0 %v1557, 64
  %v2341 = vpop.permute.xlu0 %2340
  %2342 = vrot.lane.b32.xlu0 %v1558, 64
  %v2343 = vpop.permute.xlu0 %2342
  %2344 = vrot.lane.b32.xlu0 %v1559, 64
  %v2345 = vpop.permute.xlu0 %2344
  %2346 = vrot.lane.b32.xlu0 %v1560, 64
  %v2347 = vpop.permute.xlu0 %2346
  %2348 = vrot.lane.b32.xlu0 %v1561, 64
  %v2349 = vpop.permute.xlu0 %2348
  %2350 = vrot.lane.b32.xlu0 %v1562, 64
  %v2351 = vpop.permute.xlu0 %2350
  %2352 = vrot.lane.b32.xlu0 %v1563, 64
  %v2353 = vpop.permute.xlu0 %2352
  %2354 = vrot.lane.b32.xlu0 %v1564, 64
  %v2355 = vpop.permute.xlu0 %2354
  %2356 = vrot.lane.b32.xlu0 %v1565, 64
  %v2357 = vpop.permute.xlu0 %2356
  %2358 = vrot.lane.b32.xlu0 %v1566, 64
  %v2359 = vpop.permute.xlu0 %2358
  %2360 = vrot.lane.b32.xlu0 %v1567, 64
  %v2361 = vpop.permute.xlu0 %2360
  %2362 = vrot.lane.b32.xlu0 %v1568, 64
  %v2363 = vpop.permute.xlu0 %2362
  %2364 = vrot.lane.b32.xlu0 %v1569, 64
  %v2365 = vpop.permute.xlu0 %2364
  %2366 = vrot.lane.b32.xlu0 %v1570, 64
  %v2367 = vpop.permute.xlu0 %2366
  %2368 = vrot.lane.b32.xlu0 %v1571, 64
  %v2369 = vpop.permute.xlu0 %2368
  %2370 = vrot.lane.b32.xlu0 %v1572, 64
  %v2371 = vpop.permute.xlu0 %2370
  %2372 = vrot.lane.b32.xlu0 %v1573, 64
  %v2373 = vpop.permute.xlu0 %2372
  %2374 = vrot.lane.b32.xlu0 %v1574, 64
  %v2375 = vpop.permute.xlu0 %2374
  %2376 = vrot.lane.b32.xlu0 %v1575, 64
  %v2377 = vpop.permute.xlu0 %2376
  %2378 = vrot.lane.b32.xlu0 %v1576, 64
  %v2379 = vpop.permute.xlu0 %2378
  %2380 = vrot.lane.b32.xlu0 %v1577, 64
  %v2381 = vpop.permute.xlu0 %2380
  %2382 = vrot.lane.b32.xlu0 %v1578, 64
  %v2383 = vpop.permute.xlu0 %2382
  %2384 = vrot.lane.b32.xlu0 %v1579, 64
  %v2385 = vpop.permute.xlu0 %2384
  %2386 = vrot.lane.b32.xlu0 %v1580, 64
  %v2387 = vpop.permute.xlu0 %2386
  %2388 = vrot.lane.b32.xlu0 %v1581, 64
  %v2389 = vpop.permute.xlu0 %2388
  %2390 = vrot.lane.b32.xlu0 %v1582, 64
  %v2391 = vpop.permute.xlu0 %2390
  %2392 = vrot.lane.b32.xlu0 %v1583, 64
  %v2393 = vpop.permute.xlu0 %2392
  %2394 = vrot.lane.b32.xlu0 %v1584, 64
  %v2395 = vpop.permute.xlu0 %2394
  %2396 = vrot.lane.b32.xlu0 %v1585, 64
  %v2397 = vpop.permute.xlu0 %2396
  %2398 = vrot.lane.b32.xlu0 %v1586, 64
  %v2399 = vpop.permute.xlu0 %2398
  %2400 = vrot.lane.b32.xlu0 %v1587, 64
  %v2401 = vpop.permute.xlu0 %2400
  %2402 = vrot.lane.b32.xlu0 %v1588, 64
  %v2403 = vpop.permute.xlu0 %2402
  %2404 = vrot.lane.b32.xlu0 %v1589, 64
  %v2405 = vpop.permute.xlu0 %2404
  %2406 = vrot.lane.b32.xlu0 %v1590, 64
  %v2407 = vpop.permute.xlu0 %2406
  %2408 = vrot.lane.b32.xlu0 %v1591, 64
  %v2409 = vpop.permute.xlu0 %2408
  %2410 = vrot.lane.b32.xlu0 %v1592, 64
  %v2411 = vpop.permute.xlu0 %2410
  %2412 = vrot.lane.b32.xlu0 %v1593, 64
  %v2413 = vpop.permute.xlu0 %2412
  %2414 = vrot.lane.b32.xlu0 %v1594, 64
  %v2415 = vpop.permute.xlu0 %2414
  %2416 = vrot.lane.b32.xlu0 %v1595, 64
  %v2417 = vpop.permute.xlu0 %2416
  %2418 = vrot.lane.b32.xlu0 %v1596, 64
  %v2419 = vpop.permute.xlu0 %2418
  %2420 = vrot.lane.b32.xlu0 %v1597, 64
  %v2421 = vpop.permute.xlu0 %2420
  %2422 = vrot.lane.b32.xlu0 %v1598, 64
  %v2423 = vpop.permute.xlu0 %2422
  %2424 = vrot.lane.b32.xlu0 %v1599, 64
  %v2425 = vpop.permute.xlu0 %2424
  %2426 = vrot.lane.b32.xlu0 %v1600, 64
  %v2427 = vpop.permute.xlu0 %2426
  %2428 = vrot.lane.b32.xlu0 %v1601, 64
  %v2429 = vpop.permute.xlu0 %2428
  %2430 = vrot.lane.b32.xlu0 %v1602, 64
  %v2431 = vpop.permute.xlu0 %2430
  %2432 = vrot.lane.b32.xlu0 %v1603, 64
  %v2433 = vpop.permute.xlu0 %2432
  %2434 = vrot.lane.b32.xlu0 %v1604, 64
  %v2435 = vpop.permute.xlu0 %2434
  %2436 = vrot.lane.b32.xlu0 %v1605, 64
  %v2437 = vpop.permute.xlu0 %2436
  %2438 = vrot.lane.b32.xlu0 %v1606, 64
  %v2439 = vpop.permute.xlu0 %2438
  %2568 = vrot.lane.b32.xlu0 %v1607, 96
  %v2569 = vpop.permute.xlu0 %2568
  %2570 = vrot.lane.b32.xlu0 %v1608, 96
  %v2571 = vpop.permute.xlu0 %2570
  %2572 = vrot.lane.b32.xlu0 %v1609, 96
  %v2573 = vpop.permute.xlu0 %2572
  %2574 = vrot.lane.b32.xlu0 %v1610, 96
  %v2575 = vpop.permute.xlu0 %2574
  %2576 = vrot.lane.b32.xlu0 %v1611, 96
  %v2577 = vpop.permute.xlu0 %2576
  %2578 = vrot.lane.b32.xlu0 %v1612, 96
  %v2579 = vpop.permute.xlu0 %2578
  %2580 = vrot.lane.b32.xlu0 %v1613, 96
  %v2581 = vpop.permute.xlu0 %2580
  %2582 = vrot.lane.b32.xlu0 %v1614, 96
  %v2583 = vpop.permute.xlu0 %2582
  %2584 = vrot.lane.b32.xlu0 %v1615, 96
  %v2585 = vpop.permute.xlu0 %2584
  %2586 = vrot.lane.b32.xlu0 %v1616, 96
  %v2587 = vpop.permute.xlu0 %2586
  %2588 = vrot.lane.b32.xlu0 %v1617, 96
  %v2589 = vpop.permute.xlu0 %2588
  %2590 = vrot.lane.b32.xlu0 %v1618, 96
  %v2591 = vpop.permute.xlu0 %2590
  %2592 = vrot.lane.b32.xlu0 %v1619, 96
  %v2593 = vpop.permute.xlu0 %2592
  %2594 = vrot.lane.b32.xlu0 %v1620, 96
  %v2595 = vpop.permute.xlu0 %2594
  %2596 = vrot.lane.b32.xlu0 %v1621, 96
  %v2597 = vpop.permute.xlu0 %2596
  %2598 = vrot.lane.b32.xlu0 %v1622, 96
  %v2599 = vpop.permute.xlu0 %2598
  %2600 = vrot.lane.b32.xlu0 %v1623, 96
  %v2601 = vpop.permute.xlu0 %2600
  %2602 = vrot.lane.b32.xlu0 %v1624, 96
  %v2603 = vpop.permute.xlu0 %2602
  %2604 = vrot.lane.b32.xlu0 %v1625, 96
  %v2605 = vpop.permute.xlu0 %2604
  %2606 = vrot.lane.b32.xlu0 %v1626, 96
  %v2607 = vpop.permute.xlu0 %2606
  %2608 = vrot.lane.b32.xlu0 %v1627, 96
  %v2609 = vpop.permute.xlu0 %2608
  %2610 = vrot.lane.b32.xlu0 %v1628, 96
  %v2611 = vpop.permute.xlu0 %2610
  %2612 = vrot.lane.b32.xlu0 %v1629, 96
  %v2613 = vpop.permute.xlu0 %2612
  %2614 = vrot.lane.b32.xlu0 %v1630, 96
  %v2615 = vpop.permute.xlu0 %2614
  %2616 = vrot.lane.b32.xlu0 %v1631, 96
  %v2617 = vpop.permute.xlu0 %2616
  %2618 = vrot.lane.b32.xlu0 %v1632, 96
  %v2619 = vpop.permute.xlu0 %2618
  %2620 = vrot.lane.b32.xlu0 %v1633, 96
  %v2621 = vpop.permute.xlu0 %2620
  %2622 = vrot.lane.b32.xlu0 %v1634, 96
  %v2623 = vpop.permute.xlu0 %2622
  %2624 = vrot.lane.b32.xlu0 %v1635, 96
  %v2625 = vpop.permute.xlu0 %2624
  %2626 = vrot.lane.b32.xlu0 %v1636, 96
  %v2627 = vpop.permute.xlu0 %2626
  %2628 = vrot.lane.b32.xlu0 %v1637, 96
  %v2629 = vpop.permute.xlu0 %2628
  %2630 = vrot.lane.b32.xlu0 %v1638, 96
  %v2631 = vpop.permute.xlu0 %2630
  %2632 = vrot.lane.b32.xlu0 %v1639, 96
  %v2633 = vpop.permute.xlu0 %2632
  %2634 = vrot.lane.b32.xlu0 %v1640, 96
  %v2635 = vpop.permute.xlu0 %2634
  %2636 = vrot.lane.b32.xlu0 %v1641, 96
  %v2637 = vpop.permute.xlu0 %2636
  %2638 = vrot.lane.b32.xlu0 %v1642, 96
  %v2639 = vpop.permute.xlu0 %2638
  %2640 = vrot.lane.b32.xlu0 %v1643, 96
  %v2641 = vpop.permute.xlu0 %2640
  %2642 = vrot.lane.b32.xlu0 %v1644, 96
  %v2643 = vpop.permute.xlu0 %2642
  %2644 = vrot.lane.b32.xlu0 %v1645, 96
  %v2645 = vpop.permute.xlu0 %2644
  %2646 = vrot.lane.b32.xlu0 %v1646, 96
  %v2647 = vpop.permute.xlu0 %2646
  %2648 = vrot.lane.b32.xlu0 %v1647, 96
  %v2649 = vpop.permute.xlu0 %2648
  %2650 = vrot.lane.b32.xlu0 %v1648, 96
  %v2651 = vpop.permute.xlu0 %2650
  %2652 = vrot.lane.b32.xlu0 %v1649, 96
  %v2653 = vpop.permute.xlu0 %2652
  %2654 = vrot.lane.b32.xlu0 %v1650, 96
  %v2655 = vpop.permute.xlu0 %2654
  %2656 = vrot.lane.b32.xlu0 %v1651, 96
  %v2657 = vpop.permute.xlu0 %2656
  %2658 = vrot.lane.b32.xlu0 %v1652, 96
  %v2659 = vpop.permute.xlu0 %2658
  %2660 = vrot.lane.b32.xlu0 %v1653, 96
  %v2661 = vpop.permute.xlu0 %2660
  %2662 = vrot.lane.b32.xlu0 %v1654, 96
  %v2663 = vpop.permute.xlu0 %2662
  %2664 = vrot.lane.b32.xlu0 %v1655, 96
  %v2665 = vpop.permute.xlu0 %2664
  %2666 = vrot.lane.b32.xlu0 %v1656, 96
  %v2667 = vpop.permute.xlu0 %2666
  %2668 = vrot.lane.b32.xlu0 %v1657, 96
  %v2669 = vpop.permute.xlu0 %2668
  %2670 = vrot.lane.b32.xlu0 %v1658, 96
  %v2671 = vpop.permute.xlu0 %2670
  %2672 = vrot.lane.b32.xlu0 %v1659, 96
  %v2673 = vpop.permute.xlu0 %2672
  %2674 = vrot.lane.b32.xlu0 %v1660, 96
  %v2675 = vpop.permute.xlu0 %2674
  %2676 = vrot.lane.b32.xlu0 %v1661, 96
  %v2677 = vpop.permute.xlu0 %2676
  %2678 = vrot.lane.b32.xlu0 %v1662, 96
  %v2679 = vpop.permute.xlu0 %2678
  %2680 = vrot.lane.b32.xlu0 %v1663, 96
  %v2681 = vpop.permute.xlu0 %2680
  %2682 = vrot.lane.b32.xlu0 %v1664, 96
  %v2683 = vpop.permute.xlu0 %2682
  %2684 = vrot.lane.b32.xlu0 %v1665, 96
  %v2685 = vpop.permute.xlu0 %2684
  %2686 = vrot.lane.b32.xlu0 %v1666, 96
  %v2687 = vpop.permute.xlu0 %2686
  %2688 = vrot.lane.b32.xlu0 %v1667, 96
  %v2689 = vpop.permute.xlu0 %2688
  %2690 = vrot.lane.b32.xlu0 %v1668, 96
  %v2691 = vpop.permute.xlu0 %2690
  %2692 = vrot.lane.b32.xlu0 %v1669, 96
  %v2693 = vpop.permute.xlu0 %2692
  %2694 = vrot.lane.b32.xlu0 %v1670, 96
  %v2695 = vpop.permute.xlu0 %2694
  %2824 = vrot.lane.b32.xlu0 %v1735, 32
  %v2825 = vpop.permute.xlu0 %2824
  %2826 = vrot.lane.b32.xlu0 %v1736, 32
  %v2827 = vpop.permute.xlu0 %2826
  %2828 = vrot.lane.b32.xlu0 %v1737, 32
  %v2829 = vpop.permute.xlu0 %2828
  %2830 = vrot.lane.b32.xlu0 %v1738, 32
  %v2831 = vpop.permute.xlu0 %2830
  %2832 = vrot.lane.b32.xlu0 %v1739, 32
  %v2833 = vpop.permute.xlu0 %2832
  %2834 = vrot.lane.b32.xlu0 %v1740, 32
  %v2835 = vpop.permute.xlu0 %2834
  %2836 = vrot.lane.b32.xlu0 %v1741, 32
  %v2837 = vpop.permute.xlu0 %2836
  %2838 = vrot.lane.b32.xlu0 %v1742, 32
  %v2839 = vpop.permute.xlu0 %2838
  %2840 = vrot.lane.b32.xlu0 %v1743, 32
  %v2841 = vpop.permute.xlu0 %2840
  %2842 = vrot.lane.b32.xlu0 %v1744, 32
  %v2843 = vpop.permute.xlu0 %2842
  %2844 = vrot.lane.b32.xlu0 %v1745, 32
  %v2845 = vpop.permute.xlu0 %2844
  %2846 = vrot.lane.b32.xlu0 %v1746, 32
  %v2847 = vpop.permute.xlu0 %2846
  %2848 = vrot.lane.b32.xlu0 %v1747, 32
  %v2849 = vpop.permute.xlu0 %2848
  %2850 = vrot.lane.b32.xlu0 %v1748, 32
  %v2851 = vpop.permute.xlu0 %2850
  %2852 = vrot.lane.b32.xlu0 %v1749, 32
  %v2853 = vpop.permute.xlu0 %2852
  %2854 = vrot.lane.b32.xlu0 %v1750, 32
  %v2855 = vpop.permute.xlu0 %2854
  %2856 = vrot.lane.b32.xlu0 %v1751, 32
  %v2857 = vpop.permute.xlu0 %2856
  %2858 = vrot.lane.b32.xlu0 %v1752, 32
  %v2859 = vpop.permute.xlu0 %2858
  %2860 = vrot.lane.b32.xlu0 %v1753, 32
  %v2861 = vpop.permute.xlu0 %2860
  %2862 = vrot.lane.b32.xlu0 %v1754, 32
  %v2863 = vpop.permute.xlu0 %2862
  %2864 = vrot.lane.b32.xlu0 %v1755, 32
  %v2865 = vpop.permute.xlu0 %2864
  %2866 = vrot.lane.b32.xlu0 %v1756, 32
  %v2867 = vpop.permute.xlu0 %2866
  %2868 = vrot.lane.b32.xlu0 %v1757, 32
  %v2869 = vpop.permute.xlu0 %2868
  %2870 = vrot.lane.b32.xlu0 %v1758, 32
  %v2871 = vpop.permute.xlu0 %2870
  %2872 = vrot.lane.b32.xlu0 %v1759, 32
  %v2873 = vpop.permute.xlu0 %2872
  %2874 = vrot.lane.b32.xlu0 %v1760, 32
  %v2875 = vpop.permute.xlu0 %2874
  %2876 = vrot.lane.b32.xlu0 %v1761, 32
  %v2877 = vpop.permute.xlu0 %2876
  %2878 = vrot.lane.b32.xlu0 %v1762, 32
  %v2879 = vpop.permute.xlu0 %2878
  %2880 = vrot.lane.b32.xlu0 %v1763, 32
  %v2881 = vpop.permute.xlu0 %2880
  %2882 = vrot.lane.b32.xlu0 %v1764, 32
  %v2883 = vpop.permute.xlu0 %2882
  %2884 = vrot.lane.b32.xlu0 %v1765, 32
  %v2885 = vpop.permute.xlu0 %2884
  %2886 = vrot.lane.b32.xlu0 %v1766, 32
  %v2887 = vpop.permute.xlu0 %2886
  %2888 = vrot.lane.b32.xlu0 %v1767, 32
  %v2889 = vpop.permute.xlu0 %2888
  %2890 = vrot.lane.b32.xlu0 %v1768, 32
  %v2891 = vpop.permute.xlu0 %2890
  %2892 = vrot.lane.b32.xlu0 %v1769, 32
  %v2893 = vpop.permute.xlu0 %2892
  %2894 = vrot.lane.b32.xlu0 %v1770, 32
  %v2895 = vpop.permute.xlu0 %2894
  %2896 = vrot.lane.b32.xlu0 %v1771, 32
  %v2897 = vpop.permute.xlu0 %2896
  %2898 = vrot.lane.b32.xlu0 %v1772, 32
  %v2899 = vpop.permute.xlu0 %2898
  %2900 = vrot.lane.b32.xlu0 %v1773, 32
  %v2901 = vpop.permute.xlu0 %2900
  %2902 = vrot.lane.b32.xlu0 %v1774, 32
  %v2903 = vpop.permute.xlu0 %2902
  %2904 = vrot.lane.b32.xlu0 %v1775, 32
  %v2905 = vpop.permute.xlu0 %2904
  %2906 = vrot.lane.b32.xlu0 %v1776, 32
  %v2907 = vpop.permute.xlu0 %2906
  %2908 = vrot.lane.b32.xlu0 %v1777, 32
  %v2909 = vpop.permute.xlu0 %2908
  %2910 = vrot.lane.b32.xlu0 %v1778, 32
  %v2911 = vpop.permute.xlu0 %2910
  %2912 = vrot.lane.b32.xlu0 %v1779, 32
  %v2913 = vpop.permute.xlu0 %2912
  %2914 = vrot.lane.b32.xlu0 %v1780, 32
  %v2915 = vpop.permute.xlu0 %2914
  %2916 = vrot.lane.b32.xlu0 %v1781, 32
  %v2917 = vpop.permute.xlu0 %2916
  %2918 = vrot.lane.b32.xlu0 %v1782, 32
  %v2919 = vpop.permute.xlu0 %2918
  %2920 = vrot.lane.b32.xlu0 %v1783, 32
  %v2921 = vpop.permute.xlu0 %2920
  %2922 = vrot.lane.b32.xlu0 %v1784, 32
  %v2923 = vpop.permute.xlu0 %2922
  %2924 = vrot.lane.b32.xlu0 %v1785, 32
  %v2925 = vpop.permute.xlu0 %2924
  %2926 = vrot.lane.b32.xlu0 %v1786, 32
  %v2927 = vpop.permute.xlu0 %2926
  %2928 = vrot.lane.b32.xlu0 %v1787, 32
  %v2929 = vpop.permute.xlu0 %2928
  %2930 = vrot.lane.b32.xlu0 %v1788, 32
  %v2931 = vpop.permute.xlu0 %2930
  %2932 = vrot.lane.b32.xlu0 %v1789, 32
  %v2933 = vpop.permute.xlu0 %2932
  %2934 = vrot.lane.b32.xlu0 %v1790, 32
  %v2935 = vpop.permute.xlu0 %2934
  %2936 = vrot.lane.b32.xlu0 %v1791, 32
  %v2937 = vpop.permute.xlu0 %2936
  %2938 = vrot.lane.b32.xlu0 %v1792, 32
  %v2939 = vpop.permute.xlu0 %2938
  %2940 = vrot.lane.b32.xlu0 %v1793, 32
  %v2941 = vpop.permute.xlu0 %2940
  %2942 = vrot.lane.b32.xlu0 %v1794, 32
  %v2943 = vpop.permute.xlu0 %2942
  %2944 = vrot.lane.b32.xlu0 %v1795, 32
  %v2945 = vpop.permute.xlu0 %2944
  %2946 = vrot.lane.b32.xlu0 %v1796, 32
  %v2947 = vpop.permute.xlu0 %2946
  %2948 = vrot.lane.b32.xlu0 %v1797, 32
  %v2949 = vpop.permute.xlu0 %2948
  %2950 = vrot.lane.b32.xlu0 %v1798, 32
  %v2951 = vpop.permute.xlu0 %2950
  %3080 = vrot.lane.b32.xlu0 %v1800, 64
  %v3081 = vpop.permute.xlu0 %3080
  %3082 = vrot.lane.b32.xlu0 %v1801, 64
  %v3083 = vpop.permute.xlu0 %3082
  %3084 = vrot.lane.b32.xlu0 %v1802, 64
  %v3085 = vpop.permute.xlu0 %3084
  %3086 = vrot.lane.b32.xlu0 %v1803, 64
  %v3087 = vpop.permute.xlu0 %3086
  %3088 = vrot.lane.b32.xlu0 %v1804, 64
  %v3089 = vpop.permute.xlu0 %3088
  %3090 = vrot.lane.b32.xlu0 %v1805, 64
  %v3091 = vpop.permute.xlu0 %3090
  %3092 = vrot.lane.b32.xlu0 %v1806, 64
  %v3093 = vpop.permute.xlu0 %3092
  %3094 = vrot.lane.b32.xlu0 %v1807, 64
  %v3095 = vpop.permute.xlu0 %3094
  %3096 = vrot.lane.b32.xlu0 %v1808, 64
  %v3097 = vpop.permute.xlu0 %3096
  %3098 = vrot.lane.b32.xlu0 %v1809, 64
  %v3099 = vpop.permute.xlu0 %3098
  %3100 = vrot.lane.b32.xlu0 %v1810, 64
  %v3101 = vpop.permute.xlu0 %3100
  %3102 = vrot.lane.b32.xlu0 %v1811, 64
  %v3103 = vpop.permute.xlu0 %3102
  %3104 = vrot.lane.b32.xlu0 %v1812, 64
  %v3105 = vpop.permute.xlu0 %3104
  %3106 = vrot.lane.b32.xlu0 %v1813, 64
  %v3107 = vpop.permute.xlu0 %3106
  %3108 = vrot.lane.b32.xlu0 %v1814, 64
  %v3109 = vpop.permute.xlu0 %3108
  %3110 = vrot.lane.b32.xlu0 %v1815, 64
  %v3111 = vpop.permute.xlu0 %3110
  %3112 = vrot.lane.b32.xlu0 %v1816, 64
  %v3113 = vpop.permute.xlu0 %3112
  %3114 = vrot.lane.b32.xlu0 %v1817, 64
  %v3115 = vpop.permute.xlu0 %3114
  %3116 = vrot.lane.b32.xlu0 %v1818, 64
  %v3117 = vpop.permute.xlu0 %3116
  %3118 = vrot.lane.b32.xlu0 %v1819, 64
  %v3119 = vpop.permute.xlu0 %3118
  %3120 = vrot.lane.b32.xlu0 %v1820, 64
  %v3121 = vpop.permute.xlu0 %3120
  %3122 = vrot.lane.b32.xlu0 %v1821, 64
  %v3123 = vpop.permute.xlu0 %3122
  %3124 = vrot.lane.b32.xlu0 %v1822, 64
  %v3125 = vpop.permute.xlu0 %3124
  %3126 = vrot.lane.b32.xlu0 %v1823, 64
  %v3127 = vpop.permute.xlu0 %3126
  %3128 = vrot.lane.b32.xlu0 %v1824, 64
  %v3129 = vpop.permute.xlu0 %3128
  %3130 = vrot.lane.b32.xlu0 %v1825, 64
  %v3131 = vpop.permute.xlu0 %3130
  %3132 = vrot.lane.b32.xlu0 %v1826, 64
  %v3133 = vpop.permute.xlu0 %3132
  %3134 = vrot.lane.b32.xlu0 %v1827, 64
  %v3135 = vpop.permute.xlu0 %3134
  %3136 = vrot.lane.b32.xlu0 %v1828, 64
  %v3137 = vpop.permute.xlu0 %3136
  %3138 = vrot.lane.b32.xlu0 %v1829, 64
  %v3139 = vpop.permute.xlu0 %3138
  %3140 = vrot.lane.b32.xlu0 %v1830, 64
  %v3141 = vpop.permute.xlu0 %3140
  %3142 = vrot.lane.b32.xlu0 %v1831, 64
  %v3143 = vpop.permute.xlu0 %3142
  %3144 = vrot.lane.b32.xlu0 %v1832, 64
  %v3145 = vpop.permute.xlu0 %3144
  %3146 = vrot.lane.b32.xlu0 %v1833, 64
  %v3147 = vpop.permute.xlu0 %3146
  %3148 = vrot.lane.b32.xlu0 %v1834, 64
  %v3149 = vpop.permute.xlu0 %3148
  %3150 = vrot.lane.b32.xlu0 %v1835, 64
  %v3151 = vpop.permute.xlu0 %3150
  %3152 = vrot.lane.b32.xlu0 %v1836, 64
  %v3153 = vpop.permute.xlu0 %3152
  %3154 = vrot.lane.b32.xlu0 %v1837, 64
  %v3155 = vpop.permute.xlu0 %3154
  %3156 = vrot.lane.b32.xlu0 %v1838, 64
  %v3157 = vpop.permute.xlu0 %3156
  %3158 = vrot.lane.b32.xlu0 %v1839, 64
  %v3159 = vpop.permute.xlu0 %3158
  %3160 = vrot.lane.b32.xlu0 %v1840, 64
  %v3161 = vpop.permute.xlu0 %3160
  %3162 = vrot.lane.b32.xlu0 %v1841, 64
  %v3163 = vpop.permute.xlu0 %3162
  %3164 = vrot.lane.b32.xlu0 %v1842, 64
  %v3165 = vpop.permute.xlu0 %3164
  %3166 = vrot.lane.b32.xlu0 %v1843, 64
  %v3167 = vpop.permute.xlu0 %3166
  %3168 = vrot.lane.b32.xlu0 %v1844, 64
  %v3169 = vpop.permute.xlu0 %3168
  %3170 = vrot.lane.b32.xlu0 %v1845, 64
  %v3171 = vpop.permute.xlu0 %3170
  %3172 = vrot.lane.b32.xlu0 %v1846, 64
  %v3173 = vpop.permute.xlu0 %3172
  %3174 = vrot.lane.b32.xlu0 %v1847, 64
  %v3175 = vpop.permute.xlu0 %3174
  %3176 = vrot.lane.b32.xlu0 %v1848, 64
  %v3177 = vpop.permute.xlu0 %3176
  %3178 = vrot.lane.b32.xlu0 %v1849, 64
  %v3179 = vpop.permute.xlu0 %3178
  %3180 = vrot.lane.b32.xlu0 %v1850, 64
  %v3181 = vpop.permute.xlu0 %3180
  %3182 = vrot.lane.b32.xlu0 %v1851, 64
  %v3183 = vpop.permute.xlu0 %3182
  %3184 = vrot.lane.b32.xlu0 %v1852, 64
  %v3185 = vpop.permute.xlu0 %3184
  %3186 = vrot.lane.b32.xlu0 %v1853, 64
  %v3187 = vpop.permute.xlu0 %3186
  %3188 = vrot.lane.b32.xlu0 %v1854, 64
  %v3189 = vpop.permute.xlu0 %3188
  %3190 = vrot.lane.b32.xlu0 %v1855, 64
  %v3191 = vpop.permute.xlu0 %3190
  %3192 = vrot.lane.b32.xlu0 %v1856, 64
  %v3193 = vpop.permute.xlu0 %3192
  %3194 = vrot.lane.b32.xlu0 %v1857, 64
  %v3195 = vpop.permute.xlu0 %3194
  %3196 = vrot.lane.b32.xlu0 %v1858, 64
  %v3197 = vpop.permute.xlu0 %3196
  %3198 = vrot.lane.b32.xlu0 %v1859, 64
  %v3199 = vpop.permute.xlu0 %3198
  %3200 = vrot.lane.b32.xlu0 %v1860, 64
  %v3201 = vpop.permute.xlu0 %3200
  %3202 = vrot.lane.b32.xlu0 %v1861, 64
  %v3203 = vpop.permute.xlu0 %3202
  %3204 = vrot.lane.b32.xlu0 %v1862, 64
  %v3205 = vpop.permute.xlu0 %3204
  %3206 = vrot.lane.b32.xlu0 %v1863, 64
  %v3207 = vpop.permute.xlu0 %3206
  %3336 = vrot.lane.b32.xlu0 %v1864, 96
  %v3337 = vpop.permute.xlu0 %3336
  %3338 = vrot.lane.b32.xlu0 %v1865, 96
  %v3339 = vpop.permute.xlu0 %3338
  %3340 = vrot.lane.b32.xlu0 %v1866, 96
  %v3341 = vpop.permute.xlu0 %3340
  %3342 = vrot.lane.b32.xlu0 %v1867, 96
  %v3343 = vpop.permute.xlu0 %3342
  %3344 = vrot.lane.b32.xlu0 %v1868, 96
  %v3345 = vpop.permute.xlu0 %3344
  %3346 = vrot.lane.b32.xlu0 %v1869, 96
  %v3347 = vpop.permute.xlu0 %3346
  %3348 = vrot.lane.b32.xlu0 %v1870, 96
  %v3349 = vpop.permute.xlu0 %3348
  %3350 = vrot.lane.b32.xlu0 %v1871, 96
  %v3351 = vpop.permute.xlu0 %3350
  %3352 = vrot.lane.b32.xlu0 %v1872, 96
  %v3353 = vpop.permute.xlu0 %3352
  %3354 = vrot.lane.b32.xlu0 %v1873, 96
  %v3355 = vpop.permute.xlu0 %3354
  %3356 = vrot.lane.b32.xlu0 %v1874, 96
  %v3357 = vpop.permute.xlu0 %3356
  %3358 = vrot.lane.b32.xlu0 %v1875, 96
  %v3359 = vpop.permute.xlu0 %3358
  %3360 = vrot.lane.b32.xlu0 %v1876, 96
  %v3361 = vpop.permute.xlu0 %3360
  %3362 = vrot.lane.b32.xlu0 %v1877, 96
  %v3363 = vpop.permute.xlu0 %3362
  %3364 = vrot.lane.b32.xlu0 %v1878, 96
  %v3365 = vpop.permute.xlu0 %3364
  %3366 = vrot.lane.b32.xlu0 %v1879, 96
  %v3367 = vpop.permute.xlu0 %3366
  %3368 = vrot.lane.b32.xlu0 %v1880, 96
  %v3369 = vpop.permute.xlu0 %3368
  %3370 = vrot.lane.b32.xlu0 %v1881, 96
  %v3371 = vpop.permute.xlu0 %3370
  %3372 = vrot.lane.b32.xlu0 %v1882, 96
  %v3373 = vpop.permute.xlu0 %3372
  %3374 = vrot.lane.b32.xlu0 %v1883, 96
  %v3375 = vpop.permute.xlu0 %3374
  %3376 = vrot.lane.b32.xlu0 %v1884, 96
  %v3377 = vpop.permute.xlu0 %3376
  %3378 = vrot.lane.b32.xlu0 %v1885, 96
  %v3379 = vpop.permute.xlu0 %3378
  %3380 = vrot.lane.b32.xlu0 %v1886, 96
  %v3381 = vpop.permute.xlu0 %3380
  %3382 = vrot.lane.b32.xlu0 %v1887, 96
  %v3383 = vpop.permute.xlu0 %3382
  %3384 = vrot.lane.b32.xlu0 %v1888, 96
  %v3385 = vpop.permute.xlu0 %3384
  %3386 = vrot.lane.b32.xlu0 %v1889, 96
  %v3387 = vpop.permute.xlu0 %3386
  %3388 = vrot.lane.b32.xlu0 %v1890, 96
  %v3389 = vpop.permute.xlu0 %3388
  %3390 = vrot.lane.b32.xlu0 %v1891, 96
  %v3391 = vpop.permute.xlu0 %3390
  %3392 = vrot.lane.b32.xlu0 %v1892, 96
  %v3393 = vpop.permute.xlu0 %3392
  %3394 = vrot.lane.b32.xlu0 %v1893, 96
  %v3395 = vpop.permute.xlu0 %3394
  %3396 = vrot.lane.b32.xlu0 %v1894, 96
  %v3397 = vpop.permute.xlu0 %3396
  %3398 = vrot.lane.b32.xlu0 %v1895, 96
  %v3399 = vpop.permute.xlu0 %3398
  %3400 = vrot.lane.b32.xlu0 %v1896, 96
  %v3401 = vpop.permute.xlu0 %3400
  %3402 = vrot.lane.b32.xlu0 %v1897, 96
  %v3403 = vpop.permute.xlu0 %3402
  %3404 = vrot.lane.b32.xlu0 %v1898, 96
  %v3405 = vpop.permute.xlu0 %3404
  %3406 = vrot.lane.b32.xlu0 %v1899, 96
  %v3407 = vpop.permute.xlu0 %3406
  %3408 = vrot.lane.b32.xlu0 %v1900, 96
  %v3409 = vpop.permute.xlu0 %3408
  %3410 = vrot.lane.b32.xlu0 %v1901, 96
  %v3411 = vpop.permute.xlu0 %3410
  %3412 = vrot.lane.b32.xlu0 %v1902, 96
  %v3413 = vpop.permute.xlu0 %3412
  %3414 = vrot.lane.b32.xlu0 %v1903, 96
  %v3415 = vpop.permute.xlu0 %3414
  %3416 = vrot.lane.b32.xlu0 %v1904, 96
  %v3417 = vpop.permute.xlu0 %3416
  %3418 = vrot.lane.b32.xlu0 %v1905, 96
  %v3419 = vpop.permute.xlu0 %3418
  %3420 = vrot.lane.b32.xlu0 %v1906, 96
  %v3421 = vpop.permute.xlu0 %3420
  %3422 = vrot.lane.b32.xlu0 %v1907, 96
  %v3423 = vpop.permute.xlu0 %3422
  %3424 = vrot.lane.b32.xlu0 %v1908, 96
  %v3425 = vpop.permute.xlu0 %3424
  %3426 = vrot.lane.b32.xlu0 %v1909, 96
  %v3427 = vpop.permute.xlu0 %3426
  %3428 = vrot.lane.b32.xlu0 %v1910, 96
  %v3429 = vpop.permute.xlu0 %3428
  %3430 = vrot.lane.b32.xlu0 %v1911, 96
  %v3431 = vpop.permute.xlu0 %3430
  %3432 = vrot.lane.b32.xlu0 %v1912, 96
  %v3433 = vpop.permute.xlu0 %3432
  %3434 = vrot.lane.b32.xlu0 %v1913, 96
  %v3435 = vpop.permute.xlu0 %3434
  %3436 = vrot.lane.b32.xlu0 %v1914, 96
  %v3437 = vpop.permute.xlu0 %3436
  %3438 = vrot.lane.b32.xlu0 %v1915, 96
  %v3439 = vpop.permute.xlu0 %3438
  %3440 = vrot.lane.b32.xlu0 %v1916, 96
  %v3441 = vpop.permute.xlu0 %3440
  %3442 = vrot.lane.b32.xlu0 %v1917, 96
  %v3443 = vpop.permute.xlu0 %3442
  %3444 = vrot.lane.b32.xlu0 %v1918, 96
  %v3445 = vpop.permute.xlu0 %3444
  %3446 = vrot.lane.b32.xlu0 %v1919, 96
  %v3447 = vpop.permute.xlu0 %3446
  %3448 = vrot.lane.b32.xlu0 %v1920, 96
  %v3449 = vpop.permute.xlu0 %3448
  %3450 = vrot.lane.b32.xlu0 %v1921, 96
  %v3451 = vpop.permute.xlu0 %3450
  %3452 = vrot.lane.b32.xlu0 %v1922, 96
  %v3453 = vpop.permute.xlu0 %3452
  %3454 = vrot.lane.b32.xlu0 %v1923, 96
  %v3455 = vpop.permute.xlu0 %3454
  %3456 = vrot.lane.b32.xlu0 %v1924, 96
  %v3457 = vpop.permute.xlu0 %3456
  %3458 = vrot.lane.b32.xlu0 %v1925, 96
  %v3459 = vpop.permute.xlu0 %3458
  %3460 = vrot.lane.b32.xlu0 %v1926, 96
  %v3461 = vpop.permute.xlu0 %3460
  %3462 = vrot.lane.b32.xlu0 %v1927, 96
  %v3463 = vpop.permute.xlu0 %3462
  %v3528 = vsel %vm62, %v1415, %v2057
  %v3529 = vsel %vm62, %v1416, %v2059
  %v3530 = vsel %vm62, %v1417, %v2061
  %v3531 = vsel %vm62, %v1418, %v2063
  %v3532 = vsel %vm62, %v1419, %v2065
  %v3533 = vsel %vm62, %v1420, %v2067
  %v3534 = vsel %vm62, %v1421, %v2069
  %v3535 = vsel %vm62, %v1422, %v2071
  %v3536 = vsel %vm62, %v1423, %v2073
  %v3537 = vsel %vm62, %v1424, %v2075
  %v3538 = vsel %vm62, %v1425, %v2077
  %v3539 = vsel %vm62, %v1426, %v2079
  %v3540 = vsel %vm62, %v1427, %v2081
  %v3541 = vsel %vm62, %v1428, %v2083
  %v3542 = vsel %vm62, %v1429, %v2085
  %v3543 = vsel %vm62, %v1430, %v2087
  %v3544 = vsel %vm62, %v1431, %v2089
  %v3545 = vsel %vm62, %v1432, %v2091
  %v3546 = vsel %vm62, %v1433, %v2093
  %v3547 = vsel %vm62, %v1434, %v2095
  %v3548 = vsel %vm62, %v1435, %v2097
  %v3549 = vsel %vm62, %v1436, %v2099
  %v3550 = vsel %vm62, %v1437, %v2101
  %v3551 = vsel %vm62, %v1438, %v2103
  %v3552 = vsel %vm62, %v1439, %v2105
  %v3553 = vsel %vm62, %v1440, %v2107
  %v3554 = vsel %vm62, %v1441, %v2109
  %v3555 = vsel %vm62, %v1442, %v2111
  %v3556 = vsel %vm62, %v1443, %v2113
  %v3557 = vsel %vm62, %v1444, %v2115
  %v3558 = vsel %vm62, %v1445, %v2117
  %v3559 = vsel %vm62, %v1446, %v2119
  %v3560 = vsel %vm62, %v1447, %v2121
  %v3561 = vsel %vm62, %v1448, %v2123
  %v3562 = vsel %vm62, %v1449, %v2125
  %v3563 = vsel %vm62, %v1450, %v2127
  %v3564 = vsel %vm62, %v1451, %v2129
  %v3565 = vsel %vm62, %v1452, %v2131
  %v3566 = vsel %vm62, %v1453, %v2133
  %v3567 = vsel %vm62, %v1454, %v2135
  %v3568 = vsel %vm62, %v1455, %v2137
  %v3569 = vsel %vm62, %v1456, %v2139
  %v3570 = vsel %vm62, %v1457, %v2141
  %v3571 = vsel %vm62, %v1458, %v2143
  %v3572 = vsel %vm62, %v1459, %v2145
  %v3573 = vsel %vm62, %v1460, %v2147
  %v3574 = vsel %vm62, %v1461, %v2149
  %v3575 = vsel %vm62, %v1462, %v2151
  %v3576 = vsel %vm62, %v1463, %v2153
  %v3577 = vsel %vm62, %v1464, %v2155
  %v3578 = vsel %vm62, %v1465, %v2157
  %v3579 = vsel %vm62, %v1466, %v2159
  %v3580 = vsel %vm62, %v1467, %v2161
  %v3581 = vsel %vm62, %v1468, %v2163
  %v3582 = vsel %vm62, %v1469, %v2165
  %v3583 = vsel %vm62, %v1470, %v2167
  %v3584 = vsel %vm62, %v1471, %v2169
  %v3585 = vsel %vm62, %v1472, %v2171
  %v3586 = vsel %vm62, %v1473, %v2173
  %v3587 = vsel %vm62, %v1474, %v2175
  %v3588 = vsel %vm62, %v1475, %v2177
  %v3589 = vsel %vm62, %v1476, %v2179
  %v3590 = vsel %vm62, %v1477, %v2181
  %v3591 = vsel %vm62, %v1478, %v2183
  %vm3592 = vcmask 523264
  %v3593 = vsel %vm3592, %v3528, %v2313
  %v3594 = vsel %vm3592, %v3529, %v2315
  %v3595 = vsel %vm3592, %v3530, %v2317
  %v3596 = vsel %vm3592, %v3531, %v2319
  %v3597 = vsel %vm3592, %v3532, %v2321
  %v3598 = vsel %vm3592, %v3533, %v2323
  %v3599 = vsel %vm3592, %v3534, %v2325
  %v3600 = vsel %vm3592, %v3535, %v2327
  %v3601 = vsel %vm3592, %v3536, %v2329
  %v3602 = vsel %vm3592, %v3537, %v2331
  %v3603 = vsel %vm3592, %v3538, %v2333
  %v3604 = vsel %vm3592, %v3539, %v2335
  %v3605 = vsel %vm3592, %v3540, %v2337
  %v3606 = vsel %vm3592, %v3541, %v2339
  %v3607 = vsel %vm3592, %v3542, %v2341
  %v3608 = vsel %vm3592, %v3543, %v2343
  %v3609 = vsel %vm3592, %v3544, %v2345
  %v3610 = vsel %vm3592, %v3545, %v2347
  %v3611 = vsel %vm3592, %v3546, %v2349
  %v3612 = vsel %vm3592, %v3547, %v2351
  %v3613 = vsel %vm3592, %v3548, %v2353
  %v3614 = vsel %vm3592, %v3549, %v2355
  %v3615 = vsel %vm3592, %v3550, %v2357
  %v3616 = vsel %vm3592, %v3551, %v2359
  %v3617 = vsel %vm3592, %v3552, %v2361
  %v3618 = vsel %vm3592, %v3553, %v2363
  %v3619 = vsel %vm3592, %v3554, %v2365
  %v3620 = vsel %vm3592, %v3555, %v2367
  %v3621 = vsel %vm3592, %v3556, %v2369
  %v3622 = vsel %vm3592, %v3557, %v2371
  %v3623 = vsel %vm3592, %v3558, %v2373
  %v3624 = vsel %vm3592, %v3559, %v2375
  %v3625 = vsel %vm3592, %v3560, %v2377
  %v3626 = vsel %vm3592, %v3561, %v2379
  %v3627 = vsel %vm3592, %v3562, %v2381
  %v3628 = vsel %vm3592, %v3563, %v2383
  %v3629 = vsel %vm3592, %v3564, %v2385
  %v3630 = vsel %vm3592, %v3565, %v2387
  %v3631 = vsel %vm3592, %v3566, %v2389
  %v3632 = vsel %vm3592, %v3567, %v2391
  %v3633 = vsel %vm3592, %v3568, %v2393
  %v3634 = vsel %vm3592, %v3569, %v2395
  %v3635 = vsel %vm3592, %v3570, %v2397
  %v3636 = vsel %vm3592, %v3571, %v2399
  %v3637 = vsel %vm3592, %v3572, %v2401
  %v3638 = vsel %vm3592, %v3573, %v2403
  %v3639 = vsel %vm3592, %v3574, %v2405
  %v3640 = vsel %vm3592, %v3575, %v2407
  %v3641 = vsel %vm3592, %v3576, %v2409
  %v3642 = vsel %vm3592, %v3577, %v2411
  %v3643 = vsel %vm3592, %v3578, %v2413
  %v3644 = vsel %vm3592, %v3579, %v2415
  %v3645 = vsel %vm3592, %v3580, %v2417
  %v3646 = vsel %vm3592, %v3581, %v2419
  %v3647 = vsel %vm3592, %v3582, %v2421
  %v3648 = vsel %vm3592, %v3583, %v2423
  %v3649 = vsel %vm3592, %v3584, %v2425
  %v3650 = vsel %vm3592, %v3585, %v2427
  %v3651 = vsel %vm3592, %v3586, %v2429
  %v3652 = vsel %vm3592, %v3587, %v2431
  %v3653 = vsel %vm3592, %v3588, %v2433
  %v3654 = vsel %vm3592, %v3589, %v2435
  %v3655 = vsel %vm3592, %v3590, %v2437
  %v3656 = vsel %vm3592, %v3591, %v2439
  %vm3657 = vcmask 785408
  %v3658 = vsel %vm3657, %v3593, %v2569
  %v3659 = vsel %vm3657, %v3594, %v2571
  %v3660 = vsel %vm3657, %v3595, %v2573
  %v3661 = vsel %vm3657, %v3596, %v2575
  %v3662 = vsel %vm3657, %v3597, %v2577
  %v3663 = vsel %vm3657, %v3598, %v2579
  %v3664 = vsel %vm3657, %v3599, %v2581
  %v3665 = vsel %vm3657, %v3600, %v2583
  %v3666 = vsel %vm3657, %v3601, %v2585
  %v3667 = vsel %vm3657, %v3602, %v2587
  %v3668 = vsel %vm3657, %v3603, %v2589
  %v3669 = vsel %vm3657, %v3604, %v2591
  %v3670 = vsel %vm3657, %v3605, %v2593
  %v3671 = vsel %vm3657, %v3606, %v2595
  %v3672 = vsel %vm3657, %v3607, %v2597
  %v3673 = vsel %vm3657, %v3608, %v2599
  %v3674 = vsel %vm3657, %v3609, %v2601
  %v3675 = vsel %vm3657, %v3610, %v2603
  %v3676 = vsel %vm3657, %v3611, %v2605
  %v3677 = vsel %vm3657, %v3612, %v2607
  %v3678 = vsel %vm3657, %v3613, %v2609
  %v3679 = vsel %vm3657, %v3614, %v2611
  %v3680 = vsel %vm3657, %v3615, %v2613
  %v3681 = vsel %vm3657, %v3616, %v2615
  %v3682 = vsel %vm3657, %v3617, %v2617
  %v3683 = vsel %vm3657, %v3618, %v2619
  %v3684 = vsel %vm3657, %v3619, %v2621
  %v3685 = vsel %vm3657, %v3620, %v2623
  %v3686 = vsel %vm3657, %v3621, %v2625
  %v3687 = vsel %vm3657, %v3622, %v2627
  %v3688 = vsel %vm3657, %v3623, %v2629
  %v3689 = vsel %vm3657, %v3624, %v2631
  %v3690 = vsel %vm3657, %v3625, %v2633
  %v3691 = vsel %vm3657, %v3626, %v2635
  %v3692 = vsel %vm3657, %v3627, %v2637
  %v3693 = vsel %vm3657, %v3628, %v2639
  %v3694 = vsel %vm3657, %v3629, %v2641
  %v3695 = vsel %vm3657, %v3630, %v2643
  %v3696 = vsel %vm3657, %v3631, %v2645
  %v3697 = vsel %vm3657, %v3632, %v2647
  %v3698 = vsel %vm3657, %v3633, %v2649
  %v3699 = vsel %vm3657, %v3634, %v2651
  %v3700 = vsel %vm3657, %v3635, %v2653
  %v3701 = vsel %vm3657, %v3636, %v2655
  %v3702 = vsel %vm3657, %v3637, %v2657
  %v3703 = vsel %vm3657, %v3638, %v2659
  %v3704 = vsel %vm3657, %v3639, %v2661
  %v3705 = vsel %vm3657, %v3640, %v2663
  %v3706 = vsel %vm3657, %v3641, %v2665
  %v3707 = vsel %vm3657, %v3642, %v2667
  %v3708 = vsel %vm3657, %v3643, %v2669
  %v3709 = vsel %vm3657, %v3644, %v2671
  %v3710 = vsel %vm3657, %v3645, %v2673
  %v3711 = vsel %vm3657, %v3646, %v2675
  %v3712 = vsel %vm3657, %v3647, %v2677
  %v3713 = vsel %vm3657, %v3648, %v2679
  %v3714 = vsel %vm3657, %v3649, %v2681
  %v3715 = vsel %vm3657, %v3650, %v2683
  %v3716 = vsel %vm3657, %v3651, %v2685
  %v3717 = vsel %vm3657, %v3652, %v2687
  %v3718 = vsel %vm3657, %v3653, %v2689
  %v3719 = vsel %vm3657, %v3654, %v2691
  %v3720 = vsel %vm3657, %v3655, %v2693
  %v3721 = vsel %vm3657, %v3656, %v2695
  %v3722 = vsel %vm62, %v1671, %v2825
  %v3723 = vsel %vm62, %v1672, %v2827
  %v3724 = vsel %vm62, %v1673, %v2829
  %v3725 = vsel %vm62, %v1674, %v2831
  %v3726 = vsel %vm62, %v1675, %v2833
  %v3727 = vsel %vm62, %v1676, %v2835
  %v3728 = vsel %vm62, %v1677, %v2837
  %v3729 = vsel %vm62, %v1678, %v2839
  %v3730 = vsel %vm62, %v1679, %v2841
  %v3731 = vsel %vm62, %v1680, %v2843
  %v3732 = vsel %vm62, %v1681, %v2845
  %v3733 = vsel %vm62, %v1682, %v2847
  %v3734 = vsel %vm62, %v1683, %v2849
  %v3735 = vsel %vm62, %v1684, %v2851
  %v3736 = vsel %vm62, %v1685, %v2853
  %v3737 = vsel %vm62, %v1686, %v2855
  %v3738 = vsel %vm62, %v1687, %v2857
  %v3739 = vsel %vm62, %v1688, %v2859
  %v3740 = vsel %vm62, %v1689, %v2861
  %v3741 = vsel %vm62, %v1690, %v2863
  %v3742 = vsel %vm62, %v1691, %v2865
  %v3743 = vsel %vm62, %v1692, %v2867
  %v3744 = vsel %vm62, %v1693, %v2869
  %v3745 = vsel %vm62, %v1694, %v2871
  %v3746 = vsel %vm62, %v1695, %v2873
  %v3747 = vsel %vm62, %v1696, %v2875
  %v3748 = vsel %vm62, %v1697, %v2877
  %v3749 = vsel %vm62, %v1698, %v2879
  %v3750 = vsel %vm62, %v1699, %v2881
  %v3751 = vsel %vm62, %v1700, %v2883
  %v3752 = vsel %vm62, %v1701, %v2885
  %v3753 = vsel %vm62, %v1702, %v2887
  %v3754 = vsel %vm62, %v1703, %v2889
  %v3755 = vsel %vm62, %v1704, %v2891
  %v3756 = vsel %vm62, %v1705, %v2893
  %v3757 = vsel %vm62, %v1706, %v2895
  %v3758 = vsel %vm62, %v1707, %v2897
  %v3759 = vsel %vm62, %v1708, %v2899
  %v3760 = vsel %vm62, %v1709, %v2901
  %v3761 = vsel %vm62, %v1710, %v2903
  %v3762 = vsel %vm62, %v1711, %v2905
  %v3763 = vsel %vm62, %v1712, %v2907
  %v3764 = vsel %vm62, %v1713, %v2909
  %v3765 = vsel %vm62, %v1714, %v2911
  %v3766 = vsel %vm62, %v1715, %v2913
  %v3767 = vsel %vm62, %v1716, %v2915
  %v3768 = vsel %vm62, %v1717, %v2917
  %v3769 = vsel %vm62, %v1718, %v2919
  %v3770 = vsel %vm62, %v1719, %v2921
  %v3771 = vsel %vm62, %v1720, %v2923
  %v3772 = vsel %vm62, %v1721, %v2925
  %v3773 = vsel %vm62, %v1722, %v2927
  %v3774 = vsel %vm62, %v1723, %v2929
  %v3775 = vsel %vm62, %v1724, %v2931
  %v3776 = vsel %vm62, %v1725, %v2933
  %v3777 = vsel %vm62, %v1726, %v2935
  %v3778 = vsel %vm62, %v1727, %v2937
  %v3779 = vsel %vm62, %v1728, %v2939
  %v3780 = vsel %vm62, %v1729, %v2941
  %v3781 = vsel %vm62, %v1730, %v2943
  %v3782 = vsel %vm62, %v1731, %v2945
  %v3783 = vsel %vm62, %v1732, %v2947
  %v3784 = vsel %vm62, %v1733, %v2949
  %v3785 = vsel %vm62, %v1734, %v2951
  %v3786 = vsel %vm3592, %v3722, %v3081
  %v3787 = vsel %vm3592, %v3723, %v3083
  %v3788 = vsel %vm3592, %v3724, %v3085
  %v3789 = vsel %vm3592, %v3725, %v3087
  %v3790 = vsel %vm3592, %v3726, %v3089
  %v3791 = vsel %vm3592, %v3727, %v3091
  %v3792 = vsel %vm3592, %v3728, %v3093
  %v3793 = vsel %vm3592, %v3729, %v3095
  %v3794 = vsel %vm3592, %v3730, %v3097
  %v3795 = vsel %vm3592, %v3731, %v3099
  %v3796 = vsel %vm3592, %v3732, %v3101
  %v3797 = vsel %vm3592, %v3733, %v3103
  %v3798 = vsel %vm3592, %v3734, %v3105
  %v3799 = vsel %vm3592, %v3735, %v3107
  %v3800 = vsel %vm3592, %v3736, %v3109
  %v3801 = vsel %vm3592, %v3737, %v3111
  %v3802 = vsel %vm3592, %v3738, %v3113
  %v3803 = vsel %vm3592, %v3739, %v3115
  %v3804 = vsel %vm3592, %v3740, %v3117
  %v3805 = vsel %vm3592, %v3741, %v3119
  %v3806 = vsel %vm3592, %v3742, %v3121
  %v3807 = vsel %vm3592, %v3743, %v3123
  %v3808 = vsel %vm3592, %v3744, %v3125
  %v3809 = vsel %vm3592, %v3745, %v3127
  %v3810 = vsel %vm3592, %v3746, %v3129
  %v3811 = vsel %vm3592, %v3747, %v3131
  %v3812 = vsel %vm3592, %v3748, %v3133
  %v3813 = vsel %vm3592, %v3749, %v3135
  %v3814 = vsel %vm3592, %v3750, %v3137
  %v3815 = vsel %vm3592, %v3751, %v3139
  %v3816 = vsel %vm3592, %v3752, %v3141
  %v3817 = vsel %vm3592, %v3753, %v3143
  %v3818 = vsel %vm3592, %v3754, %v3145
  %v3819 = vsel %vm3592, %v3755, %v3147
  %v3820 = vsel %vm3592, %v3756, %v3149
  %v3821 = vsel %vm3592, %v3757, %v3151
  %v3822 = vsel %vm3592, %v3758, %v3153
  %v3823 = vsel %vm3592, %v3759, %v3155
  %v3824 = vsel %vm3592, %v3760, %v3157
  %v3825 = vsel %vm3592, %v3761, %v3159
  %v3826 = vsel %vm3592, %v3762, %v3161
  %v3827 = vsel %vm3592, %v3763, %v3163
  %v3828 = vsel %vm3592, %v3764, %v3165
  %v3829 = vsel %vm3592, %v3765, %v3167
  %v3830 = vsel %vm3592, %v3766, %v3169
  %v3831 = vsel %vm3592, %v3767, %v3171
  %v3832 = vsel %vm3592, %v3768, %v3173
  %v3833 = vsel %vm3592, %v3769, %v3175
  %v3834 = vsel %vm3592, %v3770, %v3177
  %v3835 = vsel %vm3592, %v3771, %v3179
  %v3836 = vsel %vm3592, %v3772, %v3181
  %v3837 = vsel %vm3592, %v3773, %v3183
  %v3838 = vsel %vm3592, %v3774, %v3185
  %v3839 = vsel %vm3592, %v3775, %v3187
  %v3840 = vsel %vm3592, %v3776, %v3189
  %v3841 = vsel %vm3592, %v3777, %v3191
  %v3842 = vsel %vm3592, %v3778, %v3193
  %v3843 = vsel %vm3592, %v3779, %v3195
  %v3844 = vsel %vm3592, %v3780, %v3197
  %v3845 = vsel %vm3592, %v3781, %v3199
  %v3846 = vsel %vm3592, %v3782, %v3201
  %v3847 = vsel %vm3592, %v3783, %v3203
  %v3848 = vsel %vm3592, %v3784, %v3205
  %v3849 = vsel %vm3592, %v3785, %v3207
  %v3850 = vsel %vm3657, %v3786, %v3337
  %v3851 = vsel %vm3657, %v3787, %v3339
  %v3852 = vsel %vm3657, %v3788, %v3341
  %v3853 = vsel %vm3657, %v3789, %v3343
  %v3854 = vsel %vm3657, %v3790, %v3345
  %v3855 = vsel %vm3657, %v3791, %v3347
  %v3856 = vsel %vm3657, %v3792, %v3349
  %v3857 = vsel %vm3657, %v3793, %v3351
  %v3858 = vsel %vm3657, %v3794, %v3353
  %v3859 = vsel %vm3657, %v3795, %v3355
  %v3860 = vsel %vm3657, %v3796, %v3357
  %v3861 = vsel %vm3657, %v3797, %v3359
  %v3862 = vsel %vm3657, %v3798, %v3361
  %v3863 = vsel %vm3657, %v3799, %v3363
  %v3864 = vsel %vm3657, %v3800, %v3365
  %v3865 = vsel %vm3657, %v3801, %v3367
  %v3866 = vsel %vm3657, %v3802, %v3369
  %v3867 = vsel %vm3657, %v3803, %v3371
  %v3868 = vsel %vm3657, %v3804, %v3373
  %v3869 = vsel %vm3657, %v3805, %v3375
  %v3870 = vsel %vm3657, %v3806, %v3377
  %v3871 = vsel %vm3657, %v3807, %v3379
  %v3872 = vsel %vm3657, %v3808, %v3381
  %v3873 = vsel %vm3657, %v3809, %v3383
  %v3874 = vsel %vm3657, %v3810, %v3385
  %v3875 = vsel %vm3657, %v3811, %v3387
  %v3876 = vsel %vm3657, %v3812, %v3389
  %v3877 = vsel %vm3657, %v3813, %v3391
  %v3878 = vsel %vm3657, %v3814, %v3393
  %v3879 = vsel %vm3657, %v3815, %v3395
  %v3880 = vsel %vm3657, %v3816, %v3397
  %v3881 = vsel %vm3657, %v3817, %v3399
  %v3882 = vsel %vm3657, %v3818, %v3401
  %v3883 = vsel %vm3657, %v3819, %v3403
  %v3884 = vsel %vm3657, %v3820, %v3405
  %v3885 = vsel %vm3657, %v3821, %v3407
  %v3886 = vsel %vm3657, %v3822, %v3409
  %v3887 = vsel %vm3657, %v3823, %v3411
  %v3888 = vsel %vm3657, %v3824, %v3413
  %v3889 = vsel %vm3657, %v3825, %v3415
  %v3890 = vsel %vm3657, %v3826, %v3417
  %v3891 = vsel %vm3657, %v3827, %v3419
  %v3892 = vsel %vm3657, %v3828, %v3421
  %v3893 = vsel %vm3657, %v3829, %v3423
  %v3894 = vsel %vm3657, %v3830, %v3425
  %v3895 = vsel %vm3657, %v3831, %v3427
  %v3896 = vsel %vm3657, %v3832, %v3429
  %v3897 = vsel %vm3657, %v3833, %v3431
  %v3898 = vsel %vm3657, %v3834, %v3433
  %v3899 = vsel %vm3657, %v3835, %v3435
  %v3900 = vsel %vm3657, %v3836, %v3437
  %v3901 = vsel %vm3657, %v3837, %v3439
  %v3902 = vsel %vm3657, %v3838, %v3441
  %v3903 = vsel %vm3657, %v3839, %v3443
  %v3904 = vsel %vm3657, %v3840, %v3445
  %v3905 = vsel %vm3657, %v3841, %v3447
  %v3906 = vsel %vm3657, %v3842, %v3449
  %v3907 = vsel %vm3657, %v3843, %v3451
  %v3908 = vsel %vm3657, %v3844, %v3453
  %v3909 = vsel %vm3657, %v3845, %v3455
  %v3910 = vsel %vm3657, %v3846, %v3457
  %v3911 = vsel %vm3657, %v3847, %v3459
  %v3912 = vsel %vm3657, %v3848, %v3461
  %v3913 = vsel %vm3657, %v3849, %v3463
  %v3914 = vld [vmem:[%s5] sm:$0xff]
  %v3915 = vld [vmem:[%s5 + $0x8] sm:$0xff]
  %v3916 = vld [vmem:[%s5 + $0x10] sm:$0xff]
  %v3917 = vld [vmem:[%s5 + $0x18] sm:$0xff]
  %v3918 = vld [vmem:[%s5 + $0x20] sm:$0xff]
  %v3919 = vld [vmem:[%s5 + $0x28] sm:$0xff]
  %v3920 = vld [vmem:[%s5 + $0x30] sm:$0xff]
  %v3921 = vld [vmem:[%s5 + $0x38] sm:$0xff]
  %v3922 = vld [vmem:[%s5 + $0x40] sm:$0xff]
  %v3923 = vld [vmem:[%s5 + $0x48] sm:$0xff]
  %v3924 = vld [vmem:[%s5 + $0x50] sm:$0xff]
  %v3925 = vld [vmem:[%s5 + $0x58] sm:$0xff]
  %v3926 = vld [vmem:[%s5 + $0x60] sm:$0xff]
  %v3927 = vld [vmem:[%s5 + $0x68] sm:$0xff]
  %v3928 = vld [vmem:[%s5 + $0x70] sm:$0xff]
  %v3929 = vld [vmem:[%s5 + $0x78] sm:$0xff]
  %v3930 = vld [vmem:[%s5 + $0x80] sm:$0xff]
  %v3931 = vld [vmem:[%s5 + $0x88] sm:$0xff]
  %v3932 = vld [vmem:[%s5 + $0x90] sm:$0xff]
  %v3933 = vld [vmem:[%s5 + $0x98] sm:$0xff]
  %v3934 = vld [vmem:[%s5 + $0xa0] sm:$0xff]
  %v3935 = vld [vmem:[%s5 + $0xa8] sm:$0xff]
  %v3936 = vld [vmem:[%s5 + $0xb0] sm:$0xff]
  %v3937 = vld [vmem:[%s5 + $0xb8] sm:$0xff]
  %v3938 = vld [vmem:[%s5 + $0xc0] sm:$0xff]
  %v3939 = vld [vmem:[%s5 + $0xc8] sm:$0xff]
  %v3940 = vld [vmem:[%s5 + $0xd0] sm:$0xff]
  %v3941 = vld [vmem:[%s5 + $0xd8] sm:$0xff]
  %v3942 = vld [vmem:[%s5 + $0xe0] sm:$0xff]
  %v3943 = vld [vmem:[%s5 + $0xe8] sm:$0xff]
  %v3944 = vld [vmem:[%s5 + $0xf0] sm:$0xff]
  %v3945 = vld [vmem:[%s5 + $0xf8] sm:$0xff]
  %v3946 = vld [vmem:[%s5 + $0x100] sm:$0xff]
  %v3947 = vld [vmem:[%s5 + $0x108] sm:$0xff]
  %v3948 = vld [vmem:[%s5 + $0x110] sm:$0xff]
  %v3949 = vld [vmem:[%s5 + $0x118] sm:$0xff]
  %v3950 = vld [vmem:[%s6] sm:$0x1]
  %v3952 = vlaneseq
  %v3953 = vshrl.u32 %v3952, 7
  %v3954 = vsub.s32 0, %v3953
  %v3955 = vrot.slane %v3950, %v3954
  %v3958 = vsel %vm62, %v1928, 0
  %v3961 = vsel %vm62, %v1929, 0
  %v3964 = vsel %vm62, %v1930, 0
  %v3967 = vsel %vm62, %v1931, 0
  %v3970 = vsel %vm62, %v1932, 0
  %v3973 = vsel %vm62, %v1933, 0
  %v3976 = vsel %vm62, %v1934, 0
  %v3979 = vsel %vm62, %v1935, 0
  %v3982 = vsel %vm62, %v1936, 0
  %v3985 = vsel %vm62, %v1937, 0
  %v3988 = vsel %vm62, %v1938, 0
  %v3991 = vsel %vm62, %v1939, 0
  %v3994 = vsel %vm62, %v1940, 0
  %v3997 = vsel %vm62, %v1941, 0
  %v4000 = vsel %vm62, %v1942, 0
  %v4003 = vsel %vm62, %v1943, 0
  %v4006 = vsel %vm62, %v1944, 0
  %v4009 = vsel %vm62, %v1945, 0
  %v4012 = vsel %vm62, %v1946, 0
  %v4015 = vsel %vm62, %v1947, 0
  %v4018 = vsel %vm62, %v1948, 0
  %v4021 = vsel %vm62, %v1949, 0
  %v4024 = vsel %vm62, %v1950, 0
  %v4027 = vsel %vm62, %v1951, 0
  %v4030 = vsel %vm62, %v1952, 0
  %v4033 = vsel %vm62, %v1953, 0
  %v4036 = vsel %vm62, %v1954, 0
  %v4039 = vsel %vm62, %v1955, 0
  %v4042 = vsel %vm62, %v1956, 0
  %v4045 = vsel %vm62, %v1957, 0
  %v4048 = vsel %vm62, %v1958, 0
  %v4051 = vsel %vm62, %v1959, 0
  %v4054 = vsel %vm62, %v1960, 0
  %v4057 = vsel %vm62, %v1961, 0
  %v4060 = vsel %vm62, %v1962, 0
  %v4063 = vsel %vm62, %v1963, 0
  %v4066 = vsel %vm62, %v1964, 0
  %v4069 = vsel %vm62, %v1965, 0
  %v4072 = vsel %vm62, %v1966, 0
  %v4075 = vsel %vm62, %v1967, 0
  %v4078 = vsel %vm62, %v1968, 0
  %v4081 = vsel %vm62, %v1969, 0
  %v4084 = vsel %vm62, %v1970, 0
  %v4087 = vsel %vm62, %v1971, 0
  %v4090 = vsel %vm62, %v1972, 0
  %v4093 = vsel %vm62, %v1973, 0
  %v4096 = vsel %vm62, %v1974, 0
  %v4099 = vsel %vm62, %v1975, 0
  %v4102 = vsel %vm62, %v1976, 0
  %v4105 = vsel %vm62, %v1977, 0
  %v4108 = vsel %vm62, %v1978, 0
  %v4111 = vsel %vm62, %v1979, 0
  %v4114 = vsel %vm62, %v1980, 0
  %v4117 = vsel %vm62, %v1981, 0
  %v4120 = vsel %vm62, %v1982, 0
  %v4123 = vsel %vm62, %v1983, 0
  %v4126 = vsel %vm62, %v1984, 0
  %v4129 = vsel %vm62, %v1985, 0
  %v4132 = vsel %vm62, %v1986, 0
  %v4135 = vsel %vm62, %v1987, 0
  %v4138 = vsel %vm62, %v1988, 0
  %v4141 = vsel %vm62, %v1989, 0
  %v4144 = vsel %vm62, %v1990, 0
  %v4147 = vsel %vm62, %v1991, 0
  %4149 = vmatprep.subr.mxu0 0.0
  %4150 = vmatpush1.msra.mxu0 %v3914
  %4151 = vmatprep.subr.mxu0 0.0
  %4152 = vmatpush1.msra.mxu0 %v3915
  %4153 = vmatprep.subr.mxu0 0.0
  %4154 = vmatpush1.msra.mxu0 %v3916
  %4155 = vmatprep.subr.mxu0 0.0
  %4156 = vmatpush1.msra.mxu0 %v3917
  %4157 = vmatprep.subr.mxu0 0.0
  %4158 = vmatpush1.msra.mxu0 %v3918
  %4159 = vmatprep.subr.mxu0 0.0
  %4160 = vmatpush1.msra.mxu0 %v3919
  %4161 = vmatprep.subr.mxu0 0.0
  %4162 = vmatpush1.msra.mxu0 %v3920
  %4163 = vmatprep.subr.mxu0 0.0
  %4164 = vmatpush1.msra.mxu0 %v3921
  %4165 = vmatprep.subr.mxu0 0.0
  %4166 = vmatpush1.msra.mxu0 %v3922
  %4167 = vmatprep.subr.mxu0 0.0
  %4168 = vmatpush1.msra.mxu0 %v3923
  %4169 = vmatprep.subr.mxu0 0.0
  %4170 = vmatpush1.msra.mxu0 %v3924
  %4171 = vmatprep.subr.mxu0 0.0
  %4172 = vmatpush1.msra.mxu0 %v3925
  %4173 = vmatprep.subr.mxu0 0.0
  %4174 = vmatpush1.msra.mxu0 %v3926
  %4175 = vmatprep.subr.mxu0 0.0
  %4176 = vmatpush1.msra.mxu0 %v3927
  %4177 = vmatprep.subr.mxu0 0.0
  %4178 = vmatpush1.msra.mxu0 %v3928
  %4179 = vmatprep.subr.mxu0 0.0
  %4180 = vmatpush1.msra.mxu0 %v3929
  %4181 = vmatprep.subr.mxu0 0.0
  %4182 = vmatpush1.msra.mxu0 %v3930
  %4183 = vmatprep.subr.mxu0 0.0
  %4184 = vmatpush1.msra.mxu0 %v3931
  %4185 = vmatprep.subr.mxu0 0.0
  %4186 = vmatpush1.msra.mxu0 %v3932
  %4187 = vmatprep.subr.mxu0 0.0
  %4188 = vmatpush1.msra.mxu0 %v3933
  %4189 = vmatprep.subr.mxu0 0.0
  %4190 = vmatpush1.msra.mxu0 %v3934
  %4191 = vmatprep.subr.mxu0 0.0
  %4192 = vmatpush1.msra.mxu0 %v3935
  %4193 = vmatprep.subr.mxu0 0.0
  %4194 = vmatpush1.msra.mxu0 %v3936
  %4195 = vmatprep.subr.mxu0 0.0
  %4196 = vmatpush1.msra.mxu0 %v3937
  %4197 = vmatprep.subr.mxu0 0.0
  %4198 = vmatpush1.msra.mxu0 %v3938
  %4199 = vmatprep.subr.mxu0 0.0
  %4200 = vmatpush1.msra.mxu0 %v3939
  %4201 = vmatprep.subr.mxu0 0.0
  %4202 = vmatpush1.msra.mxu0 %v3940
  %4203 = vmatprep.subr.mxu0 0.0
  %4204 = vmatpush1.msra.mxu0 %v3941
  %4205 = vmatprep.subr.mxu0 0.0
  %4206 = vmatpush1.msra.mxu0 %v3942
  %4207 = vmatprep.subr.mxu0 0.0
  %4208 = vmatpush1.msra.mxu0 %v3943
  %4209 = vmatprep.subr.mxu0 0.0
  %4210 = vmatpush1.msra.mxu0 %v3944
  %4211 = vmatprep.subr.mxu0 0.0
  %4212 = vmatpush1.msra.mxu0 %v3945
  %4213 = vmatprep.mubr.f32.mxu0 %v3850
  %4214 = vmatmul.mubr.f32.gmra.mrb[0].mxu0 %v3658
  %v4215 = vpop.f32.mrb[0].mxu0
  %v4216 = vadd.f32 %v3955, %v4215
  %v4217 = vpop.f32.mrb[0].mxu0
  %4218 = vmatprep.mubr.f32.mxu0 %v3851
  %4219 = vmatmul.mubr.f32.gmra.mrb[0].mxu0 %v3659
  %v4220 = vpop.f32.mrb[0].mxu0
  %v4221 = vadd.f32 %v3955, %v4220
  %v4222 = vpop.f32.mrb[0].mxu0
  %4223 = vmatprep.mubr.f32.mxu0 %v3852
  %4224 = vmatmul.mubr.f32.gmra.mrb[0].mxu0 %v3660
  %v4225 = vpop.f32.mrb[0].mxu0
  %v4226 = vadd.f32 %v3955, %v4225
  %v4227 = vpop.f32.mrb[0].mxu0
  %4228 = vmatprep.mubr.f32.mxu0 %v3853
  %4229 = vmatmul.mubr.f32.gmra.mrb[0].mxu0 %v3661
  %v4230 = vpop.f32.mrb[0].mxu0
  %v4231 = vadd.f32 %v3955, %v4230
  %v4232 = vpop.f32.mrb[0].mxu0
  %4233 = vmatprep.mubr.f32.mxu0 %v3854
  %4234 = vmatmul.mubr.f32.gmra.mrb[0].mxu0 %v3662
  %v4235 = vpop.f32.mrb[0].mxu0
  %v4236 = vadd.f32 %v3955, %v4235
  %v4237 = vpop.f32.mrb[0].mxu0
  %4238 = vmatprep.mubr.f32.mxu0 %v3855
  %4239 = vmatmul.mubr.f32.gmra.mrb[0].mxu0 %v3663
  %v4240 = vpop.f32.mrb[0].mxu0
  %v4241 = vadd.f32 %v3955, %v4240
  %v4242 = vpop.f32.mrb[0].mxu0
  %4243 = vmatprep.mubr.f32.mxu0 %v3856
  %4244 = vmatmul.mubr.f32.gmra.mrb[0].mxu0 %v3664
  %v4245 = vpop.f32.mrb[0].mxu0
  %v4246 = vadd.f32 %v3955, %v4245
  %v4247 = vpop.f32.mrb[0].mxu0
  %4248 = vmatprep.mubr.f32.mxu0 %v3857
  %4249 = vmatmul.mubr.f32.gmra.mrb[0].mxu0 %v3665
  %v4250 = vpop.f32.mrb[0].mxu0
  %v4251 = vadd.f32 %v3955, %v4250
  %v4252 = vpop.f32.mrb[0].mxu0
  %4253 = vmatprep.mubr.f32.mxu0 %v3858
  %4254 = vmatmul.mubr.f32.gmra.mrb[0].mxu0 %v3666
  %v4255 = vpop.f32.mrb[0].mxu0
  %v4256 = vadd.f32 %v3955, %v4255
  %v4257 = vpop.f32.mrb[0].mxu0
  %4258 = vmatprep.mubr.f32.mxu0 %v3859
  %4259 = vmatmul.mubr.f32.gmra.mrb[0].mxu0 %v3667
  %v4260 = vpop.f32.mrb[0].mxu0
  %v4261 = vadd.f32 %v3955, %v4260
  %v4262 = vpop.f32.mrb[0].mxu0
  %4263 = vmatprep.mubr.f32.mxu0 %v3860
  %4264 = vmatmul.mubr.f32.gmra.mrb[0].mxu0 %v3668
  %v4265 = vpop.f32.mrb[0].mxu0
  %v4266 = vadd.f32 %v3955, %v4265
  %v4267 = vpop.f32.mrb[0].mxu0
  %4268 = vmatprep.mubr.f32.mxu0 %v3861
  %4269 = vmatmul.mubr.f32.gmra.mrb[0].mxu0 %v3669
  %v4270 = vpop.f32.mrb[0].mxu0
  %v4271 = vadd.f32 %v3955, %v4270
  %v4272 = vpop.f32.mrb[0].mxu0
  %4273 = vmatprep.mubr.f32.mxu0 %v3862
  %4274 = vmatmul.mubr.f32.gmra.mrb[0].mxu0 %v3670
  %v4275 = vpop.f32.mrb[0].mxu0
  %v4276 = vadd.f32 %v3955, %v4275
  %v4277 = vpop.f32.mrb[0].mxu0
  %4278 = vmatprep.mubr.f32.mxu0 %v3863
  %4279 = vmatmul.mubr.f32.gmra.mrb[0].mxu0 %v3671
  %v4280 = vpop.f32.mrb[0].mxu0
  %v4281 = vadd.f32 %v3955, %v4280
  %v4282 = vpop.f32.mrb[0].mxu0
  %4283 = vmatprep.mubr.f32.mxu0 %v3864
  %4284 = vmatmul.mubr.f32.gmra.mrb[0].mxu0 %v3672
  %v4285 = vpop.f32.mrb[0].mxu0
  %v4286 = vadd.f32 %v3955, %v4285
  %v4287 = vpop.f32.mrb[0].mxu0
  %4288 = vmatprep.mubr.f32.mxu0 %v3865
  %4289 = vmatmul.mubr.f32.gmra.mrb[0].mxu0 %v3673
  %v4290 = vpop.f32.mrb[0].mxu0
  %v4291 = vadd.f32 %v3955, %v4290
  %v4292 = vpop.f32.mrb[0].mxu0
  %4293 = vmatprep.mubr.f32.mxu0 %v3866
  %4294 = vmatmul.mubr.f32.gmra.mrb[0].mxu0 %v3674
  %v4295 = vpop.f32.mrb[0].mxu0
  %v4296 = vadd.f32 %v3955, %v4295
  %v4297 = vpop.f32.mrb[0].mxu0
  %4298 = vmatprep.mubr.f32.mxu0 %v3867
  %4299 = vmatmul.mubr.f32.gmra.mrb[0].mxu0 %v3675
  %v4300 = vpop.f32.mrb[0].mxu0
  %v4301 = vadd.f32 %v3955, %v4300
  %v4302 = vpop.f32.mrb[0].mxu0
  %4303 = vmatprep.mubr.f32.mxu0 %v3868
  %4304 = vmatmul.mubr.f32.gmra.mrb[0].mxu0 %v3676
  %v4305 = vpop.f32.mrb[0].mxu0
  %v4306 = vadd.f32 %v3955, %v4305
  %v4307 = vpop.f32.mrb[0].mxu0
  %4308 = vmatprep.mubr.f32.mxu0 %v3869
  %4309 = vmatmul.mubr.f32.gmra.mrb[0].mxu0 %v3677
  %v4310 = vpop.f32.mrb[0].mxu0
  %v4311 = vadd.f32 %v3955, %v4310
  %v4312 = vpop.f32.mrb[0].mxu0
  %4313 = vmatprep.mubr.f32.mxu0 %v3870
  %4314 = vmatmul.mubr.f32.gmra.mrb[0].mxu0 %v3678
  %v4315 = vpop.f32.mrb[0].mxu0
  %v4316 = vadd.f32 %v3955, %v4315
  %v4317 = vpop.f32.mrb[0].mxu0
  %4318 = vmatprep.mubr.f32.mxu0 %v3871
  %4319 = vmatmul.mubr.f32.gmra.mrb[0].mxu0 %v3679
  %v4320 = vpop.f32.mrb[0].mxu0
  %v4321 = vadd.f32 %v3955, %v4320
  %v4322 = vpop.f32.mrb[0].mxu0
  %4323 = vmatprep.mubr.f32.mxu0 %v3872
  %4324 = vmatmul.mubr.f32.gmra.mrb[0].mxu0 %v3680
  %v4325 = vpop.f32.mrb[0].mxu0
  %v4326 = vadd.f32 %v3955, %v4325
  %v4327 = vpop.f32.mrb[0].mxu0
  %4328 = vmatprep.mubr.f32.mxu0 %v3873
  %4329 = vmatmul.mubr.f32.gmra.mrb[0].mxu0 %v3681
  %v4330 = vpop.f32.mrb[0].mxu0
  %v4331 = vadd.f32 %v3955, %v4330
  %v4332 = vpop.f32.mrb[0].mxu0
  %4333 = vmatprep.mubr.f32.mxu0 %v3874
  %4334 = vmatmul.mubr.f32.gmra.mrb[0].mxu0 %v3682
  %v4335 = vpop.f32.mrb[0].mxu0
  %v4336 = vadd.f32 %v3955, %v4335
  %v4337 = vpop.f32.mrb[0].mxu0
  %4338 = vmatprep.mubr.f32.mxu0 %v3875
  %4339 = vmatmul.mubr.f32.gmra.mrb[0].mxu0 %v3683
  %v4340 = vpop.f32.mrb[0].mxu0
  %v4341 = vadd.f32 %v3955, %v4340
  %v4342 = vpop.f32.mrb[0].mxu0
  %4343 = vmatprep.mubr.f32.mxu0 %v3876
  %4344 = vmatmul.mubr.f32.gmra.mrb[0].mxu0 %v3684
  %v4345 = vpop.f32.mrb[0].mxu0
  %v4346 = vadd.f32 %v3955, %v4345
  %v4347 = vpop.f32.mrb[0].mxu0
  %4348 = vmatprep.mubr.f32.mxu0 %v3877
  %4349 = vmatmul.mubr.f32.gmra.mrb[0].mxu0 %v3685
  %v4350 = vpop.f32.mrb[0].mxu0
  %v4351 = vadd.f32 %v3955, %v4350
  %v4352 = vpop.f32.mrb[0].mxu0
  %4353 = vmatprep.mubr.f32.mxu0 %v3878
  %4354 = vmatmul.mubr.f32.gmra.mrb[0].mxu0 %v3686
  %v4355 = vpop.f32.mrb[0].mxu0
  %v4356 = vadd.f32 %v3955, %v4355
  %v4357 = vpop.f32.mrb[0].mxu0
  %4358 = vmatprep.mubr.f32.mxu0 %v3879
  %4359 = vmatmul.mubr.f32.gmra.mrb[0].mxu0 %v3687
  %v4360 = vpop.f32.mrb[0].mxu0
  %v4361 = vadd.f32 %v3955, %v4360
  %v4362 = vpop.f32.mrb[0].mxu0
  %4363 = vmatprep.mubr.f32.mxu0 %v3880
  %4364 = vmatmul.mubr.f32.gmra.mrb[0].mxu0 %v3688
  %v4365 = vpop.f32.mrb[0].mxu0
  %v4366 = vadd.f32 %v3955, %v4365
  %v4367 = vpop.f32.mrb[0].mxu0
  %4368 = vmatprep.mubr.f32.mxu0 %v3881
  %4369 = vmatmul.mubr.f32.gmra.mrb[0].mxu0 %v3689
  %v4370 = vpop.f32.mrb[0].mxu0
  %v4371 = vadd.f32 %v3955, %v4370
  %v4372 = vpop.f32.mrb[0].mxu0
  %4373 = vmatprep.mubr.f32.mxu0 %v3882
  %4374 = vmatmul.mubr.f32.gmra.mrb[0].mxu0 %v3690
  %v4375 = vpop.f32.mrb[0].mxu0
  %v4376 = vadd.f32 %v3955, %v4375
  %v4377 = vpop.f32.mrb[0].mxu0
  %4378 = vmatprep.mubr.f32.mxu0 %v3883
  %4379 = vmatmul.mubr.f32.gmra.mrb[0].mxu0 %v3691
  %v4380 = vpop.f32.mrb[0].mxu0
  %v4381 = vadd.f32 %v3955, %v4380
  %v4382 = vpop.f32.mrb[0].mxu0
  %4383 = vmatprep.mubr.f32.mxu0 %v3884
  %4384 = vmatmul.mubr.f32.gmra.mrb[0].mxu0 %v3692
  %v4385 = vpop.f32.mrb[0].mxu0
  %v4386 = vadd.f32 %v3955, %v4385
  %v4387 = vpop.f32.mrb[0].mxu0
  %4388 = vmatprep.mubr.f32.mxu0 %v3885
  %4389 = vmatmul.mubr.f32.gmra.mrb[0].mxu0 %v3693
  %v4390 = vpop.f32.mrb[0].mxu0
  %v4391 = vadd.f32 %v3955, %v4390
  %v4392 = vpop.f32.mrb[0].mxu0
  %4393 = vmatprep.mubr.f32.mxu0 %v3886
  %4394 = vmatmul.mubr.f32.gmra.mrb[0].mxu0 %v3694
  %v4395 = vpop.f32.mrb[0].mxu0
  %v4396 = vadd.f32 %v3955, %v4395
  %v4397 = vpop.f32.mrb[0].mxu0
  %4398 = vmatprep.mubr.f32.mxu0 %v3887
  %4399 = vmatmul.mubr.f32.gmra.mrb[0].mxu0 %v3695
  %v4400 = vpop.f32.mrb[0].mxu0
  %v4401 = vadd.f32 %v3955, %v4400
  %v4402 = vpop.f32.mrb[0].mxu0
  %4403 = vmatprep.mubr.f32.mxu0 %v3888
  %4404 = vmatmul.mubr.f32.gmra.mrb[0].mxu0 %v3696
  %v4405 = vpop.f32.mrb[0].mxu0
  %v4406 = vadd.f32 %v3955, %v4405
  %v4407 = vpop.f32.mrb[0].mxu0
  %4408 = vmatprep.mubr.f32.mxu0 %v3889
  %4409 = vmatmul.mubr.f32.gmra.mrb[0].mxu0 %v3697
  %v4410 = vpop.f32.mrb[0].mxu0
  %v4411 = vadd.f32 %v3955, %v4410
  %v4412 = vpop.f32.mrb[0].mxu0
  %4413 = vmatprep.mubr.f32.mxu0 %v3890
  %4414 = vmatmul.mubr.f32.gmra.mrb[0].mxu0 %v3698
  %v4415 = vpop.f32.mrb[0].mxu0
  %v4416 = vadd.f32 %v3955, %v4415
  %v4417 = vpop.f32.mrb[0].mxu0
  %4418 = vmatprep.mubr.f32.mxu0 %v3891
  %4419 = vmatmul.mubr.f32.gmra.mrb[0].mxu0 %v3699
  %v4420 = vpop.f32.mrb[0].mxu0
  %v4421 = vadd.f32 %v3955, %v4420
  %v4422 = vpop.f32.mrb[0].mxu0
  %4423 = vmatprep.mubr.f32.mxu0 %v3892
  %4424 = vmatmul.mubr.f32.gmra.mrb[0].mxu0 %v3700
  %v4425 = vpop.f32.mrb[0].mxu0
  %v4426 = vadd.f32 %v3955, %v4425
  %v4427 = vpop.f32.mrb[0].mxu0
  %4428 = vmatprep.mubr.f32.mxu0 %v3893
  %4429 = vmatmul.mubr.f32.gmra.mrb[0].mxu0 %v3701
  %v4430 = vpop.f32.mrb[0].mxu0
  %v4431 = vadd.f32 %v3955, %v4430
  %v4432 = vpop.f32.mrb[0].mxu0
  %4433 = vmatprep.mubr.f32.mxu0 %v3894
  %4434 = vmatmul.mubr.f32.gmra.mrb[0].mxu0 %v3702
  %v4435 = vpop.f32.mrb[0].mxu0
  %v4436 = vadd.f32 %v3955, %v4435
  %v4437 = vpop.f32.mrb[0].mxu0
  %4438 = vmatprep.mubr.f32.mxu0 %v3895
  %4439 = vmatmul.mubr.f32.gmra.mrb[0].mxu0 %v3703
  %v4440 = vpop.f32.mrb[0].mxu0
  %v4441 = vadd.f32 %v3955, %v4440
  %v4442 = vpop.f32.mrb[0].mxu0
  %4443 = vmatprep.mubr.f32.mxu0 %v3896
  %4444 = vmatmul.mubr.f32.gmra.mrb[0].mxu0 %v3704
  %v4445 = vpop.f32.mrb[0].mxu0
  %v4446 = vadd.f32 %v3955, %v4445
  %v4447 = vpop.f32.mrb[0].mxu0
  %4448 = vmatprep.mubr.f32.mxu0 %v3897
  %4449 = vmatmul.mubr.f32.gmra.mrb[0].mxu0 %v3705
  %v4450 = vpop.f32.mrb[0].mxu0
  %v4451 = vadd.f32 %v3955, %v4450
  %v4452 = vpop.f32.mrb[0].mxu0
  %4453 = vmatprep.mubr.f32.mxu0 %v3898
  %4454 = vmatmul.mubr.f32.gmra.mrb[0].mxu0 %v3706
  %v4455 = vpop.f32.mrb[0].mxu0
  %v4456 = vadd.f32 %v3955, %v4455
  %v4457 = vpop.f32.mrb[0].mxu0
  %4458 = vmatprep.mubr.f32.mxu0 %v3899
  %4459 = vmatmul.mubr.f32.gmra.mrb[0].mxu0 %v3707
  %v4460 = vpop.f32.mrb[0].mxu0
  %v4461 = vadd.f32 %v3955, %v4460
  %v4462 = vpop.f32.mrb[0].mxu0
  %4463 = vmatprep.mubr.f32.mxu0 %v3900
  %4464 = vmatmul.mubr.f32.gmra.mrb[0].mxu0 %v3708
  %v4465 = vpop.f32.mrb[0].mxu0
  %v4466 = vadd.f32 %v3955, %v4465
  %v4467 = vpop.f32.mrb[0].mxu0
  %4468 = vmatprep.mubr.f32.mxu0 %v3901
  %4469 = vmatmul.mubr.f32.gmra.mrb[0].mxu0 %v3709
  %v4470 = vpop.f32.mrb[0].mxu0
  %v4471 = vadd.f32 %v3955, %v4470
  %v4472 = vpop.f32.mrb[0].mxu0
  %4473 = vmatprep.mubr.f32.mxu0 %v3902
  %4474 = vmatmul.mubr.f32.gmra.mrb[0].mxu0 %v3710
  %v4475 = vpop.f32.mrb[0].mxu0
  %v4476 = vadd.f32 %v3955, %v4475
  %v4477 = vpop.f32.mrb[0].mxu0
  %4478 = vmatprep.mubr.f32.mxu0 %v3903
  %4479 = vmatmul.mubr.f32.gmra.mrb[0].mxu0 %v3711
  %v4480 = vpop.f32.mrb[0].mxu0
  %v4481 = vadd.f32 %v3955, %v4480
  %v4482 = vpop.f32.mrb[0].mxu0
  %4483 = vmatprep.mubr.f32.mxu0 %v3904
  %4484 = vmatmul.mubr.f32.gmra.mrb[0].mxu0 %v3712
  %v4485 = vpop.f32.mrb[0].mxu0
  %v4486 = vadd.f32 %v3955, %v4485
  %v4487 = vpop.f32.mrb[0].mxu0
  %4488 = vmatprep.mubr.f32.mxu0 %v3905
  %4489 = vmatmul.mubr.f32.gmra.mrb[0].mxu0 %v3713
  %v4490 = vpop.f32.mrb[0].mxu0
  %v4491 = vadd.f32 %v3955, %v4490
  %v4492 = vpop.f32.mrb[0].mxu0
  %4493 = vmatprep.mubr.f32.mxu0 %v3906
  %4494 = vmatmul.mubr.f32.gmra.mrb[0].mxu0 %v3714
  %v4495 = vpop.f32.mrb[0].mxu0
  %v4496 = vadd.f32 %v3955, %v4495
  %v4497 = vpop.f32.mrb[0].mxu0
  %4498 = vmatprep.mubr.f32.mxu0 %v3907
  %4499 = vmatmul.mubr.f32.gmra.mrb[0].mxu0 %v3715
  %v4500 = vpop.f32.mrb[0].mxu0
  %v4501 = vadd.f32 %v3955, %v4500
  %v4502 = vpop.f32.mrb[0].mxu0
  %4503 = vmatprep.mubr.f32.mxu0 %v3908
  %4504 = vmatmul.mubr.f32.gmra.mrb[0].mxu0 %v3716
  %v4505 = vpop.f32.mrb[0].mxu0
  %v4506 = vadd.f32 %v3955, %v4505
  %v4507 = vpop.f32.mrb[0].mxu0
  %4508 = vmatprep.mubr.f32.mxu0 %v3909
  %4509 = vmatmul.mubr.f32.gmra.mrb[0].mxu0 %v3717
  %v4510 = vpop.f32.mrb[0].mxu0
  %v4511 = vadd.f32 %v3955, %v4510
  %v4512 = vpop.f32.mrb[0].mxu0
  %4513 = vmatprep.mubr.f32.mxu0 %v3910
  %4514 = vmatmul.mubr.f32.gmra.mrb[0].mxu0 %v3718
  %v4515 = vpop.f32.mrb[0].mxu0
  %v4516 = vadd.f32 %v3955, %v4515
  %v4517 = vpop.f32.mrb[0].mxu0
  %4518 = vmatprep.mubr.f32.mxu0 %v3911
  %4519 = vmatmul.mubr.f32.gmra.mrb[0].mxu0 %v3719
  %v4520 = vpop.f32.mrb[0].mxu0
  %v4521 = vadd.f32 %v3955, %v4520
  %v4522 = vpop.f32.mrb[0].mxu0
  %4523 = vmatprep.mubr.f32.mxu0 %v3912
  %4524 = vmatmul.mubr.f32.gmra.mrb[0].mxu0 %v3720
  %v4525 = vpop.f32.mrb[0].mxu0
  %v4526 = vadd.f32 %v3955, %v4525
  %v4527 = vpop.f32.mrb[0].mxu0
  %4528 = vmatprep.mubr.f32.mxu0 %v3913
  %4529 = vmatmul.mubr.f32.gmra.mrb[0].mxu0 %v3721
  %v4530 = vpop.f32.mrb[0].mxu0
  %v4531 = vadd.f32 %v3955, %v4530
  %v4532 = vpop.f32.mrb[0].mxu0
  %4533 = vdwg.mxu0
  %4534 = vmatprep.subr.mxu0 0.0
  %4535 = vmatpush1.msra.mxu0 %v3946
  %4536 = vmatprep.subr.mxu0 0.0
  %4537 = vmatpush1.msra.mxu0 %v3947
  %4538 = vmatprep.subr.mxu0 0.0
  %4539 = vmatpush1.msra.mxu0 %v3948
  %4540 = vmatprep.subr.mxu0 0.0
  %4541 = vmatpush1.msra.mxu0 %v3949
  %4542 = vmatprep.subr.mxu0 0.0
  %4543 = vmatpush1.msra.mxu0 0.0
  %4544 = vmatprep.subr.mxu0 0.0
  %4545 = vmatpush1.msra.mxu0 0.0
  %4546 = vmatprep.subr.mxu0 0.0
  %4547 = vmatpush1.msra.mxu0 0.0
  %4548 = vmatprep.subr.mxu0 0.0
  %4549 = vmatpush1.msra.mxu0 0.0
  %4550 = vmatprep.subr.mxu0 0.0
  %4551 = vmatpush1.msra.mxu0 0.0
  %4552 = vmatprep.subr.mxu0 0.0
  %4553 = vmatpush1.msra.mxu0 0.0
  %4554 = vmatprep.subr.mxu0 0.0
  %4555 = vmatpush1.msra.mxu0 0.0
  %4556 = vmatprep.subr.mxu0 0.0
  %4557 = vmatpush1.msra.mxu0 0.0
  %4558 = vmatprep.subr.mxu0 0.0
  %4559 = vmatpush1.msra.mxu0 0.0
  %4560 = vmatprep.subr.mxu0 0.0
  %4561 = vmatpush1.msra.mxu0 0.0
  %4562 = vmatprep.subr.mxu0 0.0
  %4563 = vmatpush1.msra.mxu0 0.0
  %4564 = vmatprep.subr.mxu0 0.0
  %4565 = vmatpush1.msra.mxu0 0.0
  %4566 = vmatprep.subr.mxu0 0.0
  %4567 = vmatpush1.msra.mxu0 0.0
  %4568 = vmatprep.subr.mxu0 0.0
  %4569 = vmatpush1.msra.mxu0 0.0
  %4570 = vmatprep.subr.mxu0 0.0
  %4571 = vmatpush1.msra.mxu0 0.0
  %4572 = vmatprep.subr.mxu0 0.0
  %4573 = vmatpush1.msra.mxu0 0.0
  %4574 = vmatprep.subr.mxu0 0.0
  %4575 = vmatpush1.msra.mxu0 0.0
  %4576 = vmatprep.subr.mxu0 0.0
  %4577 = vmatpush1.msra.mxu0 0.0
  %4578 = vmatprep.subr.mxu0 0.0
  %4579 = vmatpush1.msra.mxu0 0.0
  %4580 = vmatprep.subr.mxu0 0.0
  %4581 = vmatpush1.msra.mxu0 0.0
  %4582 = vmatprep.subr.mxu0 0.0
  %4583 = vmatpush1.msra.mxu0 0.0
  %4584 = vmatprep.subr.mxu0 0.0
  %4585 = vmatpush1.msra.mxu0 0.0
  %4586 = vmatprep.subr.mxu0 0.0
  %4587 = vmatpush1.msra.mxu0 0.0
  %4588 = vmatprep.subr.mxu0 0.0
  %4589 = vmatpush1.msra.mxu0 0.0
  %4590 = vmatprep.subr.mxu0 0.0
  %4591 = vmatpush1.msra.mxu0 0.0
  %4592 = vmatprep.subr.mxu0 0.0
  %4593 = vmatpush1.msra.mxu0 0.0
  %4594 = vmatprep.subr.mxu0 0.0
  %4595 = vmatpush1.msra.mxu0 0.0
  %4596 = vmatprep.subr.mxu0 0.0
  %4597 = vmatpush1.msra.mxu0 0.0
  %4598 = vmatprep.mubr.f32.mxu0 0.0
  %4599 = vmatmul.mubr.f32.gmra.mrb[0].mxu0 %v3958
  %v4600 = vpop.f32.mrb[0].mxu0
  %v4601 = vadd.f32 %v4216, %v4600
  %v4602 = vpop.f32.mrb[0].mxu0
  %4603 = vmatprep.mubr.f32.mxu0 0.0
  %4604 = vmatmul.mubr.f32.gmra.mrb[0].mxu0 %v3961
  %v4605 = vpop.f32.mrb[0].mxu0
  %v4606 = vadd.f32 %v4221, %v4605
  %v4607 = vpop.f32.mrb[0].mxu0
  %4608 = vmatprep.mubr.f32.mxu0 0.0
  %4609 = vmatmul.mubr.f32.gmra.mrb[0].mxu0 %v3964
  %v4610 = vpop.f32.mrb[0].mxu0
  %v4611 = vadd.f32 %v4226, %v4610
  %v4612 = vpop.f32.mrb[0].mxu0
  %4613 = vmatprep.mubr.f32.mxu0 0.0
  %4614 = vmatmul.mubr.f32.gmra.mrb[0].mxu0 %v3967
  %v4615 = vpop.f32.mrb[0].mxu0
  %v4616 = vadd.f32 %v4231, %v4615
  %v4617 = vpop.f32.mrb[0].mxu0
  %4618 = vmatprep.mubr.f32.mxu0 0.0
  %4619 = vmatmul.mubr.f32.gmra.mrb[0].mxu0 %v3970
  %v4620 = vpop.f32.mrb[0].mxu0
  %v4621 = vadd.f32 %v4236, %v4620
  %v4622 = vpop.f32.mrb[0].mxu0
  %4623 = vmatprep.mubr.f32.mxu0 0.0
  %4624 = vmatmul.mubr.f32.gmra.mrb[0].mxu0 %v3973
  %v4625 = vpop.f32.mrb[0].mxu0
  %v4626 = vadd.f32 %v4241, %v4625
  %v4627 = vpop.f32.mrb[0].mxu0
  %4628 = vmatprep.mubr.f32.mxu0 0.0
  %4629 = vmatmul.mubr.f32.gmra.mrb[0].mxu0 %v3976
  %v4630 = vpop.f32.mrb[0].mxu0
  %v4631 = vadd.f32 %v4246, %v4630
  %v4632 = vpop.f32.mrb[0].mxu0
  %4633 = vmatprep.mubr.f32.mxu0 0.0
  %4634 = vmatmul.mubr.f32.gmra.mrb[0].mxu0 %v3979
  %v4635 = vpop.f32.mrb[0].mxu0
  %v4636 = vadd.f32 %v4251, %v4635
  %v4637 = vpop.f32.mrb[0].mxu0
  %4638 = vmatprep.mubr.f32.mxu0 0.0
  %4639 = vmatmul.mubr.f32.gmra.mrb[0].mxu0 %v3982
  %v4640 = vpop.f32.mrb[0].mxu0
  %v4641 = vadd.f32 %v4256, %v4640
  %v4642 = vpop.f32.mrb[0].mxu0
  %4643 = vmatprep.mubr.f32.mxu0 0.0
  %4644 = vmatmul.mubr.f32.gmra.mrb[0].mxu0 %v3985
  %v4645 = vpop.f32.mrb[0].mxu0
  %v4646 = vadd.f32 %v4261, %v4645
  %v4647 = vpop.f32.mrb[0].mxu0
  %4648 = vmatprep.mubr.f32.mxu0 0.0
  %4649 = vmatmul.mubr.f32.gmra.mrb[0].mxu0 %v3988
  %v4650 = vpop.f32.mrb[0].mxu0
  %v4651 = vadd.f32 %v4266, %v4650
  %v4652 = vpop.f32.mrb[0].mxu0
  %4653 = vmatprep.mubr.f32.mxu0 0.0
  %4654 = vmatmul.mubr.f32.gmra.mrb[0].mxu0 %v3991
  %v4655 = vpop.f32.mrb[0].mxu0
  %v4656 = vadd.f32 %v4271, %v4655
  %v4657 = vpop.f32.mrb[0].mxu0
  %4658 = vmatprep.mubr.f32.mxu0 0.0
  %4659 = vmatmul.mubr.f32.gmra.mrb[0].mxu0 %v3994
  %v4660 = vpop.f32.mrb[0].mxu0
  %v4661 = vadd.f32 %v4276, %v4660
  %v4662 = vpop.f32.mrb[0].mxu0
  %4663 = vmatprep.mubr.f32.mxu0 0.0
  %4664 = vmatmul.mubr.f32.gmra.mrb[0].mxu0 %v3997
  %v4665 = vpop.f32.mrb[0].mxu0
  %v4666 = vadd.f32 %v4281, %v4665
  %v4667 = vpop.f32.mrb[0].mxu0
  %4668 = vmatprep.mubr.f32.mxu0 0.0
  %4669 = vmatmul.mubr.f32.gmra.mrb[0].mxu0 %v4000
  %v4670 = vpop.f32.mrb[0].mxu0
  %v4671 = vadd.f32 %v4286, %v4670
  %v4672 = vpop.f32.mrb[0].mxu0
  %4673 = vmatprep.mubr.f32.mxu0 0.0
  %4674 = vmatmul.mubr.f32.gmra.mrb[0].mxu0 %v4003
  %v4675 = vpop.f32.mrb[0].mxu0
  %v4676 = vadd.f32 %v4291, %v4675
  %v4677 = vpop.f32.mrb[0].mxu0
  %4678 = vmatprep.mubr.f32.mxu0 0.0
  %4679 = vmatmul.mubr.f32.gmra.mrb[0].mxu0 %v4006
  %v4680 = vpop.f32.mrb[0].mxu0
  %v4681 = vadd.f32 %v4296, %v4680
  %v4682 = vpop.f32.mrb[0].mxu0
  %4683 = vmatprep.mubr.f32.mxu0 0.0
  %4684 = vmatmul.mubr.f32.gmra.mrb[0].mxu0 %v4009
  %v4685 = vpop.f32.mrb[0].mxu0
  %v4686 = vadd.f32 %v4301, %v4685
  %v4687 = vpop.f32.mrb[0].mxu0
  %4688 = vmatprep.mubr.f32.mxu0 0.0
  %4689 = vmatmul.mubr.f32.gmra.mrb[0].mxu0 %v4012
  %v4690 = vpop.f32.mrb[0].mxu0
  %v4691 = vadd.f32 %v4306, %v4690
  %v4692 = vpop.f32.mrb[0].mxu0
  %4693 = vmatprep.mubr.f32.mxu0 0.0
  %4694 = vmatmul.mubr.f32.gmra.mrb[0].mxu0 %v4015
  %v4695 = vpop.f32.mrb[0].mxu0
  %v4696 = vadd.f32 %v4311, %v4695
  %v4697 = vpop.f32.mrb[0].mxu0
  %4698 = vmatprep.mubr.f32.mxu0 0.0
  %4699 = vmatmul.mubr.f32.gmra.mrb[0].mxu0 %v4018
  %v4700 = vpop.f32.mrb[0].mxu0
  %v4701 = vadd.f32 %v4316, %v4700
  %v4702 = vpop.f32.mrb[0].mxu0
  %4703 = vmatprep.mubr.f32.mxu0 0.0
  %4704 = vmatmul.mubr.f32.gmra.mrb[0].mxu0 %v4021
  %v4705 = vpop.f32.mrb[0].mxu0
  %v4706 = vadd.f32 %v4321, %v4705
  %v4707 = vpop.f32.mrb[0].mxu0
  %4708 = vmatprep.mubr.f32.mxu0 0.0
  %4709 = vmatmul.mubr.f32.gmra.mrb[0].mxu0 %v4024
  %v4710 = vpop.f32.mrb[0].mxu0
  %v4711 = vadd.f32 %v4326, %v4710
  %v4712 = vpop.f32.mrb[0].mxu0
  %4713 = vmatprep.mubr.f32.mxu0 0.0
  %4714 = vmatmul.mubr.f32.gmra.mrb[0].mxu0 %v4027
  %v4715 = vpop.f32.mrb[0].mxu0
  %v4716 = vadd.f32 %v4331, %v4715
  %v4717 = vpop.f32.mrb[0].mxu0
  %4718 = vmatprep.mubr.f32.mxu0 0.0
  %4719 = vmatmul.mubr.f32.gmra.mrb[0].mxu0 %v4030
  %v4720 = vpop.f32.mrb[0].mxu0
  %v4721 = vadd.f32 %v4336, %v4720
  %v4722 = vpop.f32.mrb[0].mxu0
  %4723 = vmatprep.mubr.f32.mxu0 0.0
  %4724 = vmatmul.mubr.f32.gmra.mrb[0].mxu0 %v4033
  %v4725 = vpop.f32.mrb[0].mxu0
  %v4726 = vadd.f32 %v4341, %v4725
  %v4727 = vpop.f32.mrb[0].mxu0
  %4728 = vmatprep.mubr.f32.mxu0 0.0
  %4729 = vmatmul.mubr.f32.gmra.mrb[0].mxu0 %v4036
  %v4730 = vpop.f32.mrb[0].mxu0
  %v4731 = vadd.f32 %v4346, %v4730
  %v4732 = vpop.f32.mrb[0].mxu0
  %4733 = vmatprep.mubr.f32.mxu0 0.0
  %4734 = vmatmul.mubr.f32.gmra.mrb[0].mxu0 %v4039
  %v4735 = vpop.f32.mrb[0].mxu0
  %v4736 = vadd.f32 %v4351, %v4735
  %v4737 = vpop.f32.mrb[0].mxu0
  %4738 = vmatprep.mubr.f32.mxu0 0.0
  %4739 = vmatmul.mubr.f32.gmra.mrb[0].mxu0 %v4042
  %v4740 = vpop.f32.mrb[0].mxu0
  %v4741 = vadd.f32 %v4356, %v4740
  %v4742 = vpop.f32.mrb[0].mxu0
  %4743 = vmatprep.mubr.f32.mxu0 0.0
  %4744 = vmatmul.mubr.f32.gmra.mrb[0].mxu0 %v4045
  %v4745 = vpop.f32.mrb[0].mxu0
  %v4746 = vadd.f32 %v4361, %v4745
  %v4747 = vpop.f32.mrb[0].mxu0
  %4748 = vmatprep.mubr.f32.mxu0 0.0
  %4749 = vmatmul.mubr.f32.gmra.mrb[0].mxu0 %v4048
  %v4750 = vpop.f32.mrb[0].mxu0
  %v4751 = vadd.f32 %v4366, %v4750
  %v4752 = vpop.f32.mrb[0].mxu0
  %4753 = vmatprep.mubr.f32.mxu0 0.0
  %4754 = vmatmul.mubr.f32.gmra.mrb[0].mxu0 %v4051
  %v4755 = vpop.f32.mrb[0].mxu0
  %v4756 = vadd.f32 %v4371, %v4755
  %v4757 = vpop.f32.mrb[0].mxu0
  %4758 = vmatprep.mubr.f32.mxu0 0.0
  %4759 = vmatmul.mubr.f32.gmra.mrb[0].mxu0 %v4054
  %v4760 = vpop.f32.mrb[0].mxu0
  %v4761 = vadd.f32 %v4376, %v4760
  %v4762 = vpop.f32.mrb[0].mxu0
  %4763 = vmatprep.mubr.f32.mxu0 0.0
  %4764 = vmatmul.mubr.f32.gmra.mrb[0].mxu0 %v4057
  %v4765 = vpop.f32.mrb[0].mxu0
  %v4766 = vadd.f32 %v4381, %v4765
  %v4767 = vpop.f32.mrb[0].mxu0
  %4768 = vmatprep.mubr.f32.mxu0 0.0
  %4769 = vmatmul.mubr.f32.gmra.mrb[0].mxu0 %v4060
  %v4770 = vpop.f32.mrb[0].mxu0
  %v4771 = vadd.f32 %v4386, %v4770
  %v4772 = vpop.f32.mrb[0].mxu0
  %4773 = vmatprep.mubr.f32.mxu0 0.0
  %4774 = vmatmul.mubr.f32.gmra.mrb[0].mxu0 %v4063
  %v4775 = vpop.f32.mrb[0].mxu0
  %v4776 = vadd.f32 %v4391, %v4775
  %v4777 = vpop.f32.mrb[0].mxu0
  %4778 = vmatprep.mubr.f32.mxu0 0.0
  %4779 = vmatmul.mubr.f32.gmra.mrb[0].mxu0 %v4066
  %v4780 = vpop.f32.mrb[0].mxu0
  %v4781 = vadd.f32 %v4396, %v4780
  %v4782 = vpop.f32.mrb[0].mxu0
  %4783 = vmatprep.mubr.f32.mxu0 0.0
  %4784 = vmatmul.mubr.f32.gmra.mrb[0].mxu0 %v4069
  %v4785 = vpop.f32.mrb[0].mxu0
  %v4786 = vadd.f32 %v4401, %v4785
  %v4787 = vpop.f32.mrb[0].mxu0
  %4788 = vmatprep.mubr.f32.mxu0 0.0
  %4789 = vmatmul.mubr.f32.gmra.mrb[0].mxu0 %v4072
  %v4790 = vpop.f32.mrb[0].mxu0
  %v4791 = vadd.f32 %v4406, %v4790
  %v4792 = vpop.f32.mrb[0].mxu0
  %4793 = vmatprep.mubr.f32.mxu0 0.0
  %4794 = vmatmul.mubr.f32.gmra.mrb[0].mxu0 %v4075
  %v4795 = vpop.f32.mrb[0].mxu0
  %v4796 = vadd.f32 %v4411, %v4795
  %v4797 = vpop.f32.mrb[0].mxu0
  %4798 = vmatprep.mubr.f32.mxu0 0.0
  %4799 = vmatmul.mubr.f32.gmra.mrb[0].mxu0 %v4078
  %v4800 = vpop.f32.mrb[0].mxu0
  %v4801 = vadd.f32 %v4416, %v4800
  %v4802 = vpop.f32.mrb[0].mxu0
  %4803 = vmatprep.mubr.f32.mxu0 0.0
  %4804 = vmatmul.mubr.f32.gmra.mrb[0].mxu0 %v4081
  %v4805 = vpop.f32.mrb[0].mxu0
  %v4806 = vadd.f32 %v4421, %v4805
  %v4807 = vpop.f32.mrb[0].mxu0
  %4808 = vmatprep.mubr.f32.mxu0 0.0
  %4809 = vmatmul.mubr.f32.gmra.mrb[0].mxu0 %v4084
  %v4810 = vpop.f32.mrb[0].mxu0
  %v4811 = vadd.f32 %v4426, %v4810
  %v4812 = vpop.f32.mrb[0].mxu0
  %4813 = vmatprep.mubr.f32.mxu0 0.0
  %4814 = vmatmul.mubr.f32.gmra.mrb[0].mxu0 %v4087
  %v4815 = vpop.f32.mrb[0].mxu0
  %v4816 = vadd.f32 %v4431, %v4815
  %v4817 = vpop.f32.mrb[0].mxu0
  %4818 = vmatprep.mubr.f32.mxu0 0.0
  %4819 = vmatmul.mubr.f32.gmra.mrb[0].mxu0 %v4090
  %v4820 = vpop.f32.mrb[0].mxu0
  %v4821 = vadd.f32 %v4436, %v4820
  %v4822 = vpop.f32.mrb[0].mxu0
  %4823 = vmatprep.mubr.f32.mxu0 0.0
  %4824 = vmatmul.mubr.f32.gmra.mrb[0].mxu0 %v4093
  %v4825 = vpop.f32.mrb[0].mxu0
  %v4826 = vadd.f32 %v4441, %v4825
  %v4827 = vpop.f32.mrb[0].mxu0
  %4828 = vmatprep.mubr.f32.mxu0 0.0
  %4829 = vmatmul.mubr.f32.gmra.mrb[0].mxu0 %v4096
  %v4830 = vpop.f32.mrb[0].mxu0
  %v4831 = vadd.f32 %v4446, %v4830
  %v4832 = vpop.f32.mrb[0].mxu0
  %4833 = vmatprep.mubr.f32.mxu0 0.0
  %4834 = vmatmul.mubr.f32.gmra.mrb[0].mxu0 %v4099
  %v4835 = vpop.f32.mrb[0].mxu0
  %v4836 = vadd.f32 %v4451, %v4835
  %v4837 = vpop.f32.mrb[0].mxu0
  %4838 = vmatprep.mubr.f32.mxu0 0.0
  %4839 = vmatmul.mubr.f32.gmra.mrb[0].mxu0 %v4102
  %v4840 = vpop.f32.mrb[0].mxu0
  %v4841 = vadd.f32 %v4456, %v4840
  %v4842 = vpop.f32.mrb[0].mxu0
  %4843 = vmatprep.mubr.f32.mxu0 0.0
  %4844 = vmatmul.mubr.f32.gmra.mrb[0].mxu0 %v4105
  %v4845 = vpop.f32.mrb[0].mxu0
  %v4846 = vadd.f32 %v4461, %v4845
  %v4847 = vpop.f32.mrb[0].mxu0
  %4848 = vmatprep.mubr.f32.mxu0 0.0
  %4849 = vmatmul.mubr.f32.gmra.mrb[0].mxu0 %v4108
  %v4850 = vpop.f32.mrb[0].mxu0
  %v4851 = vadd.f32 %v4466, %v4850
  %v4852 = vpop.f32.mrb[0].mxu0
  %4853 = vmatprep.mubr.f32.mxu0 0.0
  %4854 = vmatmul.mubr.f32.gmra.mrb[0].mxu0 %v4111
  %v4855 = vpop.f32.mrb[0].mxu0
  %v4856 = vadd.f32 %v4471, %v4855
  %v4857 = vpop.f32.mrb[0].mxu0
  %4858 = vmatprep.mubr.f32.mxu0 0.0
  %4859 = vmatmul.mubr.f32.gmra.mrb[0].mxu0 %v4114
  %v4860 = vpop.f32.mrb[0].mxu0
  %v4861 = vadd.f32 %v4476, %v4860
  %v4862 = vpop.f32.mrb[0].mxu0
  %4863 = vmatprep.mubr.f32.mxu0 0.0
  %4864 = vmatmul.mubr.f32.gmra.mrb[0].mxu0 %v4117
  %v4865 = vpop.f32.mrb[0].mxu0
  %v4866 = vadd.f32 %v4481, %v4865
  %v4867 = vpop.f32.mrb[0].mxu0
  %4868 = vmatprep.mubr.f32.mxu0 0.0
  %4869 = vmatmul.mubr.f32.gmra.mrb[0].mxu0 %v4120
  %v4870 = vpop.f32.mrb[0].mxu0
  %v4871 = vadd.f32 %v4486, %v4870
  %v4872 = vpop.f32.mrb[0].mxu0
  %4873 = vmatprep.mubr.f32.mxu0 0.0
  %4874 = vmatmul.mubr.f32.gmra.mrb[0].mxu0 %v4123
  %v4875 = vpop.f32.mrb[0].mxu0
  %v4876 = vadd.f32 %v4491, %v4875
  %v4877 = vpop.f32.mrb[0].mxu0
  %4878 = vmatprep.mubr.f32.mxu0 0.0
  %4879 = vmatmul.mubr.f32.gmra.mrb[0].mxu0 %v4126
  %v4880 = vpop.f32.mrb[0].mxu0
  %v4881 = vadd.f32 %v4496, %v4880
  %v4882 = vpop.f32.mrb[0].mxu0
  %4883 = vmatprep.mubr.f32.mxu0 0.0
  %4884 = vmatmul.mubr.f32.gmra.mrb[0].mxu0 %v4129
  %v4885 = vpop.f32.mrb[0].mxu0
  %v4886 = vadd.f32 %v4501, %v4885
  %v4887 = vpop.f32.mrb[0].mxu0
  %4888 = vmatprep.mubr.f32.mxu0 0.0
  %4889 = vmatmul.mubr.f32.gmra.mrb[0].mxu0 %v4132
  %v4890 = vpop.f32.mrb[0].mxu0
  %v4891 = vadd.f32 %v4506, %v4890
  %v4892 = vpop.f32.mrb[0].mxu0
  %4893 = vmatprep.mubr.f32.mxu0 0.0
  %4894 = vmatmul.mubr.f32.gmra.mrb[0].mxu0 %v4135
  %v4895 = vpop.f32.mrb[0].mxu0
  %v4896 = vadd.f32 %v4511, %v4895
  %v4897 = vpop.f32.mrb[0].mxu0
  %4898 = vmatprep.mubr.f32.mxu0 0.0
  %4899 = vmatmul.mubr.f32.gmra.mrb[0].mxu0 %v4138
  %v4900 = vpop.f32.mrb[0].mxu0
  %v4901 = vadd.f32 %v4516, %v4900
  %v4902 = vpop.f32.mrb[0].mxu0
  %4903 = vmatprep.mubr.f32.mxu0 0.0
  %4904 = vmatmul.mubr.f32.gmra.mrb[0].mxu0 %v4141
  %v4905 = vpop.f32.mrb[0].mxu0
  %v4906 = vadd.f32 %v4521, %v4905
  %v4907 = vpop.f32.mrb[0].mxu0
  %4908 = vmatprep.mubr.f32.mxu0 0.0
  %4909 = vmatmul.mubr.f32.gmra.mrb[0].mxu0 %v4144
  %v4910 = vpop.f32.mrb[0].mxu0
  %v4911 = vadd.f32 %v4526, %v4910
  %v4912 = vpop.f32.mrb[0].mxu0
  %4913 = vmatprep.mubr.f32.mxu0 0.0
  %4914 = vmatmul.mubr.f32.gmra.mrb[0].mxu0 %v4147
  %v4915 = vpop.f32.mrb[0].mxu0
  %v4916 = vadd.f32 %v4531, %v4915
  %v4917 = vpop.f32.mrb[0].mxu0
  %4918 = vdwg.mxu0
  %v4919 = vsel %vm62, %v4601, 0.0
  %v4920 = vsel %vm62, %v4606, 0.0
  %v4921 = vadd.f32 %v4919, %v4920
  %v4922 = vsel %vm62, %v4611, 0.0
  %v4923 = vadd.f32 %v4921, %v4922
  %v4924 = vsel %vm62, %v4616, 0.0
  %v4925 = vadd.f32 %v4923, %v4924
  %v4926 = vsel %vm62, %v4621, 0.0
  %v4927 = vadd.f32 %v4925, %v4926
  %v4928 = vsel %vm62, %v4626, 0.0
  %v4929 = vadd.f32 %v4927, %v4928
  %v4930 = vsel %vm62, %v4631, 0.0
  %v4931 = vadd.f32 %v4929, %v4930
  %v4932 = vsel %vm62, %v4636, 0.0
  %v4933 = vadd.f32 %v4931, %v4932
  %v4934 = vsel %vm62, %v4641, 0.0
  %v4935 = vadd.f32 %v4933, %v4934
  %v4936 = vsel %vm62, %v4646, 0.0
  %v4937 = vadd.f32 %v4935, %v4936
  %v4938 = vsel %vm62, %v4651, 0.0
  %v4939 = vadd.f32 %v4937, %v4938
  %v4940 = vsel %vm62, %v4656, 0.0
  %v4941 = vadd.f32 %v4939, %v4940
  %v4942 = vsel %vm62, %v4661, 0.0
  %v4943 = vadd.f32 %v4941, %v4942
  %v4944 = vsel %vm62, %v4666, 0.0
  %v4945 = vadd.f32 %v4943, %v4944
  %v4946 = vsel %vm62, %v4671, 0.0
  %v4947 = vadd.f32 %v4945, %v4946
  %v4948 = vsel %vm62, %v4676, 0.0
  %v4949 = vadd.f32 %v4947, %v4948
  %v4950 = vsel %vm62, %v4681, 0.0
  %v4951 = vadd.f32 %v4949, %v4950
  %v4952 = vsel %vm62, %v4686, 0.0
  %v4953 = vadd.f32 %v4951, %v4952
  %v4954 = vsel %vm62, %v4691, 0.0
  %v4955 = vadd.f32 %v4953, %v4954
  %v4956 = vsel %vm62, %v4696, 0.0
  %v4957 = vadd.f32 %v4955, %v4956
  %v4958 = vsel %vm62, %v4701, 0.0
  %v4959 = vadd.f32 %v4957, %v4958
  %v4960 = vsel %vm62, %v4706, 0.0
  %v4961 = vadd.f32 %v4959, %v4960
  %v4962 = vsel %vm62, %v4711, 0.0
  %v4963 = vadd.f32 %v4961, %v4962
  %v4964 = vsel %vm62, %v4716, 0.0
  %v4965 = vadd.f32 %v4963, %v4964
  %v4966 = vsel %vm62, %v4721, 0.0
  %v4967 = vadd.f32 %v4965, %v4966
  %v4968 = vsel %vm62, %v4726, 0.0
  %v4969 = vadd.f32 %v4967, %v4968
  %v4970 = vsel %vm62, %v4731, 0.0
  %v4971 = vadd.f32 %v4969, %v4970
  %v4972 = vsel %vm62, %v4736, 0.0
  %v4973 = vadd.f32 %v4971, %v4972
  %v4974 = vsel %vm62, %v4741, 0.0
  %v4975 = vadd.f32 %v4973, %v4974
  %v4976 = vsel %vm62, %v4746, 0.0
  %v4977 = vadd.f32 %v4975, %v4976
  %v4978 = vsel %vm62, %v4751, 0.0
  %v4979 = vadd.f32 %v4977, %v4978
  %v4980 = vsel %vm62, %v4756, 0.0
  %v4981 = vadd.f32 %v4979, %v4980
  %v4982 = vsel %vm62, %v4761, 0.0
  %v4983 = vadd.f32 %v4981, %v4982
  %v4984 = vsel %vm62, %v4766, 0.0
  %v4985 = vadd.f32 %v4983, %v4984
  %v4986 = vsel %vm62, %v4771, 0.0
  %v4987 = vadd.f32 %v4985, %v4986
  %v4988 = vsel %vm62, %v4776, 0.0
  %v4989 = vadd.f32 %v4987, %v4988
  %v4990 = vsel %vm62, %v4781, 0.0
  %v4991 = vadd.f32 %v4989, %v4990
  %v4992 = vsel %vm62, %v4786, 0.0
  %v4993 = vadd.f32 %v4991, %v4992
  %v4994 = vsel %vm62, %v4791, 0.0
  %v4995 = vadd.f32 %v4993, %v4994
  %v4996 = vsel %vm62, %v4796, 0.0
  %v4997 = vadd.f32 %v4995, %v4996
  %v4998 = vsel %vm62, %v4801, 0.0
  %v4999 = vadd.f32 %v4997, %v4998
  %v5000 = vsel %vm62, %v4806, 0.0
  %v5001 = vadd.f32 %v4999, %v5000
  %v5002 = vsel %vm62, %v4811, 0.0
  %v5003 = vadd.f32 %v5001, %v5002
  %v5004 = vsel %vm62, %v4816, 0.0
  %v5005 = vadd.f32 %v5003, %v5004
  %v5006 = vsel %vm62, %v4821, 0.0
  %v5007 = vadd.f32 %v5005, %v5006
  %v5008 = vsel %vm62, %v4826, 0.0
  %v5009 = vadd.f32 %v5007, %v5008
  %v5010 = vsel %vm62, %v4831, 0.0
  %v5011 = vadd.f32 %v5009, %v5010
  %v5012 = vsel %vm62, %v4836, 0.0
  %v5013 = vadd.f32 %v5011, %v5012
  %v5014 = vsel %vm62, %v4841, 0.0
  %v5015 = vadd.f32 %v5013, %v5014
  %v5016 = vsel %vm62, %v4846, 0.0
  %v5017 = vadd.f32 %v5015, %v5016
  %v5018 = vsel %vm62, %v4851, 0.0
  %v5019 = vadd.f32 %v5017, %v5018
  %v5020 = vsel %vm62, %v4856, 0.0
  %v5021 = vadd.f32 %v5019, %v5020
  %v5022 = vsel %vm62, %v4861, 0.0
  %v5023 = vadd.f32 %v5021, %v5022
  %v5024 = vsel %vm62, %v4866, 0.0
  %v5025 = vadd.f32 %v5023, %v5024
  %v5026 = vsel %vm62, %v4871, 0.0
  %v5027 = vadd.f32 %v5025, %v5026
  %v5028 = vsel %vm62, %v4876, 0.0
  %v5029 = vadd.f32 %v5027, %v5028
  %v5030 = vsel %vm62, %v4881, 0.0
  %v5031 = vadd.f32 %v5029, %v5030
  %v5032 = vsel %vm62, %v4886, 0.0
  %v5033 = vadd.f32 %v5031, %v5032
  %v5034 = vsel %vm62, %v4891, 0.0
  %v5035 = vadd.f32 %v5033, %v5034
  %v5036 = vsel %vm62, %v4896, 0.0
  %v5037 = vadd.f32 %v5035, %v5036
  %v5038 = vsel %vm62, %v4901, 0.0
  %v5039 = vadd.f32 %v5037, %v5038
  %v5040 = vsel %vm62, %v4906, 0.0
  %v5041 = vadd.f32 %v5039, %v5040
  %v5042 = vsel %vm62, %v4911, 0.0
  %v5043 = vadd.f32 %v5041, %v5042
  %v5044 = vsel %vm62, %v4916, 0.0
  %v5045 = vadd.f32 %v5043, %v5044
  %v5046 = vrot.slane %v5045, 4
  %v5047 = vadd.f32 %v5045, %v5046
  %v5048 = vrot.slane %v5047, 2
  %v5049 = vadd.f32 %v5047, %v5048
  %v5050 = vrot.slane %v5049, 1
  %v5051 = vadd.f32 %v5049, %v5050
  %v5052 = vmul.f32 %v4601, %v4601
  %v5053 = vmul.f32 %v4606, %v4606
  %v5054 = vmul.f32 %v4611, %v4611
  %v5055 = vmul.f32 %v4616, %v4616
  %v5056 = vmul.f32 %v4621, %v4621
  %v5057 = vmul.f32 %v4626, %v4626
  %v5058 = vmul.f32 %v4631, %v4631
  %v5059 = vmul.f32 %v4636, %v4636
  %v5060 = vmul.f32 %v4641, %v4641
  %v5061 = vmul.f32 %v4646, %v4646
  %v5062 = vmul.f32 %v4651, %v4651
  %v5063 = vmul.f32 %v4656, %v4656
  %v5064 = vmul.f32 %v4661, %v4661
  %v5065 = vmul.f32 %v4666, %v4666
  %v5066 = vmul.f32 %v4671, %v4671
  %v5067 = vmul.f32 %v4676, %v4676
  %v5068 = vmul.f32 %v4681, %v4681
  %v5069 = vmul.f32 %v4686, %v4686
  %v5070 = vmul.f32 %v4691, %v4691
  %v5071 = vmul.f32 %v4696, %v4696
  %v5072 = vmul.f32 %v4701, %v4701
  %v5073 = vmul.f32 %v4706, %v4706
  %v5074 = vmul.f32 %v4711, %v4711
  %v5075 = vmul.f32 %v4716, %v4716
  %v5076 = vmul.f32 %v4721, %v4721
  %v5077 = vmul.f32 %v4726, %v4726
  %v5078 = vmul.f32 %v4731, %v4731
  %v5079 = vmul.f32 %v4736, %v4736
  %v5080 = vmul.f32 %v4741, %v4741
  %v5081 = vmul.f32 %v4746, %v4746
  %v5082 = vmul.f32 %v4751, %v4751
  %v5083 = vmul.f32 %v4756, %v4756
  %v5084 = vmul.f32 %v4761, %v4761
  %v5085 = vmul.f32 %v4766, %v4766
  %v5086 = vmul.f32 %v4771, %v4771
  %v5087 = vmul.f32 %v4776, %v4776
  %v5088 = vmul.f32 %v4781, %v4781
  %v5089 = vmul.f32 %v4786, %v4786
  %v5090 = vmul.f32 %v4791, %v4791
  %v5091 = vmul.f32 %v4796, %v4796
  %v5092 = vmul.f32 %v4801, %v4801
  %v5093 = vmul.f32 %v4806, %v4806
  %v5094 = vmul.f32 %v4811, %v4811
  %v5095 = vmul.f32 %v4816, %v4816
  %v5096 = vmul.f32 %v4821, %v4821
  %v5097 = vmul.f32 %v4826, %v4826
  %v5098 = vmul.f32 %v4831, %v4831
  %v5099 = vmul.f32 %v4836, %v4836
  %v5100 = vmul.f32 %v4841, %v4841
  %v5101 = vmul.f32 %v4846, %v4846
  %v5102 = vmul.f32 %v4851, %v4851
  %v5103 = vmul.f32 %v4856, %v4856
  %v5104 = vmul.f32 %v4861, %v4861
  %v5105 = vmul.f32 %v4866, %v4866
  %v5106 = vmul.f32 %v4871, %v4871
  %v5107 = vmul.f32 %v4876, %v4876
  %v5108 = vmul.f32 %v4881, %v4881
  %v5109 = vmul.f32 %v4886, %v4886
  %v5110 = vmul.f32 %v4891, %v4891
  %v5111 = vmul.f32 %v4896, %v4896
  %v5112 = vmul.f32 %v4901, %v4901
  %v5113 = vmul.f32 %v4906, %v4906
  %v5114 = vmul.f32 %v4911, %v4911
  %v5115 = vmul.f32 %v4916, %v4916
  %v5116 = vsel %vm62, %v5052, 0.0
  %v5117 = vsel %vm62, %v5053, 0.0
  %v5118 = vadd.f32 %v5116, %v5117
  %v5119 = vsel %vm62, %v5054, 0.0
  %v5120 = vadd.f32 %v5118, %v5119
  %v5121 = vsel %vm62, %v5055, 0.0
  %v5122 = vadd.f32 %v5120, %v5121
  %v5123 = vsel %vm62, %v5056, 0.0
  %v5124 = vadd.f32 %v5122, %v5123
  %v5125 = vsel %vm62, %v5057, 0.0
  %v5126 = vadd.f32 %v5124, %v5125
  %v5127 = vsel %vm62, %v5058, 0.0
  %v5128 = vadd.f32 %v5126, %v5127
  %v5129 = vsel %vm62, %v5059, 0.0
  %v5130 = vadd.f32 %v5128, %v5129
  %v5131 = vsel %vm62, %v5060, 0.0
  %v5132 = vadd.f32 %v5130, %v5131
  %v5133 = vsel %vm62, %v5061, 0.0
  %v5134 = vadd.f32 %v5132, %v5133
  %v5135 = vsel %vm62, %v5062, 0.0
  %v5136 = vadd.f32 %v5134, %v5135
  %v5137 = vsel %vm62, %v5063, 0.0
  %v5138 = vadd.f32 %v5136, %v5137
  %v5139 = vsel %vm62, %v5064, 0.0
  %v5140 = vadd.f32 %v5138, %v5139
  %v5141 = vsel %vm62, %v5065, 0.0
  %v5142 = vadd.f32 %v5140, %v5141
  %v5143 = vsel %vm62, %v5066, 0.0
  %v5144 = vadd.f32 %v5142, %v5143
  %v5145 = vsel %vm62, %v5067, 0.0
  %v5146 = vadd.f32 %v5144, %v5145
  %v5147 = vsel %vm62, %v5068, 0.0
  %v5148 = vadd.f32 %v5146, %v5147
  %v5149 = vsel %vm62, %v5069, 0.0
  %v5150 = vadd.f32 %v5148, %v5149
  %v5151 = vsel %vm62, %v5070, 0.0
  %v5152 = vadd.f32 %v5150, %v5151
  %v5153 = vsel %vm62, %v5071, 0.0
  %v5154 = vadd.f32 %v5152, %v5153
  %v5155 = vsel %vm62, %v5072, 0.0
  %v5156 = vadd.f32 %v5154, %v5155
  %v5157 = vsel %vm62, %v5073, 0.0
  %v5158 = vadd.f32 %v5156, %v5157
  %v5159 = vsel %vm62, %v5074, 0.0
  %v5160 = vadd.f32 %v5158, %v5159
  %v5161 = vsel %vm62, %v5075, 0.0
  %v5162 = vadd.f32 %v5160, %v5161
  %v5163 = vsel %vm62, %v5076, 0.0
  %v5164 = vadd.f32 %v5162, %v5163
  %v5165 = vsel %vm62, %v5077, 0.0
  %v5166 = vadd.f32 %v5164, %v5165
  %v5167 = vsel %vm62, %v5078, 0.0
  %v5168 = vadd.f32 %v5166, %v5167
  %v5169 = vsel %vm62, %v5079, 0.0
  %v5170 = vadd.f32 %v5168, %v5169
  %v5171 = vsel %vm62, %v5080, 0.0
  %v5172 = vadd.f32 %v5170, %v5171
  %v5173 = vsel %vm62, %v5081, 0.0
  %v5174 = vadd.f32 %v5172, %v5173
  %v5175 = vsel %vm62, %v5082, 0.0
  %v5176 = vadd.f32 %v5174, %v5175
  %v5177 = vsel %vm62, %v5083, 0.0
  %v5178 = vadd.f32 %v5176, %v5177
  %v5179 = vsel %vm62, %v5084, 0.0
  %v5180 = vadd.f32 %v5178, %v5179
  %v5181 = vsel %vm62, %v5085, 0.0
  %v5182 = vadd.f32 %v5180, %v5181
  %v5183 = vsel %vm62, %v5086, 0.0
  %v5184 = vadd.f32 %v5182, %v5183
  %v5185 = vsel %vm62, %v5087, 0.0
  %v5186 = vadd.f32 %v5184, %v5185
  %v5187 = vsel %vm62, %v5088, 0.0
  %v5188 = vadd.f32 %v5186, %v5187
  %v5189 = vsel %vm62, %v5089, 0.0
  %v5190 = vadd.f32 %v5188, %v5189
  %v5191 = vsel %vm62, %v5090, 0.0
  %v5192 = vadd.f32 %v5190, %v5191
  %v5193 = vsel %vm62, %v5091, 0.0
  %v5194 = vadd.f32 %v5192, %v5193
  %v5195 = vsel %vm62, %v5092, 0.0
  %v5196 = vadd.f32 %v5194, %v5195
  %v5197 = vsel %vm62, %v5093, 0.0
  %v5198 = vadd.f32 %v5196, %v5197
  %v5199 = vsel %vm62, %v5094, 0.0
  %v5200 = vadd.f32 %v5198, %v5199
  %v5201 = vsel %vm62, %v5095, 0.0
  %v5202 = vadd.f32 %v5200, %v5201
  %v5203 = vsel %vm62, %v5096, 0.0
  %v5204 = vadd.f32 %v5202, %v5203
  %v5205 = vsel %vm62, %v5097, 0.0
  %v5206 = vadd.f32 %v5204, %v5205
  %v5207 = vsel %vm62, %v5098, 0.0
  %v5208 = vadd.f32 %v5206, %v5207
  %v5209 = vsel %vm62, %v5099, 0.0
  %v5210 = vadd.f32 %v5208, %v5209
  %v5211 = vsel %vm62, %v5100, 0.0
  %v5212 = vadd.f32 %v5210, %v5211
  %v5213 = vsel %vm62, %v5101, 0.0
  %v5214 = vadd.f32 %v5212, %v5213
  %v5215 = vsel %vm62, %v5102, 0.0
  %v5216 = vadd.f32 %v5214, %v5215
  %v5217 = vsel %vm62, %v5103, 0.0
  %v5218 = vadd.f32 %v5216, %v5217
  %v5219 = vsel %vm62, %v5104, 0.0
  %v5220 = vadd.f32 %v5218, %v5219
  %v5221 = vsel %vm62, %v5105, 0.0
  %v5222 = vadd.f32 %v5220, %v5221
  %v5223 = vsel %vm62, %v5106, 0.0
  %v5224 = vadd.f32 %v5222, %v5223
  %v5225 = vsel %vm62, %v5107, 0.0
  %v5226 = vadd.f32 %v5224, %v5225
  %v5227 = vsel %vm62, %v5108, 0.0
  %v5228 = vadd.f32 %v5226, %v5227
  %v5229 = vsel %vm62, %v5109, 0.0
  %v5230 = vadd.f32 %v5228, %v5229
  %v5231 = vsel %vm62, %v5110, 0.0
  %v5232 = vadd.f32 %v5230, %v5231
  %v5233 = vsel %vm62, %v5111, 0.0
  %v5234 = vadd.f32 %v5232, %v5233
  %v5235 = vsel %vm62, %v5112, 0.0
  %v5236 = vadd.f32 %v5234, %v5235
  %v5237 = vsel %vm62, %v5113, 0.0
  %v5238 = vadd.f32 %v5236, %v5237
  %v5239 = vsel %vm62, %v5114, 0.0
  %v5240 = vadd.f32 %v5238, %v5239
  %v5241 = vsel %vm62, %v5115, 0.0
  %v5242 = vadd.f32 %v5240, %v5241
  %v5243 = vrot.slane %v5242, 4
  %v5244 = vadd.f32 %v5242, %v5243
  %v5245 = vrot.slane %v5244, 2
  %v5246 = vadd.f32 %v5244, %v5245
  %v5247 = vrot.slane %v5246, 1
  %v5248 = vadd.f32 %v5246, %v5247
  %v5249 = vmul.f32 %v5051, 0.001953125
  %v5250 = vmul.f32 %v5248, 0.001953125
  %v5251 = vmul.f32 %v5249, %v5249
  %v5252 = vsub.f32 %v5250, %v5251
  %v5253 = vld [vmem:[%s7] sm:$0x1]
  %v5254 = vadd.f32 %v5252, 1e-05
  %v5255 = vrsqrt.pop %v5254
  %v5256 = vmul.f32 %v5253, %v5255
  %v5257 = vld [vmem:[%s8] sm:$0x1]
  %v5258 = vmul.f32 %v5249, %v5256
  %v5259 = vsub.f32 %v5257, %v5258
  %v5261 = vlaneseq
  %v5262 = vshrl.u32 %v5261, 7
  %v5263 = vsub.s32 0, %v5262
  %v5264 = vrot.slane %v5256, %v5263
  %v5266 = vmul.f32 %v4601, %v5264
  %v5267 = vmul.f32 %v4606, %v5264
  %v5268 = vmul.f32 %v4611, %v5264
  %v5269 = vmul.f32 %v4616, %v5264
  %v5270 = vmul.f32 %v4621, %v5264
  %v5271 = vmul.f32 %v4626, %v5264
  %v5272 = vmul.f32 %v4631, %v5264
  %v5273 = vmul.f32 %v4636, %v5264
  %v5274 = vmul.f32 %v4641, %v5264
  %v5275 = vmul.f32 %v4646, %v5264
  %v5276 = vmul.f32 %v4651, %v5264
  %v5277 = vmul.f32 %v4656, %v5264
  %v5278 = vmul.f32 %v4661, %v5264
  %v5279 = vmul.f32 %v4666, %v5264
  %v5280 = vmul.f32 %v4671, %v5264
  %v5281 = vmul.f32 %v4676, %v5264
  %v5282 = vmul.f32 %v4681, %v5264
  %v5283 = vmul.f32 %v4686, %v5264
  %v5284 = vmul.f32 %v4691, %v5264
  %v5285 = vmul.f32 %v4696, %v5264
  %v5286 = vmul.f32 %v4701, %v5264
  %v5287 = vmul.f32 %v4706, %v5264
  %v5288 = vmul.f32 %v4711, %v5264
  %v5289 = vmul.f32 %v4716, %v5264
  %v5290 = vmul.f32 %v4721, %v5264
  %v5291 = vmul.f32 %v4726, %v5264
  %v5292 = vmul.f32 %v4731, %v5264
  %v5293 = vmul.f32 %v4736, %v5264
  %v5294 = vmul.f32 %v4741, %v5264
  %v5295 = vmul.f32 %v4746, %v5264
  %v5296 = vmul.f32 %v4751, %v5264
  %v5297 = vmul.f32 %v4756, %v5264
  %v5298 = vmul.f32 %v4761, %v5264
  %v5299 = vmul.f32 %v4766, %v5264
  %v5300 = vmul.f32 %v4771, %v5264
  %v5301 = vmul.f32 %v4776, %v5264
  %v5302 = vmul.f32 %v4781, %v5264
  %v5303 = vmul.f32 %v4786, %v5264
  %v5304 = vmul.f32 %v4791, %v5264
  %v5305 = vmul.f32 %v4796, %v5264
  %v5306 = vmul.f32 %v4801, %v5264
  %v5307 = vmul.f32 %v4806, %v5264
  %v5308 = vmul.f32 %v4811, %v5264
  %v5309 = vmul.f32 %v4816, %v5264
  %v5310 = vmul.f32 %v4821, %v5264
  %v5311 = vmul.f32 %v4826, %v5264
  %v5312 = vmul.f32 %v4831, %v5264
  %v5313 = vmul.f32 %v4836, %v5264
  %v5314 = vmul.f32 %v4841, %v5264
  %v5315 = vmul.f32 %v4846, %v5264
  %v5316 = vmul.f32 %v4851, %v5264
  %v5317 = vmul.f32 %v4856, %v5264
  %v5318 = vmul.f32 %v4861, %v5264
  %v5319 = vmul.f32 %v4866, %v5264
  %v5320 = vmul.f32 %v4871, %v5264
  %v5321 = vmul.f32 %v4876, %v5264
  %v5322 = vmul.f32 %v4881, %v5264
  %v5323 = vmul.f32 %v4886, %v5264
  %v5324 = vmul.f32 %v4891, %v5264
  %v5325 = vmul.f32 %v4896, %v5264
  %v5326 = vmul.f32 %v4901, %v5264
  %v5327 = vmul.f32 %v4906, %v5264
  %v5328 = vmul.f32 %v4911, %v5264
  %v5329 = vmul.f32 %v4916, %v5264
  %v5331 = vlaneseq
  %v5332 = vshrl.u32 %v5331, 7
  %v5333 = vsub.s32 0, %v5332
  %v5334 = vrot.slane %v5259, %v5333
  %v5336 = vadd.f32 %v5266, %v5334
  %v5337 = vadd.f32 %v5267, %v5334
  %v5338 = vadd.f32 %v5268, %v5334
  %v5339 = vadd.f32 %v5269, %v5334
  %v5340 = vadd.f32 %v5270, %v5334
  %v5341 = vadd.f32 %v5271, %v5334
  %v5342 = vadd.f32 %v5272, %v5334
  %v5343 = vadd.f32 %v5273, %v5334
  %v5344 = vadd.f32 %v5274, %v5334
  %v5345 = vadd.f32 %v5275, %v5334
  %v5346 = vadd.f32 %v5276, %v5334
  %v5347 = vadd.f32 %v5277, %v5334
  %v5348 = vadd.f32 %v5278, %v5334
  %v5349 = vadd.f32 %v5279, %v5334
  %v5350 = vadd.f32 %v5280, %v5334
  %v5351 = vadd.f32 %v5281, %v5334
  %v5352 = vadd.f32 %v5282, %v5334
  %v5353 = vadd.f32 %v5283, %v5334
  %v5354 = vadd.f32 %v5284, %v5334
  %v5355 = vadd.f32 %v5285, %v5334
  %v5356 = vadd.f32 %v5286, %v5334
  %v5357 = vadd.f32 %v5287, %v5334
  %v5358 = vadd.f32 %v5288, %v5334
  %v5359 = vadd.f32 %v5289, %v5334
  %v5360 = vadd.f32 %v5290, %v5334
  %v5361 = vadd.f32 %v5291, %v5334
  %v5362 = vadd.f32 %v5292, %v5334
  %v5363 = vadd.f32 %v5293, %v5334
  %v5364 = vadd.f32 %v5294, %v5334
  %v5365 = vadd.f32 %v5295, %v5334
  %v5366 = vadd.f32 %v5296, %v5334
  %v5367 = vadd.f32 %v5297, %v5334
  %v5368 = vadd.f32 %v5298, %v5334
  %v5369 = vadd.f32 %v5299, %v5334
  %v5370 = vadd.f32 %v5300, %v5334
  %v5371 = vadd.f32 %v5301, %v5334
  %v5372 = vadd.f32 %v5302, %v5334
  %v5373 = vadd.f32 %v5303, %v5334
  %v5374 = vadd.f32 %v5304, %v5334
  %v5375 = vadd.f32 %v5305, %v5334
  %v5376 = vadd.f32 %v5306, %v5334
  %v5377 = vadd.f32 %v5307, %v5334
  %v5378 = vadd.f32 %v5308, %v5334
  %v5379 = vadd.f32 %v5309, %v5334
  %v5380 = vadd.f32 %v5310, %v5334
  %v5381 = vadd.f32 %v5311, %v5334
  %v5382 = vadd.f32 %v5312, %v5334
  %v5383 = vadd.f32 %v5313, %v5334
  %v5384 = vadd.f32 %v5314, %v5334
  %v5385 = vadd.f32 %v5315, %v5334
  %v5386 = vadd.f32 %v5316, %v5334
  %v5387 = vadd.f32 %v5317, %v5334
  %v5388 = vadd.f32 %v5318, %v5334
  %v5389 = vadd.f32 %v5319, %v5334
  %v5390 = vadd.f32 %v5320, %v5334
  %v5391 = vadd.f32 %v5321, %v5334
  %v5392 = vadd.f32 %v5322, %v5334
  %v5393 = vadd.f32 %v5323, %v5334
  %v5394 = vadd.f32 %v5324, %v5334
  %v5395 = vadd.f32 %v5325, %v5334
  %v5396 = vadd.f32 %v5326, %v5334
  %v5397 = vadd.f32 %v5327, %v5334
  %v5398 = vadd.f32 %v5328, %v5334
  %v5399 = vadd.f32 %v5329, %v5334
  %v5400 = vmax.f32 %v5336, 0.0
  %v5401 = vmax.f32 %v5337, 0.0
  %v5402 = vmax.f32 %v5338, 0.0
  %v5403 = vmax.f32 %v5339, 0.0
  %v5404 = vmax.f32 %v5340, 0.0
  %v5405 = vmax.f32 %v5341, 0.0
  %v5406 = vmax.f32 %v5342, 0.0
  %v5407 = vmax.f32 %v5343, 0.0
  %v5408 = vmax.f32 %v5344, 0.0
  %v5409 = vmax.f32 %v5345, 0.0
  %v5410 = vmax.f32 %v5346, 0.0
  %v5411 = vmax.f32 %v5347, 0.0
  %v5412 = vmax.f32 %v5348, 0.0
  %v5413 = vmax.f32 %v5349, 0.0
  %v5414 = vmax.f32 %v5350, 0.0
  %v5415 = vmax.f32 %v5351, 0.0
  %v5416 = vmax.f32 %v5352, 0.0
  %v5417 = vmax.f32 %v5353, 0.0
  %v5418 = vmax.f32 %v5354, 0.0
  %v5419 = vmax.f32 %v5355, 0.0
  %v5420 = vmax.f32 %v5356, 0.0
  %v5421 = vmax.f32 %v5357, 0.0
  %v5422 = vmax.f32 %v5358, 0.0
  %v5423 = vmax.f32 %v5359, 0.0
  %v5424 = vmax.f32 %v5360, 0.0
  %v5425 = vmax.f32 %v5361, 0.0
  %v5426 = vmax.f32 %v5362, 0.0
  %v5427 = vmax.f32 %v5363, 0.0
  %v5428 = vmax.f32 %v5364, 0.0
  %v5429 = vmax.f32 %v5365, 0.0
  %v5430 = vmax.f32 %v5366, 0.0
  %v5431 = vmax.f32 %v5367, 0.0
  %v5432 = vmax.f32 %v5368, 0.0
  %v5433 = vmax.f32 %v5369, 0.0
  %v5434 = vmax.f32 %v5370, 0.0
  %v5435 = vmax.f32 %v5371, 0.0
  %v5436 = vmax.f32 %v5372, 0.0
  %v5437 = vmax.f32 %v5373, 0.0
  %v5438 = vmax.f32 %v5374, 0.0
  %v5439 = vmax.f32 %v5375, 0.0
  %v5440 = vmax.f32 %v5376, 0.0
  %v5441 = vmax.f32 %v5377, 0.0
  %v5442 = vmax.f32 %v5378, 0.0
  %v5443 = vmax.f32 %v5379, 0.0
  %v5444 = vmax.f32 %v5380, 0.0
  %v5445 = vmax.f32 %v5381, 0.0
  %v5446 = vmax.f32 %v5382, 0.0
  %v5447 = vmax.f32 %v5383, 0.0
  %v5448 = vmax.f32 %v5384, 0.0
  %v5449 = vmax.f32 %v5385, 0.0
  %v5450 = vmax.f32 %v5386, 0.0
  %v5451 = vmax.f32 %v5387, 0.0
  %v5452 = vmax.f32 %v5388, 0.0
  %v5453 = vmax.f32 %v5389, 0.0
  %v5454 = vmax.f32 %v5390, 0.0
  %v5455 = vmax.f32 %v5391, 0.0
  %v5456 = vmax.f32 %v5392, 0.0
  %v5457 = vmax.f32 %v5393, 0.0
  %v5458 = vmax.f32 %v5394, 0.0
  %v5459 = vmax.f32 %v5395, 0.0
  %v5460 = vmax.f32 %v5396, 0.0
  %v5461 = vmax.f32 %v5397, 0.0
  %v5462 = vmax.f32 %v5398, 0.0
  %v5463 = vmax.f32 %v5399, 0.0
  %5464 = vst.msk [vmem:[%s1350 + $0x1] sm:$0xff] %vm62, %v5400
  %5465 = vst.msk [vmem:[%s1350 + $0x9] sm:$0xff] %vm62, %v5401
  %5466 = vst.msk [vmem:[%s1350 + $0x19] sm:$0xff] %vm62, %v5402
  %5467 = vst.msk [vmem:[%s1350 + $0x21] sm:$0xff] %vm62, %v5403
  %5468 = vst.msk [vmem:[%s1350 + $0x31] sm:$0xff] %vm62, %v5404
  %5469 = vst.msk [vmem:[%s1350 + $0x39] sm:$0xff] %vm62, %v5405
  %5470 = vst.msk [vmem:[%s1350 + $0x49] sm:$0xff] %vm62, %v5406
  %5471 = vst.msk [vmem:[%s1350 + $0x51] sm:$0xff] %vm62, %v5407
  %5472 = vst.msk [vmem:[%s1350 + $0x61] sm:$0xff] %vm62, %v5408
  %5473 = vst.msk [vmem:[%s1350 + $0x69] sm:$0xff] %vm62, %v5409
  %5474 = vst.msk [vmem:[%s1350 + $0x79] sm:$0xff] %vm62, %v5410
  %5475 = vst.msk [vmem:[%s1350 + $0x81] sm:$0xff] %vm62, %v5411
  %5476 = vst.msk [vmem:[%s1350 + $0x91] sm:$0xff] %vm62, %v5412
  %5477 = vst.msk [vmem:[%s1350 + $0x99] sm:$0xff] %vm62, %v5413
  %5478 = vst.msk [vmem:[%s1350 + $0xa9] sm:$0xff] %vm62, %v5414
  %5479 = vst.msk [vmem:[%s1350 + $0xb1] sm:$0xff] %vm62, %v5415
  %5480 = vst.msk [vmem:[%s1350 + $0xc1] sm:$0xff] %vm62, %v5416
  %5481 = vst.msk [vmem:[%s1350 + $0xc9] sm:$0xff] %vm62, %v5417
  %5482 = vst.msk [vmem:[%s1350 + $0xd9] sm:$0xff] %vm62, %v5418
  %5483 = vst.msk [vmem:[%s1350 + $0xe1] sm:$0xff] %vm62, %v5419
  %5484 = vst.msk [vmem:[%s1350 + $0xf1] sm:$0xff] %vm62, %v5420
  %5485 = vst.msk [vmem:[%s1350 + $0xf9] sm:$0xff] %vm62, %v5421
  %5486 = vst.msk [vmem:[%s1350 + $0x109] sm:$0xff] %vm62, %v5422
  %5487 = vst.msk [vmem:[%s1350 + $0x111] sm:$0xff] %vm62, %v5423
  %5488 = vst.msk [vmem:[%s1350 + $0x121] sm:$0xff] %vm62, %v5424
  %5489 = vst.msk [vmem:[%s1350 + $0x129] sm:$0xff] %vm62, %v5425
  %5490 = vst.msk [vmem:[%s1350 + $0x139] sm:$0xff] %vm62, %v5426
  %5491 = vst.msk [vmem:[%s1350 + $0x141] sm:$0xff] %vm62, %v5427
  %5492 = vst.msk [vmem:[%s1350 + $0x151] sm:$0xff] %vm62, %v5428
  %5493 = vst.msk [vmem:[%s1350 + $0x159] sm:$0xff] %vm62, %v5429
  %5494 = vst.msk [vmem:[%s1350 + $0x169] sm:$0xff] %vm62, %v5430
  %5495 = vst.msk [vmem:[%s1350 + $0x171] sm:$0xff] %vm62, %v5431
  %5496 = vst.msk [vmem:[%s1350 + $0x1b1] sm:$0xff] %vm62, %v5432
  %5497 = vst.msk [vmem:[%s1350 + $0x1b9] sm:$0xff] %vm62, %v5433
  %5498 = vst.msk [vmem:[%s1350 + $0x1c9] sm:$0xff] %vm62, %v5434
  %5499 = vst.msk [vmem:[%s1350 + $0x1d1] sm:$0xff] %vm62, %v5435
  %5500 = vst.msk [vmem:[%s1350 + $0x1e1] sm:$0xff] %vm62, %v5436
  %5501 = vst.msk [vmem:[%s1350 + $0x1e9] sm:$0xff] %vm62, %v5437
  %5502 = vst.msk [vmem:[%s1350 + $0x1f9] sm:$0xff] %vm62, %v5438
  %5503 = vst.msk [vmem:[%s1350 + $0x201] sm:$0xff] %vm62, %v5439
  %5504 = vst.msk [vmem:[%s1350 + $0x211] sm:$0xff] %vm62, %v5440
  %5505 = vst.msk [vmem:[%s1350 + $0x219] sm:$0xff] %vm62, %v5441
  %5506 = vst.msk [vmem:[%s1350 + $0x229] sm:$0xff] %vm62, %v5442
  %5507 = vst.msk [vmem:[%s1350 + $0x231] sm:$0xff] %vm62, %v5443
  %5508 = vst.msk [vmem:[%s1350 + $0x241] sm:$0xff] %vm62, %v5444
  %5509 = vst.msk [vmem:[%s1350 + $0x249] sm:$0xff] %vm62, %v5445
  %5510 = vst.msk [vmem:[%s1350 + $0x259] sm:$0xff] %vm62, %v5446
  %5511 = vst.msk [vmem:[%s1350 + $0x261] sm:$0xff] %vm62, %v5447
  %5512 = vst.msk [vmem:[%s1350 + $0x271] sm:$0xff] %vm62, %v5448
  %5513 = vst.msk [vmem:[%s1350 + $0x279] sm:$0xff] %vm62, %v5449
  %5514 = vst.msk [vmem:[%s1350 + $0x289] sm:$0xff] %vm62, %v5450
  %5515 = vst.msk [vmem:[%s1350 + $0x291] sm:$0xff] %vm62, %v5451
  %5516 = vst.msk [vmem:[%s1350 + $0x2a1] sm:$0xff] %vm62, %v5452
  %5517 = vst.msk [vmem:[%s1350 + $0x2a9] sm:$0xff] %vm62, %v5453
  %5518 = vst.msk [vmem:[%s1350 + $0x2b9] sm:$0xff] %vm62, %v5454
  %5519 = vst.msk [vmem:[%s1350 + $0x2c1] sm:$0xff] %vm62, %v5455
  %5520 = vst.msk [vmem:[%s1350 + $0x2d1] sm:$0xff] %vm62, %v5456
  %5521 = vst.msk [vmem:[%s1350 + $0x2d9] sm:$0xff] %vm62, %v5457
  %5522 = vst.msk [vmem:[%s1350 + $0x2e9] sm:$0xff] %vm62, %v5458
  %5523 = vst.msk [vmem:[%s1350 + $0x2f1] sm:$0xff] %vm62, %v5459
  %5524 = vst.msk [vmem:[%s1350 + $0x301] sm:$0xff] %vm62, %v5460
  %5525 = vst.msk [vmem:[%s1350 + $0x309] sm:$0xff] %vm62, %v5461
  %5526 = vst.msk [vmem:[%s1350 + $0x319] sm:$0xff] %vm62, %v5462
  %5527 = vst.msk [vmem:[%s1350 + $0x321] sm:$0xff] %vm62, %v5463
  %v5528 = vld [vmem:[#allocation2] sm:$0xff]
  %v5529 = vld [vmem:[#allocation2 + $0x8] sm:$0xff]
  %v5530 = vld [vmem:[#allocation2 + $0x18] sm:$0xff]
  %v5531 = vld [vmem:[#allocation2 + $0x20] sm:$0xff]
  %v5532 = vld [vmem:[#allocation2 + $0x30] sm:$0xff]
  %v5533 = vld [vmem:[#allocation2 + $0x38] sm:$0xff]
  %v5534 = vld [vmem:[#allocation2 + $0x48] sm:$0xff]
  %v5535 = vld [vmem:[#allocation2 + $0x50] sm:$0xff]
  %v5536 = vld [vmem:[#allocation2 + $0x60] sm:$0xff]
  %v5537 = vld [vmem:[#allocation2 + $0x68] sm:$0xff]
  %v5538 = vld [vmem:[#allocation2 + $0x78] sm:$0xff]
  %v5539 = vld [vmem:[#allocation2 + $0x80] sm:$0xff]
  %v5540 = vld [vmem:[#allocation2 + $0x90] sm:$0xff]
  %v5541 = vld [vmem:[#allocation2 + $0x98] sm:$0xff]
  %v5542 = vld [vmem:[#allocation2 + $0xa8] sm:$0xff]
  %v5543 = vld [vmem:[#allocation2 + $0xb0] sm:$0xff]
  %v5544 = vld [vmem:[#allocation2 + $0xc0] sm:$0xff]
  %v5545 = vld [vmem:[#allocation2 + $0xc8] sm:$0xff]
  %v5546 = vld [vmem:[#allocation2 + $0xd8] sm:$0xff]
  %v5547 = vld [vmem:[#allocation2 + $0xe0] sm:$0xff]
  %v5548 = vld [vmem:[#allocation2 + $0xf0] sm:$0xff]
  %v5549 = vld [vmem:[#allocation2 + $0xf8] sm:$0xff]
  %v5550 = vld [vmem:[#allocation2 + $0x108] sm:$0xff]
  %v5551 = vld [vmem:[#allocation2 + $0x110] sm:$0xff]
  %v5552 = vld [vmem:[#allocation2 + $0x120] sm:$0xff]
  %v5553 = vld [vmem:[#allocation2 + $0x128] sm:$0xff]
  %v5554 = vld [vmem:[#allocation2 + $0x138] sm:$0xff]
  %v5555 = vld [vmem:[#allocation2 + $0x140] sm:$0xff]
  %v5556 = vld [vmem:[#allocation2 + $0x150] sm:$0xff]
  %v5557 = vld [vmem:[#allocation2 + $0x158] sm:$0xff]
  %v5558 = vld [vmem:[#allocation2 + $0x168] sm:$0xff]
  %v5559 = vld [vmem:[#allocation2 + $0x170] sm:$0xff]
  %v5560 = vld [vmem:[#allocation2 + $0x1b0] sm:$0xff]
  %v5561 = vld [vmem:[#allocation2 + $0x1b8] sm:$0xff]
  %v5562 = vld [vmem:[#allocation2 + $0x1c8] sm:$0xff]
  %v5563 = vld [vmem:[#allocation2 + $0x1d0] sm:$0xff]
  %v5564 = vld [vmem:[#allocation2 + $0x1e0] sm:$0xff]
  %v5565 = vld [vmem:[#allocation2 + $0x1e8] sm:$0xff]
  %v5566 = vld [vmem:[#allocation2 + $0x1f8] sm:$0xff]
  %v5567 = vld [vmem:[#allocation2 + $0x200] sm:$0xff]
  %v5568 = vld [vmem:[#allocation2 + $0x210] sm:$0xff]
  %v5569 = vld [vmem:[#allocation2 + $0x218] sm:$0xff]
  %v5570 = vld [vmem:[#allocation2 + $0x228] sm:$0xff]
  %v5571 = vld [vmem:[#allocation2 + $0x230] sm:$0xff]
  %v5572 = vld [vmem:[#allocation2 + $0x240] sm:$0xff]
  %v5573 = vld [vmem:[#allocation2 + $0x248] sm:$0xff]
  %v5574 = vld [vmem:[#allocation2 + $0x258] sm:$0xff]
  %v5575 = vld [vmem:[#allocation2 + $0x260] sm:$0xff]
  %v5576 = vld [vmem:[#allocation2 + $0x270] sm:$0xff]
  %v5577 = vld [vmem:[#allocation2 + $0x278] sm:$0xff]
  %v5578 = vld [vmem:[#allocation2 + $0x288] sm:$0xff]
  %v5579 = vld [vmem:[#allocation2 + $0x290] sm:$0xff]
  %v5580 = vld [vmem:[#allocation2 + $0x2a0] sm:$0xff]
  %v5581 = vld [vmem:[#allocation2 + $0x2a8] sm:$0xff]
  %v5582 = vld [vmem:[#allocation2 + $0x2b8] sm:$0xff]
  %v5583 = vld [vmem:[#allocation2 + $0x2c0] sm:$0xff]
  %v5584 = vld [vmem:[#allocation2 + $0x2d0] sm:$0xff]
  %v5585 = vld [vmem:[#allocation2 + $0x2d8] sm:$0xff]
  %v5586 = vld [vmem:[#allocation2 + $0x2e8] sm:$0xff]
  %v5587 = vld [vmem:[#allocation2 + $0x2f0] sm:$0xff]
  %v5588 = vld [vmem:[#allocation2 + $0x300] sm:$0xff]
  %v5589 = vld [vmem:[#allocation2 + $0x308] sm:$0xff]
  %v5590 = vld [vmem:[#allocation2 + $0x318] sm:$0xff]
  %v5591 = vld [vmem:[#allocation2 + $0x320] sm:$0xff]
  %v5592 = vld [vmem:[#allocation2 + $0x1] sm:$0xff]
  %v5593 = vld [vmem:[#allocation2 + $0x9] sm:$0xff]
  %v5594 = vld [vmem:[#allocation2 + $0x19] sm:$0xff]
  %v5595 = vld [vmem:[#allocation2 + $0x21] sm:$0xff]
  %v5596 = vld [vmem:[#allocation2 + $0x31] sm:$0xff]
  %v5597 = vld [vmem:[#allocation2 + $0x39] sm:$0xff]
  %v5598 = vld [vmem:[#allocation2 + $0x49] sm:$0xff]
  %v5599 = vld [vmem:[#allocation2 + $0x51] sm:$0xff]
  %v5600 = vld [vmem:[#allocation2 + $0x61] sm:$0xff]
  %v5601 = vld [vmem:[#allocation2 + $0x69] sm:$0xff]
  %v5602 = vld [vmem:[#allocation2 + $0x79] sm:$0xff]
  %v5603 = vld [vmem:[#allocation2 + $0x81] sm:$0xff]
  %v5604 = vld [vmem:[#allocation2 + $0x91] sm:$0xff]
  %v5605 = vld [vmem:[#allocation2 + $0x99] sm:$0xff]
  %v5606 = vld [vmem:[#allocation2 + $0xa9] sm:$0xff]
  %v5607 = vld [vmem:[#allocation2 + $0xb1] sm:$0xff]
  %v5608 = vld [vmem:[#allocation2 + $0xc1] sm:$0xff]
  %v5609 = vld [vmem:[#allocation2 + $0xc9] sm:$0xff]
  %v5610 = vld [vmem:[#allocation2 + $0xd9] sm:$0xff]
  %v5611 = vld [vmem:[#allocation2 + $0xe1] sm:$0xff]
  %v5612 = vld [vmem:[#allocation2 + $0xf1] sm:$0xff]
  %v5613 = vld [vmem:[#allocation2 + $0xf9] sm:$0xff]
  %v5614 = vld [vmem:[#allocation2 + $0x109] sm:$0xff]
  %v5615 = vld [vmem:[#allocation2 + $0x111] sm:$0xff]
  %v5616 = vld [vmem:[#allocation2 + $0x121] sm:$0xff]
  %v5617 = vld [vmem:[#allocation2 + $0x129] sm:$0xff]
  %v5618 = vld [vmem:[#allocation2 + $0x139] sm:$0xff]
  %v5619 = vld [vmem:[#allocation2 + $0x141] sm:$0xff]
  %v5620 = vld [vmem:[#allocation2 + $0x151] sm:$0xff]
  %v5621 = vld [vmem:[#allocation2 + $0x159] sm:$0xff]
  %v5622 = vld [vmem:[#allocation2 + $0x169] sm:$0xff]
  %v5623 = vld [vmem:[#allocation2 + $0x171] sm:$0xff]
  %v5624 = vld [vmem:[#allocation2 + $0x1b1] sm:$0xff]
  %v5625 = vld [vmem:[#allocation2 + $0x1b9] sm:$0xff]
  %v5626 = vld [vmem:[#allocation2 + $0x1c9] sm:$0xff]
  %v5627 = vld [vmem:[#allocation2 + $0x1d1] sm:$0xff]
  %v5628 = vld [vmem:[#allocation2 + $0x1e1] sm:$0xff]
  %v5629 = vld [vmem:[#allocation2 + $0x1e9] sm:$0xff]
  %v5630 = vld [vmem:[#allocation2 + $0x1f9] sm:$0xff]
  %v5631 = vld [vmem:[#allocation2 + $0x201] sm:$0xff]
  %v5632 = vld [vmem:[#allocation2 + $0x211] sm:$0xff]
  %v5633 = vld [vmem:[#allocation2 + $0x219] sm:$0xff]
  %v5634 = vld [vmem:[#allocation2 + $0x229] sm:$0xff]
  %v5635 = vld [vmem:[#allocation2 + $0x231] sm:$0xff]
  %v5636 = vld [vmem:[#allocation2 + $0x241] sm:$0xff]
  %v5637 = vld [vmem:[#allocation2 + $0x249] sm:$0xff]
  %v5638 = vld [vmem:[#allocation2 + $0x259] sm:$0xff]
  %v5639 = vld [vmem:[#allocation2 + $0x261] sm:$0xff]
  %v5640 = vld [vmem:[#allocation2 + $0x271] sm:$0xff]
  %v5641 = vld [vmem:[#allocation2 + $0x279] sm:$0xff]
  %v5642 = vld [vmem:[#allocation2 + $0x289] sm:$0xff]
  %v5643 = vld [vmem:[#allocation2 + $0x291] sm:$0xff]
  %v5644 = vld [vmem:[#allocation2 + $0x2a1] sm:$0xff]
  %v5645 = vld [vmem:[#allocation2 + $0x2a9] sm:$0xff]
  %v5646 = vld [vmem:[#allocation2 + $0x2b9] sm:$0xff]
  %v5647 = vld [vmem:[#allocation2 + $0x2c1] sm:$0xff]
  %v5648 = vld [vmem:[#allocation2 + $0x2d1] sm:$0xff]
  %v5649 = vld [vmem:[#allocation2 + $0x2d9] sm:$0xff]
  %v5650 = vld [vmem:[#allocation2 + $0x2e9] sm:$0xff]
  %v5651 = vld [vmem:[#allocation2 + $0x2f1] sm:$0xff]
  %v5652 = vld [vmem:[#allocation2 + $0x301] sm:$0xff]
  %v5653 = vld [vmem:[#allocation2 + $0x309] sm:$0xff]
  %v5654 = vld [vmem:[#allocation2 + $0x319] sm:$0xff]
  %v5655 = vld [vmem:[#allocation2 + $0x321] sm:$0xff]
  %v5656 = vld [vmem:[#allocation2 + $0x2] sm:$0xff]
  %v5657 = vld [vmem:[#allocation2 + $0xa] sm:$0xff]
  %v5658 = vld [vmem:[#allocation2 + $0x1a] sm:$0xff]
  %v5659 = vld [vmem:[#allocation2 + $0x22] sm:$0xff]
  %v5660 = vld [vmem:[#allocation2 + $0x32] sm:$0xff]
  %v5661 = vld [vmem:[#allocation2 + $0x3a] sm:$0xff]
  %v5662 = vld [vmem:[#allocation2 + $0x4a] sm:$0xff]
  %v5663 = vld [vmem:[#allocation2 + $0x52] sm:$0xff]
  %v5664 = vld [vmem:[#allocation2 + $0x62] sm:$0xff]
  %v5665 = vld [vmem:[#allocation2 + $0x6a] sm:$0xff]
  %v5666 = vld [vmem:[#allocation2 + $0x7a] sm:$0xff]
  %v5667 = vld [vmem:[#allocation2 + $0x82] sm:$0xff]
  %v5668 = vld [vmem:[#allocation2 + $0x92] sm:$0xff]
  %v5669 = vld [vmem:[#allocation2 + $0x9a] sm:$0xff]
  %v5670 = vld [vmem:[#allocation2 + $0xaa] sm:$0xff]
  %v5671 = vld [vmem:[#allocation2 + $0xb2] sm:$0xff]
  %v5672 = vld [vmem:[#allocation2 + $0xc2] sm:$0xff]
  %v5673 = vld [vmem:[#allocation2 + $0xca] sm:$0xff]
  %v5674 = vld [vmem:[#allocation2 + $0xda] sm:$0xff]
  %v5675 = vld [vmem:[#allocation2 + $0xe2] sm:$0xff]
  %v5676 = vld [vmem:[#allocation2 + $0xf2] sm:$0xff]
  %v5677 = vld [vmem:[#allocation2 + $0xfa] sm:$0xff]
  %v5678 = vld [vmem:[#allocation2 + $0x10a] sm:$0xff]
  %v5679 = vld [vmem:[#allocation2 + $0x112] sm:$0xff]
  %v5680 = vld [vmem:[#allocation2 + $0x122] sm:$0xff]
  %v5681 = vld [vmem:[#allocation2 + $0x12a] sm:$0xff]
  %v5682 = vld [vmem:[#allocation2 + $0x13a] sm:$0xff]
  %v5683 = vld [vmem:[#allocation2 + $0x142] sm:$0xff]
  %v5684 = vld [vmem:[#allocation2 + $0x152] sm:$0xff]
  %v5685 = vld [vmem:[#allocation2 + $0x15a] sm:$0xff]
  %v5686 = vld [vmem:[#allocation2 + $0x16a] sm:$0xff]
  %v5687 = vld [vmem:[#allocation2 + $0x172] sm:$0xff]
  %v5688 = vld [vmem:[#allocation2 + $0x1b2] sm:$0xff]
  %v5689 = vld [vmem:[#allocation2 + $0x1ba] sm:$0xff]
  %v5690 = vld [vmem:[#allocation2 + $0x1ca] sm:$0xff]
  %v5691 = vld [vmem:[#allocation2 + $0x1d2] sm:$0xff]
  %v5692 = vld [vmem:[#allocation2 + $0x1e2] sm:$0xff]
  %v5693 = vld [vmem:[#allocation2 + $0x1ea] sm:$0xff]
  %v5694 = vld [vmem:[#allocation2 + $0x1fa] sm:$0xff]
  %v5695 = vld [vmem:[#allocation2 + $0x202] sm:$0xff]
  %v5696 = vld [vmem:[#allocation2 + $0x212] sm:$0xff]
  %v5697 = vld [vmem:[#allocation2 + $0x21a] sm:$0xff]
  %v5698 = vld [vmem:[#allocation2 + $0x22a] sm:$0xff]
  %v5699 = vld [vmem:[#allocation2 + $0x232] sm:$0xff]
  %v5700 = vld [vmem:[#allocation2 + $0x242] sm:$0xff]
  %v5701 = vld [vmem:[#allocation2 + $0x24a] sm:$0xff]
  %v5702 = vld [vmem:[#allocation2 + $0x25a] sm:$0xff]
  %v5703 = vld [vmem:[#allocation2 + $0x262] sm:$0xff]
  %v5704 = vld [vmem:[#allocation2 + $0x272] sm:$0xff]
  %v5705 = vld [vmem:[#allocation2 + $0x27a] sm:$0xff]
  %v5706 = vld [vmem:[#allocation2 + $0x28a] sm:$0xff]
  %v5707 = vld [vmem:[#allocation2 + $0x292] sm:$0xff]
  %v5708 = vld [vmem:[#allocation2 + $0x2a2] sm:$0xff]
  %v5709 = vld [vmem:[#allocation2 + $0x2aa] sm:$0xff]
  %v5710 = vld [vmem:[#allocation2 + $0x2ba] sm:$0xff]
  %v5711 = vld [vmem:[#allocation2 + $0x2c2] sm:$0xff]
  %v5712 = vld [vmem:[#allocation2 + $0x2d2] sm:$0xff]
  %v5713 = vld [vmem:[#allocation2 + $0x2da] sm:$0xff]
  %v5714 = vld [vmem:[#allocation2 + $0x2ea] sm:$0xff]
  %v5715 = vld [vmem:[#allocation2 + $0x2f2] sm:$0xff]
  %v5716 = vld [vmem:[#allocation2 + $0x302] sm:$0xff]
  %v5717 = vld [vmem:[#allocation2 + $0x30a] sm:$0xff]
  %v5718 = vld [vmem:[#allocation2 + $0x31a] sm:$0xff]
  %v5719 = vld [vmem:[#allocation2 + $0x322] sm:$0xff]
  %v5720 = vld [vmem:[%s1350] sm:$0xff]
  %v5721 = vld [vmem:[%s1350 + $0x8] sm:$0xff]
  %v5722 = vld [vmem:[%s1350 + $0x18] sm:$0xff]
  %v5723 = vld [vmem:[%s1350 + $0x20] sm:$0xff]
  %v5724 = vld [vmem:[%s1350 + $0x30] sm:$0xff]
  %v5725 = vld [vmem:[%s1350 + $0x38] sm:$0xff]
  %v5726 = vld [vmem:[%s1350 + $0x48] sm:$0xff]
  %v5727 = vld [vmem:[%s1350 + $0x50] sm:$0xff]
  %v5728 = vld [vmem:[%s1350 + $0x60] sm:$0xff]
  %v5729 = vld [vmem:[%s1350 + $0x68] sm:$0xff]
  %v5730 = vld [vmem:[%s1350 + $0x78] sm:$0xff]
  %v5731 = vld [vmem:[%s1350 + $0x80] sm:$0xff]
  %v5732 = vld [vmem:[%s1350 + $0x90] sm:$0xff]
  %v5733 = vld [vmem:[%s1350 + $0x98] sm:$0xff]
  %v5734 = vld [vmem:[%s1350 + $0xa8] sm:$0xff]
  %v5735 = vld [vmem:[%s1350 + $0xb0] sm:$0xff]
  %v5736 = vld [vmem:[%s1350 + $0xc0] sm:$0xff]
  %v5737 = vld [vmem:[%s1350 + $0xc8] sm:$0xff]
  %v5738 = vld [vmem:[%s1350 + $0xd8] sm:$0xff]
  %v5739 = vld [vmem:[%s1350 + $0xe0] sm:$0xff]
  %v5740 = vld [vmem:[%s1350 + $0xf0] sm:$0xff]
  %v5741 = vld [vmem:[%s1350 + $0xf8] sm:$0xff]
  %v5742 = vld [vmem:[%s1350 + $0x108] sm:$0xff]
  %v5743 = vld [vmem:[%s1350 + $0x110] sm:$0xff]
  %v5744 = vld [vmem:[%s1350 + $0x120] sm:$0xff]
  %v5745 = vld [vmem:[%s1350 + $0x128] sm:$0xff]
  %v5746 = vld [vmem:[%s1350 + $0x138] sm:$0xff]
  %v5747 = vld [vmem:[%s1350 + $0x140] sm:$0xff]
  %v5748 = vld [vmem:[%s1350 + $0x150] sm:$0xff]
  %v5749 = vld [vmem:[%s1350 + $0x158] sm:$0xff]
  %v5750 = vld [vmem:[%s1350 + $0x168] sm:$0xff]
  %v5751 = vld [vmem:[%s1350 + $0x170] sm:$0xff]
  %v5752 = vld [vmem:[%s1350 + $0x1b0] sm:$0xff]
  %v5753 = vld [vmem:[%s1350 + $0x1b8] sm:$0xff]
  %v5754 = vld [vmem:[%s1350 + $0x1c8] sm:$0xff]
  %v5755 = vld [vmem:[%s1350 + $0x1d0] sm:$0xff]
  %v5756 = vld [vmem:[%s1350 + $0x1e0] sm:$0xff]
  %v5757 = vld [vmem:[%s1350 + $0x1e8] sm:$0xff]
  %v5758 = vld [vmem:[%s1350 + $0x1f8] sm:$0xff]
  %v5759 = vld [vmem:[%s1350 + $0x200] sm:$0xff]
  %v5760 = vld [vmem:[%s1350 + $0x210] sm:$0xff]
  %v5761 = vld [vmem:[%s1350 + $0x218] sm:$0xff]
  %v5762 = vld [vmem:[%s1350 + $0x228] sm:$0xff]
  %v5763 = vld [vmem:[%s1350 + $0x230] sm:$0xff]
  %v5764 = vld [vmem:[%s1350 + $0x240] sm:$0xff]
  %v5765 = vld [vmem:[%s1350 + $0x248] sm:$0xff]
  %v5766 = vld [vmem:[%s1350 + $0x258] sm:$0xff]
  %v5767 = vld [vmem:[%s1350 + $0x260] sm:$0xff]
  %v5768 = vld [vmem:[%s1350 + $0x270] sm:$0xff]
  %v5769 = vld [vmem:[%s1350 + $0x278] sm:$0xff]
  %v5770 = vld [vmem:[%s1350 + $0x288] sm:$0xff]
  %v5771 = vld [vmem:[%s1350 + $0x290] sm:$0xff]
  %v5772 = vld [vmem:[%s1350 + $0x2a0] sm:$0xff]
  %v5773 = vld [vmem:[%s1350 + $0x2a8] sm:$0xff]
  %v5774 = vld [vmem:[%s1350 + $0x2b8] sm:$0xff]
  %v5775 = vld [vmem:[%s1350 + $0x2c0] sm:$0xff]
  %v5776 = vld [vmem:[%s1350 + $0x2d0] sm:$0xff]
  %v5777 = vld [vmem:[%s1350 + $0x2d8] sm:$0xff]
  %v5778 = vld [vmem:[%s1350 + $0x2e8] sm:$0xff]
  %v5779 = vld [vmem:[%s1350 + $0x2f0] sm:$0xff]
  %v5780 = vld [vmem:[%s1350 + $0x300] sm:$0xff]
  %v5781 = vld [vmem:[%s1350 + $0x308] sm:$0xff]
  %v5782 = vld [vmem:[%s1350 + $0x318] sm:$0xff]
  %v5783 = vld [vmem:[%s1350 + $0x320] sm:$0xff]
  %v5784 = vld [vmem:[%s1350 + $0x1] sm:$0xff]
  %v5785 = vld [vmem:[%s1350 + $0x9] sm:$0xff]
  %v5786 = vld [vmem:[%s1350 + $0x19] sm:$0xff]
  %v5787 = vld [vmem:[%s1350 + $0x21] sm:$0xff]
  %v5788 = vld [vmem:[%s1350 + $0x31] sm:$0xff]
  %v5789 = vld [vmem:[%s1350 + $0x39] sm:$0xff]
  %v5790 = vld [vmem:[%s1350 + $0x49] sm:$0xff]
  %v5791 = vld [vmem:[%s1350 + $0x51] sm:$0xff]
  %v5792 = vld [vmem:[%s1350 + $0x61] sm:$0xff]
  %v5793 = vld [vmem:[%s1350 + $0x69] sm:$0xff]
  %v5794 = vld [vmem:[%s1350 + $0x79] sm:$0xff]
  %v5795 = vld [vmem:[%s1350 + $0x81] sm:$0xff]
  %v5796 = vld [vmem:[%s1350 + $0x91] sm:$0xff]
  %v5797 = vld [vmem:[%s1350 + $0x99] sm:$0xff]
  %v5798 = vld [vmem:[%s1350 + $0xa9] sm:$0xff]
  %v5799 = vld [vmem:[%s1350 + $0xb1] sm:$0xff]
  %v5800 = vld [vmem:[%s1350 + $0xc1] sm:$0xff]
  %v5801 = vld [vmem:[%s1350 + $0xc9] sm:$0xff]
  %v5802 = vld [vmem:[%s1350 + $0xd9] sm:$0xff]
  %v5803 = vld [vmem:[%s1350 + $0xe1] sm:$0xff]
  %v5804 = vld [vmem:[%s1350 + $0xf1] sm:$0xff]
  %v5805 = vld [vmem:[%s1350 + $0xf9] sm:$0xff]
  %v5806 = vld [vmem:[%s1350 + $0x109] sm:$0xff]
  %v5807 = vld [vmem:[%s1350 + $0x111] sm:$0xff]
  %v5808 = vld [vmem:[%s1350 + $0x121] sm:$0xff]
  %v5809 = vld [vmem:[%s1350 + $0x129] sm:$0xff]
  %v5810 = vld [vmem:[%s1350 + $0x139] sm:$0xff]
  %v5811 = vld [vmem:[%s1350 + $0x141] sm:$0xff]
  %v5812 = vld [vmem:[%s1350 + $0x151] sm:$0xff]
  %v5813 = vld [vmem:[%s1350 + $0x159] sm:$0xff]
  %v5814 = vld [vmem:[%s1350 + $0x169] sm:$0xff]
  %v5815 = vld [vmem:[%s1350 + $0x171] sm:$0xff]
  %v5816 = vld [vmem:[%s1350 + $0x1b1] sm:$0xff]
  %v5817 = vld [vmem:[%s1350 + $0x1b9] sm:$0xff]
  %v5818 = vld [vmem:[%s1350 + $0x1c9] sm:$0xff]
  %v5819 = vld [vmem:[%s1350 + $0x1d1] sm:$0xff]
  %v5820 = vld [vmem:[%s1350 + $0x1e1] sm:$0xff]
  %v5821 = vld [vmem:[%s1350 + $0x1e9] sm:$0xff]
  %v5822 = vld [vmem:[%s1350 + $0x1f9] sm:$0xff]
  %v5823 = vld [vmem:[%s1350 + $0x201] sm:$0xff]
  %v5824 = vld [vmem:[%s1350 + $0x211] sm:$0xff]
  %v5825 = vld [vmem:[%s1350 + $0x219] sm:$0xff]
  %v5826 = vld [vmem:[%s1350 + $0x229] sm:$0xff]
  %v5827 = vld [vmem:[%s1350 + $0x231] sm:$0xff]
  %v5828 = vld [vmem:[%s1350 + $0x241] sm:$0xff]
  %v5829 = vld [vmem:[%s1350 + $0x249] sm:$0xff]
  %v5830 = vld [vmem:[%s1350 + $0x259] sm:$0xff]
  %v5831 = vld [vmem:[%s1350 + $0x261] sm:$0xff]
  %v5832 = vld [vmem:[%s1350 + $0x271] sm:$0xff]
  %v5833 = vld [vmem:[%s1350 + $0x279] sm:$0xff]
  %v5834 = vld [vmem:[%s1350 + $0x289] sm:$0xff]
  %v5835 = vld [vmem:[%s1350 + $0x291] sm:$0xff]
  %v5836 = vld [vmem:[%s1350 + $0x2a1] sm:$0xff]
  %v5837 = vld [vmem:[%s1350 + $0x2a9] sm:$0xff]
  %v5838 = vld [vmem:[%s1350 + $0x2b9] sm:$0xff]
  %v5839 = vld [vmem:[%s1350 + $0x2c1] sm:$0xff]
  %v5840 = vld [vmem:[%s1350 + $0x2d1] sm:$0xff]
  %v5841 = vld [vmem:[%s1350 + $0x2d9] sm:$0xff]
  %v5842 = vld [vmem:[%s1350 + $0x2e9] sm:$0xff]
  %v5843 = vld [vmem:[%s1350 + $0x2f1] sm:$0xff]
  %v5844 = vld [vmem:[%s1350 + $0x301] sm:$0xff]
  %v5845 = vld [vmem:[%s1350 + $0x309] sm:$0xff]
  %v5846 = vld [vmem:[%s1350 + $0x319] sm:$0xff]
  %v5847 = vld [vmem:[%s1350 + $0x321] sm:$0xff]
  %v5848 = vld [vmem:[%s1350 + $0x2] sm:$0xff]
  %v5849 = vld [vmem:[%s1350 + $0xa] sm:$0xff]
  %v5850 = vld [vmem:[%s1350 + $0x1a] sm:$0xff]
  %v5851 = vld [vmem:[%s1350 + $0x22] sm:$0xff]
  %v5852 = vld [vmem:[%s1350 + $0x32] sm:$0xff]
  %v5853 = vld [vmem:[%s1350 + $0x3a] sm:$0xff]
  %v5854 = vld [vmem:[%s1350 + $0x4a] sm:$0xff]
  %v5855 = vld [vmem:[%s1350 + $0x52] sm:$0xff]
  %v5856 = vld [vmem:[%s1350 + $0x62] sm:$0xff]
  %v5857 = vld [vmem:[%s1350 + $0x6a] sm:$0xff]
  %v5858 = vld [vmem:[%s1350 + $0x7a] sm:$0xff]
  %v5859 = vld [vmem:[%s1350 + $0x82] sm:$0xff]
  %v5860 = vld [vmem:[%s1350 + $0x92] sm:$0xff]
  %v5861 = vld [vmem:[%s1350 + $0x9a] sm:$0xff]
  %v5862 = vld [vmem:[%s1350 + $0xaa] sm:$0xff]
  %v5863 = vld [vmem:[%s1350 + $0xb2] sm:$0xff]
  %v5864 = vld [vmem:[%s1350 + $0xc2] sm:$0xff]
  %v5865 = vld [vmem:[%s1350 + $0xca] sm:$0xff]
  %v5866 = vld [vmem:[%s1350 + $0xda] sm:$0xff]
  %v5867 = vld [vmem:[%s1350 + $0xe2] sm:$0xff]
  %v5868 = vld [vmem:[%s1350 + $0xf2] sm:$0xff]
  %v5869 = vld [vmem:[%s1350 + $0xfa] sm:$0xff]
  %v5870 = vld [vmem:[%s1350 + $0x10a] sm:$0xff]
  %v5871 = vld [vmem:[%s1350 + $0x112] sm:$0xff]
  %v5872 = vld [vmem:[%s1350 + $0x122] sm:$0xff]
  %v5873 = vld [vmem:[%s1350 + $0x12a] sm:$0xff]
  %v5874 = vld [vmem:[%s1350 + $0x13a] sm:$0xff]
  %v5875 = vld [vmem:[%s1350 + $0x142] sm:$0xff]
  %v5876 = vld [vmem:[%s1350 + $0x152] sm:$0xff]
  %v5877 = vld [vmem:[%s1350 + $0x15a] sm:$0xff]
  %v5878 = vld [vmem:[%s1350 + $0x16a] sm:$0xff]
  %v5879 = vld [vmem:[%s1350 + $0x172] sm:$0xff]
  %v5880 = vld [vmem:[%s1350 + $0x1b2] sm:$0xff]
  %v5881 = vld [vmem:[%s1350 + $0x1ba] sm:$0xff]
  %v5882 = vld [vmem:[%s1350 + $0x1ca] sm:$0xff]
  %v5883 = vld [vmem:[%s1350 + $0x1d2] sm:$0xff]
  %v5884 = vld [vmem:[%s1350 + $0x1e2] sm:$0xff]
  %v5885 = vld [vmem:[%s1350 + $0x1ea] sm:$0xff]
  %v5886 = vld [vmem:[%s1350 + $0x1fa] sm:$0xff]
  %v5887 = vld [vmem:[%s1350 + $0x202] sm:$0xff]
  %v5888 = vld [vmem:[%s1350 + $0x212] sm:$0xff]
  %v5889 = vld [vmem:[%s1350 + $0x21a] sm:$0xff]
  %v5890 = vld [vmem:[%s1350 + $0x22a] sm:$0xff]
  %v5891 = vld [vmem:[%s1350 + $0x232] sm:$0xff]
  %v5892 = vld [vmem:[%s1350 + $0x242] sm:$0xff]
  %v5893 = vld [vmem:[%s1350 + $0x24a] sm:$0xff]
  %v5894 = vld [vmem:[%s1350 + $0x25a] sm:$0xff]
  %v5895 = vld [vmem:[%s1350 + $0x262] sm:$0xff]
  %v5896 = vld [vmem:[%s1350 + $0x272] sm:$0xff]
  %v5897 = vld [vmem:[%s1350 + $0x27a] sm:$0xff]
  %v5898 = vld [vmem:[%s1350 + $0x28a] sm:$0xff]
  %v5899 = vld [vmem:[%s1350 + $0x292] sm:$0xff]
  %v5900 = vld [vmem:[%s1350 + $0x2a2] sm:$0xff]
  %v5901 = vld [vmem:[%s1350 + $0x2aa] sm:$0xff]
  %v5902 = vld [vmem:[%s1350 + $0x2ba] sm:$0xff]
  %v5903 = vld [vmem:[%s1350 + $0x2c2] sm:$0xff]
  %v5904 = vld [vmem:[%s1350 + $0x2d2] sm:$0xff]
  %v5905 = vld [vmem:[%s1350 + $0x2da] sm:$0xff]
  %v5906 = vld [vmem:[%s1350 + $0x2ea] sm:$0xff]
  %v5907 = vld [vmem:[%s1350 + $0x2f2] sm:$0xff]
  %v5908 = vld [vmem:[%s1350 + $0x302] sm:$0xff]
  %v5909 = vld [vmem:[%s1350 + $0x30a] sm:$0xff]
  %v5910 = vld [vmem:[%s1350 + $0x31a] sm:$0xff]
  %v5911 = vld [vmem:[%s1350 + $0x322] sm:$0xff]
  %v5912 = vld [vmem:[%s1799] sm:$0xff]
  %v5913 = vld [vmem:[%s1799 + $0x8] sm:$0xff]
  %v5914 = vld [vmem:[%s1799 + $0x18] sm:$0xff]
  %v5915 = vld [vmem:[%s1799 + $0x20] sm:$0xff]
  %v5916 = vld [vmem:[%s1799 + $0x30] sm:$0xff]
  %v5917 = vld [vmem:[%s1799 + $0x38] sm:$0xff]
  %v5918 = vld [vmem:[%s1799 + $0x48] sm:$0xff]
  %v5919 = vld [vmem:[%s1799 + $0x50] sm:$0xff]
  %v5920 = vld [vmem:[%s1799 + $0x60] sm:$0xff]
  %v5921 = vld [vmem:[%s1799 + $0x68] sm:$0xff]
  %v5922 = vld [vmem:[%s1799 + $0x78] sm:$0xff]
  %v5923 = vld [vmem:[%s1799 + $0x80] sm:$0xff]
  %v5924 = vld [vmem:[%s1799 + $0x90] sm:$0xff]
  %v5925 = vld [vmem:[%s1799 + $0x98] sm:$0xff]
  %v5926 = vld [vmem:[%s1799 + $0xa8] sm:$0xff]
  %v5927 = vld [vmem:[%s1799 + $0xb0] sm:$0xff]
  %v5928 = vld [vmem:[%s1799 + $0xc0] sm:$0xff]
  %v5929 = vld [vmem:[%s1799 + $0xc8] sm:$0xff]
  %v5930 = vld [vmem:[%s1799 + $0xd8] sm:$0xff]
  %v5931 = vld [vmem:[%s1799 + $0xe0] sm:$0xff]
  %v5932 = vld [vmem:[%s1799 + $0xf0] sm:$0xff]
  %v5933 = vld [vmem:[%s1799 + $0xf8] sm:$0xff]
  %v5934 = vld [vmem:[%s1799 + $0x108] sm:$0xff]
  %v5935 = vld [vmem:[%s1799 + $0x110] sm:$0xff]
  %v5936 = vld [vmem:[%s1799 + $0x120] sm:$0xff]
  %v5937 = vld [vmem:[%s1799 + $0x128] sm:$0xff]
  %v5938 = vld [vmem:[%s1799 + $0x138] sm:$0xff]
  %v5939 = vld [vmem:[%s1799 + $0x140] sm:$0xff]
  %v5940 = vld [vmem:[%s1799 + $0x150] sm:$0xff]
  %v5941 = vld [vmem:[%s1799 + $0x158] sm:$0xff]
  %v5942 = vld [vmem:[%s1799 + $0x168] sm:$0xff]
  %v5943 = vld [vmem:[%s1799 + $0x170] sm:$0xff]
  %v5944 = vld [vmem:[%s1799 + $0x1b0] sm:$0xff]
  %v5945 = vld [vmem:[%s1799 + $0x1b8] sm:$0xff]
  %v5946 = vld [vmem:[%s1799 + $0x1c8] sm:$0xff]
  %v5947 = vld [vmem:[%s1799 + $0x1d0] sm:$0xff]
  %v5948 = vld [vmem:[%s1799 + $0x1e0] sm:$0xff]
  %v5949 = vld [vmem:[%s1799 + $0x1e8] sm:$0xff]
  %v5950 = vld [vmem:[%s1799 + $0x1f8] sm:$0xff]
  %v5951 = vld [vmem:[%s1799 + $0x200] sm:$0xff]
  %v5952 = vld [vmem:[%s1799 + $0x210] sm:$0xff]
  %v5953 = vld [vmem:[%s1799 + $0x218] sm:$0xff]
  %v5954 = vld [vmem:[%s1799 + $0x228] sm:$0xff]
  %v5955 = vld [vmem:[%s1799 + $0x230] sm:$0xff]
  %v5956 = vld [vmem:[%s1799 + $0x240] sm:$0xff]
  %v5957 = vld [vmem:[%s1799 + $0x248] sm:$0xff]
  %v5958 = vld [vmem:[%s1799 + $0x258] sm:$0xff]
  %v5959 = vld [vmem:[%s1799 + $0x260] sm:$0xff]
  %v5960 = vld [vmem:[%s1799 + $0x270] sm:$0xff]
  %v5961 = vld [vmem:[%s1799 + $0x278] sm:$0xff]
  %v5962 = vld [vmem:[%s1799 + $0x288] sm:$0xff]
  %v5963 = vld [vmem:[%s1799 + $0x290] sm:$0xff]
  %v5964 = vld [vmem:[%s1799 + $0x2a0] sm:$0xff]
  %v5965 = vld [vmem:[%s1799 + $0x2a8] sm:$0xff]
  %v5966 = vld [vmem:[%s1799 + $0x2b8] sm:$0xff]
  %v5967 = vld [vmem:[%s1799 + $0x2c0] sm:$0xff]
  %v5968 = vld [vmem:[%s1799 + $0x2d0] sm:$0xff]
  %v5969 = vld [vmem:[%s1799 + $0x2d8] sm:$0xff]
  %v5970 = vld [vmem:[%s1799 + $0x2e8] sm:$0xff]
  %v5971 = vld [vmem:[%s1799 + $0x2f0] sm:$0xff]
  %v5972 = vld [vmem:[%s1799 + $0x300] sm:$0xff]
  %v5973 = vld [vmem:[%s1799 + $0x308] sm:$0xff]
  %v5974 = vld [vmem:[%s1799 + $0x318] sm:$0xff]
  %v5975 = vld [vmem:[%s1799 + $0x320] sm:$0xff]
  %v5976 = vld [vmem:[%s1799 + $0x1] sm:$0xff]
  %v5977 = vld [vmem:[%s1799 + $0x9] sm:$0xff]
  %v5978 = vld [vmem:[%s1799 + $0x19] sm:$0xff]
  %v5979 = vld [vmem:[%s1799 + $0x21] sm:$0xff]
  %v5980 = vld [vmem:[%s1799 + $0x31] sm:$0xff]
  %v5981 = vld [vmem:[%s1799 + $0x39] sm:$0xff]
  %v5982 = vld [vmem:[%s1799 + $0x49] sm:$0xff]
  %v5983 = vld [vmem:[%s1799 + $0x51] sm:$0xff]
  %v5984 = vld [vmem:[%s1799 + $0x61] sm:$0xff]
  %v5985 = vld [vmem:[%s1799 + $0x69] sm:$0xff]
  %v5986 = vld [vmem:[%s1799 + $0x79] sm:$0xff]
  %v5987 = vld [vmem:[%s1799 + $0x81] sm:$0xff]
  %v5988 = vld [vmem:[%s1799 + $0x91] sm:$0xff]
  %v5989 = vld [vmem:[%s1799 + $0x99] sm:$0xff]
  %v5990 = vld [vmem:[%s1799 + $0xa9] sm:$0xff]
  %v5991 = vld [vmem:[%s1799 + $0xb1] sm:$0xff]
  %v5992 = vld [vmem:[%s1799 + $0xc1] sm:$0xff]
  %v5993 = vld [vmem:[%s1799 + $0xc9] sm:$0xff]
  %v5994 = vld [vmem:[%s1799 + $0xd9] sm:$0xff]
  %v5995 = vld [vmem:[%s1799 + $0xe1] sm:$0xff]
  %v5996 = vld [vmem:[%s1799 + $0xf1] sm:$0xff]
  %v5997 = vld [vmem:[%s1799 + $0xf9] sm:$0xff]
  %v5998 = vld [vmem:[%s1799 + $0x109] sm:$0xff]
  %v5999 = vld [vmem:[%s1799 + $0x111] sm:$0xff]
  %v6000 = vld [vmem:[%s1799 + $0x121] sm:$0xff]
  %v6001 = vld [vmem:[%s1799 + $0x129] sm:$0xff]
  %v6002 = vld [vmem:[%s1799 + $0x139] sm:$0xff]
  %v6003 = vld [vmem:[%s1799 + $0x141] sm:$0xff]
  %v6004 = vld [vmem:[%s1799 + $0x151] sm:$0xff]
  %v6005 = vld [vmem:[%s1799 + $0x159] sm:$0xff]
  %v6006 = vld [vmem:[%s1799 + $0x169] sm:$0xff]
  %v6007 = vld [vmem:[%s1799 + $0x171] sm:$0xff]
  %v6008 = vld [vmem:[%s1799 + $0x1b1] sm:$0xff]
  %v6009 = vld [vmem:[%s1799 + $0x1b9] sm:$0xff]
  %v6010 = vld [vmem:[%s1799 + $0x1c9] sm:$0xff]
  %v6011 = vld [vmem:[%s1799 + $0x1d1] sm:$0xff]
  %v6012 = vld [vmem:[%s1799 + $0x1e1] sm:$0xff]
  %v6013 = vld [vmem:[%s1799 + $0x1e9] sm:$0xff]
  %v6014 = vld [vmem:[%s1799 + $0x1f9] sm:$0xff]
  %v6015 = vld [vmem:[%s1799 + $0x201] sm:$0xff]
  %v6016 = vld [vmem:[%s1799 + $0x211] sm:$0xff]
  %v6017 = vld [vmem:[%s1799 + $0x219] sm:$0xff]
  %v6018 = vld [vmem:[%s1799 + $0x229] sm:$0xff]
  %v6019 = vld [vmem:[%s1799 + $0x231] sm:$0xff]
  %v6020 = vld [vmem:[%s1799 + $0x241] sm:$0xff]
  %v6021 = vld [vmem:[%s1799 + $0x249] sm:$0xff]
  %v6022 = vld [vmem:[%s1799 + $0x259] sm:$0xff]
  %v6023 = vld [vmem:[%s1799 + $0x261] sm:$0xff]
  %v6024 = vld [vmem:[%s1799 + $0x271] sm:$0xff]
  %v6025 = vld [vmem:[%s1799 + $0x279] sm:$0xff]
  %v6026 = vld [vmem:[%s1799 + $0x289] sm:$0xff]
  %v6027 = vld [vmem:[%s1799 + $0x291] sm:$0xff]
  %v6028 = vld [vmem:[%s1799 + $0x2a1] sm:$0xff]
  %v6029 = vld [vmem:[%s1799 + $0x2a9] sm:$0xff]
  %v6030 = vld [vmem:[%s1799 + $0x2b9] sm:$0xff]
  %v6031 = vld [vmem:[%s1799 + $0x2c1] sm:$0xff]
  %v6032 = vld [vmem:[%s1799 + $0x2d1] sm:$0xff]
  %v6033 = vld [vmem:[%s1799 + $0x2d9] sm:$0xff]
  %v6034 = vld [vmem:[%s1799 + $0x2e9] sm:$0xff]
  %v6035 = vld [vmem:[%s1799 + $0x2f1] sm:$0xff]
  %v6036 = vld [vmem:[%s1799 + $0x301] sm:$0xff]
  %v6037 = vld [vmem:[%s1799 + $0x309] sm:$0xff]
  %v6038 = vld [vmem:[%s1799 + $0x319] sm:$0xff]
  %v6039 = vld [vmem:[%s1799 + $0x321] sm:$0xff]
  %v6040 = vld [vmem:[%s1799 + $0x2] sm:$0xff]
  %v6041 = vld [vmem:[%s1799 + $0xa] sm:$0xff]
  %v6042 = vld [vmem:[%s1799 + $0x1a] sm:$0xff]
  %v6043 = vld [vmem:[%s1799 + $0x22] sm:$0xff]
  %v6044 = vld [vmem:[%s1799 + $0x32] sm:$0xff]
  %v6045 = vld [vmem:[%s1799 + $0x3a] sm:$0xff]
  %v6046 = vld [vmem:[%s1799 + $0x4a] sm:$0xff]
  %v6047 = vld [vmem:[%s1799 + $0x52] sm:$0xff]
  %v6048 = vld [vmem:[%s1799 + $0x62] sm:$0xff]
  %v6049 = vld [vmem:[%s1799 + $0x6a] sm:$0xff]
  %v6050 = vld [vmem:[%s1799 + $0x7a] sm:$0xff]
  %v6051 = vld [vmem:[%s1799 + $0x82] sm:$0xff]
  %v6052 = vld [vmem:[%s1799 + $0x92] sm:$0xff]
  %v6053 = vld [vmem:[%s1799 + $0x9a] sm:$0xff]
  %v6054 = vld [vmem:[%s1799 + $0xaa] sm:$0xff]
  %v6055 = vld [vmem:[%s1799 + $0xb2] sm:$0xff]
  %v6056 = vld [vmem:[%s1799 + $0xc2] sm:$0xff]
  %v6057 = vld [vmem:[%s1799 + $0xca] sm:$0xff]
  %v6058 = vld [vmem:[%s1799 + $0xda] sm:$0xff]
  %v6059 = vld [vmem:[%s1799 + $0xe2] sm:$0xff]
  %v6060 = vld [vmem:[%s1799 + $0xf2] sm:$0xff]
  %v6061 = vld [vmem:[%s1799 + $0xfa] sm:$0xff]
  %v6062 = vld [vmem:[%s1799 + $0x10a] sm:$0xff]
  %v6063 = vld [vmem:[%s1799 + $0x112] sm:$0xff]
  %v6064 = vld [vmem:[%s1799 + $0x122] sm:$0xff]
  %v6065 = vld [vmem:[%s1799 + $0x12a] sm:$0xff]
  %v6066 = vld [vmem:[%s1799 + $0x13a] sm:$0xff]
  %v6067 = vld [vmem:[%s1799 + $0x142] sm:$0xff]
  %v6068 = vld [vmem:[%s1799 + $0x152] sm:$0xff]
  %v6069 = vld [vmem:[%s1799 + $0x15a] sm:$0xff]
  %v6070 = vld [vmem:[%s1799 + $0x16a] sm:$0xff]
  %v6071 = vld [vmem:[%s1799 + $0x172] sm:$0xff]
  %v6072 = vld [vmem:[%s1799 + $0x1b2] sm:$0xff]
  %v6073 = vld [vmem:[%s1799 + $0x1ba] sm:$0xff]
  %v6074 = vld [vmem:[%s1799 + $0x1ca] sm:$0xff]
  %v6075 = vld [vmem:[%s1799 + $0x1d2] sm:$0xff]
  %v6076 = vld [vmem:[%s1799 + $0x1e2] sm:$0xff]
  %v6077 = vld [vmem:[%s1799 + $0x1ea] sm:$0xff]
  %v6078 = vld [vmem:[%s1799 + $0x1fa] sm:$0xff]
  %v6079 = vld [vmem:[%s1799 + $0x202] sm:$0xff]
  %v6080 = vld [vmem:[%s1799 + $0x212] sm:$0xff]
  %v6081 = vld [vmem:[%s1799 + $0x21a] sm:$0xff]
  %v6082 = vld [vmem:[%s1799 + $0x22a] sm:$0xff]
  %v6083 = vld [vmem:[%s1799 + $0x232] sm:$0xff]
  %v6084 = vld [vmem:[%s1799 + $0x242] sm:$0xff]
  %v6085 = vld [vmem:[%s1799 + $0x24a] sm:$0xff]
  %v6086 = vld [vmem:[%s1799 + $0x25a] sm:$0xff]
  %v6087 = vld [vmem:[%s1799 + $0x262] sm:$0xff]
  %v6088 = vld [vmem:[%s1799 + $0x272] sm:$0xff]
  %v6089 = vld [vmem:[%s1799 + $0x27a] sm:$0xff]
  %v6090 = vld [vmem:[%s1799 + $0x28a] sm:$0xff]
  %v6091 = vld [vmem:[%s1799 + $0x292] sm:$0xff]
  %v6092 = vld [vmem:[%s1799 + $0x2a2] sm:$0xff]
  %v6093 = vld [vmem:[%s1799 + $0x2aa] sm:$0xff]
  %v6094 = vld [vmem:[%s1799 + $0x2ba] sm:$0xff]
  %v6095 = vld [vmem:[%s1799 + $0x2c2] sm:$0xff]
  %v6096 = vld [vmem:[%s1799 + $0x2d2] sm:$0xff]
  %v6097 = vld [vmem:[%s1799 + $0x2da] sm:$0xff]
  %v6098 = vld [vmem:[%s1799 + $0x2ea] sm:$0xff]
  %v6099 = vld [vmem:[%s1799 + $0x2f2] sm:$0xff]
  %v6100 = vld [vmem:[%s1799 + $0x302] sm:$0xff]
  %v6101 = vld [vmem:[%s1799 + $0x30a] sm:$0xff]
  %v6102 = vld [vmem:[%s1799 + $0x31a] sm:$0xff]
  %v6103 = vld [vmem:[%s1799 + $0x322] sm:$0xff]
  %6168 = vrot.lane.b32.xlu0 %v5592, 32
  %v6169 = vpop.permute.xlu0 %6168
  %6170 = vrot.lane.b32.xlu0 %v5593, 32
  %v6171 = vpop.permute.xlu0 %6170
  %6172 = vrot.lane.b32.xlu0 %v5594, 32
  %v6173 = vpop.permute.xlu0 %6172
  %6174 = vrot.lane.b32.xlu0 %v5595, 32
  %v6175 = vpop.permute.xlu0 %6174
  %6176 = vrot.lane.b32.xlu0 %v5596, 32
  %v6177 = vpop.permute.xlu0 %6176
  %6178 = vrot.lane.b32.xlu0 %v5597, 32
  %v6179 = vpop.permute.xlu0 %6178
  %6180 = vrot.lane.b32.xlu0 %v5598, 32
  %v6181 = vpop.permute.xlu0 %6180
  %6182 = vrot.lane.b32.xlu0 %v5599, 32
  %v6183 = vpop.permute.xlu0 %6182
  %6184 = vrot.lane.b32.xlu0 %v5600, 32
  %v6185 = vpop.permute.xlu0 %6184
  %6186 = vrot.lane.b32.xlu0 %v5601, 32
  %v6187 = vpop.permute.xlu0 %6186
  %6188 = vrot.lane.b32.xlu0 %v5602, 32
  %v6189 = vpop.permute.xlu0 %6188
  %6190 = vrot.lane.b32.xlu0 %v5603, 32
  %v6191 = vpop.permute.xlu0 %6190
  %6192 = vrot.lane.b32.xlu0 %v5604, 32
  %v6193 = vpop.permute.xlu0 %6192
  %6194 = vrot.lane.b32.xlu0 %v5605, 32
  %v6195 = vpop.permute.xlu0 %6194
  %6196 = vrot.lane.b32.xlu0 %v5606, 32
  %v6197 = vpop.permute.xlu0 %6196
  %6198 = vrot.lane.b32.xlu0 %v5607, 32
  %v6199 = vpop.permute.xlu0 %6198
  %6200 = vrot.lane.b32.xlu0 %v5608, 32
  %v6201 = vpop.permute.xlu0 %6200
  %6202 = vrot.lane.b32.xlu0 %v5609, 32
  %v6203 = vpop.permute.xlu0 %6202
  %6204 = vrot.lane.b32.xlu0 %v5610, 32
  %v6205 = vpop.permute.xlu0 %6204
  %6206 = vrot.lane.b32.xlu0 %v5611, 32
  %v6207 = vpop.permute.xlu0 %6206
  %6208 = vrot.lane.b32.xlu0 %v5612, 32
  %v6209 = vpop.permute.xlu0 %6208
  %6210 = vrot.lane.b32.xlu0 %v5613, 32
  %v6211 = vpop.permute.xlu0 %6210
  %6212 = vrot.lane.b32.xlu0 %v5614, 32
  %v6213 = vpop.permute.xlu0 %6212
  %6214 = vrot.lane.b32.xlu0 %v5615, 32
  %v6215 = vpop.permute.xlu0 %6214
  %6216 = vrot.lane.b32.xlu0 %v5616, 32
  %v6217 = vpop.permute.xlu0 %6216
  %6218 = vrot.lane.b32.xlu0 %v5617, 32
  %v6219 = vpop.permute.xlu0 %6218
  %6220 = vrot.lane.b32.xlu0 %v5618, 32
  %v6221 = vpop.permute.xlu0 %6220
  %6222 = vrot.lane.b32.xlu0 %v5619, 32
  %v6223 = vpop.permute.xlu0 %6222
  %6224 = vrot.lane.b32.xlu0 %v5620, 32
  %v6225 = vpop.permute.xlu0 %6224
  %6226 = vrot.lane.b32.xlu0 %v5621, 32
  %v6227 = vpop.permute.xlu0 %6226
  %6228 = vrot.lane.b32.xlu0 %v5622, 32
  %v6229 = vpop.permute.xlu0 %6228
  %6230 = vrot.lane.b32.xlu0 %v5623, 32
  %v6231 = vpop.permute.xlu0 %6230
  %6232 = vrot.lane.b32.xlu0 %v5624, 32
  %v6233 = vpop.permute.xlu0 %6232
  %6234 = vrot.lane.b32.xlu0 %v5625, 32
  %v6235 = vpop.permute.xlu0 %6234
  %6236 = vrot.lane.b32.xlu0 %v5626, 32
  %v6237 = vpop.permute.xlu0 %6236
  %6238 = vrot.lane.b32.xlu0 %v5627, 32
  %v6239 = vpop.permute.xlu0 %6238
  %6240 = vrot.lane.b32.xlu0 %v5628, 32
  %v6241 = vpop.permute.xlu0 %6240
  %6242 = vrot.lane.b32.xlu0 %v5629, 32
  %v6243 = vpop.permute.xlu0 %6242
  %6244 = vrot.lane.b32.xlu0 %v5630, 32
  %v6245 = vpop.permute.xlu0 %6244
  %6246 = vrot.lane.b32.xlu0 %v5631, 32
  %v6247 = vpop.permute.xlu0 %6246
  %6248 = vrot.lane.b32.xlu0 %v5632, 32
  %v6249 = vpop.permute.xlu0 %6248
  %6250 = vrot.lane.b32.xlu0 %v5633, 32
  %v6251 = vpop.permute.xlu0 %6250
  %6252 = vrot.lane.b32.xlu0 %v5634, 32
  %v6253 = vpop.permute.xlu0 %6252
  %6254 = vrot.lane.b32.xlu0 %v5635, 32
  %v6255 = vpop.permute.xlu0 %6254
  %6256 = vrot.lane.b32.xlu0 %v5636, 32
  %v6257 = vpop.permute.xlu0 %6256
  %6258 = vrot.lane.b32.xlu0 %v5637, 32
  %v6259 = vpop.permute.xlu0 %6258
  %6260 = vrot.lane.b32.xlu0 %v5638, 32
  %v6261 = vpop.permute.xlu0 %6260
  %6262 = vrot.lane.b32.xlu0 %v5639, 32
  %v6263 = vpop.permute.xlu0 %6262
  %6264 = vrot.lane.b32.xlu0 %v5640, 32
  %v6265 = vpop.permute.xlu0 %6264
  %6266 = vrot.lane.b32.xlu0 %v5641, 32
  %v6267 = vpop.permute.xlu0 %6266
  %6268 = vrot.lane.b32.xlu0 %v5642, 32
  %v6269 = vpop.permute.xlu0 %6268
  %6270 = vrot.lane.b32.xlu0 %v5643, 32
  %v6271 = vpop.permute.xlu0 %6270
  %6272 = vrot.lane.b32.xlu0 %v5644, 32
  %v6273 = vpop.permute.xlu0 %6272
  %6274 = vrot.lane.b32.xlu0 %v5645, 32
  %v6275 = vpop.permute.xlu0 %6274
  %6276 = vrot.lane.b32.xlu0 %v5646, 32
  %v6277 = vpop.permute.xlu0 %6276
  %6278 = vrot.lane.b32.xlu0 %v5647, 32
  %v6279 = vpop.permute.xlu0 %6278
  %6280 = vrot.lane.b32.xlu0 %v5648, 32
  %v6281 = vpop.permute.xlu0 %6280
  %6282 = vrot.lane.b32.xlu0 %v5649, 32
  %v6283 = vpop.permute.xlu0 %6282
  %6284 = vrot.lane.b32.xlu0 %v5650, 32
  %v6285 = vpop.permute.xlu0 %6284
  %6286 = vrot.lane.b32.xlu0 %v5651, 32
  %v6287 = vpop.permute.xlu0 %6286
  %6288 = vrot.lane.b32.xlu0 %v5652, 32
  %v6289 = vpop.permute.xlu0 %6288
  %6290 = vrot.lane.b32.xlu0 %v5653, 32
  %v6291 = vpop.permute.xlu0 %6290
  %6292 = vrot.lane.b32.xlu0 %v5654, 32
  %v6293 = vpop.permute.xlu0 %6292
  %6294 = vrot.lane.b32.xlu0 %v5655, 32
  %v6295 = vpop.permute.xlu0 %6294
  %6424 = vrot.lane.b32.xlu0 %v5656, 64
  %v6425 = vpop.permute.xlu0 %6424
  %6426 = vrot.lane.b32.xlu0 %v5657, 64
  %v6427 = vpop.permute.xlu0 %6426
  %6428 = vrot.lane.b32.xlu0 %v5658, 64
  %v6429 = vpop.permute.xlu0 %6428
  %6430 = vrot.lane.b32.xlu0 %v5659, 64
  %v6431 = vpop.permute.xlu0 %6430
  %6432 = vrot.lane.b32.xlu0 %v5660, 64
  %v6433 = vpop.permute.xlu0 %6432
  %6434 = vrot.lane.b32.xlu0 %v5661, 64
  %v6435 = vpop.permute.xlu0 %6434
  %6436 = vrot.lane.b32.xlu0 %v5662, 64
  %v6437 = vpop.permute.xlu0 %6436
  %6438 = vrot.lane.b32.xlu0 %v5663, 64
  %v6439 = vpop.permute.xlu0 %6438
  %6440 = vrot.lane.b32.xlu0 %v5664, 64
  %v6441 = vpop.permute.xlu0 %6440
  %6442 = vrot.lane.b32.xlu0 %v5665, 64
  %v6443 = vpop.permute.xlu0 %6442
  %6444 = vrot.lane.b32.xlu0 %v5666, 64
  %v6445 = vpop.permute.xlu0 %6444
  %6446 = vrot.lane.b32.xlu0 %v5667, 64
  %v6447 = vpop.permute.xlu0 %6446
  %6448 = vrot.lane.b32.xlu0 %v5668, 64
  %v6449 = vpop.permute.xlu0 %6448
  %6450 = vrot.lane.b32.xlu0 %v5669, 64
  %v6451 = vpop.permute.xlu0 %6450
  %6452 = vrot.lane.b32.xlu0 %v5670, 64
  %v6453 = vpop.permute.xlu0 %6452
  %6454 = vrot.lane.b32.xlu0 %v5671, 64
  %v6455 = vpop.permute.xlu0 %6454
  %6456 = vrot.lane.b32.xlu0 %v5672, 64
  %v6457 = vpop.permute.xlu0 %6456
  %6458 = vrot.lane.b32.xlu0 %v5673, 64
  %v6459 = vpop.permute.xlu0 %6458
  %6460 = vrot.lane.b32.xlu0 %v5674, 64
  %v6461 = vpop.permute.xlu0 %6460
  %6462 = vrot.lane.b32.xlu0 %v5675, 64
  %v6463 = vpop.permute.xlu0 %6462
  %6464 = vrot.lane.b32.xlu0 %v5676, 64
  %v6465 = vpop.permute.xlu0 %6464
  %6466 = vrot.lane.b32.xlu0 %v5677, 64
  %v6467 = vpop.permute.xlu0 %6466
  %6468 = vrot.lane.b32.xlu0 %v5678, 64
  %v6469 = vpop.permute.xlu0 %6468
  %6470 = vrot.lane.b32.xlu0 %v5679, 64
  %v6471 = vpop.permute.xlu0 %6470
  %6472 = vrot.lane.b32.xlu0 %v5680, 64
  %v6473 = vpop.permute.xlu0 %6472
  %6474 = vrot.lane.b32.xlu0 %v5681, 64
  %v6475 = vpop.permute.xlu0 %6474
  %6476 = vrot.lane.b32.xlu0 %v5682, 64
  %v6477 = vpop.permute.xlu0 %6476
  %6478 = vrot.lane.b32.xlu0 %v5683, 64
  %v6479 = vpop.permute.xlu0 %6478
  %6480 = vrot.lane.b32.xlu0 %v5684, 64
  %v6481 = vpop.permute.xlu0 %6480
  %6482 = vrot.lane.b32.xlu0 %v5685, 64
  %v6483 = vpop.permute.xlu0 %6482
  %6484 = vrot.lane.b32.xlu0 %v5686, 64
  %v6485 = vpop.permute.xlu0 %6484
  %6486 = vrot.lane.b32.xlu0 %v5687, 64
  %v6487 = vpop.permute.xlu0 %6486
  %6488 = vrot.lane.b32.xlu0 %v5688, 64
  %v6489 = vpop.permute.xlu0 %6488
  %6490 = vrot.lane.b32.xlu0 %v5689, 64
  %v6491 = vpop.permute.xlu0 %6490
  %6492 = vrot.lane.b32.xlu0 %v5690, 64
  %v6493 = vpop.permute.xlu0 %6492
  %6494 = vrot.lane.b32.xlu0 %v5691, 64
  %v6495 = vpop.permute.xlu0 %6494
  %6496 = vrot.lane.b32.xlu0 %v5692, 64
  %v6497 = vpop.permute.xlu0 %6496
  %6498 = vrot.lane.b32.xlu0 %v5693, 64
  %v6499 = vpop.permute.xlu0 %6498
  %6500 = vrot.lane.b32.xlu0 %v5694, 64
  %v6501 = vpop.permute.xlu0 %6500
  %6502 = vrot.lane.b32.xlu0 %v5695, 64
  %v6503 = vpop.permute.xlu0 %6502
  %6504 = vrot.lane.b32.xlu0 %v5696, 64
  %v6505 = vpop.permute.xlu0 %6504
  %6506 = vrot.lane.b32.xlu0 %v5697, 64
  %v6507 = vpop.permute.xlu0 %6506
  %6508 = vrot.lane.b32.xlu0 %v5698, 64
  %v6509 = vpop.permute.xlu0 %6508
  %6510 = vrot.lane.b32.xlu0 %v5699, 64
  %v6511 = vpop.permute.xlu0 %6510
  %6512 = vrot.lane.b32.xlu0 %v5700, 64
  %v6513 = vpop.permute.xlu0 %6512
  %6514 = vrot.lane.b32.xlu0 %v5701, 64
  %v6515 = vpop.permute.xlu0 %6514
  %6516 = vrot.lane.b32.xlu0 %v5702, 64
  %v6517 = vpop.permute.xlu0 %6516
  %6518 = vrot.lane.b32.xlu0 %v5703, 64
  %v6519 = vpop.permute.xlu0 %6518
  %6520 = vrot.lane.b32.xlu0 %v5704, 64
  %v6521 = vpop.permute.xlu0 %6520
  %6522 = vrot.lane.b32.xlu0 %v5705, 64
  %v6523 = vpop.permute.xlu0 %6522
  %6524 = vrot.lane.b32.xlu0 %v5706, 64
  %v6525 = vpop.permute.xlu0 %6524
  %6526 = vrot.lane.b32.xlu0 %v5707, 64
  %v6527 = vpop.permute.xlu0 %6526
  %6528 = vrot.lane.b32.xlu0 %v5708, 64
  %v6529 = vpop.permute.xlu0 %6528
  %6530 = vrot.lane.b32.xlu0 %v5709, 64
  %v6531 = vpop.permute.xlu0 %6530
  %6532 = vrot.lane.b32.xlu0 %v5710, 64
  %v6533 = vpop.permute.xlu0 %6532
  %6534 = vrot.lane.b32.xlu0 %v5711, 64
  %v6535 = vpop.permute.xlu0 %6534
  %6536 = vrot.lane.b32.xlu0 %v5712, 64
  %v6537 = vpop.permute.xlu0 %6536
  %6538 = vrot.lane.b32.xlu0 %v5713, 64
  %v6539 = vpop.permute.xlu0 %6538
  %6540 = vrot.lane.b32.xlu0 %v5714, 64
  %v6541 = vpop.permute.xlu0 %6540
  %6542 = vrot.lane.b32.xlu0 %v5715, 64
  %v6543 = vpop.permute.xlu0 %6542
  %6544 = vrot.lane.b32.xlu0 %v5716, 64
  %v6545 = vpop.permute.xlu0 %6544
  %6546 = vrot.lane.b32.xlu0 %v5717, 64
  %v6547 = vpop.permute.xlu0 %6546
  %6548 = vrot.lane.b32.xlu0 %v5718, 64
  %v6549 = vpop.permute.xlu0 %6548
  %6550 = vrot.lane.b32.xlu0 %v5719, 64
  %v6551 = vpop.permute.xlu0 %6550
  %6680 = vrot.lane.b32.xlu0 %v5720, 96
  %v6681 = vpop.permute.xlu0 %6680
  %6682 = vrot.lane.b32.xlu0 %v5721, 96
  %v6683 = vpop.permute.xlu0 %6682
  %6684 = vrot.lane.b32.xlu0 %v5722, 96
  %v6685 = vpop.permute.xlu0 %6684
  %6686 = vrot.lane.b32.xlu0 %v5723, 96
  %v6687 = vpop.permute.xlu0 %6686
  %6688 = vrot.lane.b32.xlu0 %v5724, 96
  %v6689 = vpop.permute.xlu0 %6688
  %6690 = vrot.lane.b32.xlu0 %v5725, 96
  %v6691 = vpop.permute.xlu0 %6690
  %6692 = vrot.lane.b32.xlu0 %v5726, 96
  %v6693 = vpop.permute.xlu0 %6692
  %6694 = vrot.lane.b32.xlu0 %v5727, 96
  %v6695 = vpop.permute.xlu0 %6694
  %6696 = vrot.lane.b32.xlu0 %v5728, 96
  %v6697 = vpop.permute.xlu0 %6696
  %6698 = vrot.lane.b32.xlu0 %v5729, 96
  %v6699 = vpop.permute.xlu0 %6698
  %6700 = vrot.lane.b32.xlu0 %v5730, 96
  %v6701 = vpop.permute.xlu0 %6700
  %6702 = vrot.lane.b32.xlu0 %v5731, 96
  %v6703 = vpop.permute.xlu0 %6702
  %6704 = vrot.lane.b32.xlu0 %v5732, 96
  %v6705 = vpop.permute.xlu0 %6704
  %6706 = vrot.lane.b32.xlu0 %v5733, 96
  %v6707 = vpop.permute.xlu0 %6706
  %6708 = vrot.lane.b32.xlu0 %v5734, 96
  %v6709 = vpop.permute.xlu0 %6708
  %6710 = vrot.lane.b32.xlu0 %v5735, 96
  %v6711 = vpop.permute.xlu0 %6710
  %6712 = vrot.lane.b32.xlu0 %v5736, 96
  %v6713 = vpop.permute.xlu0 %6712
  %6714 = vrot.lane.b32.xlu0 %v5737, 96
  %v6715 = vpop.permute.xlu0 %6714
  %6716 = vrot.lane.b32.xlu0 %v5738, 96
  %v6717 = vpop.permute.xlu0 %6716
  %6718 = vrot.lane.b32.xlu0 %v5739, 96
  %v6719 = vpop.permute.xlu0 %6718
  %6720 = vrot.lane.b32.xlu0 %v5740, 96
  %v6721 = vpop.permute.xlu0 %6720
  %6722 = vrot.lane.b32.xlu0 %v5741, 96
  %v6723 = vpop.permute.xlu0 %6722
  %6724 = vrot.lane.b32.xlu0 %v5742, 96
  %v6725 = vpop.permute.xlu0 %6724
  %6726 = vrot.lane.b32.xlu0 %v5743, 96
  %v6727 = vpop.permute.xlu0 %6726
  %6728 = vrot.lane.b32.xlu0 %v5744, 96
  %v6729 = vpop.permute.xlu0 %6728
  %6730 = vrot.lane.b32.xlu0 %v5745, 96
  %v6731 = vpop.permute.xlu0 %6730
  %6732 = vrot.lane.b32.xlu0 %v5746, 96
  %v6733 = vpop.permute.xlu0 %6732
  %6734 = vrot.lane.b32.xlu0 %v5747, 96
  %v6735 = vpop.permute.xlu0 %6734
  %6736 = vrot.lane.b32.xlu0 %v5748, 96
  %v6737 = vpop.permute.xlu0 %6736
  %6738 = vrot.lane.b32.xlu0 %v5749, 96
  %v6739 = vpop.permute.xlu0 %6738
  %6740 = vrot.lane.b32.xlu0 %v5750, 96
  %v6741 = vpop.permute.xlu0 %6740
  %6742 = vrot.lane.b32.xlu0 %v5751, 96
  %v6743 = vpop.permute.xlu0 %6742
  %6744 = vrot.lane.b32.xlu0 %v5752, 96
  %v6745 = vpop.permute.xlu0 %6744
  %6746 = vrot.lane.b32.xlu0 %v5753, 96
  %v6747 = vpop.permute.xlu0 %6746
  %6748 = vrot.lane.b32.xlu0 %v5754, 96
  %v6749 = vpop.permute.xlu0 %6748
  %6750 = vrot.lane.b32.xlu0 %v5755, 96
  %v6751 = vpop.permute.xlu0 %6750
  %6752 = vrot.lane.b32.xlu0 %v5756, 96
  %v6753 = vpop.permute.xlu0 %6752
  %6754 = vrot.lane.b32.xlu0 %v5757, 96
  %v6755 = vpop.permute.xlu0 %6754
  %6756 = vrot.lane.b32.xlu0 %v5758, 96
  %v6757 = vpop.permute.xlu0 %6756
  %6758 = vrot.lane.b32.xlu0 %v5759, 96
  %v6759 = vpop.permute.xlu0 %6758
  %6760 = vrot.lane.b32.xlu0 %v5760, 96
  %v6761 = vpop.permute.xlu0 %6760
  %6762 = vrot.lane.b32.xlu0 %v5761, 96
  %v6763 = vpop.permute.xlu0 %6762
  %6764 = vrot.lane.b32.xlu0 %v5762, 96
  %v6765 = vpop.permute.xlu0 %6764
  %6766 = vrot.lane.b32.xlu0 %v5763, 96
  %v6767 = vpop.permute.xlu0 %6766
  %6768 = vrot.lane.b32.xlu0 %v5764, 96
  %v6769 = vpop.permute.xlu0 %6768
  %6770 = vrot.lane.b32.xlu0 %v5765, 96
  %v6771 = vpop.permute.xlu0 %6770
  %6772 = vrot.lane.b32.xlu0 %v5766, 96
  %v6773 = vpop.permute.xlu0 %6772
  %6774 = vrot.lane.b32.xlu0 %v5767, 96
  %v6775 = vpop.permute.xlu0 %6774
  %6776 = vrot.lane.b32.xlu0 %v5768, 96
  %v6777 = vpop.permute.xlu0 %6776
  %6778 = vrot.lane.b32.xlu0 %v5769, 96
  %v6779 = vpop.permute.xlu0 %6778
  %6780 = vrot.lane.b32.xlu0 %v5770, 96
  %v6781 = vpop.permute.xlu0 %6780
  %6782 = vrot.lane.b32.xlu0 %v5771, 96
  %v6783 = vpop.permute.xlu0 %6782
  %6784 = vrot.lane.b32.xlu0 %v5772, 96
  %v6785 = vpop.permute.xlu0 %6784
  %6786 = vrot.lane.b32.xlu0 %v5773, 96
  %v6787 = vpop.permute.xlu0 %6786
  %6788 = vrot.lane.b32.xlu0 %v5774, 96
  %v6789 = vpop.permute.xlu0 %6788
  %6790 = vrot.lane.b32.xlu0 %v5775, 96
  %v6791 = vpop.permute.xlu0 %6790
  %6792 = vrot.lane.b32.xlu0 %v5776, 96
  %v6793 = vpop.permute.xlu0 %6792
  %6794 = vrot.lane.b32.xlu0 %v5777, 96
  %v6795 = vpop.permute.xlu0 %6794
  %6796 = vrot.lane.b32.xlu0 %v5778, 96
  %v6797 = vpop.permute.xlu0 %6796
  %6798 = vrot.lane.b32.xlu0 %v5779, 96
  %v6799 = vpop.permute.xlu0 %6798
  %6800 = vrot.lane.b32.xlu0 %v5780, 96
  %v6801 = vpop.permute.xlu0 %6800
  %6802 = vrot.lane.b32.xlu0 %v5781, 96
  %v6803 = vpop.permute.xlu0 %6802
  %6804 = vrot.lane.b32.xlu0 %v5782, 96
  %v6805 = vpop.permute.xlu0 %6804
  %6806 = vrot.lane.b32.xlu0 %v5783, 96
  %v6807 = vpop.permute.xlu0 %6806
  %6936 = vrot.lane.b32.xlu0 %v5848, 32
  %v6937 = vpop.permute.xlu0 %6936
  %6938 = vrot.lane.b32.xlu0 %v5849, 32
  %v6939 = vpop.permute.xlu0 %6938
  %6940 = vrot.lane.b32.xlu0 %v5850, 32
  %v6941 = vpop.permute.xlu0 %6940
  %6942 = vrot.lane.b32.xlu0 %v5851, 32
  %v6943 = vpop.permute.xlu0 %6942
  %6944 = vrot.lane.b32.xlu0 %v5852, 32
  %v6945 = vpop.permute.xlu0 %6944
  %6946 = vrot.lane.b32.xlu0 %v5853, 32
  %v6947 = vpop.permute.xlu0 %6946
  %6948 = vrot.lane.b32.xlu0 %v5854, 32
  %v6949 = vpop.permute.xlu0 %6948
  %6950 = vrot.lane.b32.xlu0 %v5855, 32
  %v6951 = vpop.permute.xlu0 %6950
  %6952 = vrot.lane.b32.xlu0 %v5856, 32
  %v6953 = vpop.permute.xlu0 %6952
  %6954 = vrot.lane.b32.xlu0 %v5857, 32
  %v6955 = vpop.permute.xlu0 %6954
  %6956 = vrot.lane.b32.xlu0 %v5858, 32
  %v6957 = vpop.permute.xlu0 %6956
  %6958 = vrot.lane.b32.xlu0 %v5859, 32
  %v6959 = vpop.permute.xlu0 %6958
  %6960 = vrot.lane.b32.xlu0 %v5860, 32
  %v6961 = vpop.permute.xlu0 %6960
  %6962 = vrot.lane.b32.xlu0 %v5861, 32
  %v6963 = vpop.permute.xlu0 %6962
  %6964 = vrot.lane.b32.xlu0 %v5862, 32
  %v6965 = vpop.permute.xlu0 %6964
  %6966 = vrot.lane.b32.xlu0 %v5863, 32
  %v6967 = vpop.permute.xlu0 %6966
  %6968 = vrot.lane.b32.xlu0 %v5864, 32
  %v6969 = vpop.permute.xlu0 %6968
  %6970 = vrot.lane.b32.xlu0 %v5865, 32
  %v6971 = vpop.permute.xlu0 %6970
  %6972 = vrot.lane.b32.xlu0 %v5866, 32
  %v6973 = vpop.permute.xlu0 %6972
  %6974 = vrot.lane.b32.xlu0 %v5867, 32
  %v6975 = vpop.permute.xlu0 %6974
  %6976 = vrot.lane.b32.xlu0 %v5868, 32
  %v6977 = vpop.permute.xlu0 %6976
  %6978 = vrot.lane.b32.xlu0 %v5869, 32
  %v6979 = vpop.permute.xlu0 %6978
  %6980 = vrot.lane.b32.xlu0 %v5870, 32
  %v6981 = vpop.permute.xlu0 %6980
  %6982 = vrot.lane.b32.xlu0 %v5871, 32
  %v6983 = vpop.permute.xlu0 %6982
  %6984 = vrot.lane.b32.xlu0 %v5872, 32
  %v6985 = vpop.permute.xlu0 %6984
  %6986 = vrot.lane.b32.xlu0 %v5873, 32
  %v6987 = vpop.permute.xlu0 %6986
  %6988 = vrot.lane.b32.xlu0 %v5874, 32
  %v6989 = vpop.permute.xlu0 %6988
  %6990 = vrot.lane.b32.xlu0 %v5875, 32
  %v6991 = vpop.permute.xlu0 %6990
  %6992 = vrot.lane.b32.xlu0 %v5876, 32
  %v6993 = vpop.permute.xlu0 %6992
  %6994 = vrot.lane.b32.xlu0 %v5877, 32
  %v6995 = vpop.permute.xlu0 %6994
  %6996 = vrot.lane.b32.xlu0 %v5878, 32
  %v6997 = vpop.permute.xlu0 %6996
  %6998 = vrot.lane.b32.xlu0 %v5879, 32
  %v6999 = vpop.permute.xlu0 %6998
  %7000 = vrot.lane.b32.xlu0 %v5880, 32
  %v7001 = vpop.permute.xlu0 %7000
  %7002 = vrot.lane.b32.xlu0 %v5881, 32
  %v7003 = vpop.permute.xlu0 %7002
  %7004 = vrot.lane.b32.xlu0 %v5882, 32
  %v7005 = vpop.permute.xlu0 %7004
  %7006 = vrot.lane.b32.xlu0 %v5883, 32
  %v7007 = vpop.permute.xlu0 %7006
  %7008 = vrot.lane.b32.xlu0 %v5884, 32
  %v7009 = vpop.permute.xlu0 %7008
  %7010 = vrot.lane.b32.xlu0 %v5885, 32
  %v7011 = vpop.permute.xlu0 %7010
  %7012 = vrot.lane.b32.xlu0 %v5886, 32
  %v7013 = vpop.permute.xlu0 %7012
  %7014 = vrot.lane.b32.xlu0 %v5887, 32
  %v7015 = vpop.permute.xlu0 %7014
  %7016 = vrot.lane.b32.xlu0 %v5888, 32
  %v7017 = vpop.permute.xlu0 %7016
  %7018 = vrot.lane.b32.xlu0 %v5889, 32
  %v7019 = vpop.permute.xlu0 %7018
  %7020 = vrot.lane.b32.xlu0 %v5890, 32
  %v7021 = vpop.permute.xlu0 %7020
  %7022 = vrot.lane.b32.xlu0 %v5891, 32
  %v7023 = vpop.permute.xlu0 %7022
  %7024 = vrot.lane.b32.xlu0 %v5892, 32
  %v7025 = vpop.permute.xlu0 %7024
  %7026 = vrot.lane.b32.xlu0 %v5893, 32
  %v7027 = vpop.permute.xlu0 %7026
  %7028 = vrot.lane.b32.xlu0 %v5894, 32
  %v7029 = vpop.permute.xlu0 %7028
  %7030 = vrot.lane.b32.xlu0 %v5895, 32
  %v7031 = vpop.permute.xlu0 %7030
  %7032 = vrot.lane.b32.xlu0 %v5896, 32
  %v7033 = vpop.permute.xlu0 %7032
  %7034 = vrot.lane.b32.xlu0 %v5897, 32
  %v7035 = vpop.permute.xlu0 %7034
  %7036 = vrot.lane.b32.xlu0 %v5898, 32
  %v7037 = vpop.permute.xlu0 %7036
  %7038 = vrot.lane.b32.xlu0 %v5899, 32
  %v7039 = vpop.permute.xlu0 %7038
  %7040 = vrot.lane.b32.xlu0 %v5900, 32
  %v7041 = vpop.permute.xlu0 %7040
  %7042 = vrot.lane.b32.xlu0 %v5901, 32
  %v7043 = vpop.permute.xlu0 %7042
  %7044 = vrot.lane.b32.xlu0 %v5902, 32
  %v7045 = vpop.permute.xlu0 %7044
  %7046 = vrot.lane.b32.xlu0 %v5903, 32
  %v7047 = vpop.permute.xlu0 %7046
  %7048 = vrot.lane.b32.xlu0 %v5904, 32
  %v7049 = vpop.permute.xlu0 %7048
  %7050 = vrot.lane.b32.xlu0 %v5905, 32
  %v7051 = vpop.permute.xlu0 %7050
  %7052 = vrot.lane.b32.xlu0 %v5906, 32
  %v7053 = vpop.permute.xlu0 %7052
  %7054 = vrot.lane.b32.xlu0 %v5907, 32
  %v7055 = vpop.permute.xlu0 %7054
  %7056 = vrot.lane.b32.xlu0 %v5908, 32
  %v7057 = vpop.permute.xlu0 %7056
  %7058 = vrot.lane.b32.xlu0 %v5909, 32
  %v7059 = vpop.permute.xlu0 %7058
  %7060 = vrot.lane.b32.xlu0 %v5910, 32
  %v7061 = vpop.permute.xlu0 %7060
  %7062 = vrot.lane.b32.xlu0 %v5911, 32
  %v7063 = vpop.permute.xlu0 %7062
  %7192 = vrot.lane.b32.xlu0 %v5912, 64
  %v7193 = vpop.permute.xlu0 %7192
  %7194 = vrot.lane.b32.xlu0 %v5913, 64
  %v7195 = vpop.permute.xlu0 %7194
  %7196 = vrot.lane.b32.xlu0 %v5914, 64
  %v7197 = vpop.permute.xlu0 %7196
  %7198 = vrot.lane.b32.xlu0 %v5915, 64
  %v7199 = vpop.permute.xlu0 %7198
  %7200 = vrot.lane.b32.xlu0 %v5916, 64
  %v7201 = vpop.permute.xlu0 %7200
  %7202 = vrot.lane.b32.xlu0 %v5917, 64
  %v7203 = vpop.permute.xlu0 %7202
  %7204 = vrot.lane.b32.xlu0 %v5918, 64
  %v7205 = vpop.permute.xlu0 %7204
  %7206 = vrot.lane.b32.xlu0 %v5919, 64
  %v7207 = vpop.permute.xlu0 %7206
  %7208 = vrot.lane.b32.xlu0 %v5920, 64
  %v7209 = vpop.permute.xlu0 %7208
  %7210 = vrot.lane.b32.xlu0 %v5921, 64
  %v7211 = vpop.permute.xlu0 %7210
  %7212 = vrot.lane.b32.xlu0 %v5922, 64
  %v7213 = vpop.permute.xlu0 %7212
  %7214 = vrot.lane.b32.xlu0 %v5923, 64
  %v7215 = vpop.permute.xlu0 %7214
  %7216 = vrot.lane.b32.xlu0 %v5924, 64
  %v7217 = vpop.permute.xlu0 %7216
  %7218 = vrot.lane.b32.xlu0 %v5925, 64
  %v7219 = vpop.permute.xlu0 %7218
  %7220 = vrot.lane.b32.xlu0 %v5926, 64
  %v7221 = vpop.permute.xlu0 %7220
  %7222 = vrot.lane.b32.xlu0 %v5927, 64
  %v7223 = vpop.permute.xlu0 %7222
  %7224 = vrot.lane.b32.xlu0 %v5928, 64
  %v7225 = vpop.permute.xlu0 %7224
  %7226 = vrot.lane.b32.xlu0 %v5929, 64
  %v7227 = vpop.permute.xlu0 %7226
  %7228 = vrot.lane.b32.xlu0 %v5930, 64
  %v7229 = vpop.permute.xlu0 %7228
  %7230 = vrot.lane.b32.xlu0 %v5931, 64
  %v7231 = vpop.permute.xlu0 %7230
  %7232 = vrot.lane.b32.xlu0 %v5932, 64
  %v7233 = vpop.permute.xlu0 %7232
  %7234 = vrot.lane.b32.xlu0 %v5933, 64
  %v7235 = vpop.permute.xlu0 %7234
  %7236 = vrot.lane.b32.xlu0 %v5934, 64
  %v7237 = vpop.permute.xlu0 %7236
  %7238 = vrot.lane.b32.xlu0 %v5935, 64
  %v7239 = vpop.permute.xlu0 %7238
  %7240 = vrot.lane.b32.xlu0 %v5936, 64
  %v7241 = vpop.permute.xlu0 %7240
  %7242 = vrot.lane.b32.xlu0 %v5937, 64
  %v7243 = vpop.permute.xlu0 %7242
  %7244 = vrot.lane.b32.xlu0 %v5938, 64
  %v7245 = vpop.permute.xlu0 %7244
  %7246 = vrot.lane.b32.xlu0 %v5939, 64
  %v7247 = vpop.permute.xlu0 %7246
  %7248 = vrot.lane.b32.xlu0 %v5940, 64
  %v7249 = vpop.permute.xlu0 %7248
  %7250 = vrot.lane.b32.xlu0 %v5941, 64
  %v7251 = vpop.permute.xlu0 %7250
  %7252 = vrot.lane.b32.xlu0 %v5942, 64
  %v7253 = vpop.permute.xlu0 %7252
  %7254 = vrot.lane.b32.xlu0 %v5943, 64
  %v7255 = vpop.permute.xlu0 %7254
  %7256 = vrot.lane.b32.xlu0 %v5944, 64
  %v7257 = vpop.permute.xlu0 %7256
  %7258 = vrot.lane.b32.xlu0 %v5945, 64
  %v7259 = vpop.permute.xlu0 %7258
  %7260 = vrot.lane.b32.xlu0 %v5946, 64
  %v7261 = vpop.permute.xlu0 %7260
  %7262 = vrot.lane.b32.xlu0 %v5947, 64
  %v7263 = vpop.permute.xlu0 %7262
  %7264 = vrot.lane.b32.xlu0 %v5948, 64
  %v7265 = vpop.permute.xlu0 %7264
  %7266 = vrot.lane.b32.xlu0 %v5949, 64
  %v7267 = vpop.permute.xlu0 %7266
  %7268 = vrot.lane.b32.xlu0 %v5950, 64
  %v7269 = vpop.permute.xlu0 %7268
  %7270 = vrot.lane.b32.xlu0 %v5951, 64
  %v7271 = vpop.permute.xlu0 %7270
  %7272 = vrot.lane.b32.xlu0 %v5952, 64
  %v7273 = vpop.permute.xlu0 %7272
  %7274 = vrot.lane.b32.xlu0 %v5953, 64
  %v7275 = vpop.permute.xlu0 %7274
  %7276 = vrot.lane.b32.xlu0 %v5954, 64
  %v7277 = vpop.permute.xlu0 %7276
  %7278 = vrot.lane.b32.xlu0 %v5955, 64
  %v7279 = vpop.permute.xlu0 %7278
  %7280 = vrot.lane.b32.xlu0 %v5956, 64
  %v7281 = vpop.permute.xlu0 %7280
  %7282 = vrot.lane.b32.xlu0 %v5957, 64
  %v7283 = vpop.permute.xlu0 %7282
  %7284 = vrot.lane.b32.xlu0 %v5958, 64
  %v7285 = vpop.permute.xlu0 %7284
  %7286 = vrot.lane.b32.xlu0 %v5959, 64
  %v7287 = vpop.permute.xlu0 %7286
  %7288 = vrot.lane.b32.xlu0 %v5960, 64
  %v7289 = vpop.permute.xlu0 %7288
  %7290 = vrot.lane.b32.xlu0 %v5961, 64
  %v7291 = vpop.permute.xlu0 %7290
  %7292 = vrot.lane.b32.xlu0 %v5962, 64
  %v7293 = vpop.permute.xlu0 %7292
  %7294 = vrot.lane.b32.xlu0 %v5963, 64
  %v7295 = vpop.permute.xlu0 %7294
  %7296 = vrot.lane.b32.xlu0 %v5964, 64
  %v7297 = vpop.permute.xlu0 %7296
  %7298 = vrot.lane.b32.xlu0 %v5965, 64
  %v7299 = vpop.permute.xlu0 %7298
  %7300 = vrot.lane.b32.xlu0 %v5966, 64
  %v7301 = vpop.permute.xlu0 %7300
  %7302 = vrot.lane.b32.xlu0 %v5967, 64
  %v7303 = vpop.permute.xlu0 %7302
  %7304 = vrot.lane.b32.xlu0 %v5968, 64
  %v7305 = vpop.permute.xlu0 %7304
  %7306 = vrot.lane.b32.xlu0 %v5969, 64
  %v7307 = vpop.permute.xlu0 %7306
  %7308 = vrot.lane.b32.xlu0 %v5970, 64
  %v7309 = vpop.permute.xlu0 %7308
  %7310 = vrot.lane.b32.xlu0 %v5971, 64
  %v7311 = vpop.permute.xlu0 %7310
  %7312 = vrot.lane.b32.xlu0 %v5972, 64
  %v7313 = vpop.permute.xlu0 %7312
  %7314 = vrot.lane.b32.xlu0 %v5973, 64
  %v7315 = vpop.permute.xlu0 %7314
  %7316 = vrot.lane.b32.xlu0 %v5974, 64
  %v7317 = vpop.permute.xlu0 %7316
  %7318 = vrot.lane.b32.xlu0 %v5975, 64
  %v7319 = vpop.permute.xlu0 %7318
  %7448 = vrot.lane.b32.xlu0 %v5976, 96
  %v7449 = vpop.permute.xlu0 %7448
  %7450 = vrot.lane.b32.xlu0 %v5977, 96
  %v7451 = vpop.permute.xlu0 %7450
  %7452 = vrot.lane.b32.xlu0 %v5978, 96
  %v7453 = vpop.permute.xlu0 %7452
  %7454 = vrot.lane.b32.xlu0 %v5979, 96
  %v7455 = vpop.permute.xlu0 %7454
  %7456 = vrot.lane.b32.xlu0 %v5980, 96
  %v7457 = vpop.permute.xlu0 %7456
  %7458 = vrot.lane.b32.xlu0 %v5981, 96
  %v7459 = vpop.permute.xlu0 %7458
  %7460 = vrot.lane.b32.xlu0 %v5982, 96
  %v7461 = vpop.permute.xlu0 %7460
  %7462 = vrot.lane.b32.xlu0 %v5983, 96
  %v7463 = vpop.permute.xlu0 %7462
  %7464 = vrot.lane.b32.xlu0 %v5984, 96
  %v7465 = vpop.permute.xlu0 %7464
  %7466 = vrot.lane.b32.xlu0 %v5985, 96
  %v7467 = vpop.permute.xlu0 %7466
  %7468 = vrot.lane.b32.xlu0 %v5986, 96
  %v7469 = vpop.permute.xlu0 %7468
  %7470 = vrot.lane.b32.xlu0 %v5987, 96
  %v7471 = vpop.permute.xlu0 %7470
  %7472 = vrot.lane.b32.xlu0 %v5988, 96
  %v7473 = vpop.permute.xlu0 %7472
  %7474 = vrot.lane.b32.xlu0 %v5989, 96
  %v7475 = vpop.permute.xlu0 %7474
  %7476 = vrot.lane.b32.xlu0 %v5990, 96
  %v7477 = vpop.permute.xlu0 %7476
  %7478 = vrot.lane.b32.xlu0 %v5991, 96
  %v7479 = vpop.permute.xlu0 %7478
  %7480 = vrot.lane.b32.xlu0 %v5992, 96
  %v7481 = vpop.permute.xlu0 %7480
  %7482 = vrot.lane.b32.xlu0 %v5993, 96
  %v7483 = vpop.permute.xlu0 %7482
  %7484 = vrot.lane.b32.xlu0 %v5994, 96
  %v7485 = vpop.permute.xlu0 %7484
  %7486 = vrot.lane.b32.xlu0 %v5995, 96
  %v7487 = vpop.permute.xlu0 %7486
  %7488 = vrot.lane.b32.xlu0 %v5996, 96
  %v7489 = vpop.permute.xlu0 %7488
  %7490 = vrot.lane.b32.xlu0 %v5997, 96
  %v7491 = vpop.permute.xlu0 %7490
  %7492 = vrot.lane.b32.xlu0 %v5998, 96
  %v7493 = vpop.permute.xlu0 %7492
  %7494 = vrot.lane.b32.xlu0 %v5999, 96
  %v7495 = vpop.permute.xlu0 %7494
  %7496 = vrot.lane.b32.xlu0 %v6000, 96
  %v7497 = vpop.permute.xlu0 %7496
  %7498 = vrot.lane.b32.xlu0 %v6001, 96
  %v7499 = vpop.permute.xlu0 %7498
  %7500 = vrot.lane.b32.xlu0 %v6002, 96
  %v7501 = vpop.permute.xlu0 %7500
  %7502 = vrot.lane.b32.xlu0 %v6003, 96
  %v7503 = vpop.permute.xlu0 %7502
  %7504 = vrot.lane.b32.xlu0 %v6004, 96
  %v7505 = vpop.permute.xlu0 %7504
  %7506 = vrot.lane.b32.xlu0 %v6005, 96
  %v7507 = vpop.permute.xlu0 %7506
  %7508 = vrot.lane.b32.xlu0 %v6006, 96
  %v7509 = vpop.permute.xlu0 %7508
  %7510 = vrot.lane.b32.xlu0 %v6007, 96
  %v7511 = vpop.permute.xlu0 %7510
  %7512 = vrot.lane.b32.xlu0 %v6008, 96
  %v7513 = vpop.permute.xlu0 %7512
  %7514 = vrot.lane.b32.xlu0 %v6009, 96
  %v7515 = vpop.permute.xlu0 %7514
  %7516 = vrot.lane.b32.xlu0 %v6010, 96
  %v7517 = vpop.permute.xlu0 %7516
  %7518 = vrot.lane.b32.xlu0 %v6011, 96
  %v7519 = vpop.permute.xlu0 %7518
  %7520 = vrot.lane.b32.xlu0 %v6012, 96
  %v7521 = vpop.permute.xlu0 %7520
  %7522 = vrot.lane.b32.xlu0 %v6013, 96
  %v7523 = vpop.permute.xlu0 %7522
  %7524 = vrot.lane.b32.xlu0 %v6014, 96
  %v7525 = vpop.permute.xlu0 %7524
  %7526 = vrot.lane.b32.xlu0 %v6015, 96
  %v7527 = vpop.permute.xlu0 %7526
  %7528 = vrot.lane.b32.xlu0 %v6016, 96
  %v7529 = vpop.permute.xlu0 %7528
  %7530 = vrot.lane.b32.xlu0 %v6017, 96
  %v7531 = vpop.permute.xlu0 %7530
  %7532 = vrot.lane.b32.xlu0 %v6018, 96
  %v7533 = vpop.permute.xlu0 %7532
  %7534 = vrot.lane.b32.xlu0 %v6019, 96
  %v7535 = vpop.permute.xlu0 %7534
  %7536 = vrot.lane.b32.xlu0 %v6020, 96
  %v7537 = vpop.permute.xlu0 %7536
  %7538 = vrot.lane.b32.xlu0 %v6021, 96
  %v7539 = vpop.permute.xlu0 %7538
  %7540 = vrot.lane.b32.xlu0 %v6022, 96
  %v7541 = vpop.permute.xlu0 %7540
  %7542 = vrot.lane.b32.xlu0 %v6023, 96
  %v7543 = vpop.permute.xlu0 %7542
  %7544 = vrot.lane.b32.xlu0 %v6024, 96
  %v7545 = vpop.permute.xlu0 %7544
  %7546 = vrot.lane.b32.xlu0 %v6025, 96
  %v7547 = vpop.permute.xlu0 %7546
  %7548 = vrot.lane.b32.xlu0 %v6026, 96
  %v7549 = vpop.permute.xlu0 %7548
  %7550 = vrot.lane.b32.xlu0 %v6027, 96
  %v7551 = vpop.permute.xlu0 %7550
  %7552 = vrot.lane.b32.xlu0 %v6028, 96
  %v7553 = vpop.permute.xlu0 %7552
  %7554 = vrot.lane.b32.xlu0 %v6029, 96
  %v7555 = vpop.permute.xlu0 %7554
  %7556 = vrot.lane.b32.xlu0 %v6030, 96
  %v7557 = vpop.permute.xlu0 %7556
  %7558 = vrot.lane.b32.xlu0 %v6031, 96
  %v7559 = vpop.permute.xlu0 %7558
  %7560 = vrot.lane.b32.xlu0 %v6032, 96
  %v7561 = vpop.permute.xlu0 %7560
  %7562 = vrot.lane.b32.xlu0 %v6033, 96
  %v7563 = vpop.permute.xlu0 %7562
  %7564 = vrot.lane.b32.xlu0 %v6034, 96
  %v7565 = vpop.permute.xlu0 %7564
  %7566 = vrot.lane.b32.xlu0 %v6035, 96
  %v7567 = vpop.permute.xlu0 %7566
  %7568 = vrot.lane.b32.xlu0 %v6036, 96
  %v7569 = vpop.permute.xlu0 %7568
  %7570 = vrot.lane.b32.xlu0 %v6037, 96
  %v7571 = vpop.permute.xlu0 %7570
  %7572 = vrot.lane.b32.xlu0 %v6038, 96
  %v7573 = vpop.permute.xlu0 %7572
  %7574 = vrot.lane.b32.xlu0 %v6039, 96
  %v7575 = vpop.permute.xlu0 %7574
  %v7640 = vsel %vm62, %v5528, %v6169
  %v7641 = vsel %vm62, %v5529, %v6171
  %v7642 = vsel %vm62, %v5530, %v6173
  %v7643 = vsel %vm62, %v5531, %v6175
  %v7644 = vsel %vm62, %v5532, %v6177
  %v7645 = vsel %vm62, %v5533, %v6179
  %v7646 = vsel %vm62, %v5534, %v6181
  %v7647 = vsel %vm62, %v5535, %v6183
  %v7648 = vsel %vm62, %v5536, %v6185
  %v7649 = vsel %vm62, %v5537, %v6187
  %v7650 = vsel %vm62, %v5538, %v6189
  %v7651 = vsel %vm62, %v5539, %v6191
  %v7652 = vsel %vm62, %v5540, %v6193
  %v7653 = vsel %vm62, %v5541, %v6195
  %v7654 = vsel %vm62, %v5542, %v6197
  %v7655 = vsel %vm62, %v5543, %v6199
  %v7656 = vsel %vm62, %v5544, %v6201
  %v7657 = vsel %vm62, %v5545, %v6203
  %v7658 = vsel %vm62, %v5546, %v6205
  %v7659 = vsel %vm62, %v5547, %v6207
  %v7660 = vsel %vm62, %v5548, %v6209
  %v7661 = vsel %vm62, %v5549, %v6211
  %v7662 = vsel %vm62, %v5550, %v6213
  %v7663 = vsel %vm62, %v5551, %v6215
  %v7664 = vsel %vm62, %v5552, %v6217
  %v7665 = vsel %vm62, %v5553, %v6219
  %v7666 = vsel %vm62, %v5554, %v6221
  %v7667 = vsel %vm62, %v5555, %v6223
  %v7668 = vsel %vm62, %v5556, %v6225
  %v7669 = vsel %vm62, %v5557, %v6227
  %v7670 = vsel %vm62, %v5558, %v6229
  %v7671 = vsel %vm62, %v5559, %v6231
  %v7672 = vsel %vm62, %v5560, %v6233
  %v7673 = vsel %vm62, %v5561, %v6235
  %v7674 = vsel %vm62, %v5562, %v6237
  %v7675 = vsel %vm62, %v5563, %v6239
  %v7676 = vsel %vm62, %v5564, %v6241
  %v7677 = vsel %vm62, %v5565, %v6243
  %v7678 = vsel %vm62, %v5566, %v6245
  %v7679 = vsel %vm62, %v5567, %v6247
  %v7680 = vsel %vm62, %v5568, %v6249
  %v7681 = vsel %vm62, %v5569, %v6251
  %v7682 = vsel %vm62, %v5570, %v6253
  %v7683 = vsel %vm62, %v5571, %v6255
  %v7684 = vsel %vm62, %v5572, %v6257
  %v7685 = vsel %vm62, %v5573, %v6259
  %v7686 = vsel %vm62, %v5574, %v6261
  %v7687 = vsel %vm62, %v5575, %v6263
  %v7688 = vsel %vm62, %v5576, %v6265
  %v7689 = vsel %vm62, %v5577, %v6267
  %v7690 = vsel %vm62, %v5578, %v6269
  %v7691 = vsel %vm62, %v5579, %v6271
  %v7692 = vsel %vm62, %v5580, %v6273
  %v7693 = vsel %vm62, %v5581, %v6275
  %v7694 = vsel %vm62, %v5582, %v6277
  %v7695 = vsel %vm62, %v5583, %v6279
  %v7696 = vsel %vm62, %v5584, %v6281
  %v7697 = vsel %vm62, %v5585, %v6283
  %v7698 = vsel %vm62, %v5586, %v6285
  %v7699 = vsel %vm62, %v5587, %v6287
  %v7700 = vsel %vm62, %v5588, %v6289
  %v7701 = vsel %vm62, %v5589, %v6291
  %v7702 = vsel %vm62, %v5590, %v6293
  %v7703 = vsel %vm62, %v5591, %v6295
  %v7704 = vsel %vm3592, %v7640, %v6425
  %v7705 = vsel %vm3592, %v7641, %v6427
  %v7706 = vsel %vm3592, %v7642, %v6429
  %v7707 = vsel %vm3592, %v7643, %v6431
  %v7708 = vsel %vm3592, %v7644, %v6433
  %v7709 = vsel %vm3592, %v7645, %v6435
  %v7710 = vsel %vm3592, %v7646, %v6437
  %v7711 = vsel %vm3592, %v7647, %v6439
  %v7712 = vsel %vm3592, %v7648, %v6441
  %v7713 = vsel %vm3592, %v7649, %v6443
  %v7714 = vsel %vm3592, %v7650, %v6445
  %v7715 = vsel %vm3592, %v7651, %v6447
  %v7716 = vsel %vm3592, %v7652, %v6449
  %v7717 = vsel %vm3592, %v7653, %v6451
  %v7718 = vsel %vm3592, %v7654, %v6453
  %v7719 = vsel %vm3592, %v7655, %v6455
  %v7720 = vsel %vm3592, %v7656, %v6457
  %v7721 = vsel %vm3592, %v7657, %v6459
  %v7722 = vsel %vm3592, %v7658, %v6461
  %v7723 = vsel %vm3592, %v7659, %v6463
  %v7724 = vsel %vm3592, %v7660, %v6465
  %v7725 = vsel %vm3592, %v7661, %v6467
  %v7726 = vsel %vm3592, %v7662, %v6469
  %v7727 = vsel %vm3592, %v7663, %v6471
  %v7728 = vsel %vm3592, %v7664, %v6473
  %v7729 = vsel %vm3592, %v7665, %v6475
  %v7730 = vsel %vm3592, %v7666, %v6477
  %v7731 = vsel %vm3592, %v7667, %v6479
  %v7732 = vsel %vm3592, %v7668, %v6481
  %v7733 = vsel %vm3592, %v7669, %v6483
  %v7734 = vsel %vm3592, %v7670, %v6485
  %v7735 = vsel %vm3592, %v7671, %v6487
  %v7736 = vsel %vm3592, %v7672, %v6489
  %v7737 = vsel %vm3592, %v7673, %v6491
  %v7738 = vsel %vm3592, %v7674, %v6493
  %v7739 = vsel %vm3592, %v7675, %v6495
  %v7740 = vsel %vm3592, %v7676, %v6497
  %v7741 = vsel %vm3592, %v7677, %v6499
  %v7742 = vsel %vm3592, %v7678, %v6501
  %v7743 = vsel %vm3592, %v7679, %v6503
  %v7744 = vsel %vm3592, %v7680, %v6505
  %v7745 = vsel %vm3592, %v7681, %v6507
  %v7746 = vsel %vm3592, %v7682, %v6509
  %v7747 = vsel %vm3592, %v7683, %v6511
  %v7748 = vsel %vm3592, %v7684, %v6513
  %v7749 = vsel %vm3592, %v7685, %v6515
  %v7750 = vsel %vm3592, %v7686, %v6517
  %v7751 = vsel %vm3592, %v7687, %v6519
  %v7752 = vsel %vm3592, %v7688, %v6521
  %v7753 = vsel %vm3592, %v7689, %v6523
  %v7754 = vsel %vm3592, %v7690, %v6525
  %v7755 = vsel %vm3592, %v7691, %v6527
  %v7756 = vsel %vm3592, %v7692, %v6529
  %v7757 = vsel %vm3592, %v7693, %v6531
  %v7758 = vsel %vm3592, %v7694, %v6533
  %v7759 = vsel %vm3592, %v7695, %v6535
  %v7760 = vsel %vm3592, %v7696, %v6537
  %v7761 = vsel %vm3592, %v7697, %v6539
  %v7762 = vsel %vm3592, %v7698, %v6541
  %v7763 = vsel %vm3592, %v7699, %v6543
  %v7764 = vsel %vm3592, %v7700, %v6545
  %v7765 = vsel %vm3592, %v7701, %v6547
  %v7766 = vsel %vm3592, %v7702, %v6549
  %v7767 = vsel %vm3592, %v7703, %v6551
  %v7768 = vsel %vm3657, %v7704, %v6681
  %v7769 = vsel %vm3657, %v7705, %v6683
  %v7770 = vsel %vm3657, %v7706, %v6685
  %v7771 = vsel %vm3657, %v7707, %v6687
  %v7772 = vsel %vm3657, %v7708, %v6689
  %v7773 = vsel %vm3657, %v7709, %v6691
  %v7774 = vsel %vm3657, %v7710, %v6693
  %v7775 = vsel %vm3657, %v7711, %v6695
  %v7776 = vsel %vm3657, %v7712, %v6697
  %v7777 = vsel %vm3657, %v7713, %v6699
  %v7778 = vsel %vm3657, %v7714, %v6701
  %v7779 = vsel %vm3657, %v7715, %v6703
  %v7780 = vsel %vm3657, %v7716, %v6705
  %v7781 = vsel %vm3657, %v7717, %v6707
  %v7782 = vsel %vm3657, %v7718, %v6709
  %v7783 = vsel %vm3657, %v7719, %v6711
  %v7784 = vsel %vm3657, %v7720, %v6713
  %v7785 = vsel %vm3657, %v7721, %v6715
  %v7786 = vsel %vm3657, %v7722, %v6717
  %v7787 = vsel %vm3657, %v7723, %v6719
  %v7788 = vsel %vm3657, %v7724, %v6721
  %v7789 = vsel %vm3657, %v7725, %v6723
  %v7790 = vsel %vm3657, %v7726, %v6725
  %v7791 = vsel %vm3657, %v7727, %v6727
  %v7792 = vsel %vm3657, %v7728, %v6729
  %v7793 = vsel %vm3657, %v7729, %v6731
  %v7794 = vsel %vm3657, %v7730, %v6733
  %v7795 = vsel %vm3657, %v7731, %v6735
  %v7796 = vsel %vm3657, %v7732, %v6737
  %v7797 = vsel %vm3657, %v7733, %v6739
  %v7798 = vsel %vm3657, %v7734, %v6741
  %v7799 = vsel %vm3657, %v7735, %v6743
  %v7800 = vsel %vm3657, %v7736, %v6745
  %v7801 = vsel %vm3657, %v7737, %v6747
  %v7802 = vsel %vm3657, %v7738, %v6749
  %v7803 = vsel %vm3657, %v7739, %v6751
  %v7804 = vsel %vm3657, %v7740, %v6753
  %v7805 = vsel %vm3657, %v7741, %v6755
  %v7806 = vsel %vm3657, %v7742, %v6757
  %v7807 = vsel %vm3657, %v7743, %v6759
  %v7808 = vsel %vm3657, %v7744, %v6761
  %v7809 = vsel %vm3657, %v7745, %v6763
  %v7810 = vsel %vm3657, %v7746, %v6765
  %v7811 = vsel %vm3657, %v7747, %v6767
  %v7812 = vsel %vm3657, %v7748, %v6769
  %v7813 = vsel %vm3657, %v7749, %v6771
  %v7814 = vsel %vm3657, %v7750, %v6773
  %v7815 = vsel %vm3657, %v7751, %v6775
  %v7816 = vsel %vm3657, %v7752, %v6777
  %v7817 = vsel %vm3657, %v7753, %v6779
  %v7818 = vsel %vm3657, %v7754, %v6781
  %v7819 = vsel %vm3657, %v7755, %v6783
  %v7820 = vsel %vm3657, %v7756, %v6785
  %v7821 = vsel %vm3657, %v7757, %v6787
  %v7822 = vsel %vm3657, %v7758, %v6789
  %v7823 = vsel %vm3657, %v7759, %v6791
  %v7824 = vsel %vm3657, %v7760, %v6793
  %v7825 = vsel %vm3657, %v7761, %v6795
  %v7826 = vsel %vm3657, %v7762, %v6797
  %v7827 = vsel %vm3657, %v7763, %v6799
  %v7828 = vsel %vm3657, %v7764, %v6801
  %v7829 = vsel %vm3657, %v7765, %v6803
  %v7830 = vsel %vm3657, %v7766, %v6805
  %v7831 = vsel %vm3657, %v7767, %v6807
  %v7832 = vsel %vm62, %v5784, %v6937
  %v7833 = vsel %vm62, %v5785, %v6939
  %v7834 = vsel %vm62, %v5786, %v6941
  %v7835 = vsel %vm62, %v5787, %v6943
  %v7836 = vsel %vm62, %v5788, %v6945
  %v7837 = vsel %vm62, %v5789, %v6947
  %v7838 = vsel %vm62, %v5790, %v6949
  %v7839 = vsel %vm62, %v5791, %v6951
  %v7840 = vsel %vm62, %v5792, %v6953
  %v7841 = vsel %vm62, %v5793, %v6955
  %v7842 = vsel %vm62, %v5794, %v6957
  %v7843 = vsel %vm62, %v5795, %v6959
  %v7844 = vsel %vm62, %v5796, %v6961
  %v7845 = vsel %vm62, %v5797, %v6963
  %v7846 = vsel %vm62, %v5798, %v6965
  %v7847 = vsel %vm62, %v5799, %v6967
  %v7848 = vsel %vm62, %v5800, %v6969
  %v7849 = vsel %vm62, %v5801, %v6971
  %v7850 = vsel %vm62, %v5802, %v6973
  %v7851 = vsel %vm62, %v5803, %v6975
  %v7852 = vsel %vm62, %v5804, %v6977
  %v7853 = vsel %vm62, %v5805, %v6979
  %v7854 = vsel %vm62, %v5806, %v6981
  %v7855 = vsel %vm62, %v5807, %v6983
  %v7856 = vsel %vm62, %v5808, %v6985
  %v7857 = vsel %vm62, %v5809, %v6987
  %v7858 = vsel %vm62, %v5810, %v6989
  %v7859 = vsel %vm62, %v5811, %v6991
  %v7860 = vsel %vm62, %v5812, %v6993
  %v7861 = vsel %vm62, %v5813, %v6995
  %v7862 = vsel %vm62, %v5814, %v6997
  %v7863 = vsel %vm62, %v5815, %v6999
  %v7864 = vsel %vm62, %v5816, %v7001
  %v7865 = vsel %vm62, %v5817, %v7003
  %v7866 = vsel %vm62, %v5818, %v7005
  %v7867 = vsel %vm62, %v5819, %v7007
  %v7868 = vsel %vm62, %v5820, %v7009
  %v7869 = vsel %vm62, %v5821, %v7011
  %v7870 = vsel %vm62, %v5822, %v7013
  %v7871 = vsel %vm62, %v5823, %v7015
  %v7872 = vsel %vm62, %v5824, %v7017
  %v7873 = vsel %vm62, %v5825, %v7019
  %v7874 = vsel %vm62, %v5826, %v7021
  %v7875 = vsel %vm62, %v5827, %v7023
  %v7876 = vsel %vm62, %v5828, %v7025
  %v7877 = vsel %vm62, %v5829, %v7027
  %v7878 = vsel %vm62, %v5830, %v7029
  %v7879 = vsel %vm62, %v5831, %v7031
  %v7880 = vsel %vm62, %v5832, %v7033
  %v7881 = vsel %vm62, %v5833, %v7035
  %v7882 = vsel %vm62, %v5834, %v7037
  %v7883 = vsel %vm62, %v5835, %v7039
  %v7884 = vsel %vm62, %v5836, %v7041
  %v7885 = vsel %vm62, %v5837, %v7043
  %v7886 = vsel %vm62, %v5838, %v7045
  %v7887 = vsel %vm62, %v5839, %v7047
  %v7888 = vsel %vm62, %v5840, %v7049
  %v7889 = vsel %vm62, %v5841, %v7051
  %v7890 = vsel %vm62, %v5842, %v7053
  %v7891 = vsel %vm62, %v5843, %v7055
  %v7892 = vsel %vm62, %v5844, %v7057
  %v7893 = vsel %vm62, %v5845, %v7059
  %v7894 = vsel %vm62, %v5846, %v7061
  %v7895 = vsel %vm62, %v5847, %v7063
  %v7896 = vsel %vm3592, %v7832, %v7193
  %v7897 = vsel %vm3592, %v7833, %v7195
  %v7898 = vsel %vm3592, %v7834, %v7197
  %v7899 = vsel %vm3592, %v7835, %v7199
  %v7900 = vsel %vm3592, %v7836, %v7201
  %v7901 = vsel %vm3592, %v7837, %v7203
  %v7902 = vsel %vm3592, %v7838, %v7205
  %v7903 = vsel %vm3592, %v7839, %v7207
  %v7904 = vsel %vm3592, %v7840, %v7209
  %v7905 = vsel %vm3592, %v7841, %v7211
  %v7906 = vsel %vm3592, %v7842, %v7213
  %v7907 = vsel %vm3592, %v7843, %v7215
  %v7908 = vsel %vm3592, %v7844, %v7217
  %v7909 = vsel %vm3592, %v7845, %v7219
  %v7910 = vsel %vm3592, %v7846, %v7221
  %v7911 = vsel %vm3592, %v7847, %v7223
  %v7912 = vsel %vm3592, %v7848, %v7225
  %v7913 = vsel %vm3592, %v7849, %v7227
  %v7914 = vsel %vm3592, %v7850, %v7229
  %v7915 = vsel %vm3592, %v7851, %v7231
  %v7916 = vsel %vm3592, %v7852, %v7233
  %v7917 = vsel %vm3592, %v7853, %v7235
  %v7918 = vsel %vm3592, %v7854, %v7237
  %v7919 = vsel %vm3592, %v7855, %v7239
  %v7920 = vsel %vm3592, %v7856, %v7241
  %v7921 = vsel %vm3592, %v7857, %v7243
  %v7922 = vsel %vm3592, %v7858, %v7245
  %v7923 = vsel %vm3592, %v7859, %v7247
  %v7924 = vsel %vm3592, %v7860, %v7249
  %v7925 = vsel %vm3592, %v7861, %v7251
  %v7926 = vsel %vm3592, %v7862, %v7253
  %v7927 = vsel %vm3592, %v7863, %v7255
  %v7928 = vsel %vm3592, %v7864, %v7257
  %v7929 = vsel %vm3592, %v7865, %v7259
  %v7930 = vsel %vm3592, %v7866, %v7261
  %v7931 = vsel %vm3592, %v7867, %v7263
  %v7932 = vsel %vm3592, %v7868, %v7265
  %v7933 = vsel %vm3592, %v7869, %v7267
  %v7934 = vsel %vm3592, %v7870, %v7269
  %v7935 = vsel %vm3592, %v7871, %v7271
  %v7936 = vsel %vm3592, %v7872, %v7273
  %v7937 = vsel %vm3592, %v7873, %v7275
  %v7938 = vsel %vm3592, %v7874, %v7277
  %v7939 = vsel %vm3592, %v7875, %v7279
  %v7940 = vsel %vm3592, %v7876, %v7281
  %v7941 = vsel %vm3592, %v7877, %v7283
  %v7942 = vsel %vm3592, %v7878, %v7285
  %v7943 = vsel %vm3592, %v7879, %v7287
  %v7944 = vsel %vm3592, %v7880, %v7289
  %v7945 = vsel %vm3592, %v7881, %v7291
  %v7946 = vsel %vm3592, %v7882, %v7293
  %v7947 = vsel %vm3592, %v7883, %v7295
  %v7948 = vsel %vm3592, %v7884, %v7297
  %v7949 = vsel %vm3592, %v7885, %v7299
  %v7950 = vsel %vm3592, %v7886, %v7301
  %v7951 = vsel %vm3592, %v7887, %v7303
  %v7952 = vsel %vm3592, %v7888, %v7305
  %v7953 = vsel %vm3592, %v7889, %v7307
  %v7954 = vsel %vm3592, %v7890, %v7309
  %v7955 = vsel %vm3592, %v7891, %v7311
  %v7956 = vsel %vm3592, %v7892, %v7313
  %v7957 = vsel %vm3592, %v7893, %v7315
  %v7958 = vsel %vm3592, %v7894, %v7317
  %v7959 = vsel %vm3592, %v7895, %v7319
  %v7960 = vsel %vm3657, %v7896, %v7449
  %v7961 = vsel %vm3657, %v7897, %v7451
  %v7962 = vsel %vm3657, %v7898, %v7453
  %v7963 = vsel %vm3657, %v7899, %v7455
  %v7964 = vsel %vm3657, %v7900, %v7457
  %v7965 = vsel %vm3657, %v7901, %v7459
  %v7966 = vsel %vm3657, %v7902, %v7461
  %v7967 = vsel %vm3657, %v7903, %v7463
  %v7968 = vsel %vm3657, %v7904, %v7465
  %v7969 = vsel %vm3657, %v7905, %v7467
  %v7970 = vsel %vm3657, %v7906, %v7469
  %v7971 = vsel %vm3657, %v7907, %v7471
  %v7972 = vsel %vm3657, %v7908, %v7473
  %v7973 = vsel %vm3657, %v7909, %v7475
  %v7974 = vsel %vm3657, %v7910, %v7477
  %v7975 = vsel %vm3657, %v7911, %v7479
  %v7976 = vsel %vm3657, %v7912, %v7481
  %v7977 = vsel %vm3657, %v7913, %v7483
  %v7978 = vsel %vm3657, %v7914, %v7485
  %v7979 = vsel %vm3657, %v7915, %v7487
  %v7980 = vsel %vm3657, %v7916, %v7489
  %v7981 = vsel %vm3657, %v7917, %v7491
  %v7982 = vsel %vm3657, %v7918, %v7493
  %v7983 = vsel %vm3657, %v7919, %v7495
  %v7984 = vsel %vm3657, %v7920, %v7497
  %v7985 = vsel %vm3657, %v7921, %v7499
  %v7986 = vsel %vm3657, %v7922, %v7501
  %v7987 = vsel %vm3657, %v7923, %v7503
  %v7988 = vsel %vm3657, %v7924, %v7505
  %v7989 = vsel %vm3657, %v7925, %v7507
  %v7990 = vsel %vm3657, %v7926, %v7509
  %v7991 = vsel %vm3657, %v7927, %v7511
  %v7992 = vsel %vm3657, %v7928, %v7513
  %v7993 = vsel %vm3657, %v7929, %v7515
  %v7994 = vsel %vm3657, %v7930, %v7517
  %v7995 = vsel %vm3657, %v7931, %v7519
  %v7996 = vsel %vm3657, %v7932, %v7521
  %v7997 = vsel %vm3657, %v7933, %v7523
  %v7998 = vsel %vm3657, %v7934, %v7525
  %v7999 = vsel %vm3657, %v7935, %v7527
  %v8000 = vsel %vm3657, %v7936, %v7529
  %v8001 = vsel %vm3657, %v7937, %v7531
  %v8002 = vsel %vm3657, %v7938, %v7533
  %v8003 = vsel %vm3657, %v7939, %v7535
  %v8004 = vsel %vm3657, %v7940, %v7537
  %v8005 = vsel %vm3657, %v7941, %v7539
  %v8006 = vsel %vm3657, %v7942, %v7541
  %v8007 = vsel %vm3657, %v7943, %v7543
  %v8008 = vsel %vm3657, %v7944, %v7545
  %v8009 = vsel %vm3657, %v7945, %v7547
  %v8010 = vsel %vm3657, %v7946, %v7549
  %v8011 = vsel %vm3657, %v7947, %v7551
  %v8012 = vsel %vm3657, %v7948, %v7553
  %v8013 = vsel %vm3657, %v7949, %v7555
  %v8014 = vsel %vm3657, %v7950, %v7557
  %v8015 = vsel %vm3657, %v7951, %v7559
  %v8016 = vsel %vm3657, %v7952, %v7561
  %v8017 = vsel %vm3657, %v7953, %v7563
  %v8018 = vsel %vm3657, %v7954, %v7565
  %v8019 = vsel %vm3657, %v7955, %v7567
  %v8020 = vsel %vm3657, %v7956, %v7569
  %v8021 = vsel %vm3657, %v7957, %v7571
  %v8022 = vsel %vm3657, %v7958, %v7573
  %v8023 = vsel %vm3657, %v7959, %v7575
  %v8024 = vld [vmem:[%s9] sm:$0xff]
  %v8025 = vld [vmem:[%s9 + $0x8] sm:$0xff]
  %v8026 = vld [vmem:[%s9 + $0x10] sm:$0xff]
  %v8027 = vld [vmem:[%s9 + $0x18] sm:$0xff]
  %v8028 = vld [vmem:[%s9 + $0x20] sm:$0xff]
  %v8029 = vld [vmem:[%s9 + $0x28] sm:$0xff]
  %v8030 = vld [vmem:[%s9 + $0x30] sm:$0xff]
  %v8031 = vld [vmem:[%s9 + $0x38] sm:$0xff]
  %v8032 = vld [vmem:[%s9 + $0x40] sm:$0xff]
  %v8033 = vld [vmem:[%s9 + $0x48] sm:$0xff]
  %v8034 = vld [vmem:[%s9 + $0x50] sm:$0xff]
  %v8035 = vld [vmem:[%s9 + $0x58] sm:$0xff]
  %v8036 = vld [vmem:[%s9 + $0x60] sm:$0xff]
  %v8037 = vld [vmem:[%s9 + $0x68] sm:$0xff]
  %v8038 = vld [vmem:[%s9 + $0x70] sm:$0xff]
  %v8039 = vld [vmem:[%s9 + $0x78] sm:$0xff]
  %v8040 = vld [vmem:[%s9 + $0x80] sm:$0xff]
  %v8041 = vld [vmem:[%s9 + $0x88] sm:$0xff]
  %v8042 = vld [vmem:[%s9 + $0x90] sm:$0xff]
  %v8043 = vld [vmem:[%s9 + $0x98] sm:$0xff]
  %v8044 = vld [vmem:[%s9 + $0xa0] sm:$0xff]
  %v8045 = vld [vmem:[%s9 + $0xa8] sm:$0xff]
  %v8046 = vld [vmem:[%s9 + $0xb0] sm:$0xff]
  %v8047 = vld [vmem:[%s9 + $0xb8] sm:$0xff]
  %v8048 = vld [vmem:[%s9 + $0xc0] sm:$0xff]
  %v8049 = vld [vmem:[%s9 + $0xc8] sm:$0xff]
  %v8050 = vld [vmem:[%s9 + $0xd0] sm:$0xff]
  %v8051 = vld [vmem:[%s9 + $0xd8] sm:$0xff]
  %v8052 = vld [vmem:[%s9 + $0xe0] sm:$0xff]
  %v8053 = vld [vmem:[%s9 + $0xe8] sm:$0xff]
  %v8054 = vld [vmem:[%s9 + $0xf0] sm:$0xff]
  %v8055 = vld [vmem:[%s9 + $0xf8] sm:$0xff]
  %v8056 = vld [vmem:[%s9 + $0x100] sm:$0xff]
  %v8057 = vld [vmem:[%s9 + $0x108] sm:$0xff]
  %v8058 = vld [vmem:[%s9 + $0x110] sm:$0xff]
  %v8059 = vld [vmem:[%s9 + $0x118] sm:$0xff]
  %v8060 = vld [vmem:[%s10] sm:$0x1]
  %v8062 = vlaneseq
  %v8063 = vshrl.u32 %v8062, 7
  %v8064 = vsub.s32 0, %v8063
  %v8065 = vrot.slane %v8060, %v8064
  %v8068 = vsel %vm62, %v6040, 0
  %v8071 = vsel %vm62, %v6041, 0
  %v8074 = vsel %vm62, %v6042, 0
  %v8077 = vsel %vm62, %v6043, 0
  %v8080 = vsel %vm62, %v6044, 0
  %v8083 = vsel %vm62, %v6045, 0
  %v8086 = vsel %vm62, %v6046, 0
  %v8089 = vsel %vm62, %v6047, 0
  %v8092 = vsel %vm62, %v6048, 0
  %v8095 = vsel %vm62, %v6049, 0
  %v8098 = vsel %vm62, %v6050, 0
  %v8101 = vsel %vm62, %v6051, 0
  %v8104 = vsel %vm62, %v6052, 0
  %v8107 = vsel %vm62, %v6053, 0
  %v8110 = vsel %vm62, %v6054, 0
  %v8113 = vsel %vm62, %v6055, 0
  %v8116 = vsel %vm62, %v6056, 0
  %v8119 = vsel %vm62, %v6057, 0
  %v8122 = vsel %vm62, %v6058, 0
  %v8125 = vsel %vm62, %v6059, 0
  %v8128 = vsel %vm62, %v6060, 0
  %v8131 = vsel %vm62, %v6061, 0
  %v8134 = vsel %vm62, %v6062, 0
  %v8137 = vsel %vm62, %v6063, 0
  %v8140 = vsel %vm62, %v6064, 0
  %v8143 = vsel %vm62, %v6065, 0
  %v8146 = vsel %vm62, %v6066, 0
  %v8149 = vsel %vm62, %v6067, 0
  %v8152 = vsel %vm62, %v6068, 0
  %v8155 = vsel %vm62, %v6069, 0
  %v8158 = vsel %vm62, %v6070, 0
  %v8161 = vsel %vm62, %v6071, 0
  %v8164 = vsel %vm62, %v6072, 0
  %v8167 = vsel %vm62, %v6073, 0
  %v8170 = vsel %vm62, %v6074, 0
  %v8173 = vsel %vm62, %v6075, 0
  %v8176 = vsel %vm62, %v6076, 0
  %v8179 = vsel %vm62, %v6077, 0
  %v8182 = vsel %vm62, %v6078, 0
  %v8185 = vsel %vm62, %v6079, 0
  %v8188 = vsel %vm62, %v6080, 0
  %v8191 = vsel %vm62, %v6081, 0
  %v8194 = vsel %vm62, %v6082, 0
  %v8197 = vsel %vm62, %v6083, 0
  %v8200 = vsel %vm62, %v6084, 0
  %v8203 = vsel %vm62, %v6085, 0
  %v8206 = vsel %vm62, %v6086, 0
  %v8209 = vsel %vm62, %v6087, 0
  %v8212 = vsel %vm62, %v6088, 0
  %v8215 = vsel %vm62, %v6089, 0
  %v8218 = vsel %vm62, %v6090, 0
  %v8221 = vsel %vm62, %v6091, 0
  %v8224 = vsel %vm62, %v6092, 0
  %v8227 = vsel %vm62, %v6093, 0
  %v8230 = vsel %vm62, %v6094, 0
  %v8233 = vsel %vm62, %v6095, 0
  %v8236 = vsel %vm62, %v6096, 0
  %v8239 = vsel %vm62, %v6097, 0
  %v8242 = vsel %vm62, %v6098, 0
  %v8245 = vsel %vm62, %v6099, 0
  %v8248 = vsel %vm62, %v6100, 0
  %v8251 = vsel %vm62, %v6101, 0
  %v8254 = vsel %vm62, %v6102, 0
  %v8257 = vsel %vm62, %v6103, 0
  %8259 = vmatprep.subr.mxu0 0.0
  %8260 = vmatpush1.msra.mxu0 %v8024
  %8261 = vmatprep.subr.mxu0 0.0
  %8262 = vmatpush1.msra.mxu0 %v8025
  %8263 = vmatprep.subr.mxu0 0.0
  %8264 = vmatpush1.msra.mxu0 %v8026
  %8265 = vmatprep.subr.mxu0 0.0
  %8266 = vmatpush1.msra.mxu0 %v8027
  %8267 = vmatprep.subr.mxu0 0.0
  %8268 = vmatpush1.msra.mxu0 %v8028
  %8269 = vmatprep.subr.mxu0 0.0
  %8270 = vmatpush1.msra.mxu0 %v8029
  %8271 = vmatprep.subr.mxu0 0.0
  %8272 = vmatpush1.msra.mxu0 %v8030
  %8273 = vmatprep.subr.mxu0 0.0
  %8274 = vmatpush1.msra.mxu0 %v8031
  %8275 = vmatprep.subr.mxu0 0.0
  %8276 = vmatpush1.msra.mxu0 %v8032
  %8277 = vmatprep.subr.mxu0 0.0
  %8278 = vmatpush1.msra.mxu0 %v8033
  %8279 = vmatprep.subr.mxu0 0.0
  %8280 = vmatpush1.msra.mxu0 %v8034
  %8281 = vmatprep.subr.mxu0 0.0
  %8282 = vmatpush1.msra.mxu0 %v8035
  %8283 = vmatprep.subr.mxu0 0.0
  %8284 = vmatpush1.msra.mxu0 %v8036
  %8285 = vmatprep.subr.mxu0 0.0
  %8286 = vmatpush1.msra.mxu0 %v8037
  %8287 = vmatprep.subr.mxu0 0.0
  %8288 = vmatpush1.msra.mxu0 %v8038
  %8289 = vmatprep.subr.mxu0 0.0
  %8290 = vmatpush1.msra.mxu0 %v8039
  %8291 = vmatprep.subr.mxu0 0.0
  %8292 = vmatpush1.msra.mxu0 %v8040
  %8293 = vmatprep.subr.mxu0 0.0
  %8294 = vmatpush1.msra.mxu0 %v8041
  %8295 = vmatprep.subr.mxu0 0.0
  %8296 = vmatpush1.msra.mxu0 %v8042
  %8297 = vmatprep.subr.mxu0 0.0
  %8298 = vmatpush1.msra.mxu0 %v8043
  %8299 = vmatprep.subr.mxu0 0.0
  %8300 = vmatpush1.msra.mxu0 %v8044
  %8301 = vmatprep.subr.mxu0 0.0
  %8302 = vmatpush1.msra.mxu0 %v8045
  %8303 = vmatprep.subr.mxu0 0.0
  %8304 = vmatpush1.msra.mxu0 %v8046
  %8305 = vmatprep.subr.mxu0 0.0
  %8306 = vmatpush1.msra.mxu0 %v8047
  %8307 = vmatprep.subr.mxu0 0.0
  %8308 = vmatpush1.msra.mxu0 %v8048
  %8309 = vmatprep.subr.mxu0 0.0
  %8310 = vmatpush1.msra.mxu0 %v8049
  %8311 = vmatprep.subr.mxu0 0.0
  %8312 = vmatpush1.msra.mxu0 %v8050
  %8313 = vmatprep.subr.mxu0 0.0
  %8314 = vmatpush1.msra.mxu0 %v8051
  %8315 = vmatprep.subr.mxu0 0.0
  %8316 = vmatpush1.msra.mxu0 %v8052
  %8317 = vmatprep.subr.mxu0 0.0
  %8318 = vmatpush1.msra.mxu0 %v8053
  %8319 = vmatprep.subr.mxu0 0.0
  %8320 = vmatpush1.msra.mxu0 %v8054
  %8321 = vmatprep.subr.mxu0 0.0
  %8322 = vmatpush1.msra.mxu0 %v8055
  %8323 = vmatprep.mubr.f32.mxu0 %v7960
  %8324 = vmatmul.mubr.f32.gmra.mrb[0].mxu0 %v7768
  %v8325 = vpop.f32.mrb[0].mxu0
  %v8326 = vadd.f32 %v8065, %v8325
  %v8327 = vpop.f32.mrb[0].mxu0
  %8328 = vmatprep.mubr.f32.mxu0 %v7961
  %8329 = vmatmul.mubr.f32.gmra.mrb[0].mxu0 %v7769
  %v8330 = vpop.f32.mrb[0].mxu0
  %v8331 = vadd.f32 %v8065, %v8330
  %v8332 = vpop.f32.mrb[0].mxu0
  %8333 = vmatprep.mubr.f32.mxu0 %v7962
  %8334 = vmatmul.mubr.f32.gmra.mrb[0].mxu0 %v7770
  %v8335 = vpop.f32.mrb[0].mxu0
  %v8336 = vadd.f32 %v8065, %v8335
  %v8337 = vpop.f32.mrb[0].mxu0
  %8338 = vmatprep.mubr.f32.mxu0 %v7963
  %8339 = vmatmul.mubr.f32.gmra.mrb[0].mxu0 %v7771
  %v8340 = vpop.f32.mrb[0].mxu0
  %v8341 = vadd.f32 %v8065, %v8340
  %v8342 = vpop.f32.mrb[0].mxu0
  %8343 = vmatprep.mubr.f32.mxu0 %v7964
  %8344 = vmatmul.mubr.f32.gmra.mrb[0].mxu0 %v7772
  %v8345 = vpop.f32.mrb[0].mxu0
  %v8346 = vadd.f32 %v8065, %v8345
  %v8347 = vpop.f32.mrb[0].mxu0
  %8348 = vmatprep.mubr.f32.mxu0 %v7965
  %8349 = vmatmul.mubr.f32.gmra.mrb[0].mxu0 %v7773
  %v8350 = vpop.f32.mrb[0].mxu0
  %v8351 = vadd.f32 %v8065, %v8350
  %v8352 = vpop.f32.mrb[0].mxu0
  %8353 = vmatprep.mubr.f32.mxu0 %v7966
  %8354 = vmatmul.mubr.f32.gmra.mrb[0].mxu0 %v7774
  %v8355 = vpop.f32.mrb[0].mxu0
  %v8356 = vadd.f32 %v8065, %v8355
  %v8357 = vpop.f32.mrb[0].mxu0
  %8358 = vmatprep.mubr.f32.mxu0 %v7967
  %8359 = vmatmul.mubr.f32.gmra.mrb[0].mxu0 %v7775
  %v8360 = vpop.f32.mrb[0].mxu0
  %v8361 = vadd.f32 %v8065, %v8360
  %v8362 = vpop.f32.mrb[0].mxu0
  %8363 = vmatprep.mubr.f32.mxu0 %v7968
  %8364 = vmatmul.mubr.f32.gmra.mrb[0].mxu0 %v7776
  %v8365 = vpop.f32.mrb[0].mxu0
  %v8366 = vadd.f32 %v8065, %v8365
  %v8367 = vpop.f32.mrb[0].mxu0
  %8368 = vmatprep.mubr.f32.mxu0 %v7969
  %8369 = vmatmul.mubr.f32.gmra.mrb[0].mxu0 %v7777
  %v8370 = vpop.f32.mrb[0].mxu0
  %v8371 = vadd.f32 %v8065, %v8370
  %v8372 = vpop.f32.mrb[0].mxu0
  %8373 = vmatprep.mubr.f32.mxu0 %v7970
  %8374 = vmatmul.mubr.f32.gmra.mrb[0].mxu0 %v7778
  %v8375 = vpop.f32.mrb[0].mxu0
  %v8376 = vadd.f32 %v8065, %v8375
  %v8377 = vpop.f32.mrb[0].mxu0
  %8378 = vmatprep.mubr.f32.mxu0 %v7971
  %8379 = vmatmul.mubr.f32.gmra.mrb[0].mxu0 %v7779
  %v8380 = vpop.f32.mrb[0].mxu0
  %v8381 = vadd.f32 %v8065, %v8380
  %v8382 = vpop.f32.mrb[0].mxu0
  %8383 = vmatprep.mubr.f32.mxu0 %v7972
  %8384 = vmatmul.mubr.f32.gmra.mrb[0].mxu0 %v7780
  %v8385 = vpop.f32.mrb[0].mxu0
  %v8386 = vadd.f32 %v8065, %v8385
  %v8387 = vpop.f32.mrb[0].mxu0
  %8388 = vmatprep.mubr.f32.mxu0 %v7973
  %8389 = vmatmul.mubr.f32.gmra.mrb[0].mxu0 %v7781
  %v8390 = vpop.f32.mrb[0].mxu0
  %v8391 = vadd.f32 %v8065, %v8390
  %v8392 = vpop.f32.mrb[0].mxu0
  %8393 = vmatprep.mubr.f32.mxu0 %v7974
  %8394 = vmatmul.mubr.f32.gmra.mrb[0].mxu0 %v7782
  %v8395 = vpop.f32.mrb[0].mxu0
  %v8396 = vadd.f32 %v8065, %v8395
  %v8397 = vpop.f32.mrb[0].mxu0
  %8398 = vmatprep.mubr.f32.mxu0 %v7975
  %8399 = vmatmul.mubr.f32.gmra.mrb[0].mxu0 %v7783
  %v8400 = vpop.f32.mrb[0].mxu0
  %v8401 = vadd.f32 %v8065, %v8400
  %v8402 = vpop.f32.mrb[0].mxu0
  %8403 = vmatprep.mubr.f32.mxu0 %v7976
  %8404 = vmatmul.mubr.f32.gmra.mrb[0].mxu0 %v7784
  %v8405 = vpop.f32.mrb[0].mxu0
  %v8406 = vadd.f32 %v8065, %v8405
  %v8407 = vpop.f32.mrb[0].mxu0
  %8408 = vmatprep.mubr.f32.mxu0 %v7977
  %8409 = vmatmul.mubr.f32.gmra.mrb[0].mxu0 %v7785
  %v8410 = vpop.f32.mrb[0].mxu0
  %v8411 = vadd.f32 %v8065, %v8410
  %v8412 = vpop.f32.mrb[0].mxu0
  %8413 = vmatprep.mubr.f32.mxu0 %v7978
  %8414 = vmatmul.mubr.f32.gmra.mrb[0].mxu0 %v7786
  %v8415 = vpop.f32.mrb[0].mxu0
  %v8416 = vadd.f32 %v8065, %v8415
  %v8417 = vpop.f32.mrb[0].mxu0
  %8418 = vmatprep.mubr.f32.mxu0 %v7979
  %8419 = vmatmul.mubr.f32.gmra.mrb[0].mxu0 %v7787
  %v8420 = vpop.f32.mrb[0].mxu0
  %v8421 = vadd.f32 %v8065, %v8420
  %v8422 = vpop.f32.mrb[0].mxu0
  %8423 = vmatprep.mubr.f32.mxu0 %v7980
  %8424 = vmatmul.mubr.f32.gmra.mrb[0].mxu0 %v7788
  %v8425 = vpop.f32.mrb[0].mxu0
  %v8426 = vadd.f32 %v8065, %v8425
  %v8427 = vpop.f32.mrb[0].mxu0
  %8428 = vmatprep.mubr.f32.mxu0 %v7981
  %8429 = vmatmul.mubr.f32.gmra.mrb[0].mxu0 %v7789
  %v8430 = vpop.f32.mrb[0].mxu0
  %v8431 = vadd.f32 %v8065, %v8430
  %v8432 = vpop.f32.mrb[0].mxu0
  %8433 = vmatprep.mubr.f32.mxu0 %v7982
  %8434 = vmatmul.mubr.f32.gmra.mrb[0].mxu0 %v7790
  %v8435 = vpop.f32.mrb[0].mxu0
  %v8436 = vadd.f32 %v8065, %v8435
  %v8437 = vpop.f32.mrb[0].mxu0
  %8438 = vmatprep.mubr.f32.mxu0 %v7983
  %8439 = vmatmul.mubr.f32.gmra.mrb[0].mxu0 %v7791
  %v8440 = vpop.f32.mrb[0].mxu0
  %v8441 = vadd.f32 %v8065, %v8440
  %v8442 = vpop.f32.mrb[0].mxu0
  %8443 = vmatprep.mubr.f32.mxu0 %v7984
  %8444 = vmatmul.mubr.f32.gmra.mrb[0].mxu0 %v7792
  %v8445 = vpop.f32.mrb[0].mxu0
  %v8446 = vadd.f32 %v8065, %v8445
  %v8447 = vpop.f32.mrb[0].mxu0
  %8448 = vmatprep.mubr.f32.mxu0 %v7985
  %8449 = vmatmul.mubr.f32.gmra.mrb[0].mxu0 %v7793
  %v8450 = vpop.f32.mrb[0].mxu0
  %v8451 = vadd.f32 %v8065, %v8450
  %v8452 = vpop.f32.mrb[0].mxu0
  %8453 = vmatprep.mubr.f32.mxu0 %v7986
  %8454 = vmatmul.mubr.f32.gmra.mrb[0].mxu0 %v7794
  %v8455 = vpop.f32.mrb[0].mxu0
  %v8456 = vadd.f32 %v8065, %v8455
  %v8457 = vpop.f32.mrb[0].mxu0
  %8458 = vmatprep.mubr.f32.mxu0 %v7987
  %8459 = vmatmul.mubr.f32.gmra.mrb[0].mxu0 %v7795
  %v8460 = vpop.f32.mrb[0].mxu0
  %v8461 = vadd.f32 %v8065, %v8460
  %v8462 = vpop.f32.mrb[0].mxu0
  %8463 = vmatprep.mubr.f32.mxu0 %v7988
  %8464 = vmatmul.mubr.f32.gmra.mrb[0].mxu0 %v7796
  %v8465 = vpop.f32.mrb[0].mxu0
  %v8466 = vadd.f32 %v8065, %v8465
  %v8467 = vpop.f32.mrb[0].mxu0
  %8468 = vmatprep.mubr.f32.mxu0 %v7989
  %8469 = vmatmul.mubr.f32.gmra.mrb[0].mxu0 %v7797
  %v8470 = vpop.f32.mrb[0].mxu0
  %v8471 = vadd.f32 %v8065, %v8470
  %v8472 = vpop.f32.mrb[0].mxu0
  %8473 = vmatprep.mubr.f32.mxu0 %v7990
  %8474 = vmatmul.mubr.f32.gmra.mrb[0].mxu0 %v7798
  %v8475 = vpop.f32.mrb[0].mxu0
  %v8476 = vadd.f32 %v8065, %v8475
  %v8477 = vpop.f32.mrb[0].mxu0
  %8478 = vmatprep.mubr.f32.mxu0 %v7991
  %8479 = vmatmul.mubr.f32.gmra.mrb[0].mxu0 %v7799
  %v8480 = vpop.f32.mrb[0].mxu0
  %v8481 = vadd.f32 %v8065, %v8480
  %v8482 = vpop.f32.mrb[0].mxu0
  %8483 = vmatprep.mubr.f32.mxu0 %v7992
  %8484 = vmatmul.mubr.f32.gmra.mrb[0].mxu0 %v7800
  %v8485 = vpop.f32.mrb[0].mxu0
  %v8486 = vadd.f32 %v8065, %v8485
  %v8487 = vpop.f32.mrb[0].mxu0
  %8488 = vmatprep.mubr.f32.mxu0 %v7993
  %8489 = vmatmul.mubr.f32.gmra.mrb[0].mxu0 %v7801
  %v8490 = vpop.f32.mrb[0].mxu0
  %v8491 = vadd.f32 %v8065, %v8490
  %v8492 = vpop.f32.mrb[0].mxu0
  %8493 = vmatprep.mubr.f32.mxu0 %v7994
  %8494 = vmatmul.mubr.f32.gmra.mrb[0].mxu0 %v7802
  %v8495 = vpop.f32.mrb[0].mxu0
  %v8496 = vadd.f32 %v8065, %v8495
  %v8497 = vpop.f32.mrb[0].mxu0
  %8498 = vmatprep.mubr.f32.mxu0 %v7995
  %8499 = vmatmul.mubr.f32.gmra.mrb[0].mxu0 %v7803
  %v8500 = vpop.f32.mrb[0].mxu0
  %v8501 = vadd.f32 %v8065, %v8500
  %v8502 = vpop.f32.mrb[0].mxu0
  %8503 = vmatprep.mubr.f32.mxu0 %v7996
  %8504 = vmatmul.mubr.f32.gmra.mrb[0].mxu0 %v7804
  %v8505 = vpop.f32.mrb[0].mxu0
  %v8506 = vadd.f32 %v8065, %v8505
  %v8507 = vpop.f32.mrb[0].mxu0
  %8508 = vmatprep.mubr.f32.mxu0 %v7997
  %8509 = vmatmul.mubr.f32.gmra.mrb[0].mxu0 %v7805
  %v8510 = vpop.f32.mrb[0].mxu0
  %v8511 = vadd.f32 %v8065, %v8510
  %v8512 = vpop.f32.mrb[0].mxu0
  %8513 = vmatprep.mubr.f32.mxu0 %v7998
  %8514 = vmatmul.mubr.f32.gmra.mrb[0].mxu0 %v7806
  %v8515 = vpop.f32.mrb[0].mxu0
  %v8516 = vadd.f32 %v8065, %v8515
  %v8517 = vpop.f32.mrb[0].mxu0
  %8518 = vmatprep.mubr.f32.mxu0 %v7999
  %8519 = vmatmul.mubr.f32.gmra.mrb[0].mxu0 %v7807
  %v8520 = vpop.f32.mrb[0].mxu0
  %v8521 = vadd.f32 %v8065, %v8520
  %v8522 = vpop.f32.mrb[0].mxu0
  %8523 = vmatprep.mubr.f32.mxu0 %v8000
  %8524 = vmatmul.mubr.f32.gmra.mrb[0].mxu0 %v7808
  %v8525 = vpop.f32.mrb[0].mxu0
  %v8526 = vadd.f32 %v8065, %v8525
  %v8527 = vpop.f32.mrb[0].mxu0
  %8528 = vmatprep.mubr.f32.mxu0 %v8001
  %8529 = vmatmul.mubr.f32.gmra.mrb[0].mxu0 %v7809
  %v8530 = vpop.f32.mrb[0].mxu0
  %v8531 = vadd.f32 %v8065, %v8530
  %v8532 = vpop.f32.mrb[0].mxu0
  %8533 = vmatprep.mubr.f32.mxu0 %v8002
  %8534 = vmatmul.mubr.f32.gmra.mrb[0].mxu0 %v7810
  %v8535 = vpop.f32.mrb[0].mxu0
  %v8536 = vadd.f32 %v8065, %v8535
  %v8537 = vpop.f32.mrb[0].mxu0
  %8538 = vmatprep.mubr.f32.mxu0 %v8003
  %8539 = vmatmul.mubr.f32.gmra.mrb[0].mxu0 %v7811
  %v8540 = vpop.f32.mrb[0].mxu0
  %v8541 = vadd.f32 %v8065, %v8540
  %v8542 = vpop.f32.mrb[0].mxu0
  %8543 = vmatprep.mubr.f32.mxu0 %v8004
  %8544 = vmatmul.mubr.f32.gmra.mrb[0].mxu0 %v7812
  %v8545 = vpop.f32.mrb[0].mxu0
  %v8546 = vadd.f32 %v8065, %v8545
  %v8547 = vpop.f32.mrb[0].mxu0
  %8548 = vmatprep.mubr.f32.mxu0 %v8005
  %8549 = vmatmul.mubr.f32.gmra.mrb[0].mxu0 %v7813
  %v8550 = vpop.f32.mrb[0].mxu0
  %v8551 = vadd.f32 %v8065, %v8550
  %v8552 = vpop.f32.mrb[0].mxu0
  %8553 = vmatprep.mubr.f32.mxu0 %v8006
  %8554 = vmatmul.mubr.f32.gmra.mrb[0].mxu0 %v7814
  %v8555 = vpop.f32.mrb[0].mxu0
  %v8556 = vadd.f32 %v8065, %v8555
  %v8557 = vpop.f32.mrb[0].mxu0
  %8558 = vmatprep.mubr.f32.mxu0 %v8007
  %8559 = vmatmul.mubr.f32.gmra.mrb[0].mxu0 %v7815
  %v8560 = vpop.f32.mrb[0].mxu0
  %v8561 = vadd.f32 %v8065, %v8560
  %v8562 = vpop.f32.mrb[0].mxu0
  %8563 = vmatprep.mubr.f32.mxu0 %v8008
  %8564 = vmatmul.mubr.f32.gmra.mrb[0].mxu0 %v7816
  %v8565 = vpop.f32.mrb[0].mxu0
  %v8566 = vadd.f32 %v8065, %v8565
  %v8567 = vpop.f32.mrb[0].mxu0
  %8568 = vmatprep.mubr.f32.mxu0 %v8009
  %8569 = vmatmul.mubr.f32.gmra.mrb[0].mxu0 %v7817
  %v8570 = vpop.f32.mrb[0].mxu0
  %v8571 = vadd.f32 %v8065, %v8570
  %v8572 = vpop.f32.mrb[0].mxu0
  %8573 = vmatprep.mubr.f32.mxu0 %v8010
  %8574 = vmatmul.mubr.f32.gmra.mrb[0].mxu0 %v7818
  %v8575 = vpop.f32.mrb[0].mxu0
  %v8576 = vadd.f32 %v8065, %v8575
  %v8577 = vpop.f32.mrb[0].mxu0
  %8578 = vmatprep.mubr.f32.mxu0 %v8011
  %8579 = vmatmul.mubr.f32.gmra.mrb[0].mxu0 %v7819
  %v8580 = vpop.f32.mrb[0].mxu0
  %v8581 = vadd.f32 %v8065, %v8580
  %v8582 = vpop.f32.mrb[0].mxu0
  %8583 = vmatprep.mubr.f32.mxu0 %v8012
  %8584 = vmatmul.mubr.f32.gmra.mrb[0].mxu0 %v7820
  %v8585 = vpop.f32.mrb[0].mxu0
  %v8586 = vadd.f32 %v8065, %v8585
  %v8587 = vpop.f32.mrb[0].mxu0
  %8588 = vmatprep.mubr.f32.mxu0 %v8013
  %8589 = vmatmul.mubr.f32.gmra.mrb[0].mxu0 %v7821
  %v8590 = vpop.f32.mrb[0].mxu0
  %v8591 = vadd.f32 %v8065, %v8590
  %v8592 = vpop.f32.mrb[0].mxu0
  %8593 = vmatprep.mubr.f32.mxu0 %v8014
  %8594 = vmatmul.mubr.f32.gmra.mrb[0].mxu0 %v7822
  %v8595 = vpop.f32.mrb[0].mxu0
  %v8596 = vadd.f32 %v8065, %v8595
  %v8597 = vpop.f32.mrb[0].mxu0
  %8598 = vmatprep.mubr.f32.mxu0 %v8015
  %8599 = vmatmul.mubr.f32.gmra.mrb[0].mxu0 %v7823
  %v8600 = vpop.f32.mrb[0].mxu0
  %v8601 = vadd.f32 %v8065, %v8600
  %v8602 = vpop.f32.mrb[0].mxu0
  %8603 = vmatprep.mubr.f32.mxu0 %v8016
  %8604 = vmatmul.mubr.f32.gmra.mrb[0].mxu0 %v7824
  %v8605 = vpop.f32.mrb[0].mxu0
  %v8606 = vadd.f32 %v8065, %v8605
  %v8607 = vpop.f32.mrb[0].mxu0
  %8608 = vmatprep.mubr.f32.mxu0 %v8017
  %8609 = vmatmul.mubr.f32.gmra.mrb[0].mxu0 %v7825
  %v8610 = vpop.f32.mrb[0].mxu0
  %v8611 = vadd.f32 %v8065, %v8610
  %v8612 = vpop.f32.mrb[0].mxu0
  %8613 = vmatprep.mubr.f32.mxu0 %v8018
  %8614 = vmatmul.mubr.f32.gmra.mrb[0].mxu0 %v7826
  %v8615 = vpop.f32.mrb[0].mxu0
  %v8616 = vadd.f32 %v8065, %v8615
  %v8617 = vpop.f32.mrb[0].mxu0
  %8618 = vmatprep.mubr.f32.mxu0 %v8019
  %8619 = vmatmul.mubr.f32.gmra.mrb[0].mxu0 %v7827
  %v8620 = vpop.f32.mrb[0].mxu0
  %v8621 = vadd.f32 %v8065, %v8620
  %v8622 = vpop.f32.mrb[0].mxu0
  %8623 = vmatprep.mubr.f32.mxu0 %v8020
  %8624 = vmatmul.mubr.f32.gmra.mrb[0].mxu0 %v7828
  %v8625 = vpop.f32.mrb[0].mxu0
  %v8626 = vadd.f32 %v8065, %v8625
  %v8627 = vpop.f32.mrb[0].mxu0
  %8628 = vmatprep.mubr.f32.mxu0 %v8021
  %8629 = vmatmul.mubr.f32.gmra.mrb[0].mxu0 %v7829
  %v8630 = vpop.f32.mrb[0].mxu0
  %v8631 = vadd.f32 %v8065, %v8630
  %v8632 = vpop.f32.mrb[0].mxu0
  %8633 = vmatprep.mubr.f32.mxu0 %v8022
  %8634 = vmatmul.mubr.f32.gmra.mrb[0].mxu0 %v7830
  %v8635 = vpop.f32.mrb[0].mxu0
  %v8636 = vadd.f32 %v8065, %v8635
  %v8637 = vpop.f32.mrb[0].mxu0
  %8638 = vmatprep.mubr.f32.mxu0 %v8023
  %8639 = vmatmul.mubr.f32.gmra.mrb[0].mxu0 %v7831
  %v8640 = vpop.f32.mrb[0].mxu0
  %v8641 = vadd.f32 %v8065, %v8640
  %v8642 = vpop.f32.mrb[0].mxu0
  %8643 = vdwg.mxu0
  %8644 = vmatprep.subr.mxu0 0.0
  %8645 = vmatpush1.msra.mxu0 %v8056
  %8646 = vmatprep.subr.mxu0 0.0
  %8647 = vmatpush1.msra.mxu0 %v8057
  %8648 = vmatprep.subr.mxu0 0.0
  %8649 = vmatpush1.msra.mxu0 %v8058
  %8650 = vmatprep.subr.mxu0 0.0
  %8651 = vmatpush1.msra.mxu0 %v8059
  %8652 = vmatprep.subr.mxu0 0.0
  %8653 = vmatpush1.msra.mxu0 0.0
  %8654 = vmatprep.subr.mxu0 0.0
  %8655 = vmatpush1.msra.mxu0 0.0
  %8656 = vmatprep.subr.mxu0 0.0
  %8657 = vmatpush1.msra.mxu0 0.0
  %8658 = vmatprep.subr.mxu0 0.0
  %8659 = vmatpush1.msra.mxu0 0.0
  %8660 = vmatprep.subr.mxu0 0.0
  %8661 = vmatpush1.msra.mxu0 0.0
  %8662 = vmatprep.subr.mxu0 0.0
  %8663 = vmatpush1.msra.mxu0 0.0
  %8664 = vmatprep.subr.mxu0 0.0
  %8665 = vmatpush1.msra.mxu0 0.0
  %8666 = vmatprep.subr.mxu0 0.0
  %8667 = vmatpush1.msra.mxu0 0.0
  %8668 = vmatprep.subr.mxu0 0.0
  %8669 = vmatpush1.msra.mxu0 0.0
  %8670 = vmatprep.subr.mxu0 0.0
  %8671 = vmatpush1.msra.mxu0 0.0
  %8672 = vmatprep.subr.mxu0 0.0
  %8673 = vmatpush1.msra.mxu0 0.0
  %8674 = vmatprep.subr.mxu0 0.0
  %8675 = vmatpush1.msra.mxu0 0.0
  %8676 = vmatprep.subr.mxu0 0.0
  %8677 = vmatpush1.msra.mxu0 0.0
  %8678 = vmatprep.subr.mxu0 0.0
  %8679 = vmatpush1.msra.mxu0 0.0
  %8680 = vmatprep.subr.mxu0 0.0
  %8681 = vmatpush1.msra.mxu0 0.0
  %8682 = vmatprep.subr.mxu0 0.0
  %8683 = vmatpush1.msra.mxu0 0.0
  %8684 = vmatprep.subr.mxu0 0.0
  %8685 = vmatpush1.msra.mxu0 0.0
  %8686 = vmatprep.subr.mxu0 0.0
  %8687 = vmatpush1.msra.mxu0 0.0
  %8688 = vmatprep.subr.mxu0 0.0
  %8689 = vmatpush1.msra.mxu0 0.0
  %8690 = vmatprep.subr.mxu0 0.0
  %8691 = vmatpush1.msra.mxu0 0.0
  %8692 = vmatprep.subr.mxu0 0.0
  %8693 = vmatpush1.msra.mxu0 0.0
  %8694 = vmatprep.subr.mxu0 0.0
  %8695 = vmatpush1.msra.mxu0 0.0
  %8696 = vmatprep.subr.mxu0 0.0
  %8697 = vmatpush1.msra.mxu0 0.0
  %8698 = vmatprep.subr.mxu0 0.0
  %8699 = vmatpush1.msra.mxu0 0.0
  %8700 = vmatprep.subr.mxu0 0.0
  %8701 = vmatpush1.msra.mxu0 0.0
  %8702 = vmatprep.subr.mxu0 0.0
  %8703 = vmatpush1.msra.mxu0 0.0
  %8704 = vmatprep.subr.mxu0 0.0
  %8705 = vmatpush1.msra.mxu0 0.0
  %8706 = vmatprep.subr.mxu0 0.0
  %8707 = vmatpush1.msra.mxu0 0.0
  %8708 = vmatprep.mubr.f32.mxu0 0.0
  %8709 = vmatmul.mubr.f32.gmra.mrb[0].mxu0 %v8068
  %v8710 = vpop.f32.mrb[0].mxu0
  %v8711 = vadd.f32 %v8326, %v8710
  %v8712 = vpop.f32.mrb[0].mxu0
  %8713 = vmatprep.mubr.f32.mxu0 0.0
  %8714 = vmatmul.mubr.f32.gmra.mrb[0].mxu0 %v8071
  %v8715 = vpop.f32.mrb[0].mxu0
  %v8716 = vadd.f32 %v8331, %v8715
  %v8717 = vpop.f32.mrb[0].mxu0
  %8718 = vmatprep.mubr.f32.mxu0 0.0
  %8719 = vmatmul.mubr.f32.gmra.mrb[0].mxu0 %v8074
  %v8720 = vpop.f32.mrb[0].mxu0
  %v8721 = vadd.f32 %v8336, %v8720
  %v8722 = vpop.f32.mrb[0].mxu0
  %8723 = vmatprep.mubr.f32.mxu0 0.0
  %8724 = vmatmul.mubr.f32.gmra.mrb[0].mxu0 %v8077
  %v8725 = vpop.f32.mrb[0].mxu0
  %v8726 = vadd.f32 %v8341, %v8725
  %v8727 = vpop.f32.mrb[0].mxu0
  %8728 = vmatprep.mubr.f32.mxu0 0.0
  %8729 = vmatmul.mubr.f32.gmra.mrb[0].mxu0 %v8080
  %v8730 = vpop.f32.mrb[0].mxu0
  %v8731 = vadd.f32 %v8346, %v8730
  %v8732 = vpop.f32.mrb[0].mxu0
  %8733 = vmatprep.mubr.f32.mxu0 0.0
  %8734 = vmatmul.mubr.f32.gmra.mrb[0].mxu0 %v8083
  %v8735 = vpop.f32.mrb[0].mxu0
  %v8736 = vadd.f32 %v8351, %v8735
  %v8737 = vpop.f32.mrb[0].mxu0
  %8738 = vmatprep.mubr.f32.mxu0 0.0
  %8739 = vmatmul.mubr.f32.gmra.mrb[0].mxu0 %v8086
  %v8740 = vpop.f32.mrb[0].mxu0
  %v8741 = vadd.f32 %v8356, %v8740
  %v8742 = vpop.f32.mrb[0].mxu0
  %8743 = vmatprep.mubr.f32.mxu0 0.0
  %8744 = vmatmul.mubr.f32.gmra.mrb[0].mxu0 %v8089
  %v8745 = vpop.f32.mrb[0].mxu0
  %v8746 = vadd.f32 %v8361, %v8745
  %v8747 = vpop.f32.mrb[0].mxu0
  %8748 = vmatprep.mubr.f32.mxu0 0.0
  %8749 = vmatmul.mubr.f32.gmra.mrb[0].mxu0 %v8092
  %v8750 = vpop.f32.mrb[0].mxu0
  %v8751 = vadd.f32 %v8366, %v8750
  %v8752 = vpop.f32.mrb[0].mxu0
  %8753 = vmatprep.mubr.f32.mxu0 0.0
  %8754 = vmatmul.mubr.f32.gmra.mrb[0].mxu0 %v8095
  %v8755 = vpop.f32.mrb[0].mxu0
  %v8756 = vadd.f32 %v8371, %v8755
  %v8757 = vpop.f32.mrb[0].mxu0
  %8758 = vmatprep.mubr.f32.mxu0 0.0
  %8759 = vmatmul.mubr.f32.gmra.mrb[0].mxu0 %v8098
  %v8760 = vpop.f32.mrb[0].mxu0
  %v8761 = vadd.f32 %v8376, %v8760
  %v8762 = vpop.f32.mrb[0].mxu0
  %8763 = vmatprep.mubr.f32.mxu0 0.0
  %8764 = vmatmul.mubr.f32.gmra.mrb[0].mxu0 %v8101
  %v8765 = vpop.f32.mrb[0].mxu0
  %v8766 = vadd.f32 %v8381, %v8765
  %v8767 = vpop.f32.mrb[0].mxu0
  %8768 = vmatprep.mubr.f32.mxu0 0.0
  %8769 = vmatmul.mubr.f32.gmra.mrb[0].mxu0 %v8104
  %v8770 = vpop.f32.mrb[0].mxu0
  %v8771 = vadd.f32 %v8386, %v8770
  %v8772 = vpop.f32.mrb[0].mxu0
  %8773 = vmatprep.mubr.f32.mxu0 0.0
  %8774 = vmatmul.mubr.f32.gmra.mrb[0].mxu0 %v8107
  %v8775 = vpop.f32.mrb[0].mxu0
  %v8776 = vadd.f32 %v8391, %v8775
  %v8777 = vpop.f32.mrb[0].mxu0
  %8778 = vmatprep.mubr.f32.mxu0 0.0
  %8779 = vmatmul.mubr.f32.gmra.mrb[0].mxu0 %v8110
  %v8780 = vpop.f32.mrb[0].mxu0
  %v8781 = vadd.f32 %v8396, %v8780
  %v8782 = vpop.f32.mrb[0].mxu0
  %8783 = vmatprep.mubr.f32.mxu0 0.0
  %8784 = vmatmul.mubr.f32.gmra.mrb[0].mxu0 %v8113
  %v8785 = vpop.f32.mrb[0].mxu0
  %v8786 = vadd.f32 %v8401, %v8785
  %v8787 = vpop.f32.mrb[0].mxu0
  %8788 = vmatprep.mubr.f32.mxu0 0.0
  %8789 = vmatmul.mubr.f32.gmra.mrb[0].mxu0 %v8116
  %v8790 = vpop.f32.mrb[0].mxu0
  %v8791 = vadd.f32 %v8406, %v8790
  %v8792 = vpop.f32.mrb[0].mxu0
  %8793 = vmatprep.mubr.f32.mxu0 0.0
  %8794 = vmatmul.mubr.f32.gmra.mrb[0].mxu0 %v8119
  %v8795 = vpop.f32.mrb[0].mxu0
  %v8796 = vadd.f32 %v8411, %v8795
  %v8797 = vpop.f32.mrb[0].mxu0
  %8798 = vmatprep.mubr.f32.mxu0 0.0
  %8799 = vmatmul.mubr.f32.gmra.mrb[0].mxu0 %v8122
  %v8800 = vpop.f32.mrb[0].mxu0
  %v8801 = vadd.f32 %v8416, %v8800
  %v8802 = vpop.f32.mrb[0].mxu0
  %8803 = vmatprep.mubr.f32.mxu0 0.0
  %8804 = vmatmul.mubr.f32.gmra.mrb[0].mxu0 %v8125
  %v8805 = vpop.f32.mrb[0].mxu0
  %v8806 = vadd.f32 %v8421, %v8805
  %v8807 = vpop.f32.mrb[0].mxu0
  %8808 = vmatprep.mubr.f32.mxu0 0.0
  %8809 = vmatmul.mubr.f32.gmra.mrb[0].mxu0 %v8128
  %v8810 = vpop.f32.mrb[0].mxu0
  %v8811 = vadd.f32 %v8426, %v8810
  %v8812 = vpop.f32.mrb[0].mxu0
  %8813 = vmatprep.mubr.f32.mxu0 0.0
  %8814 = vmatmul.mubr.f32.gmra.mrb[0].mxu0 %v8131
  %v8815 = vpop.f32.mrb[0].mxu0
  %v8816 = vadd.f32 %v8431, %v8815
  %v8817 = vpop.f32.mrb[0].mxu0
  %8818 = vmatprep.mubr.f32.mxu0 0.0
  %8819 = vmatmul.mubr.f32.gmra.mrb[0].mxu0 %v8134
  %v8820 = vpop.f32.mrb[0].mxu0
  %v8821 = vadd.f32 %v8436, %v8820
  %v8822 = vpop.f32.mrb[0].mxu0
  %8823 = vmatprep.mubr.f32.mxu0 0.0
  %8824 = vmatmul.mubr.f32.gmra.mrb[0].mxu0 %v8137
  %v8825 = vpop.f32.mrb[0].mxu0
  %v8826 = vadd.f32 %v8441, %v8825
  %v8827 = vpop.f32.mrb[0].mxu0
  %8828 = vmatprep.mubr.f32.mxu0 0.0
  %8829 = vmatmul.mubr.f32.gmra.mrb[0].mxu0 %v8140
  %v8830 = vpop.f32.mrb[0].mxu0
  %v8831 = vadd.f32 %v8446, %v8830
  %v8832 = vpop.f32.mrb[0].mxu0
  %8833 = vmatprep.mubr.f32.mxu0 0.0
  %8834 = vmatmul.mubr.f32.gmra.mrb[0].mxu0 %v8143
  %v8835 = vpop.f32.mrb[0].mxu0
  %v8836 = vadd.f32 %v8451, %v8835
  %v8837 = vpop.f32.mrb[0].mxu0
  %8838 = vmatprep.mubr.f32.mxu0 0.0
  %8839 = vmatmul.mubr.f32.gmra.mrb[0].mxu0 %v8146
  %v8840 = vpop.f32.mrb[0].mxu0
  %v8841 = vadd.f32 %v8456, %v8840
  %v8842 = vpop.f32.mrb[0].mxu0
  %8843 = vmatprep.mubr.f32.mxu0 0.0
  %8844 = vmatmul.mubr.f32.gmra.mrb[0].mxu0 %v8149
  %v8845 = vpop.f32.mrb[0].mxu0
  %v8846 = vadd.f32 %v8461, %v8845
  %v8847 = vpop.f32.mrb[0].mxu0
  %8848 = vmatprep.mubr.f32.mxu0 0.0
  %8849 = vmatmul.mubr.f32.gmra.mrb[0].mxu0 %v8152
  %v8850 = vpop.f32.mrb[0].mxu0
  %v8851 = vadd.f32 %v8466, %v8850
  %v8852 = vpop.f32.mrb[0].mxu0
  %8853 = vmatprep.mubr.f32.mxu0 0.0
  %8854 = vmatmul.mubr.f32.gmra.mrb[0].mxu0 %v8155
  %v8855 = vpop.f32.mrb[0].mxu0
  %v8856 = vadd.f32 %v8471, %v8855
  %v8857 = vpop.f32.mrb[0].mxu0
  %8858 = vmatprep.mubr.f32.mxu0 0.0
  %8859 = vmatmul.mubr.f32.gmra.mrb[0].mxu0 %v8158
  %v8860 = vpop.f32.mrb[0].mxu0
  %v8861 = vadd.f32 %v8476, %v8860
  %v8862 = vpop.f32.mrb[0].mxu0
  %8863 = vmatprep.mubr.f32.mxu0 0.0
  %8864 = vmatmul.mubr.f32.gmra.mrb[0].mxu0 %v8161
  %v8865 = vpop.f32.mrb[0].mxu0
  %v8866 = vadd.f32 %v8481, %v8865
  %v8867 = vpop.f32.mrb[0].mxu0
  %8868 = vmatprep.mubr.f32.mxu0 0.0
  %8869 = vmatmul.mubr.f32.gmra.mrb[0].mxu0 %v8164
  %v8870 = vpop.f32.mrb[0].mxu0
  %v8871 = vadd.f32 %v8486, %v8870
  %v8872 = vpop.f32.mrb[0].mxu0
  %8873 = vmatprep.mubr.f32.mxu0 0.0
  %8874 = vmatmul.mubr.f32.gmra.mrb[0].mxu0 %v8167
  %v8875 = vpop.f32.mrb[0].mxu0
  %v8876 = vadd.f32 %v8491, %v8875
  %v8877 = vpop.f32.mrb[0].mxu0
  %8878 = vmatprep.mubr.f32.mxu0 0.0
  %8879 = vmatmul.mubr.f32.gmra.mrb[0].mxu0 %v8170
  %v8880 = vpop.f32.mrb[0].mxu0
  %v8881 = vadd.f32 %v8496, %v8880
  %v8882 = vpop.f32.mrb[0].mxu0
  %8883 = vmatprep.mubr.f32.mxu0 0.0
  %8884 = vmatmul.mubr.f32.gmra.mrb[0].mxu0 %v8173
  %v8885 = vpop.f32.mrb[0].mxu0
  %v8886 = vadd.f32 %v8501, %v8885
  %v8887 = vpop.f32.mrb[0].mxu0
  %8888 = vmatprep.mubr.f32.mxu0 0.0
  %8889 = vmatmul.mubr.f32.gmra.mrb[0].mxu0 %v8176
  %v8890 = vpop.f32.mrb[0].mxu0
  %v8891 = vadd.f32 %v8506, %v8890
  %v8892 = vpop.f32.mrb[0].mxu0
  %8893 = vmatprep.mubr.f32.mxu0 0.0
  %8894 = vmatmul.mubr.f32.gmra.mrb[0].mxu0 %v8179
  %v8895 = vpop.f32.mrb[0].mxu0
  %v8896 = vadd.f32 %v8511, %v8895
  %v8897 = vpop.f32.mrb[0].mxu0
  %8898 = vmatprep.mubr.f32.mxu0 0.0
  %8899 = vmatmul.mubr.f32.gmra.mrb[0].mxu0 %v8182
  %v8900 = vpop.f32.mrb[0].mxu0
  %v8901 = vadd.f32 %v8516, %v8900
  %v8902 = vpop.f32.mrb[0].mxu0
  %8903 = vmatprep.mubr.f32.mxu0 0.0
  %8904 = vmatmul.mubr.f32.gmra.mrb[0].mxu0 %v8185
  %v8905 = vpop.f32.mrb[0].mxu0
  %v8906 = vadd.f32 %v8521, %v8905
  %v8907 = vpop.f32.mrb[0].mxu0
  %8908 = vmatprep.mubr.f32.mxu0 0.0
  %8909 = vmatmul.mubr.f32.gmra.mrb[0].mxu0 %v8188
  %v8910 = vpop.f32.mrb[0].mxu0
  %v8911 = vadd.f32 %v8526, %v8910
  %v8912 = vpop.f32.mrb[0].mxu0
  %8913 = vmatprep.mubr.f32.mxu0 0.0
  %8914 = vmatmul.mubr.f32.gmra.mrb[0].mxu0 %v8191
  %v8915 = vpop.f32.mrb[0].mxu0
  %v8916 = vadd.f32 %v8531, %v8915
  %v8917 = vpop.f32.mrb[0].mxu0
  %8918 = vmatprep.mubr.f32.mxu0 0.0
  %8919 = vmatmul.mubr.f32.gmra.mrb[0].mxu0 %v8194
  %v8920 = vpop.f32.mrb[0].mxu0
  %v8921 = vadd.f32 %v8536, %v8920
  %v8922 = vpop.f32.mrb[0].mxu0
  %8923 = vmatprep.mubr.f32.mxu0 0.0
  %8924 = vmatmul.mubr.f32.gmra.mrb[0].mxu0 %v8197
  %v8925 = vpop.f32.mrb[0].mxu0
  %v8926 = vadd.f32 %v8541, %v8925
  %v8927 = vpop.f32.mrb[0].mxu0
  %8928 = vmatprep.mubr.f32.mxu0 0.0
  %8929 = vmatmul.mubr.f32.gmra.mrb[0].mxu0 %v8200
  %v8930 = vpop.f32.mrb[0].mxu0
  %v8931 = vadd.f32 %v8546, %v8930
  %v8932 = vpop.f32.mrb[0].mxu0
  %8933 = vmatprep.mubr.f32.mxu0 0.0
  %8934 = vmatmul.mubr.f32.gmra.mrb[0].mxu0 %v8203
  %v8935 = vpop.f32.mrb[0].mxu0
  %v8936 = vadd.f32 %v8551, %v8935
  %v8937 = vpop.f32.mrb[0].mxu0
  %8938 = vmatprep.mubr.f32.mxu0 0.0
  %8939 = vmatmul.mubr.f32.gmra.mrb[0].mxu0 %v8206
  %v8940 = vpop.f32.mrb[0].mxu0
  %v8941 = vadd.f32 %v8556, %v8940
  %v8942 = vpop.f32.mrb[0].mxu0
  %8943 = vmatprep.mubr.f32.mxu0 0.0
  %8944 = vmatmul.mubr.f32.gmra.mrb[0].mxu0 %v8209
  %v8945 = vpop.f32.mrb[0].mxu0
  %v8946 = vadd.f32 %v8561, %v8945
  %v8947 = vpop.f32.mrb[0].mxu0
  %8948 = vmatprep.mubr.f32.mxu0 0.0
  %8949 = vmatmul.mubr.f32.gmra.mrb[0].mxu0 %v8212
  %v8950 = vpop.f32.mrb[0].mxu0
  %v8951 = vadd.f32 %v8566, %v8950
  %v8952 = vpop.f32.mrb[0].mxu0
  %8953 = vmatprep.mubr.f32.mxu0 0.0
  %8954 = vmatmul.mubr.f32.gmra.mrb[0].mxu0 %v8215
  %v8955 = vpop.f32.mrb[0].mxu0
  %v8956 = vadd.f32 %v8571, %v8955
  %v8957 = vpop.f32.mrb[0].mxu0
  %8958 = vmatprep.mubr.f32.mxu0 0.0
  %8959 = vmatmul.mubr.f32.gmra.mrb[0].mxu0 %v8218
  %v8960 = vpop.f32.mrb[0].mxu0
  %v8961 = vadd.f32 %v8576, %v8960
  %v8962 = vpop.f32.mrb[0].mxu0
  %8963 = vmatprep.mubr.f32.mxu0 0.0
  %8964 = vmatmul.mubr.f32.gmra.mrb[0].mxu0 %v8221
  %v8965 = vpop.f32.mrb[0].mxu0
  %v8966 = vadd.f32 %v8581, %v8965
  %v8967 = vpop.f32.mrb[0].mxu0
  %8968 = vmatprep.mubr.f32.mxu0 0.0
  %8969 = vmatmul.mubr.f32.gmra.mrb[0].mxu0 %v8224
  %v8970 = vpop.f32.mrb[0].mxu0
  %v8971 = vadd.f32 %v8586, %v8970
  %v8972 = vpop.f32.mrb[0].mxu0
  %8973 = vmatprep.mubr.f32.mxu0 0.0
  %8974 = vmatmul.mubr.f32.gmra.mrb[0].mxu0 %v8227
  %v8975 = vpop.f32.mrb[0].mxu0
  %v8976 = vadd.f32 %v8591, %v8975
  %v8977 = vpop.f32.mrb[0].mxu0
  %8978 = vmatprep.mubr.f32.mxu0 0.0
  %8979 = vmatmul.mubr.f32.gmra.mrb[0].mxu0 %v8230
  %v8980 = vpop.f32.mrb[0].mxu0
  %v8981 = vadd.f32 %v8596, %v8980
  %v8982 = vpop.f32.mrb[0].mxu0
  %8983 = vmatprep.mubr.f32.mxu0 0.0
  %8984 = vmatmul.mubr.f32.gmra.mrb[0].mxu0 %v8233
  %v8985 = vpop.f32.mrb[0].mxu0
  %v8986 = vadd.f32 %v8601, %v8985
  %v8987 = vpop.f32.mrb[0].mxu0
  %8988 = vmatprep.mubr.f32.mxu0 0.0
  %8989 = vmatmul.mubr.f32.gmra.mrb[0].mxu0 %v8236
  %v8990 = vpop.f32.mrb[0].mxu0
  %v8991 = vadd.f32 %v8606, %v8990
  %v8992 = vpop.f32.mrb[0].mxu0
  %8993 = vmatprep.mubr.f32.mxu0 0.0
  %8994 = vmatmul.mubr.f32.gmra.mrb[0].mxu0 %v8239
  %v8995 = vpop.f32.mrb[0].mxu0
  %v8996 = vadd.f32 %v8611, %v8995
  %v8997 = vpop.f32.mrb[0].mxu0
  %8998 = vmatprep.mubr.f32.mxu0 0.0
  %8999 = vmatmul.mubr.f32.gmra.mrb[0].mxu0 %v8242
  %v9000 = vpop.f32.mrb[0].mxu0
  %v9001 = vadd.f32 %v8616, %v9000
  %v9002 = vpop.f32.mrb[0].mxu0
  %9003 = vmatprep.mubr.f32.mxu0 0.0
  %9004 = vmatmul.mubr.f32.gmra.mrb[0].mxu0 %v8245
  %v9005 = vpop.f32.mrb[0].mxu0
  %v9006 = vadd.f32 %v8621, %v9005
  %v9007 = vpop.f32.mrb[0].mxu0
  %9008 = vmatprep.mubr.f32.mxu0 0.0
  %9009 = vmatmul.mubr.f32.gmra.mrb[0].mxu0 %v8248
  %v9010 = vpop.f32.mrb[0].mxu0
  %v9011 = vadd.f32 %v8626, %v9010
  %v9012 = vpop.f32.mrb[0].mxu0
  %9013 = vmatprep.mubr.f32.mxu0 0.0
  %9014 = vmatmul.mubr.f32.gmra.mrb[0].mxu0 %v8251
  %v9015 = vpop.f32.mrb[0].mxu0
  %v9016 = vadd.f32 %v8631, %v9015
  %v9017 = vpop.f32.mrb[0].mxu0
  %9018 = vmatprep.mubr.f32.mxu0 0.0
  %9019 = vmatmul.mubr.f32.gmra.mrb[0].mxu0 %v8254
  %v9020 = vpop.f32.mrb[0].mxu0
  %v9021 = vadd.f32 %v8636, %v9020
  %v9022 = vpop.f32.mrb[0].mxu0
  %9023 = vmatprep.mubr.f32.mxu0 0.0
  %9024 = vmatmul.mubr.f32.gmra.mrb[0].mxu0 %v8257
  %v9025 = vpop.f32.mrb[0].mxu0
  %v9026 = vadd.f32 %v8641, %v9025
  %v9027 = vpop.f32.mrb[0].mxu0
  %9028 = vdwg.mxu0
  %v9029 = vsel %vm3592, %v8711, 0.0
  %v9030 = vsel %vm3592, %v8716, 0.0
  %v9031 = vadd.f32 %v9029, %v9030
  %v9032 = vsel %vm3592, %v8721, 0.0
  %v9033 = vadd.f32 %v9031, %v9032
  %v9034 = vsel %vm3592, %v8726, 0.0
  %v9035 = vadd.f32 %v9033, %v9034
  %v9036 = vsel %vm3592, %v8731, 0.0
  %v9037 = vadd.f32 %v9035, %v9036
  %v9038 = vsel %vm3592, %v8736, 0.0
  %v9039 = vadd.f32 %v9037, %v9038
  %v9040 = vsel %vm3592, %v8741, 0.0
  %v9041 = vadd.f32 %v9039, %v9040
  %v9042 = vsel %vm3592, %v8746, 0.0
  %v9043 = vadd.f32 %v9041, %v9042
  %v9044 = vsel %vm3592, %v8751, 0.0
  %v9045 = vadd.f32 %v9043, %v9044
  %v9046 = vsel %vm3592, %v8756, 0.0
  %v9047 = vadd.f32 %v9045, %v9046
  %v9048 = vsel %vm3592, %v8761, 0.0
  %v9049 = vadd.f32 %v9047, %v9048
  %v9050 = vsel %vm3592, %v8766, 0.0
  %v9051 = vadd.f32 %v9049, %v9050
  %v9052 = vsel %vm3592, %v8771, 0.0
  %v9053 = vadd.f32 %v9051, %v9052
  %v9054 = vsel %vm3592, %v8776, 0.0
  %v9055 = vadd.f32 %v9053, %v9054
  %v9056 = vsel %vm3592, %v8781, 0.0
  %v9057 = vadd.f32 %v9055, %v9056
  %v9058 = vsel %vm3592, %v8786, 0.0
  %v9059 = vadd.f32 %v9057, %v9058
  %v9060 = vsel %vm3592, %v8791, 0.0
  %v9061 = vadd.f32 %v9059, %v9060
  %v9062 = vsel %vm3592, %v8796, 0.0
  %v9063 = vadd.f32 %v9061, %v9062
  %v9064 = vsel %vm3592, %v8801, 0.0
  %v9065 = vadd.f32 %v9063, %v9064
  %v9066 = vsel %vm3592, %v8806, 0.0
  %v9067 = vadd.f32 %v9065, %v9066
  %v9068 = vsel %vm3592, %v8811, 0.0
  %v9069 = vadd.f32 %v9067, %v9068
  %v9070 = vsel %vm3592, %v8816, 0.0
  %v9071 = vadd.f32 %v9069, %v9070
  %v9072 = vsel %vm3592, %v8821, 0.0
  %v9073 = vadd.f32 %v9071, %v9072
  %v9074 = vsel %vm3592, %v8826, 0.0
  %v9075 = vadd.f32 %v9073, %v9074
  %v9076 = vsel %vm3592, %v8831, 0.0
  %v9077 = vadd.f32 %v9075, %v9076
  %v9078 = vsel %vm3592, %v8836, 0.0
  %v9079 = vadd.f32 %v9077, %v9078
  %v9080 = vsel %vm3592, %v8841, 0.0
  %v9081 = vadd.f32 %v9079, %v9080
  %v9082 = vsel %vm3592, %v8846, 0.0
  %v9083 = vadd.f32 %v9081, %v9082
  %v9084 = vsel %vm3592, %v8851, 0.0
  %v9085 = vadd.f32 %v9083, %v9084
  %v9086 = vsel %vm3592, %v8856, 0.0
  %v9087 = vadd.f32 %v9085, %v9086
  %v9088 = vsel %vm3592, %v8861, 0.0
  %v9089 = vadd.f32 %v9087, %v9088
  %v9090 = vsel %vm3592, %v8866, 0.0
  %v9091 = vadd.f32 %v9089, %v9090
  %v9092 = vsel %vm3592, %v8871, 0.0
  %v9093 = vadd.f32 %v9091, %v9092
  %v9094 = vsel %vm3592, %v8876, 0.0
  %v9095 = vadd.f32 %v9093, %v9094
  %v9096 = vsel %vm3592, %v8881, 0.0
  %v9097 = vadd.f32 %v9095, %v9096
  %v9098 = vsel %vm3592, %v8886, 0.0
  %v9099 = vadd.f32 %v9097, %v9098
  %v9100 = vsel %vm3592, %v8891, 0.0
  %v9101 = vadd.f32 %v9099, %v9100
  %v9102 = vsel %vm3592, %v8896, 0.0
  %v9103 = vadd.f32 %v9101, %v9102
  %v9104 = vsel %vm3592, %v8901, 0.0
  %v9105 = vadd.f32 %v9103, %v9104
  %v9106 = vsel %vm3592, %v8906, 0.0
  %v9107 = vadd.f32 %v9105, %v9106
  %v9108 = vsel %vm3592, %v8911, 0.0
  %v9109 = vadd.f32 %v9107, %v9108
  %v9110 = vsel %vm3592, %v8916, 0.0
  %v9111 = vadd.f32 %v9109, %v9110
  %v9112 = vsel %vm3592, %v8921, 0.0
  %v9113 = vadd.f32 %v9111, %v9112
  %v9114 = vsel %vm3592, %v8926, 0.0
  %v9115 = vadd.f32 %v9113, %v9114
  %v9116 = vsel %vm3592, %v8931, 0.0
  %v9117 = vadd.f32 %v9115, %v9116
  %v9118 = vsel %vm3592, %v8936, 0.0
  %v9119 = vadd.f32 %v9117, %v9118
  %v9120 = vsel %vm3592, %v8941, 0.0
  %v9121 = vadd.f32 %v9119, %v9120
  %v9122 = vsel %vm3592, %v8946, 0.0
  %v9123 = vadd.f32 %v9121, %v9122
  %v9124 = vsel %vm3592, %v8951, 0.0
  %v9125 = vadd.f32 %v9123, %v9124
  %v9126 = vsel %vm3592, %v8956, 0.0
  %v9127 = vadd.f32 %v9125, %v9126
  %v9128 = vsel %vm3592, %v8961, 0.0
  %v9129 = vadd.f32 %v9127, %v9128
  %v9130 = vsel %vm3592, %v8966, 0.0
  %v9131 = vadd.f32 %v9129, %v9130
  %v9132 = vsel %vm3592, %v8971, 0.0
  %v9133 = vadd.f32 %v9131, %v9132
  %v9134 = vsel %vm3592, %v8976, 0.0
  %v9135 = vadd.f32 %v9133, %v9134
  %v9136 = vsel %vm3592, %v8981, 0.0
  %v9137 = vadd.f32 %v9135, %v9136
  %v9138 = vsel %vm3592, %v8986, 0.0
  %v9139 = vadd.f32 %v9137, %v9138
  %v9140 = vsel %vm3592, %v8991, 0.0
  %v9141 = vadd.f32 %v9139, %v9140
  %v9142 = vsel %vm3592, %v8996, 0.0
  %v9143 = vadd.f32 %v9141, %v9142
  %v9144 = vsel %vm3592, %v9001, 0.0
  %v9145 = vadd.f32 %v9143, %v9144
  %v9146 = vsel %vm3592, %v9006, 0.0
  %v9147 = vadd.f32 %v9145, %v9146
  %v9148 = vsel %vm3592, %v9011, 0.0
  %v9149 = vadd.f32 %v9147, %v9148
  %v9150 = vsel %vm3592, %v9016, 0.0
  %v9151 = vadd.f32 %v9149, %v9150
  %v9152 = vsel %vm3592, %v9021, 0.0
  %v9153 = vadd.f32 %v9151, %v9152
  %v9154 = vsel %vm3592, %v9026, 0.0
  %v9155 = vadd.f32 %v9153, %v9154
  %v9156 = vrot.slane %v9155, 4
  %v9157 = vadd.f32 %v9155, %v9156
  %v9158 = vrot.slane %v9157, 2
  %v9159 = vadd.f32 %v9157, %v9158
  %v9160 = vrot.slane %v9159, 1
  %v9161 = vadd.f32 %v9159, %v9160
  %v9162 = vmul.f32 %v8711, %v8711
  %v9163 = vmul.f32 %v8716, %v8716
  %v9164 = vmul.f32 %v8721, %v8721
  %v9165 = vmul.f32 %v8726, %v8726
  %v9166 = vmul.f32 %v8731, %v8731
  %v9167 = vmul.f32 %v8736, %v8736
  %v9168 = vmul.f32 %v8741, %v8741
  %v9169 = vmul.f32 %v8746, %v8746
  %v9170 = vmul.f32 %v8751, %v8751
  %v9171 = vmul.f32 %v8756, %v8756
  %v9172 = vmul.f32 %v8761, %v8761
  %v9173 = vmul.f32 %v8766, %v8766
  %v9174 = vmul.f32 %v8771, %v8771
  %v9175 = vmul.f32 %v8776, %v8776
  %v9176 = vmul.f32 %v8781, %v8781
  %v9177 = vmul.f32 %v8786, %v8786
  %v9178 = vmul.f32 %v8791, %v8791
  %v9179 = vmul.f32 %v8796, %v8796
  %v9180 = vmul.f32 %v8801, %v8801
  %v9181 = vmul.f32 %v8806, %v8806
  %v9182 = vmul.f32 %v8811, %v8811
  %v9183 = vmul.f32 %v8816, %v8816
  %v9184 = vmul.f32 %v8821, %v8821
  %v9185 = vmul.f32 %v8826, %v8826
  %v9186 = vmul.f32 %v8831, %v8831
  %v9187 = vmul.f32 %v8836, %v8836
  %v9188 = vmul.f32 %v8841, %v8841
  %v9189 = vmul.f32 %v8846, %v8846
  %v9190 = vmul.f32 %v8851, %v8851
  %v9191 = vmul.f32 %v8856, %v8856
  %v9192 = vmul.f32 %v8861, %v8861
  %v9193 = vmul.f32 %v8866, %v8866
  %v9194 = vmul.f32 %v8871, %v8871
  %v9195 = vmul.f32 %v8876, %v8876
  %v9196 = vmul.f32 %v8881, %v8881
  %v9197 = vmul.f32 %v8886, %v8886
  %v9198 = vmul.f32 %v8891, %v8891
  %v9199 = vmul.f32 %v8896, %v8896
  %v9200 = vmul.f32 %v8901, %v8901
  %v9201 = vmul.f32 %v8906, %v8906
  %v9202 = vmul.f32 %v8911, %v8911
  %v9203 = vmul.f32 %v8916, %v8916
  %v9204 = vmul.f32 %v8921, %v8921
  %v9205 = vmul.f32 %v8926, %v8926
  %v9206 = vmul.f32 %v8931, %v8931
  %v9207 = vmul.f32 %v8936, %v8936
  %v9208 = vmul.f32 %v8941, %v8941
  %v9209 = vmul.f32 %v8946, %v8946
  %v9210 = vmul.f32 %v8951, %v8951
  %v9211 = vmul.f32 %v8956, %v8956
  %v9212 = vmul.f32 %v8961, %v8961
  %v9213 = vmul.f32 %v8966, %v8966
  %v9214 = vmul.f32 %v8971, %v8971
  %v9215 = vmul.f32 %v8976, %v8976
  %v9216 = vmul.f32 %v8981, %v8981
  %v9217 = vmul.f32 %v8986, %v8986
  %v9218 = vmul.f32 %v8991, %v8991
  %v9219 = vmul.f32 %v8996, %v8996
  %v9220 = vmul.f32 %v9001, %v9001
  %v9221 = vmul.f32 %v9006, %v9006
  %v9222 = vmul.f32 %v9011, %v9011
  %v9223 = vmul.f32 %v9016, %v9016
  %v9224 = vmul.f32 %v9021, %v9021
  %v9225 = vmul.f32 %v9026, %v9026
  %v9226 = vsel %vm3592, %v9162, 0.0
  %v9227 = vsel %vm3592, %v9163, 0.0
  %v9228 = vadd.f32 %v9226, %v9227
  %v9229 = vsel %vm3592, %v9164, 0.0
  %v9230 = vadd.f32 %v9228, %v9229
  %v9231 = vsel %vm3592, %v9165, 0.0
  %v9232 = vadd.f32 %v9230, %v9231
  %v9233 = vsel %vm3592, %v9166, 0.0
  %v9234 = vadd.f32 %v9232, %v9233
  %v9235 = vsel %vm3592, %v9167, 0.0
  %v9236 = vadd.f32 %v9234, %v9235
  %v9237 = vsel %vm3592, %v9168, 0.0
  %v9238 = vadd.f32 %v9236, %v9237
  %v9239 = vsel %vm3592, %v9169, 0.0
  %v9240 = vadd.f32 %v9238, %v9239
  %v9241 = vsel %vm3592, %v9170, 0.0
  %v9242 = vadd.f32 %v9240, %v9241
  %v9243 = vsel %vm3592, %v9171, 0.0
  %v9244 = vadd.f32 %v9242, %v9243
  %v9245 = vsel %vm3592, %v9172, 0.0
  %v9246 = vadd.f32 %v9244, %v9245
  %v9247 = vsel %vm3592, %v9173, 0.0
  %v9248 = vadd.f32 %v9246, %v9247
  %v9249 = vsel %vm3592, %v9174, 0.0
  %v9250 = vadd.f32 %v9248, %v9249
  %v9251 = vsel %vm3592, %v9175, 0.0
  %v9252 = vadd.f32 %v9250, %v9251
  %v9253 = vsel %vm3592, %v9176, 0.0
  %v9254 = vadd.f32 %v9252, %v9253
  %v9255 = vsel %vm3592, %v9177, 0.0
  %v9256 = vadd.f32 %v9254, %v9255
  %v9257 = vsel %vm3592, %v9178, 0.0
  %v9258 = vadd.f32 %v9256, %v9257
  %v9259 = vsel %vm3592, %v9179, 0.0
  %v9260 = vadd.f32 %v9258, %v9259
  %v9261 = vsel %vm3592, %v9180, 0.0
  %v9262 = vadd.f32 %v9260, %v9261
  %v9263 = vsel %vm3592, %v9181, 0.0
  %v9264 = vadd.f32 %v9262, %v9263
  %v9265 = vsel %vm3592, %v9182, 0.0
  %v9266 = vadd.f32 %v9264, %v9265
  %v9267 = vsel %vm3592, %v9183, 0.0
  %v9268 = vadd.f32 %v9266, %v9267
  %v9269 = vsel %vm3592, %v9184, 0.0
  %v9270 = vadd.f32 %v9268, %v9269
  %v9271 = vsel %vm3592, %v9185, 0.0
  %v9272 = vadd.f32 %v9270, %v9271
  %v9273 = vsel %vm3592, %v9186, 0.0
  %v9274 = vadd.f32 %v9272, %v9273
  %v9275 = vsel %vm3592, %v9187, 0.0
  %v9276 = vadd.f32 %v9274, %v9275
  %v9277 = vsel %vm3592, %v9188, 0.0
  %v9278 = vadd.f32 %v9276, %v9277
  %v9279 = vsel %vm3592, %v9189, 0.0
  %v9280 = vadd.f32 %v9278, %v9279
  %v9281 = vsel %vm3592, %v9190, 0.0
  %v9282 = vadd.f32 %v9280, %v9281
  %v9283 = vsel %vm3592, %v9191, 0.0
  %v9284 = vadd.f32 %v9282, %v9283
  %v9285 = vsel %vm3592, %v9192, 0.0
  %v9286 = vadd.f32 %v9284, %v9285
  %v9287 = vsel %vm3592, %v9193, 0.0
  %v9288 = vadd.f32 %v9286, %v9287
  %v9289 = vsel %vm3592, %v9194, 0.0
  %v9290 = vadd.f32 %v9288, %v9289
  %v9291 = vsel %vm3592, %v9195, 0.0
  %v9292 = vadd.f32 %v9290, %v9291
  %v9293 = vsel %vm3592, %v9196, 0.0
  %v9294 = vadd.f32 %v9292, %v9293
  %v9295 = vsel %vm3592, %v9197, 0.0
  %v9296 = vadd.f32 %v9294, %v9295
  %v9297 = vsel %vm3592, %v9198, 0.0
  %v9298 = vadd.f32 %v9296, %v9297
  %v9299 = vsel %vm3592, %v9199, 0.0
  %v9300 = vadd.f32 %v9298, %v9299
  %v9301 = vsel %vm3592, %v9200, 0.0
  %v9302 = vadd.f32 %v9300, %v9301
  %v9303 = vsel %vm3592, %v9201, 0.0
  %v9304 = vadd.f32 %v9302, %v9303
  %v9305 = vsel %vm3592, %v9202, 0.0
  %v9306 = vadd.f32 %v9304, %v9305
  %v9307 = vsel %vm3592, %v9203, 0.0
  %v9308 = vadd.f32 %v9306, %v9307
  %v9309 = vsel %vm3592, %v9204, 0.0
  %v9310 = vadd.f32 %v9308, %v9309
  %v9311 = vsel %vm3592, %v9205, 0.0
  %v9312 = vadd.f32 %v9310, %v9311
  %v9313 = vsel %vm3592, %v9206, 0.0
  %v9314 = vadd.f32 %v9312, %v9313
  %v9315 = vsel %vm3592, %v9207, 0.0
  %v9316 = vadd.f32 %v9314, %v9315
  %v9317 = vsel %vm3592, %v9208, 0.0
  %v9318 = vadd.f32 %v9316, %v9317
  %v9319 = vsel %vm3592, %v9209, 0.0
  %v9320 = vadd.f32 %v9318, %v9319
  %v9321 = vsel %vm3592, %v9210, 0.0
  %v9322 = vadd.f32 %v9320, %v9321
  %v9323 = vsel %vm3592, %v9211, 0.0
  %v9324 = vadd.f32 %v9322, %v9323
  %v9325 = vsel %vm3592, %v9212, 0.0
  %v9326 = vadd.f32 %v9324, %v9325
  %v9327 = vsel %vm3592, %v9213, 0.0
  %v9328 = vadd.f32 %v9326, %v9327
  %v9329 = vsel %vm3592, %v9214, 0.0
  %v9330 = vadd.f32 %v9328, %v9329
  %v9331 = vsel %vm3592, %v9215, 0.0
  %v9332 = vadd.f32 %v9330, %v9331
  %v9333 = vsel %vm3592, %v9216, 0.0
  %v9334 = vadd.f32 %v9332, %v9333
  %v9335 = vsel %vm3592, %v9217, 0.0
  %v9336 = vadd.f32 %v9334, %v9335
  %v9337 = vsel %vm3592, %v9218, 0.0
  %v9338 = vadd.f32 %v9336, %v9337
  %v9339 = vsel %vm3592, %v9219, 0.0
  %v9340 = vadd.f32 %v9338, %v9339
  %v9341 = vsel %vm3592, %v9220, 0.0
  %v9342 = vadd.f32 %v9340, %v9341
  %v9343 = vsel %vm3592, %v9221, 0.0
  %v9344 = vadd.f32 %v9342, %v9343
  %v9345 = vsel %vm3592, %v9222, 0.0
  %v9346 = vadd.f32 %v9344, %v9345
  %v9347 = vsel %vm3592, %v9223, 0.0
  %v9348 = vadd.f32 %v9346, %v9347
  %v9349 = vsel %vm3592, %v9224, 0.0
  %v9350 = vadd.f32 %v9348, %v9349
  %v9351 = vsel %vm3592, %v9225, 0.0
  %v9352 = vadd.f32 %v9350, %v9351
  %v9353 = vrot.slane %v9352, 4
  %v9354 = vadd.f32 %v9352, %v9353
  %v9355 = vrot.slane %v9354, 2
  %v9356 = vadd.f32 %v9354, %v9355
  %v9357 = vrot.slane %v9356, 1
  %v9358 = vadd.f32 %v9356, %v9357
  %v9359 = vmul.f32 %v9161, 0.001953125
  %v9360 = vmul.f32 %v9358, 0.001953125
  %v9361 = vmul.f32 %v9359, %v9359
  %v9362 = vsub.f32 %v9360, %v9361
  %v9363 = vld [vmem:[%s11] sm:$0x1]
  %v9364 = vadd.f32 %v9362, 1e-05
  %v9365 = vrsqrt.pop %v9364
  %v9366 = vmul.f32 %v9363, %v9365
  %v9367 = vld [vmem:[%s12] sm:$0x1]
  %v9368 = vmul.f32 %v9359, %v9366
  %v9369 = vsub.f32 %v9367, %v9368
  %v9371 = vlaneseq
  %v9372 = vshrl.u32 %v9371, 7
  %v9373 = vsub.s32 0, %v9372
  %v9374 = vrot.slane %v9366, %v9373
  %v9376 = vmul.f32 %v8711, %v9374
  %v9377 = vmul.f32 %v8716, %v9374
  %v9378 = vmul.f32 %v8721, %v9374
  %v9379 = vmul.f32 %v8726, %v9374
  %v9380 = vmul.f32 %v8731, %v9374
  %v9381 = vmul.f32 %v8736, %v9374
  %v9382 = vmul.f32 %v8741, %v9374
  %v9383 = vmul.f32 %v8746, %v9374
  %v9384 = vmul.f32 %v8751, %v9374
  %v9385 = vmul.f32 %v8756, %v9374
  %v9386 = vmul.f32 %v8761, %v9374
  %v9387 = vmul.f32 %v8766, %v9374
  %v9388 = vmul.f32 %v8771, %v9374
  %v9389 = vmul.f32 %v8776, %v9374
  %v9390 = vmul.f32 %v8781, %v9374
  %v9391 = vmul.f32 %v8786, %v9374
  %v9392 = vmul.f32 %v8791, %v9374
  %v9393 = vmul.f32 %v8796, %v9374
  %v9394 = vmul.f32 %v8801, %v9374
  %v9395 = vmul.f32 %v8806, %v9374
  %v9396 = vmul.f32 %v8811, %v9374
  %v9397 = vmul.f32 %v8816, %v9374
  %v9398 = vmul.f32 %v8821, %v9374
  %v9399 = vmul.f32 %v8826, %v9374
  %v9400 = vmul.f32 %v8831, %v9374
  %v9401 = vmul.f32 %v8836, %v9374
  %v9402 = vmul.f32 %v8841, %v9374
  %v9403 = vmul.f32 %v8846, %v9374
  %v9404 = vmul.f32 %v8851, %v9374
  %v9405 = vmul.f32 %v8856, %v9374
  %v9406 = vmul.f32 %v8861, %v9374
  %v9407 = vmul.f32 %v8866, %v9374
  %v9408 = vmul.f32 %v8871, %v9374
  %v9409 = vmul.f32 %v8876, %v9374
  %v9410 = vmul.f32 %v8881, %v9374
  %v9411 = vmul.f32 %v8886, %v9374
  %v9412 = vmul.f32 %v8891, %v9374
  %v9413 = vmul.f32 %v8896, %v9374
  %v9414 = vmul.f32 %v8901, %v9374
  %v9415 = vmul.f32 %v8906, %v9374
  %v9416 = vmul.f32 %v8911, %v9374
  %v9417 = vmul.f32 %v8916, %v9374
  %v9418 = vmul.f32 %v8921, %v9374
  %v9419 = vmul.f32 %v8926, %v9374
  %v9420 = vmul.f32 %v8931, %v9374
  %v9421 = vmul.f32 %v8936, %v9374
  %v9422 = vmul.f32 %v8941, %v9374
  %v9423 = vmul.f32 %v8946, %v9374
  %v9424 = vmul.f32 %v8951, %v9374
  %v9425 = vmul.f32 %v8956, %v9374
  %v9426 = vmul.f32 %v8961, %v9374
  %v9427 = vmul.f32 %v8966, %v9374
  %v9428 = vmul.f32 %v8971, %v9374
  %v9429 = vmul.f32 %v8976, %v9374
  %v9430 = vmul.f32 %v8981, %v9374
  %v9431 = vmul.f32 %v8986, %v9374
  %v9432 = vmul.f32 %v8991, %v9374
  %v9433 = vmul.f32 %v8996, %v9374
  %v9434 = vmul.f32 %v9001, %v9374
  %v9435 = vmul.f32 %v9006, %v9374
  %v9436 = vmul.f32 %v9011, %v9374
  %v9437 = vmul.f32 %v9016, %v9374
  %v9438 = vmul.f32 %v9021, %v9374
  %v9439 = vmul.f32 %v9026, %v9374
  %v9441 = vlaneseq
  %v9442 = vshrl.u32 %v9441, 7
  %v9443 = vsub.s32 0, %v9442
  %v9444 = vrot.slane %v9369, %v9443
  %v9446 = vadd.f32 %v9376, %v9444
  %v9447 = vadd.f32 %v9377, %v9444
  %v9448 = vadd.f32 %v9378, %v9444
  %v9449 = vadd.f32 %v9379, %v9444
  %v9450 = vadd.f32 %v9380, %v9444
  %v9451 = vadd.f32 %v9381, %v9444
  %v9452 = vadd.f32 %v9382, %v9444
  %v9453 = vadd.f32 %v9383, %v9444
  %v9454 = vadd.f32 %v9384, %v9444
  %v9455 = vadd.f32 %v9385, %v9444
  %v9456 = vadd.f32 %v9386, %v9444
  %v9457 = vadd.f32 %v9387, %v9444
  %v9458 = vadd.f32 %v9388, %v9444
  %v9459 = vadd.f32 %v9389, %v9444
  %v9460 = vadd.f32 %v9390, %v9444
  %v9461 = vadd.f32 %v9391, %v9444
  %v9462 = vadd.f32 %v9392, %v9444
  %v9463 = vadd.f32 %v9393, %v9444
  %v9464 = vadd.f32 %v9394, %v9444
  %v9465 = vadd.f32 %v9395, %v9444
  %v9466 = vadd.f32 %v9396, %v9444
  %v9467 = vadd.f32 %v9397, %v9444
  %v9468 = vadd.f32 %v9398, %v9444
  %v9469 = vadd.f32 %v9399, %v9444
  %v9470 = vadd.f32 %v9400, %v9444
  %v9471 = vadd.f32 %v9401, %v9444
  %v9472 = vadd.f32 %v9402, %v9444
  %v9473 = vadd.f32 %v9403, %v9444
  %v9474 = vadd.f32 %v9404, %v9444
  %v9475 = vadd.f32 %v9405, %v9444
  %v9476 = vadd.f32 %v9406, %v9444
  %v9477 = vadd.f32 %v9407, %v9444
  %v9478 = vadd.f32 %v9408, %v9444
  %v9479 = vadd.f32 %v9409, %v9444
  %v9480 = vadd.f32 %v9410, %v9444
  %v9481 = vadd.f32 %v9411, %v9444
  %v9482 = vadd.f32 %v9412, %v9444
  %v9483 = vadd.f32 %v9413, %v9444
  %v9484 = vadd.f32 %v9414, %v9444
  %v9485 = vadd.f32 %v9415, %v9444
  %v9486 = vadd.f32 %v9416, %v9444
  %v9487 = vadd.f32 %v9417, %v9444
  %v9488 = vadd.f32 %v9418, %v9444
  %v9489 = vadd.f32 %v9419, %v9444
  %v9490 = vadd.f32 %v9420, %v9444
  %v9491 = vadd.f32 %v9421, %v9444
  %v9492 = vadd.f32 %v9422, %v9444
  %v9493 = vadd.f32 %v9423, %v9444
  %v9494 = vadd.f32 %v9424, %v9444
  %v9495 = vadd.f32 %v9425, %v9444
  %v9496 = vadd.f32 %v9426, %v9444
  %v9497 = vadd.f32 %v9427, %v9444
  %v9498 = vadd.f32 %v9428, %v9444
  %v9499 = vadd.f32 %v9429, %v9444
  %v9500 = vadd.f32 %v9430, %v9444
  %v9501 = vadd.f32 %v9431, %v9444
  %v9502 = vadd.f32 %v9432, %v9444
  %v9503 = vadd.f32 %v9433, %v9444
  %v9504 = vadd.f32 %v9434, %v9444
  %v9505 = vadd.f32 %v9435, %v9444
  %v9506 = vadd.f32 %v9436, %v9444
  %v9507 = vadd.f32 %v9437, %v9444
  %v9508 = vadd.f32 %v9438, %v9444
  %v9509 = vadd.f32 %v9439, %v9444
  %v9510 = vmax.f32 %v9446, 0.0
  %v9511 = vmax.f32 %v9447, 0.0
  %v9512 = vmax.f32 %v9448, 0.0
  %v9513 = vmax.f32 %v9449, 0.0
  %v9514 = vmax.f32 %v9450, 0.0
  %v9515 = vmax.f32 %v9451, 0.0
  %v9516 = vmax.f32 %v9452, 0.0
  %v9517 = vmax.f32 %v9453, 0.0
  %v9518 = vmax.f32 %v9454, 0.0
  %v9519 = vmax.f32 %v9455, 0.0
  %v9520 = vmax.f32 %v9456, 0.0
  %v9521 = vmax.f32 %v9457, 0.0
  %v9522 = vmax.f32 %v9458, 0.0
  %v9523 = vmax.f32 %v9459, 0.0
  %v9524 = vmax.f32 %v9460, 0.0
  %v9525 = vmax.f32 %v9461, 0.0
  %v9526 = vmax.f32 %v9462, 0.0
  %v9527 = vmax.f32 %v9463, 0.0
  %v9528 = vmax.f32 %v9464, 0.0
  %v9529 = vmax.f32 %v9465, 0.0
  %v9530 = vmax.f32 %v9466, 0.0
  %v9531 = vmax.f32 %v9467, 0.0
  %v9532 = vmax.f32 %v9468, 0.0
  %v9533 = vmax.f32 %v9469, 0.0
  %v9534 = vmax.f32 %v9470, 0.0
  %v9535 = vmax.f32 %v9471, 0.0
  %v9536 = vmax.f32 %v9472, 0.0
  %v9537 = vmax.f32 %v9473, 0.0
  %v9538 = vmax.f32 %v9474, 0.0
  %v9539 = vmax.f32 %v9475, 0.0
  %v9540 = vmax.f32 %v9476, 0.0
  %v9541 = vmax.f32 %v9477, 0.0
  %v9542 = vmax.f32 %v9478, 0.0
  %v9543 = vmax.f32 %v9479, 0.0
  %v9544 = vmax.f32 %v9480, 0.0
  %v9545 = vmax.f32 %v9481, 0.0
  %v9546 = vmax.f32 %v9482, 0.0
  %v9547 = vmax.f32 %v9483, 0.0
  %v9548 = vmax.f32 %v9484, 0.0
  %v9549 = vmax.f32 %v9485, 0.0
  %v9550 = vmax.f32 %v9486, 0.0
  %v9551 = vmax.f32 %v9487, 0.0
  %v9552 = vmax.f32 %v9488, 0.0
  %v9553 = vmax.f32 %v9489, 0.0
  %v9554 = vmax.f32 %v9490, 0.0
  %v9555 = vmax.f32 %v9491, 0.0
  %v9556 = vmax.f32 %v9492, 0.0
  %v9557 = vmax.f32 %v9493, 0.0
  %v9558 = vmax.f32 %v9494, 0.0
  %v9559 = vmax.f32 %v9495, 0.0
  %v9560 = vmax.f32 %v9496, 0.0
  %v9561 = vmax.f32 %v9497, 0.0
  %v9562 = vmax.f32 %v9498, 0.0
  %v9563 = vmax.f32 %v9499, 0.0
  %v9564 = vmax.f32 %v9500, 0.0
  %v9565 = vmax.f32 %v9501, 0.0
  %v9566 = vmax.f32 %v9502, 0.0
  %v9567 = vmax.f32 %v9503, 0.0
  %v9568 = vmax.f32 %v9504, 0.0
  %v9569 = vmax.f32 %v9505, 0.0
  %v9570 = vmax.f32 %v9506, 0.0
  %v9571 = vmax.f32 %v9507, 0.0
  %v9572 = vmax.f32 %v9508, 0.0
  %v9573 = vmax.f32 %v9509, 0.0
  %v9574 = vld [vmem:[%s13] sm:$0xff]
  %v9575 = vld [vmem:[%s13 + $0x8] sm:$0xff]
  %v9576 = vld [vmem:[%s13 + $0x10] sm:$0xff]
  %v9577 = vld [vmem:[%s13 + $0x18] sm:$0xff]
  %v9578 = vld [vmem:[%s14] sm:$0xff]
  %v9579 = vld [vmem:[%s14 + $0x8] sm:$0xff]
  %v9580 = vld [vmem:[%s14 + $0x10] sm:$0xff]
  %v9581 = vld [vmem:[%s14 + $0x18] sm:$0xff]
  %9583 = vset.pattern.permute.xlu0 0
  %9584 = vperm.xlu0 %9583, %v9578
  %v9585 = vpop.permute.xlu0 %9584
  %9588 = vset.pattern.permute.xlu0 0
  %9589 = vperm.xlu0 %9588, %v9579
  %v9590 = vpop.permute.xlu0 %9589
  %9593 = vset.pattern.permute.xlu0 0
  %9594 = vperm.xlu0 %9593, %v9580
  %v9595 = vpop.permute.xlu0 %9594
  %9598 = vset.pattern.permute.xlu0 0
  %9599 = vperm.xlu0 %9598, %v9581
  %v9600 = vpop.permute.xlu0 %9599
  %v9603 = vsel %vm3592, %v9574, 0
  %v9606 = vsel %vm3592, %v9575, 0
  %v9609 = vsel %vm3592, %v9576, 0
  %v9612 = vsel %vm3592, %v9577, 0
  %v9615 = vsel %vm3592, %v9510, 0
  %v9618 = vsel %vm3592, %v9511, 0
  %v9621 = vsel %vm3592, %v9512, 0
  %v9624 = vsel %vm3592, %v9513, 0
  %v9627 = vsel %vm3592, %v9514, 0
  %v9630 = vsel %vm3592, %v9515, 0
  %v9633 = vsel %vm3592, %v9516, 0
  %v9636 = vsel %vm3592, %v9517, 0
  %v9639 = vsel %vm3592, %v9518, 0
  %v9642 = vsel %vm3592, %v9519, 0
  %v9645 = vsel %vm3592, %v9520, 0
  %v9648 = vsel %vm3592, %v9521, 0
  %v9651 = vsel %vm3592, %v9522, 0
  %v9654 = vsel %vm3592, %v9523, 0
  %v9657 = vsel %vm3592, %v9524, 0
  %v9660 = vsel %vm3592, %v9525, 0
  %v9663 = vsel %vm3592, %v9526, 0
  %v9666 = vsel %vm3592, %v9527, 0
  %v9669 = vsel %vm3592, %v9528, 0
  %v9672 = vsel %vm3592, %v9529, 0
  %v9675 = vsel %vm3592, %v9530, 0
  %v9678 = vsel %vm3592, %v9531, 0
  %v9681 = vsel %vm3592, %v9532, 0
  %v9684 = vsel %vm3592, %v9533, 0
  %v9687 = vsel %vm3592, %v9534, 0
  %v9690 = vsel %vm3592, %v9535, 0
  %v9693 = vsel %vm3592, %v9536, 0
  %v9696 = vsel %vm3592, %v9537, 0
  %v9699 = vsel %vm3592, %v9538, 0
  %v9702 = vsel %vm3592, %v9539, 0
  %v9705 = vsel %vm3592, %v9540, 0
  %v9708 = vsel %vm3592, %v9541, 0
  %v9711 = vsel %vm3592, %v9542, 0
  %v9714 = vsel %vm3592, %v9543, 0
  %v9717 = vsel %vm3592, %v9544, 0
  %v9720 = vsel %vm3592, %v9545, 0
  %v9723 = vsel %vm3592, %v9546, 0
  %v9726 = vsel %vm3592, %v9547, 0
  %v9729 = vsel %vm3592, %v9548, 0
  %v9732 = vsel %vm3592, %v9549, 0
  %v9735 = vsel %vm3592, %v9550, 0
  %v9738 = vsel %vm3592, %v9551, 0
  %v9741 = vsel %vm3592, %v9552, 0
  %v9744 = vsel %vm3592, %v9553, 0
  %v9747 = vsel %vm3592, %v9554, 0
  %v9750 = vsel %vm3592, %v9555, 0
  %v9753 = vsel %vm3592, %v9556, 0
  %v9756 = vsel %vm3592, %v9557, 0
  %v9759 = vsel %vm3592, %v9558, 0
  %v9762 = vsel %vm3592, %v9559, 0
  %v9765 = vsel %vm3592, %v9560, 0
  %v9768 = vsel %vm3592, %v9561, 0
  %v9771 = vsel %vm3592, %v9562, 0
  %v9774 = vsel %vm3592, %v9563, 0
  %v9777 = vsel %vm3592, %v9564, 0
  %v9780 = vsel %vm3592, %v9565, 0
  %v9783 = vsel %vm3592, %v9566, 0
  %v9786 = vsel %vm3592, %v9567, 0
  %v9789 = vsel %vm3592, %v9568, 0
  %v9792 = vsel %vm3592, %v9569, 0
  %v9795 = vsel %vm3592, %v9570, 0
  %v9798 = vsel %vm3592, %v9571, 0
  %v9801 = vsel %vm3592, %v9572, 0
  %v9804 = vsel %vm3592, %v9573, 0
  %9806 = vmatprep.subr.mxu0 0.0
  %9807 = vmatpush1.xpose.msra.mxu0 %v9615
  %9808 = vmatprep.subr.mxu0 0.0
  %9809 = vmatpush1.xpose.msra.mxu0 %v9618
  %9810 = vmatprep.subr.mxu0 0.0
  %9811 = vmatpush1.xpose.msra.mxu0 %v9621
  %9812 = vmatprep.subr.mxu0 0.0
  %9813 = vmatpush1.xpose.msra.mxu0 %v9624
  %9814 = vmatprep.subr.mxu0 0.0
  %9815 = vmatpush1.xpose.msra.mxu0 %v9627
  %9816 = vmatprep.subr.mxu0 0.0
  %9817 = vmatpush1.xpose.msra.mxu0 %v9630
  %9818 = vmatprep.subr.mxu0 0.0
  %9819 = vmatpush1.xpose.msra.mxu0 %v9633
  %9820 = vmatprep.subr.mxu0 0.0
  %9821 = vmatpush1.xpose.msra.mxu0 %v9636
  %9822 = vmatprep.subr.mxu0 0.0
  %9823 = vmatpush1.xpose.msra.mxu0 %v9639
  %9824 = vmatprep.subr.mxu0 0.0
  %9825 = vmatpush1.xpose.msra.mxu0 %v9642
  %9826 = vmatprep.subr.mxu0 0.0
  %9827 = vmatpush1.xpose.msra.mxu0 %v9645
  %9828 = vmatprep.subr.mxu0 0.0
  %9829 = vmatpush1.xpose.msra.mxu0 %v9648
  %9830 = vmatprep.subr.mxu0 0.0
  %9831 = vmatpush1.xpose.msra.mxu0 %v9651
  %9832 = vmatprep.subr.mxu0 0.0
  %9833 = vmatpush1.xpose.msra.mxu0 %v9654
  %9834 = vmatprep.subr.mxu0 0.0
  %9835 = vmatpush1.xpose.msra.mxu0 %v9657
  %9836 = vmatprep.subr.mxu0 0.0
  %9837 = vmatpush1.xpose.msra.mxu0 %v9660
  %9838 = vmatprep.subr.mxu0 0.0
  %9839 = vmatpush1.xpose.msra.mxu0 %v9663
  %9840 = vmatprep.subr.mxu0 0.0
  %9841 = vmatpush1.xpose.msra.mxu0 %v9666
  %9842 = vmatprep.subr.mxu0 0.0
  %9843 = vmatpush1.xpose.msra.mxu0 %v9669
  %9844 = vmatprep.subr.mxu0 0.0
  %9845 = vmatpush1.xpose.msra.mxu0 %v9672
  %9846 = vmatprep.subr.mxu0 0.0
  %9847 = vmatpush1.xpose.msra.mxu0 %v9675
  %9848 = vmatprep.subr.mxu0 0.0
  %9849 = vmatpush1.xpose.msra.mxu0 %v9678
  %9850 = vmatprep.subr.mxu0 0.0
  %9851 = vmatpush1.xpose.msra.mxu0 %v9681
  %9852 = vmatprep.subr.mxu0 0.0
  %9853 = vmatpush1.xpose.msra.mxu0 %v9684
  %9854 = vmatprep.subr.mxu0 0.0
  %9855 = vmatpush1.xpose.msra.mxu0 %v9687
  %9856 = vmatprep.subr.mxu0 0.0
  %9857 = vmatpush1.xpose.msra.mxu0 %v9690
  %9858 = vmatprep.subr.mxu0 0.0
  %9859 = vmatpush1.xpose.msra.mxu0 %v9693
  %9860 = vmatprep.subr.mxu0 0.0
  %9861 = vmatpush1.xpose.msra.mxu0 %v9696
  %9862 = vmatprep.subr.mxu0 0.0
  %9863 = vmatpush1.xpose.msra.mxu0 %v9699
  %9864 = vmatprep.subr.mxu0 0.0
  %9865 = vmatpush1.xpose.msra.mxu0 %v9702
  %9866 = vmatprep.subr.mxu0 0.0
  %9867 = vmatpush1.xpose.msra.mxu0 %v9705
  %9868 = vmatprep.subr.mxu0 0.0
  %9869 = vmatpush1.xpose.msra.mxu0 %v9708
  %9870 = vmatprep.mubr.f32.mxu0 0.0
  %9871 = vmatmul.mubr.f32.gmra.mrb[0].mxu0 %v9603
  %v9872 = vpop.f32.mrb[0].mxu0
  %v9873 = vadd.f32 %v9585, %v9872
  %v9874 = vpop.f32.mrb[0].mxu0
  %v9875 = vadd.f32 %v9585, %v9874
  %9876 = vmatprep.mubr.f32.mxu0 0.0
  %9877 = vmatmul.mubr.f32.gmra.mrb[0].mxu0 %v9606
  %v9878 = vpop.f32.mrb[0].mxu0
  %v9879 = vadd.f32 %v9590, %v9878
  %v9880 = vpop.f32.mrb[0].mxu0
  %v9881 = vadd.f32 %v9590, %v9880
  %9882 = vmatprep.mubr.f32.mxu0 0.0
  %9883 = vmatmul.mubr.f32.gmra.mrb[0].mxu0 %v9609
  %v9884 = vpop.f32.mrb[0].mxu0
  %v9885 = vadd.f32 %v9595, %v9884
  %v9886 = vpop.f32.mrb[0].mxu0
  %v9887 = vadd.f32 %v9595, %v9886
  %9888 = vmatprep.mubr.f32.mxu0 0.0
  %9889 = vmatmul.mubr.f32.gmra.mrb[0].mxu0 %v9612
  %v9890 = vpop.f32.mrb[0].mxu0
  %v9891 = vadd.f32 %v9600, %v9890
  %v9892 = vpop.f32.mrb[0].mxu0
  %v9893 = vadd.f32 %v9600, %v9892
  %9894 = vdwg.mxu0
  %9895 = vmatprep.subr.mxu0 0.0
  %9896 = vmatpush1.xpose.msra.mxu0 %v9711
  %9897 = vmatprep.subr.mxu0 0.0
  %9898 = vmatpush1.xpose.msra.mxu0 %v9714
  %9899 = vmatprep.subr.mxu0 0.0
  %9900 = vmatpush1.xpose.msra.mxu0 %v9717
  %9901 = vmatprep.subr.mxu0 0.0
  %9902 = vmatpush1.xpose.msra.mxu0 %v9720
  %9903 = vmatprep.subr.mxu0 0.0
  %9904 = vmatpush1.xpose.msra.mxu0 %v9723
  %9905 = vmatprep.subr.mxu0 0.0
  %9906 = vmatpush1.xpose.msra.mxu0 %v9726
  %9907 = vmatprep.subr.mxu0 0.0
  %9908 = vmatpush1.xpose.msra.mxu0 %v9729
  %9909 = vmatprep.subr.mxu0 0.0
  %9910 = vmatpush1.xpose.msra.mxu0 %v9732
  %9911 = vmatprep.subr.mxu0 0.0
  %9912 = vmatpush1.xpose.msra.mxu0 %v9735
  %9913 = vmatprep.subr.mxu0 0.0
  %9914 = vmatpush1.xpose.msra.mxu0 %v9738
  %9915 = vmatprep.subr.mxu0 0.0
  %9916 = vmatpush1.xpose.msra.mxu0 %v9741
  %9917 = vmatprep.subr.mxu0 0.0
  %9918 = vmatpush1.xpose.msra.mxu0 %v9744
  %9919 = vmatprep.subr.mxu0 0.0
  %9920 = vmatpush1.xpose.msra.mxu0 %v9747
  %9921 = vmatprep.subr.mxu0 0.0
  %9922 = vmatpush1.xpose.msra.mxu0 %v9750
  %9923 = vmatprep.subr.mxu0 0.0
  %9924 = vmatpush1.xpose.msra.mxu0 %v9753
  %9925 = vmatprep.subr.mxu0 0.0
  %9926 = vmatpush1.xpose.msra.mxu0 %v9756
  %9927 = vmatprep.subr.mxu0 0.0
  %9928 = vmatpush1.xpose.msra.mxu0 %v9759
  %9929 = vmatprep.subr.mxu0 0.0
  %9930 = vmatpush1.xpose.msra.mxu0 %v9762
  %9931 = vmatprep.subr.mxu0 0.0
  %9932 = vmatpush1.xpose.msra.mxu0 %v9765
  %9933 = vmatprep.subr.mxu0 0.0
  %9934 = vmatpush1.xpose.msra.mxu0 %v9768
  %9935 = vmatprep.subr.mxu0 0.0
  %9936 = vmatpush1.xpose.msra.mxu0 %v9771
  %9937 = vmatprep.subr.mxu0 0.0
  %9938 = vmatpush1.xpose.msra.mxu0 %v9774
  %9939 = vmatprep.subr.mxu0 0.0
  %9940 = vmatpush1.xpose.msra.mxu0 %v9777
  %9941 = vmatprep.subr.mxu0 0.0
  %9942 = vmatpush1.xpose.msra.mxu0 %v9780
  %9943 = vmatprep.subr.mxu0 0.0
  %9944 = vmatpush1.xpose.msra.mxu0 %v9783
  %9945 = vmatprep.subr.mxu0 0.0
  %9946 = vmatpush1.xpose.msra.mxu0 %v9786
  %9947 = vmatprep.subr.mxu0 0.0
  %9948 = vmatpush1.xpose.msra.mxu0 %v9789
  %9949 = vmatprep.subr.mxu0 0.0
  %9950 = vmatpush1.xpose.msra.mxu0 %v9792
  %9951 = vmatprep.subr.mxu0 0.0
  %9952 = vmatpush1.xpose.msra.mxu0 %v9795
  %9953 = vmatprep.subr.mxu0 0.0
  %9954 = vmatpush1.xpose.msra.mxu0 %v9798
  %9955 = vmatprep.subr.mxu0 0.0
  %9956 = vmatpush1.xpose.msra.mxu0 %v9801
  %9957 = vmatprep.subr.mxu0 0.0
  %9958 = vmatpush1.xpose.msra.mxu0 %v9804
  %9959 = vmatprep.mubr.f32.mxu0 0.0
  %9960 = vmatmul.mubr.f32.gmra.mrb[0].mxu0 %v9603
  %v9961 = vpop.f32.mrb[0].mxu0
  %v9962 = vadd.f32 %v9585, %v9961
  %v9963 = vpop.f32.mrb[0].mxu0
  %v9964 = vadd.f32 %v9585, %v9963
  %9965 = vmatprep.mubr.f32.mxu0 0.0
  %9966 = vmatmul.mubr.f32.gmra.mrb[0].mxu0 %v9606
  %v9967 = vpop.f32.mrb[0].mxu0
  %v9968 = vadd.f32 %v9590, %v9967
  %v9969 = vpop.f32.mrb[0].mxu0
  %v9970 = vadd.f32 %v9590, %v9969
  %9971 = vmatprep.mubr.f32.mxu0 0.0
  %9972 = vmatmul.mubr.f32.gmra.mrb[0].mxu0 %v9609
  %v9973 = vpop.f32.mrb[0].mxu0
  %v9974 = vadd.f32 %v9595, %v9973
  %v9975 = vpop.f32.mrb[0].mxu0
  %v9976 = vadd.f32 %v9595, %v9975
  %9977 = vmatprep.mubr.f32.mxu0 0.0
  %9978 = vmatmul.mubr.f32.gmra.mrb[0].mxu0 %v9612
  %v9979 = vpop.f32.mrb[0].mxu0
  %v9980 = vadd.f32 %v9600, %v9979
  %v9981 = vpop.f32.mrb[0].mxu0
  %v9982 = vadd.f32 %v9600, %v9981
  %9983 = vdwg.mxu0
  %v9984 = vadd.f32 %v9873, %v9875
  %v9985 = vadd.f32 %v9984, %v9962
  %v9986 = vadd.f32 %v9985, %v9964
  %9987 = vadd.xlane.f32.xlu0 %v9986
  %v9988 = vpop.xlane.xlu0 %9987
  %v9989 = vadd.f32 %v9879, %v9881
  %v9990 = vadd.f32 %v9989, %v9968
  %v9991 = vadd.f32 %v9990, %v9970
  %9992 = vadd.xlane.f32.xlu0 %v9991
  %v9993 = vpop.xlane.xlu0 %9992
  %v9994 = vadd.f32 %v9885, %v9887
  %v9995 = vadd.f32 %v9994, %v9974
  %v9996 = vadd.f32 %v9995, %v9976
  %9997 = vadd.xlane.f32.xlu0 %v9996
  %v9998 = vpop.xlane.xlu0 %9997
  %v9999 = vadd.f32 %v9891, %v9893
  %v10000 = vadd.f32 %v9999, %v9980
  %v10001 = vadd.f32 %v10000, %v9982
  %10002 = vadd.xlane.f32.xlu0 %v10001
  %v10003 = vpop.xlane.xlu0 %10002
  %v10004 = vmul.f32 %v9873, %v9873
  %v10005 = vmul.f32 %v9875, %v9875
  %v10006 = vmul.f32 %v9962, %v9962
  %v10007 = vmul.f32 %v9964, %v9964
  %v10008 = vmul.f32 %v9879, %v9879
  %v10009 = vmul.f32 %v9881, %v9881
  %v10010 = vmul.f32 %v9968, %v9968
  %v10011 = vmul.f32 %v9970, %v9970
  %v10012 = vmul.f32 %v9885, %v9885
  %v10013 = vmul.f32 %v9887, %v9887
  %v10014 = vmul.f32 %v9974, %v9974
  %v10015 = vmul.f32 %v9976, %v9976
  %v10016 = vmul.f32 %v9891, %v9891
  %v10017 = vmul.f32 %v9893, %v9893
  %v10018 = vmul.f32 %v9980, %v9980
  %v10019 = vmul.f32 %v9982, %v9982
  %v10020 = vadd.f32 %v10004, %v10005
  %v10021 = vadd.f32 %v10020, %v10006
  %v10022 = vadd.f32 %v10021, %v10007
  %10023 = vadd.xlane.f32.xlu0 %v10022
  %v10024 = vpop.xlane.xlu0 %10023
  %v10025 = vadd.f32 %v10008, %v10009
  %v10026 = vadd.f32 %v10025, %v10010
  %v10027 = vadd.f32 %v10026, %v10011
  %10028 = vadd.xlane.f32.xlu0 %v10027
  %v10029 = vpop.xlane.xlu0 %10028
  %v10030 = vadd.f32 %v10012, %v10013
  %v10031 = vadd.f32 %v10030, %v10014
  %v10032 = vadd.f32 %v10031, %v10015
  %10033 = vadd.xlane.f32.xlu0 %v10032
  %v10034 = vpop.xlane.xlu0 %10033
  %v10035 = vadd.f32 %v10016, %v10017
  %v10036 = vadd.f32 %v10035, %v10018
  %v10037 = vadd.f32 %v10036, %v10019
  %10038 = vadd.xlane.f32.xlu0 %v10037
  %v10039 = vpop.xlane.xlu0 %10038
  %v10040 = vmul.f32 %v9988, 0.001953125
  %v10041 = vmul.f32 %v9993, 0.001953125
  %v10042 = vmul.f32 %v9998, 0.001953125
  %v10043 = vmul.f32 %v10003, 0.001953125
  %v10044 = vmul.f32 %v10024, 0.001953125
  %v10045 = vmul.f32 %v10029, 0.001953125
  %v10046 = vmul.f32 %v10034, 0.001953125
  %v10047 = vmul.f32 %v10039, 0.001953125
  %v10048 = vmul.f32 %v10040, %v10040
  %v10049 = vmul.f32 %v10041, %v10041
  %v10050 = vmul.f32 %v10042, %v10042
  %v10051 = vmul.f32 %v10043, %v10043
  %v10052 = vsub.f32 %v10044, %v10048
  %v10053 = vsub.f32 %v10045, %v10049
  %v10054 = vsub.f32 %v10046, %v10050
  %v10055 = vsub.f32 %v10047, %v10051
  %v10056 = vld [vmem:[%s15] sm:$0xff]
  %v10057 = vld [vmem:[%s15 + $0x8] sm:$0xff]
  %v10058 = vld [vmem:[%s15 + $0x10] sm:$0xff]
  %v10059 = vld [vmem:[%s15 + $0x18] sm:$0xff]
  %v10060 = vadd.f32 %v10052, 1e-05
  %v10061 = vadd.f32 %v10053, 1e-05
  %v10062 = vadd.f32 %v10054, 1e-05
  %v10063 = vadd.f32 %v10055, 1e-05
  %v10064 = vrsqrt.pop %v10060
  %v10065 = vrsqrt.pop %v10061
  %v10066 = vrsqrt.pop %v10062
  %v10067 = vrsqrt.pop %v10063
  %v10068 = vmul.f32 %v10056, %v10064
  %v10069 = vmul.f32 %v10057, %v10065
  %v10070 = vmul.f32 %v10058, %v10066
  %v10071 = vmul.f32 %v10059, %v10067
  %v10072 = vld [vmem:[%s16] sm:$0xff]
  %v10073 = vld [vmem:[%s16 + $0x8] sm:$0xff]
  %v10074 = vld [vmem:[%s16 + $0x10] sm:$0xff]
  %v10075 = vld [vmem:[%s16 + $0x18] sm:$0xff]
  %v10076 = vmul.f32 %v10040, %v10068
  %v10077 = vmul.f32 %v10041, %v10069
  %v10078 = vmul.f32 %v10042, %v10070
  %v10079 = vmul.f32 %v10043, %v10071
  %v10080 = vsub.f32 %v10072, %v10076
  %v10081 = vsub.f32 %v10073, %v10077
  %v10082 = vsub.f32 %v10074, %v10078
  %v10083 = vsub.f32 %v10075, %v10079
  %10085 = vset.pattern.permute.xlu0 0
  %10086 = vperm.xlu0 %10085, %v10068
  %v10087 = vpop.permute.xlu0 %10086
  %10090 = vset.pattern.permute.xlu0 0
  %10091 = vperm.xlu0 %10090, %v10069
  %v10092 = vpop.permute.xlu0 %10091
  %10095 = vset.pattern.permute.xlu0 0
  %10096 = vperm.xlu0 %10095, %v10070
  %v10097 = vpop.permute.xlu0 %10096
  %10100 = vset.pattern.permute.xlu0 0
  %10101 = vperm.xlu0 %10100, %v10071
  %v10102 = vpop.permute.xlu0 %10101
  %v10104 = vmul.f32 %v9873, %v10087
  %v10105 = vmul.f32 %v9875, %v10087
  %v10106 = vmul.f32 %v9962, %v10087
  %v10107 = vmul.f32 %v9964, %v10087
  %v10108 = vmul.f32 %v9879, %v10092
  %v10109 = vmul.f32 %v9881, %v10092
  %v10110 = vmul.f32 %v9968, %v10092
  %v10111 = vmul.f32 %v9970, %v10092
  %v10112 = vmul.f32 %v9885, %v10097
  %v10113 = vmul.f32 %v9887, %v10097
  %v10114 = vmul.f32 %v9974, %v10097
  %v10115 = vmul.f32 %v9976, %v10097
  %v10116 = vmul.f32 %v9891, %v10102
  %v10117 = vmul.f32 %v9893, %v10102
  %v10118 = vmul.f32 %v9980, %v10102
  %v10119 = vmul.f32 %v9982, %v10102
  %10121 = vset.pattern.permute.xlu0 0
  %10122 = vperm.xlu0 %10121, %v10080
  %v10123 = vpop.permute.xlu0 %10122
  %10126 = vset.pattern.permute.xlu0 0
  %10127 = vperm.xlu0 %10126, %v10081
  %v10128 = vpop.permute.xlu0 %10127
  %10131 = vset.pattern.permute.xlu0 0
  %10132 = vperm.xlu0 %10131, %v10082
  %v10133 = vpop.permute.xlu0 %10132
  %10136 = vset.pattern.permute.xlu0 0
  %10137 = vperm.xlu0 %10136, %v10083
  %v10138 = vpop.permute.xlu0 %10137
  %v10140 = vadd.f32 %v10104, %v10123
  %v10141 = vadd.f32 %v10105, %v10123
  %v10142 = vadd.f32 %v10106, %v10123
  %v10143 = vadd.f32 %v10107, %v10123
  %v10144 = vadd.f32 %v10108, %v10128
  %v10145 = vadd.f32 %v10109, %v10128
  %v10146 = vadd.f32 %v10110, %v10128
  %v10147 = vadd.f32 %v10111, %v10128
  %v10148 = vadd.f32 %v10112, %v10133
  %v10149 = vadd.f32 %v10113, %v10133
  %v10150 = vadd.f32 %v10114, %v10133
  %v10151 = vadd.f32 %v10115, %v10133
  %v10152 = vadd.f32 %v10116, %v10138
  %v10153 = vadd.f32 %v10117, %v10138
  %v10154 = vadd.f32 %v10118, %v10138
  %v10155 = vadd.f32 %v10119, %v10138
  %v10156 = vmax.f32 %v10140, 0.0
  %v10157 = vmax.f32 %v10141, 0.0
  %v10158 = vmax.f32 %v10142, 0.0
  %v10159 = vmax.f32 %v10143, 0.0
  %v10160 = vmax.f32 %v10144, 0.0
  %v10161 = vmax.f32 %v10145, 0.0
  %v10162 = vmax.f32 %v10146, 0.0
  %v10163 = vmax.f32 %v10147, 0.0
  %v10164 = vmax.f32 %v10148, 0.0
  %v10165 = vmax.f32 %v10149, 0.0
  %v10166 = vmax.f32 %v10150, 0.0
  %v10167 = vmax.f32 %v10151, 0.0
  %v10168 = vmax.f32 %v10152, 0.0
  %v10169 = vmax.f32 %v10153, 0.0
  %v10170 = vmax.f32 %v10154, 0.0
  %v10171 = vmax.f32 %v10155, 0.0
  %v10172 = vld [vmem:[%s17] sm:$0x3]
  %v10173 = vld [vmem:[%s18] sm:$0x3]
  %10175 = vset.pattern.permute.xlu0 0
  %10176 = vperm.xlu0 %10175, %v10173
  %v10177 = vpop.permute.xlu0 %10176
  %v10180 = vsel %vm62, %v10172, 0
  %10182 = vmatprep.subr.mxu0 %v10157
  %10183 = vmatpush1.msra.mxu0 %v10156
  %10184 = vmatprep.subr.mxu0 %v10161
  %10185 = vmatpush1.msra.mxu0 %v10160
  %10186 = vmatprep.subr.mxu0 %v10165
  %10187 = vmatpush1.msra.mxu0 %v10164
  %10188 = vmatprep.subr.mxu0 %v10169
  %10189 = vmatpush1.msra.mxu0 %v10168
  %10190 = vmatprep.subr.mxu0 0.0
  %10191 = vmatpush1.msra.mxu0 0.0
  %10192 = vmatprep.subr.mxu0 0.0
  %10193 = vmatpush1.msra.mxu0 0.0
  %10194 = vmatprep.subr.mxu0 0.0
  %10195 = vmatpush1.msra.mxu0 0.0
  %10196 = vmatprep.subr.mxu0 0.0
  %10197 = vmatpush1.msra.mxu0 0.0
  %10198 = vmatprep.subr.mxu0 0.0
  %10199 = vmatpush1.msra.mxu0 0.0
  %10200 = vmatprep.subr.mxu0 0.0
  %10201 = vmatpush1.msra.mxu0 0.0
  %10202 = vmatprep.subr.mxu0 0.0
  %10203 = vmatpush1.msra.mxu0 0.0
  %10204 = vmatprep.subr.mxu0 0.0
  %10205 = vmatpush1.msra.mxu0 0.0
  %10206 = vmatprep.subr.mxu0 0.0
  %10207 = vmatpush1.msra.mxu0 0.0
  %10208 = vmatprep.subr.mxu0 0.0
  %10209 = vmatpush1.msra.mxu0 0.0
  %10210 = vmatprep.subr.mxu0 0.0
  %10211 = vmatpush1.msra.mxu0 0.0
  %10212 = vmatprep.subr.mxu0 0.0
  %10213 = vmatpush1.msra.mxu0 0.0
  %10214 = vmatprep.subr.mxu0 0.0
  %10215 = vmatpush1.msra.mxu0 0.0
  %10216 = vmatprep.subr.mxu0 0.0
  %10217 = vmatpush1.msra.mxu0 0.0
  %10218 = vmatprep.subr.mxu0 0.0
  %10219 = vmatpush1.msra.mxu0 0.0
  %10220 = vmatprep.subr.mxu0 0.0
  %10221 = vmatpush1.msra.mxu0 0.0
  %10222 = vmatprep.subr.mxu0 0.0
  %10223 = vmatpush1.msra.mxu0 0.0
  %10224 = vmatprep.subr.mxu0 0.0
  %10225 = vmatpush1.msra.mxu0 0.0
  %10226 = vmatprep.subr.mxu0 0.0
  %10227 = vmatpush1.msra.mxu0 0.0
  %10228 = vmatprep.subr.mxu0 0.0
  %10229 = vmatpush1.msra.mxu0 0.0
  %10230 = vmatprep.subr.mxu0 0.0
  %10231 = vmatpush1.msra.mxu0 0.0
  %10232 = vmatprep.subr.mxu0 0.0
  %10233 = vmatpush1.msra.mxu0 0.0
  %10234 = vmatprep.subr.mxu0 0.0
  %10235 = vmatpush1.msra.mxu0 0.0
  %10236 = vmatprep.subr.mxu0 0.0
  %10237 = vmatpush1.msra.mxu0 0.0
  %10238 = vmatprep.subr.mxu0 0.0
  %10239 = vmatpush1.msra.mxu0 0.0
  %10240 = vmatprep.subr.mxu0 0.0
  %10241 = vmatpush1.msra.mxu0 0.0
  %10242 = vmatprep.subr.mxu0 0.0
  %10243 = vmatpush1.msra.mxu0 0.0
  %10244 = vmatprep.subr.mxu0 0.0
  %10245 = vmatpush1.msra.mxu0 0.0
  %10246 = vmatprep.mubr.f32.mxu0 0.0
  %10247 = vmatmul.mubr.f32.gmra.mrb[0].mxu0 %v10180
  %v10248 = vpop.f32.mrb[0].mxu0
  %v10249 = vadd.f32 %v10177, %v10248
  %v10250 = vpop.f32.mrb[0].mxu0
  %v10251 = vadd.f32 %v10177, %v10250
  %10252 = vdwg.mxu0
  %10253 = vmatprep.subr.mxu0 %v10159
  %10254 = vmatpush1.msra.mxu0 %v10158
  %10255 = vmatprep.subr.mxu0 %v10163
  %10256 = vmatpush1.msra.mxu0 %v10162
  %10257 = vmatprep.subr.mxu0 %v10167
  %10258 = vmatpush1.msra.mxu0 %v10166
  %10259 = vmatprep.subr.mxu0 %v10171
  %10260 = vmatpush1.msra.mxu0 %v10170
  %10261 = vmatprep.subr.mxu0 0.0
  %10262 = vmatpush1.msra.mxu0 0.0
  %10263 = vmatprep.subr.mxu0 0.0
  %10264 = vmatpush1.msra.mxu0 0.0
  %10265 = vmatprep.subr.mxu0 0.0
  %10266 = vmatpush1.msra.mxu0 0.0
  %10267 = vmatprep.subr.mxu0 0.0
  %10268 = vmatpush1.msra.mxu0 0.0
  %10269 = vmatprep.subr.mxu0 0.0
  %10270 = vmatpush1.msra.mxu0 0.0
  %10271 = vmatprep.subr.mxu0 0.0
  %10272 = vmatpush1.msra.mxu0 0.0
  %10273 = vmatprep.subr.mxu0 0.0
  %10274 = vmatpush1.msra.mxu0 0.0
  %10275 = vmatprep.subr.mxu0 0.0
  %10276 = vmatpush1.msra.mxu0 0.0
  %10277 = vmatprep.subr.mxu0 0.0
  %10278 = vmatpush1.msra.mxu0 0.0
  %10279 = vmatprep.subr.mxu0 0.0
  %10280 = vmatpush1.msra.mxu0 0.0
  %10281 = vmatprep.subr.mxu0 0.0
  %10282 = vmatpush1.msra.mxu0 0.0
  %10283 = vmatprep.subr.mxu0 0.0
  %10284 = vmatpush1.msra.mxu0 0.0
  %10285 = vmatprep.subr.mxu0 0.0
  %10286 = vmatpush1.msra.mxu0 0.0
  %10287 = vmatprep.subr.mxu0 0.0
  %10288 = vmatpush1.msra.mxu0 0.0
  %10289 = vmatprep.subr.mxu0 0.0
  %10290 = vmatpush1.msra.mxu0 0.0
  %10291 = vmatprep.subr.mxu0 0.0
  %10292 = vmatpush1.msra.mxu0 0.0
  %10293 = vmatprep.subr.mxu0 0.0
  %10294 = vmatpush1.msra.mxu0 0.0
  %10295 = vmatprep.subr.mxu0 0.0
  %10296 = vmatpush1.msra.mxu0 0.0
  %10297 = vmatprep.subr.mxu0 0.0
  %10298 = vmatpush1.msra.mxu0 0.0
  %10299 = vmatprep.subr.mxu0 0.0
  %10300 = vmatpush1.msra.mxu0 0.0
  %10301 = vmatprep.subr.mxu0 0.0
  %10302 = vmatpush1.msra.mxu0 0.0
  %10303 = vmatprep.subr.mxu0 0.0
  %10304 = vmatpush1.msra.mxu0 0.0
  %10305 = vmatprep.subr.mxu0 0.0
  %10306 = vmatpush1.msra.mxu0 0.0
  %10307 = vmatprep.subr.mxu0 0.0
  %10308 = vmatpush1.msra.mxu0 0.0
  %10309 = vmatprep.subr.mxu0 0.0
  %10310 = vmatpush1.msra.mxu0 0.0
  %10311 = vmatprep.subr.mxu0 0.0
  %10312 = vmatpush1.msra.mxu0 0.0
  %10313 = vmatprep.subr.mxu0 0.0
  %10314 = vmatpush1.msra.mxu0 0.0
  %10315 = vmatprep.subr.mxu0 0.0
  %10316 = vmatpush1.msra.mxu0 0.0
  %10317 = vmatprep.mubr.f32.mxu0 0.0
  %10318 = vmatmul.mubr.f32.gmra.mrb[0].mxu0 %v10180
  %v10319 = vpop.f32.mrb[0].mxu0
  %v10320 = vadd.f32 %v10177, %v10319
  %v10321 = vpop.f32.mrb[0].mxu0
  %v10322 = vadd.f32 %v10177, %v10321
  %10323 = vdwg.mxu0
  %v10328 = vcombine.low %v10249, %v10251
  %v10329 = vcombine.low %v10320, %v10322
  %v10331 = vunpack.c.l.s4 1983009808
  %v10332 = vunpack.c.0.s8 %v10331
  %v10333 = vlaneseq
  %v10334 = vshrl.u32 %v10333, 7
  %v10335 = vsub.s32 %v10332, %v10334
  %v10336 = vrot.slane %v10328, %v10335
  %v10338 = vunpack.c.l.s4 1983009808
  %v10339 = vunpack.c.0.s8 %v10338
  %v10340 = vlaneseq
  %v10341 = vshrl.u32 %v10340, 7
  %v10342 = vsub.s32 %v10339, %v10341
  %v10343 = vrot.slane %v10329, %v10342
  %v10344 = vcombine.low %v10336, %v10343
  %10346 = vst [vmem:[%s19] sm:$0xff] %v10344
  // Predicated region
  $region78: #{fcn_net1_forward.1} parent=0 // pred_check
    _
  $region79: #{fcn_net1_forward.1} parent=0 // pred_check_branch
    %10348 = sbr.rel (0) target = $region81
  $region80: #{fcn_net1_forward.1} parent=0 // pred_region
    _
  $region81: #{fcn_net1_forward.1} parent=0 // pred_fallthru
    _
  // Predicated region
  $region82: #{fcn_net1_forward.1} parent=0 // pred_check
    _
  $region83: #{fcn_net1_forward.1} parent=0 // pred_check_branch
    %10350 = sbr.rel (0) target = $region85
  $region84: #{fcn_net1_forward.1} parent=0 // pred_region
    _
  $region85: #{fcn_net1_forward.1} parent=0 // pred_fallthru
    _

</llo_original>
